<compile_context>
chip_gen: v7x
topology: tpu7x:2x2x1
jax: 0.10.0
libtpu: 0.0.40
codegen_flags: <defaults>
</compile_context>

<pallas_src>
import jax
import jax.numpy as jnp
import numpy as np
from jax import lax
from jax.experimental import pallas as pl
from jax.experimental.pallas import tpu as pltpu

LANE = 128  # TPU lane width; channel dim is padded to a multiple of this.


def _ceil_to(x, m):
    return ((x + m - 1) // m) * m


# ----------------------------- Pallas kernels ------------------------------ #

def _make_conv3x3_kernel(H, W, Cp, apply_relu):
    """Fused: per-channel input affine -> zero-pad -> 3x3 conv -> (ReLU) -> BN stats."""
    HW = H * W

    def kernel(x_ref, sc_ref, sh_ref, w_ref, y_ref, s_ref, ss_ref, pad_ref):
        # x_ref  : (1, H, W, Cp) f32   activation tile (one image)
        # sc_ref : (1, Cp)       f32   per-channel scale applied to the *input*
        # sh_ref : (1, Cp)       f32   per-channel shift applied to the *input*
        # w_ref  : (9, Cp, Cp)   bf16  conv weights, tap-major (kh*3+kw, Cin, Cout)
        # y_ref  : (1, H, W, Cp) f32   conv (+ReLU) output
        # s_ref  : (1, 1, Cp)    f32   per-image channel sum of the output
        # ss_ref : (1, 1, Cp)    f32   per-image channel sum-of-squares of the output
        # pad_ref: (H+2, W+2, Cp) f32  VMEM scratch (zero border = SAME padding)
        sc = sc_ref[0]                                   # (Cp,)
        sh = sh_ref[0]                                   # (Cp,)

        # Zero-padded tile with the input affine fused into its construction.
        # (For conv1 the affine is identity; for conv2 it is the folded bn1.)
        pad_ref[...] = jnp.zeros_like(pad_ref)
        pad_ref[1:H + 1, 1:W + 1, :] = x_ref[0] * sc + sh

        # 3x3 conv as 9 shifted-window matmuls on the MXU (bf16 in, f32 acc).
        acc = jnp.zeros((HW, Cp), jnp.float32)
        for k in range(9):
            kh, kw = k // 3, k % 3
            win = pad_ref[kh:kh + H, kw:kw + W, :].reshape(HW, Cp)
            acc = acc + jnp.dot(win.astype(jnp.bfloat16), w_ref[k],
                                preferred_element_type=jnp.float32)
        if apply_relu:
            acc = jnp.maximum(acc, 0.0)

        y_ref[0] = acc.reshape(H, W, Cp)
        # Per-image partial sums for BatchNorm batch statistics (finished in glue).
        s_ref[...] = jnp.sum(acc, axis=0, keepdims=True).reshape(1, 1, Cp)
        ss_ref[...] = jnp.sum(acc * acc, axis=0, keepdims=True).reshape(1, 1, Cp)

    return kernel


def _bn_add_relu_kernel(y_ref, sc_ref, sh_ref, r_ref, o_ref):
    # Fused bn2 affine + residual add + ReLU (all f32, lane-dense).
    o_ref[0] = jnp.maximum(y_ref[0] * sc_ref[0] + sh_ref[0] + r_ref[0], 0.0)


# ------------------------------ Pallas wrappers ----------------------------- #

def _conv3x3_bn_fused(x, scale, shift, w9, *, relu):
    """x: (N,H,W,Cp) f32; scale/shift: (1,Cp) f32; w9: (9,Cp,Cp) bf16."""
    N, H, W, Cp = x.shape
    kernel = _make_conv3x3_kernel(H, W, Cp, relu)
    return pl.pallas_call(
        kernel,
        grid=(N,),
        in_specs=[
            pl.BlockSpec((1, H, W, Cp), lambda n: (n, 0, 0, 0)),
            pl.BlockSpec((1, Cp), lambda n: (0, 0)),           # grid-invariant
            pl.BlockSpec((1, Cp), lambda n: (0, 0)),           # grid-invariant
            pl.BlockSpec((9, Cp, Cp), lambda n: (0, 0, 0)),    # grid-invariant
        ],
        out_specs=(
            pl.BlockSpec((1, H, W, Cp), lambda n: (n, 0, 0, 0)),
            pl.BlockSpec((1, 1, Cp), lambda n: (n, 0, 0)),
            pl.BlockSpec((1, 1, Cp), lambda n: (n, 0, 0)),
        ),
        out_shape=(
            jax.ShapeDtypeStruct((N, H, W, Cp), jnp.float32),
            jax.ShapeDtypeStruct((N, 1, Cp), jnp.float32),
            jax.ShapeDtypeStruct((N, 1, Cp), jnp.float32),
        ),
        scratch_shapes=[pltpu.VMEM((H + 2, W + 2, Cp), jnp.float32)],
        compiler_params=pltpu.CompilerParams(
            dimension_semantics=("parallel",)),
    )(x, scale, shift, w9)


def _bn_residual_relu(y, scale, shift, residual):
    N, H, W, Cp = y.shape
    return pl.pallas_call(
        _bn_add_relu_kernel,
        grid=(N,),
        in_specs=[
            pl.BlockSpec((1, H, W, Cp), lambda n: (n, 0, 0, 0)),
            pl.BlockSpec((1, Cp), lambda n: (0, 0)),
            pl.BlockSpec((1, Cp), lambda n: (0, 0)),
            pl.BlockSpec((1, H, W, Cp), lambda n: (n, 0, 0, 0)),
        ],
        out_specs=pl.BlockSpec((1, H, W, Cp), lambda n: (n, 0, 0, 0)),
        out_shape=jax.ShapeDtypeStruct((N, H, W, Cp), jnp.float32),
        compiler_params=pltpu.CompilerParams(
            dimension_semantics=("parallel",)),
    )(y, scale, shift, residual)


# --------------------------------- Glue ------------------------------------- #

def _pack_conv_weights(w_oihw, Cp):
    """PyTorch OIHW 3x3 weights -> (9, Cp, Cp) bf16, tap-major, channel-padded."""
    O, I, KH, KW = w_oihw.shape
    w = jnp.transpose(w_oihw, (2, 3, 1, 0)).astype(jnp.float32)   # HWIO
    w = jnp.pad(w, ((0, 0), (0, 0), (0, Cp - I), (0, Cp - O)))
    return w.reshape(KH * KW, Cp, Cp).astype(jnp.bfloat16)


def _pad_bn_params(gamma, beta, Cp):
    C = gamma.shape[0]
    g = jnp.concatenate([gamma.astype(jnp.float32),
                         jnp.ones((Cp - C,), jnp.float32)])
    b = jnp.concatenate([beta.astype(jnp.float32),
                         jnp.zeros((Cp - C,), jnp.float32)])
    return g, b


def _fold_bn(s, ss, count, gamma, beta, eps):
    """Per-image channel sums -> training-mode BN folded to per-channel affine."""
    mean = jnp.sum(s, axis=(0, 1)) / count
    var = jnp.maximum(jnp.sum(ss, axis=(0, 1)) / count - mean * mean, 0.0)
    scale = gamma / jnp.sqrt(var + eps)            # biased batch variance
    shift = beta - mean * scale
    return scale.reshape(1, -1), shift.reshape(1, -1)


def basic_block_forward(x_nchw, params, eps=1e-5):
    """BasicBlock forward (stride=1, downsample=None), NCHW in/out, f32."""
    N, Cin, H, W = x_nchw.shape
    planes = params["conv1_w"].shape[0]
    assert Cin == planes, "stride!=1 / downsample path not implemented"
    # TODO(synk): stride != 1 and downsample is not None are not implemented here.
    Cp = _ceil_to(max(Cin, planes), LANE)

    x = jnp.transpose(x_nchw, (0, 2, 3, 1)).astype(jnp.float32)     # NHWC
    x_p = jnp.pad(x, ((0, 0), (0, 0), (0, 0), (0, Cp - Cin)))        # lane-pad C

    w1 = _pack_conv_weights(params["conv1_w"], Cp)
    w2 = _pack_conv_weights(params["conv2_w"], Cp)
    g1, b1 = _pad_bn_params(params["bn1_g"], params["bn1_b"], Cp)
    g2, b2 = _pad_bn_params(params["bn2_g"], params["bn2_b"], Cp)

    ident_scale = jnp.ones((1, Cp), jnp.float32)
    ident_shift = jnp.zeros((1, Cp), jnp.float32)
    count = N * H * W

    # conv1 + ReLU + bn1 partial stats (one fused kernel).
    y1, s1, ss1 = _conv3x3_bn_fused(x_p, ident_scale, ident_shift, w1, relu=True)
    sc1, sh1 = _fold_bn(s1, ss1, count, g1, b1, eps)

    # bn1 affine folded into conv2's input stage + conv2 + bn2 partial stats.
    y2, s2, ss2 = _conv3x3_bn_fused(y1, sc1, sh1, w2, relu=False)
    sc2, sh2 = _fold_bn(s2, ss2, count, g2, b2, eps)

    # bn2 affine + residual add + ReLU (one fused elementwise kernel).
    out_p = _bn_residual_relu(y2, sc2, sh2, x_p)

    return jnp.transpose(out_p[..., :planes], (0, 3, 1, 2))


# ---------------------------- Pure-JAX references ---------------------------- #

def reference_forward(x_nchw, params, eps=1e-5, matmul_dtype=jnp.float32):
    """XLA reference. matmul_dtype=bf16 mirrors the kernel's MXU precision policy."""
    x = jnp.transpose(x_nchw, (0, 2, 3, 1)).astype(jnp.float32)

    def conv(inp, w_oihw):
        wt = jnp.transpose(w_oihw, (2, 3, 1, 0)).astype(matmul_dtype)   # HWIO
        return lax.conv_general_dilated(
            inp.astype(matmul_dtype), wt, (1, 1), "SAME",
            dimension_numbers=("NHWC", "HWIO", "NHWC"),
            preferred_element_type=jnp.float32)

    def bn(y, g, b):
        mean = y.mean(axis=(0, 1, 2))
        var = y.var(axis=(0, 1, 2))         # biased batch var (training mode)
        return (y - mean) / jnp.sqrt(var + eps) * g + b

    out = conv(x, params["conv1_w"])
    out = jnp.maximum(out, 0.0)                       # ReLU before bn1 (per spec)
    out = bn(out, params["bn1_g"], params["bn1_b"])
    out = conv(out, params["conv2_w"])
    out = bn(out, params["bn2_g"], params["bn2_b"])
    out = jnp.maximum(out + x, 0.0)
    return jnp.transpose(out, (0, 3, 1, 2))


# ----------------------------------- Main ----------------------------------- #

if __name__ == "__main__":
    # Small shapes: N=2, inplanes=planes=8, H=W=16 (stride=1, downsample=None).
    N, C, H, W = 2, 8, 16, 16
    planes = C

    keys = jax.random.split(jax.random.PRNGKey(0), 7)
    params = {
        "conv1_w": 0.1 * jax.random.normal(keys[0], (planes, C, 3, 3), jnp.float32),
        "conv2_w": 0.1 * jax.random.normal(keys[1], (planes, planes, 3, 3), jnp.float32),
        "bn1_g": 1.0 + 0.1 * jax.random.normal(keys[2], (planes,), jnp.float32),
        "bn1_b": 0.1 * jax.random.normal(keys[3], (planes,), jnp.float32),
        "bn2_g": 1.0 + 0.1 * jax.random.normal(keys[4], (planes,), jnp.float32),
        "bn2_b": 0.1 * jax.random.normal(keys[5], (planes,), jnp.float32),
    }
    x = jax.random.normal(keys[6], (N, C, H, W), jnp.float32)

    out = jax.block_until_ready(jax.jit(basic_block_forward)(x, params))
    assert out.shape == (N, planes, H, W), out.shape

    # (a) Reference with the same bf16-matmul-input / f32-accumulate policy as the
    #     kernel: isolates kernel correctness from the intended bf16 quantization.
    ref_policy = jax.block_until_ready(
        reference_forward(x, params, matmul_dtype=jnp.bfloat16))
    np.testing.assert_allclose(np.asarray(out), np.asarray(ref_policy),
                               atol=1e-2, rtol=1e-2)

    # (b) Pure-f32 reference: loose tolerance bounds the bf16 MXU-input error
    #     (~0.4% relative per operand, f32 accumulation).
    ref_f32 = jax.block_until_ready(
        reference_forward(x, params, matmul_dtype=jnp.float32))
    np.testing.assert_allclose(np.asarray(out), np.asarray(ref_f32),
                               atol=5e-2, rtol=5e-2)

    print("KERNEL_OK")
</pallas_src>

<mosaic_0001>
module attributes {stable_mosaic.version = 11 : i64} {
  func.func @kernel(%arg0: i32, %arg1: memref<1x16x16x128xf32, #tpu.memory_space<vmem>>, %arg2: memref<1x128xf32, #tpu.memory_space<vmem>>, %arg3: memref<1x128xf32, #tpu.memory_space<vmem>>, %arg4: memref<9x128x128xbf16, #tpu.memory_space<vmem>>, %arg5: memref<1x16x16x128xf32, #tpu.memory_space<vmem>>, %arg6: memref<1x1x128xf32, #tpu.memory_space<vmem>>, %arg7: memref<1x1x128xf32, #tpu.memory_space<vmem>>, %arg8: memref<18x18x128xf32, #tpu.memory_space<vmem>>) attributes {dimension_semantics = [#tpu.dimension_semantics<parallel>], iteration_bounds = array<i64: 2>, scalar_prefetch = 0 : i64, scratch_operands = 1 : i64, tpu.core_type = #tpu.core_type<tc>, window_params = [{transform_indices = @transform_0, window_bounds = array<i64: 1, 16, 16, 128>}, {pipeline_mode = #tpu.pipeline_mode<synchronous>, transform_indices = @transform_1, window_bounds = array<i64: 1, 128>}, {pipeline_mode = #tpu.pipeline_mode<synchronous>, transform_indices = @transform_2, window_bounds = array<i64: 1, 128>}, {pipeline_mode = #tpu.pipeline_mode<synchronous>, transform_indices = @transform_3, window_bounds = array<i64: 9, 128, 128>}, {transform_indices = @transform_4, window_bounds = array<i64: 1, 16, 16, 128>}, {transform_indices = @transform_5, window_bounds = array<i64: 1, 1, 128>}, {transform_indices = @transform_6, window_bounds = array<i64: 1, 1, 128>}]} {
    %c0 = arith.constant 0 : index
    %c0_0 = arith.constant 0 : index
    %0 = vector.load %arg2[%c0, %c0_0] : memref<1x128xf32, #tpu.memory_space<vmem>>, vector<1x128xf32>
    %1 = vector.shape_cast %0 : vector<1x128xf32> to vector<128xf32>
    %c0_1 = arith.constant 0 : index
    %c0_2 = arith.constant 0 : index
    %2 = vector.load %arg3[%c0_1, %c0_2] : memref<1x128xf32, #tpu.memory_space<vmem>>, vector<1x128xf32>
    %3 = vector.shape_cast %2 : vector<1x128xf32> to vector<128xf32>
    %cst = arith.constant 0.000000e+00 : f32
    %4 = vector.broadcast %cst : f32 to vector<18x18x128xf32>
    %c0_3 = arith.constant 0 : index
    %c0_4 = arith.constant 0 : index
    %c0_5 = arith.constant 0 : index
    %5 = vector.load %arg8[%c0_3, %c0_4, %c0_5] : memref<18x18x128xf32, #tpu.memory_space<vmem>>, vector<18x18x128xf32>
    tpu.vector_store %arg8[%c0_3, %c0_4, %c0_5], %4 {strides = array<i32>} : memref<18x18x128xf32, #tpu.memory_space<vmem>>, vector<18x18x128xf32>,
    %c0_6 = arith.constant 0 : index
    %c0_7 = arith.constant 0 : index
    %c0_8 = arith.constant 0 : index
    %c0_9 = arith.constant 0 : index
    %6 = vector.load %arg1[%c0_6, %c0_7, %c0_8, %c0_9] : memref<1x16x16x128xf32, #tpu.memory_space<vmem>>, vector<1x16x16x128xf32>
    %7 = vector.shape_cast %6 : vector<1x16x16x128xf32> to vector<16x16x128xf32>
    %8 = vector.shape_cast %1 : vector<128xf32> to vector<1x1x128xf32>
    %9 = vector.broadcast %8 : vector<1x1x128xf32> to vector<16x16x128xf32>
    %10 = arith.mulf %7, %9 : vector<16x16x128xf32>
    %11 = vector.shape_cast %3 : vector<128xf32> to vector<1x1x128xf32>
    %12 = vector.broadcast %11 : vector<1x1x128xf32> to vector<16x16x128xf32>
    %13 = arith.addf %10, %12 : vector<16x16x128xf32>
    %c1 = arith.constant 1 : index
    %c1_10 = arith.constant 1 : index
    %c0_11 = arith.constant 0 : index
    %14 = vector.load %arg8[%c1, %c1_10, %c0_11] : memref<18x18x128xf32, #tpu.memory_space<vmem>>, vector<16x16x128xf32>
    tpu.vector_store %arg8[%c1, %c1_10, %c0_11], %13 {strides = array<i32>} : memref<18x18x128xf32, #tpu.memory_space<vmem>>, vector<16x16x128xf32>,
    %cst_12 = arith.constant 0.000000e+00 : f32
    %15 = vector.broadcast %cst_12 : f32 to vector<256x128xf32>
    %c0_13 = arith.constant 0 : index
    %c0_14 = arith.constant 0 : index
    %c0_15 = arith.constant 0 : index
    %16 = vector.load %arg8[%c0_13, %c0_14, %c0_15] : memref<18x18x128xf32, #tpu.memory_space<vmem>>, vector<16x16x128xf32>
    %17 = vector.shape_cast %16 : vector<16x16x128xf32> to vector<256x128xf32>
    %18 = arith.truncf %17 : vector<256x128xf32> to vector<256x128xbf16>
    %c0_16 = arith.constant 0 : index
    %c0_17 = arith.constant 0 : index
    %c0_18 = arith.constant 0 : index
    %19 = vector.load %arg4[%c0_16, %c0_17, %c0_18] : memref<9x128x128xbf16, #tpu.memory_space<vmem>>, vector<1x128x128xbf16>
    %20 = vector.shape_cast %19 : vector<1x128x128xbf16> to vector<128x128xbf16>
    %cst_19 = arith.constant dense<0.000000e+00> : vector<256x128xf32>
    %21 = tpu.matmul %18, %20, %cst_19 {dimension_numbers = #tpu.dot_dimension_numbers<[1], [0], [0], [1], [0, 0, 1, 1], [], []>} : vector<256x128xbf16>, vector<128x128xbf16>, vector<256x128xf32> -> vector<256x128xf32>
    %22 = arith.addf %15, %21 : vector<256x128xf32>
    %c0_20 = arith.constant 0 : index
    %c1_21 = arith.constant 1 : index
    %c0_22 = arith.constant 0 : index
    %23 = vector.load %arg8[%c0_20, %c1_21, %c0_22] : memref<18x18x128xf32, #tpu.memory_space<vmem>>, vector<16x16x128xf32>
    %24 = vector.shape_cast %23 : vector<16x16x128xf32> to vector<256x128xf32>
    %25 = arith.truncf %24 : vector<256x128xf32> to vector<256x128xbf16>
    %c1_23 = arith.constant 1 : index
    %c0_24 = arith.constant 0 : index
    %c0_25 = arith.constant 0 : index
    %26 = vector.load %arg4[%c1_23, %c0_24, %c0_25] : memref<9x128x128xbf16, #tpu.memory_space<vmem>>, vector<1x128x128xbf16>
    %27 = vector.shape_cast %26 : vector<1x128x128xbf16> to vector<128x128xbf16>
    %cst_26 = arith.constant dense<0.000000e+00> : vector<256x128xf32>
    %28 = tpu.matmul %25, %27, %cst_26 {dimension_numbers = #tpu.dot_dimension_numbers<[1], [0], [0], [1], [0, 0, 1, 1], [], []>} : vector<256x128xbf16>, vector<128x128xbf16>, vector<256x128xf32> -> vector<256x128xf32>
    %29 = arith.addf %22, %28 : vector<256x128xf32>
    %c0_27 = arith.constant 0 : index
    %c2 = arith.constant 2 : index
    %c0_28 = arith.constant 0 : index
    %30 = vector.load %arg8[%c0_27, %c2, %c0_28] : memref<18x18x128xf32, #tpu.memory_space<vmem>>, vector<16x16x128xf32>
    %31 = vector.shape_cast %30 : vector<16x16x128xf32> to vector<256x128xf32>
    %32 = arith.truncf %31 : vector<256x128xf32> to vector<256x128xbf16>
    %c2_29 = arith.constant 2 : index
    %c0_30 = arith.constant 0 : index
    %c0_31 = arith.constant 0 : index
    %33 = vector.load %arg4[%c2_29, %c0_30, %c0_31] : memref<9x128x128xbf16, #tpu.memory_space<vmem>>, vector<1x128x128xbf16>
    %34 = vector.shape_cast %33 : vector<1x128x128xbf16> to vector<128x128xbf16>
    %cst_32 = arith.constant dense<0.000000e+00> : vector<256x128xf32>
    %35 = tpu.matmul %32, %34, %cst_32 {dimension_numbers = #tpu.dot_dimension_numbers<[1], [0], [0], [1], [0, 0, 1, 1], [], []>} : vector<256x128xbf16>, vector<128x128xbf16>, vector<256x128xf32> -> vector<256x128xf32>
    %36 = arith.addf %29, %35 : vector<256x128xf32>
    %c1_33 = arith.constant 1 : index
    %c0_34 = arith.constant 0 : index
    %c0_35 = arith.constant 0 : index
    %37 = vector.load %arg8[%c1_33, %c0_34, %c0_35] : memref<18x18x128xf32, #tpu.memory_space<vmem>>, vector<16x16x128xf32>
    %38 = vector.shape_cast %37 : vector<16x16x128xf32> to vector<256x128xf32>
    %39 = arith.truncf %38 : vector<256x128xf32> to vector<256x128xbf16>
    %c3 = arith.constant 3 : index
    %c0_36 = arith.constant 0 : index
    %c0_37 = arith.constant 0 : index
    %40 = vector.load %arg4[%c3, %c0_36, %c0_37] : memref<9x128x128xbf16, #tpu.memory_space<vmem>>, vector<1x128x128xbf16>
    %41 = vector.shape_cast %40 : vector<1x128x128xbf16> to vector<128x128xbf16>
    %cst_38 = arith.constant dense<0.000000e+00> : vector<256x128xf32>
    %42 = tpu.matmul %39, %41, %cst_38 {dimension_numbers = #tpu.dot_dimension_numbers<[1], [0], [0], [1], [0, 0, 1, 1], [], []>} : vector<256x128xbf16>, vector<128x128xbf16>, vector<256x128xf32> -> vector<256x128xf32>
    %43 = arith.addf %36, %42 : vector<256x128xf32>
    %c1_39 = arith.constant 1 : index
    %c1_40 = arith.constant 1 : index
    %c0_41 = arith.constant 0 : index
    %44 = vector.load %arg8[%c1_39, %c1_40, %c0_41] : memref<18x18x128xf32, #tpu.memory_space<vmem>>, vector<16x16x128xf32>
    %45 = vector.shape_cast %44 : vector<16x16x128xf32> to vector<256x128xf32>
    %46 = arith.truncf %45 : vector<256x128xf32> to vector<256x128xbf16>
    %c4 = arith.constant 4 : index
    %c0_42 = arith.constant 0 : index
    %c0_43 = arith.constant 0 : index
    %47 = vector.load %arg4[%c4, %c0_42, %c0_43] : memref<9x128x128xbf16, #tpu.memory_space<vmem>>, vector<1x128x128xbf16>
    %48 = vector.shape_cast %47 : vector<1x128x128xbf16> to vector<128x128xbf16>
    %cst_44 = arith.constant dense<0.000000e+00> : vector<256x128xf32>
    %49 = tpu.matmul %46, %48, %cst_44 {dimension_numbers = #tpu.dot_dimension_numbers<[1], [0], [0], [1], [0, 0, 1, 1], [], []>} : vector<256x128xbf16>, vector<128x128xbf16>, vector<256x128xf32> -> vector<256x128xf32>
    %50 = arith.addf %43, %49 : vector<256x128xf32>
    %c1_45 = arith.constant 1 : index
    %c2_46 = arith.constant 2 : index
    %c0_47 = arith.constant 0 : index
    %51 = vector.load %arg8[%c1_45, %c2_46, %c0_47] : memref<18x18x128xf32, #tpu.memory_space<vmem>>, vector<16x16x128xf32>
    %52 = vector.shape_cast %51 : vector<16x16x128xf32> to vector<256x128xf32>
    %53 = arith.truncf %52 : vector<256x128xf32> to vector<256x128xbf16>
    %c5 = arith.constant 5 : index
    %c0_48 = arith.constant 0 : index
    %c0_49 = arith.constant 0 : index
    %54 = vector.load %arg4[%c5, %c0_48, %c0_49] : memref<9x128x128xbf16, #tpu.memory_space<vmem>>, vector<1x128x128xbf16>
    %55 = vector.shape_cast %54 : vector<1x128x128xbf16> to vector<128x128xbf16>
    %cst_50 = arith.constant dense<0.000000e+00> : vector<256x128xf32>
    %56 = tpu.matmul %53, %55, %cst_50 {dimension_numbers = #tpu.dot_dimension_numbers<[1], [0], [0], [1], [0, 0, 1, 1], [], []>} : vector<256x128xbf16>, vector<128x128xbf16>, vector<256x128xf32> -> vector<256x128xf32>
    %57 = arith.addf %50, %56 : vector<256x128xf32>
    %c2_51 = arith.constant 2 : index
    %c0_52 = arith.constant 0 : index
    %c0_53 = arith.constant 0 : index
    %58 = vector.load %arg8[%c2_51, %c0_52, %c0_53] : memref<18x18x128xf32, #tpu.memory_space<vmem>>, vector<16x16x128xf32>
    %59 = vector.shape_cast %58 : vector<16x16x128xf32> to vector<256x128xf32>
    %60 = arith.truncf %59 : vector<256x128xf32> to vector<256x128xbf16>
    %c6 = arith.constant 6 : index
    %c0_54 = arith.constant 0 : index
    %c0_55 = arith.constant 0 : index
    %61 = vector.load %arg4[%c6, %c0_54, %c0_55] : memref<9x128x128xbf16, #tpu.memory_space<vmem>>, vector<1x128x128xbf16>
    %62 = vector.shape_cast %61 : vector<1x128x128xbf16> to vector<128x128xbf16>
    %cst_56 = arith.constant dense<0.000000e+00> : vector<256x128xf32>
    %63 = tpu.matmul %60, %62, %cst_56 {dimension_numbers = #tpu.dot_dimension_numbers<[1], [0], [0], [1], [0, 0, 1, 1], [], []>} : vector<256x128xbf16>, vector<128x128xbf16>, vector<256x128xf32> -> vector<256x128xf32>
    %64 = arith.addf %57, %63 : vector<256x128xf32>
    %c2_57 = arith.constant 2 : index
    %c1_58 = arith.constant 1 : index
    %c0_59 = arith.constant 0 : index
    %65 = vector.load %arg8[%c2_57, %c1_58, %c0_59] : memref<18x18x128xf32, #tpu.memory_space<vmem>>, vector<16x16x128xf32>
    %66 = vector.shape_cast %65 : vector<16x16x128xf32> to vector<256x128xf32>
    %67 = arith.truncf %66 : vector<256x128xf32> to vector<256x128xbf16>
    %c7 = arith.constant 7 : index
    %c0_60 = arith.constant 0 : index
    %c0_61 = arith.constant 0 : index
    %68 = vector.load %arg4[%c7, %c0_60, %c0_61] : memref<9x128x128xbf16, #tpu.memory_space<vmem>>, vector<1x128x128xbf16>
    %69 = vector.shape_cast %68 : vector<1x128x128xbf16> to vector<128x128xbf16>
    %cst_62 = arith.constant dense<0.000000e+00> : vector<256x128xf32>
    %70 = tpu.matmul %67, %69, %cst_62 {dimension_numbers = #tpu.dot_dimension_numbers<[1], [0], [0], [1], [0, 0, 1, 1], [], []>} : vector<256x128xbf16>, vector<128x128xbf16>, vector<256x128xf32> -> vector<256x128xf32>
    %71 = arith.addf %64, %70 : vector<256x128xf32>
    %c2_63 = arith.constant 2 : index
    %c2_64 = arith.constant 2 : index
    %c0_65 = arith.constant 0 : index
    %72 = vector.load %arg8[%c2_63, %c2_64, %c0_65] : memref<18x18x128xf32, #tpu.memory_space<vmem>>, vector<16x16x128xf32>
    %73 = vector.shape_cast %72 : vector<16x16x128xf32> to vector<256x128xf32>
    %74 = arith.truncf %73 : vector<256x128xf32> to vector<256x128xbf16>
    %c8 = arith.constant 8 : index
    %c0_66 = arith.constant 0 : index
    %c0_67 = arith.constant 0 : index
    %75 = vector.load %arg4[%c8, %c0_66, %c0_67] : memref<9x128x128xbf16, #tpu.memory_space<vmem>>, vector<1x128x128xbf16>
    %76 = vector.shape_cast %75 : vector<1x128x128xbf16> to vector<128x128xbf16>
    %cst_68 = arith.constant dense<0.000000e+00> : vector<256x128xf32>
    %77 = tpu.matmul %74, %76, %cst_68 {dimension_numbers = #tpu.dot_dimension_numbers<[1], [0], [0], [1], [0, 0, 1, 1], [], []>} : vector<256x128xbf16>, vector<128x128xbf16>, vector<256x128xf32> -> vector<256x128xf32>
    %78 = arith.addf %71, %77 : vector<256x128xf32>
    %79 = vector.shape_cast %78 : vector<256x128xf32> to vector<16x16x128xf32>
    %c0_69 = arith.constant 0 : index
    %c0_70 = arith.constant 0 : index
    %c0_71 = arith.constant 0 : index
    %c0_72 = arith.constant 0 : index
    %80 = vector.load %arg5[%c0_69, %c0_70, %c0_71, %c0_72] : memref<1x16x16x128xf32, #tpu.memory_space<vmem>>, vector<1x16x16x128xf32>
    %81 = vector.shape_cast %80 : vector<1x16x16x128xf32> to vector<16x16x128xf32>
    %82 = vector.shape_cast %79 : vector<16x16x128xf32> to vector<1x16x16x128xf32>
    tpu.vector_store %arg5[%c0_69, %c0_70, %c0_71, %c0_72], %82 {strides = array<i32>} : memref<1x16x16x128xf32, #tpu.memory_space<vmem>>, vector<1x16x16x128xf32>,
    %cst_73 = arith.constant dense<0.000000e+00> : vector<128xf32>
    %83 = vector.multi_reduction <add>, %78, %cst_73 [0] : vector<256x128xf32> to vector<128xf32>
    %84 = vector.shape_cast %83 : vector<128xf32> to vector<1x128xf32>
    %85 = vector.shape_cast %84 : vector<1x128xf32> to vector<1x1x128xf32>
    %c0_74 = arith.constant 0 : index
    %c0_75 = arith.constant 0 : index
    %c0_76 = arith.constant 0 : index
    %86 = vector.load %arg6[%c0_74, %c0_75, %c0_76] : memref<1x1x128xf32, #tpu.memory_space<vmem>>, vector<1x1x128xf32>
    tpu.vector_store %arg6[%c0_74, %c0_75, %c0_76], %85 {strides = array<i32>} : memref<1x1x128xf32, #tpu.memory_space<vmem>>, vector<1x1x128xf32>,
    %87 = arith.mulf %78, %78 : vector<256x128xf32>
    %cst_77 = arith.constant dense<0.000000e+00> : vector<128xf32>
    %88 = vector.multi_reduction <add>, %87, %cst_77 [0] : vector<256x128xf32> to vector<128xf32>
    %89 = vector.shape_cast %88 : vector<128xf32> to vector<1x128xf32>
    %90 = vector.shape_cast %89 : vector<1x128xf32> to vector<1x1x128xf32>
    %c0_78 = arith.constant 0 : index
    %c0_79 = arith.constant 0 : index
    %c0_80 = arith.constant 0 : index
    %91 = vector.load %arg7[%c0_78, %c0_79, %c0_80] : memref<1x1x128xf32, #tpu.memory_space<vmem>>, vector<1x1x128xf32>
    tpu.vector_store %arg7[%c0_78, %c0_79, %c0_80], %90 {strides = array<i32>} : memref<1x1x128xf32, #tpu.memory_space<vmem>>, vector<1x1x128xf32>,
    return
  }
  func.func @transform_0(%arg0: i32) -> (i32, i32, i32, i32) {
    %c0_i32 = arith.constant 0 : i32
    %c0_i32_0 = arith.constant 0 : i32
    %c0_i32_1 = arith.constant 0 : i32
    %c0_i32_2 = arith.constant 0 : i32
    return %arg0, %c0_i32, %c0_i32_0, %c0_i32_1 : i32, i32, i32, i32
  }
  func.func @transform_1(%arg0: i32) -> (i32, i32) {
    %c0_i32 = arith.constant 0 : i32
    %c0_i32_0 = arith.constant 0 : i32
    %c0_i32_1 = arith.constant 0 : i32
    return %c0_i32, %c0_i32_0 : i32, i32
  }
  func.func @transform_2(%arg0: i32) -> (i32, i32) {
    %c0_i32 = arith.constant 0 : i32
    %c0_i32_0 = arith.constant 0 : i32
    %c0_i32_1 = arith.constant 0 : i32
    return %c0_i32, %c0_i32_0 : i32, i32
  }
  func.func @transform_3(%arg0: i32) -> (i32, i32, i32) {
    %c0_i32 = arith.constant 0 : i32
    %c0_i32_0 = arith.constant 0 : i32
    %c0_i32_1 = arith.constant 0 : i32
    %c0_i32_2 = arith.constant 0 : i32
    return %c0_i32, %c0_i32_0, %c0_i32_1 : i32, i32, i32
  }
  func.func @transform_4(%arg0: i32) -> (i32, i32, i32, i32) {
    %c0_i32 = arith.constant 0 : i32
    %c0_i32_0 = arith.constant 0 : i32
    %c0_i32_1 = arith.constant 0 : i32
    %c0_i32_2 = arith.constant 0 : i32
    return %arg0, %c0_i32, %c0_i32_0, %c0_i32_1 : i32, i32, i32, i32
  }
  func.func @transform_5(%arg0: i32) -> (i32, i32, i32) {
    %c0_i32 = arith.constant 0 : i32
    %c0_i32_0 = arith.constant 0 : i32
    %c0_i32_1 = arith.constant 0 : i32
    return %arg0, %c0_i32, %c0_i32_0 : i32, i32, i32
  }
  func.func @transform_6(%arg0: i32) -> (i32, i32, i32) {
    %c0_i32 = arith.constant 0 : i32
    %c0_i32_0 = arith.constant 0 : i32
    %c0_i32_1 = arith.constant 0 : i32
    return %arg0, %c0_i32, %c0_i32_0 : i32, i32, i32
  }
}

module attributes {stable_mosaic.version = 11 : i64} {
  func.func @_bn_add_relu_kernel(%arg0: i32, %arg1: memref<1x16x16x128xf32, #tpu.memory_space<vmem>>, %arg2: memref<1x128xf32, #tpu.memory_space<vmem>>, %arg3: memref<1x128xf32, #tpu.memory_space<vmem>>, %arg4: memref<1x16x16x128xf32, #tpu.memory_space<vmem>>, %arg5: memref<1x16x16x128xf32, #tpu.memory_space<vmem>>) attributes {dimension_semantics = [#tpu.dimension_semantics<parallel>], iteration_bounds = array<i64: 2>, scalar_prefetch = 0 : i64, scratch_operands = 0 : i64, tpu.core_type = #tpu.core_type<tc>, window_params = [{transform_indices = @transform_0, window_bounds = array<i64: 1, 16, 16, 128>}, {pipeline_mode = #tpu.pipeline_mode<synchronous>, transform_indices = @transform_1, window_bounds = array<i64: 1, 128>}, {pipeline_mode = #tpu.pipeline_mode<synchronous>, transform_indices = @transform_2, window_bounds = array<i64: 1, 128>}, {transform_indices = @transform_3, window_bounds = array<i64: 1, 16, 16, 128>}, {transform_indices = @transform_4, window_bounds = array<i64: 1, 16, 16, 128>}]} {
    %c0 = arith.constant 0 : index
    %c0_0 = arith.constant 0 : index
    %c0_1 = arith.constant 0 : index
    %c0_2 = arith.constant 0 : index
    %0 = vector.load %arg1[%c0, %c0_0, %c0_1, %c0_2] : memref<1x16x16x128xf32, #tpu.memory_space<vmem>>, vector<1x16x16x128xf32>
    %1 = vector.shape_cast %0 : vector<1x16x16x128xf32> to vector<16x16x128xf32>
    %c0_3 = arith.constant 0 : index
    %c0_4 = arith.constant 0 : index
    %2 = vector.load %arg2[%c0_3, %c0_4] : memref<1x128xf32, #tpu.memory_space<vmem>>, vector<1x128xf32>
    %3 = vector.shape_cast %2 : vector<1x128xf32> to vector<128xf32>
    %4 = vector.shape_cast %3 : vector<128xf32> to vector<1x1x128xf32>
    %5 = vector.broadcast %4 : vector<1x1x128xf32> to vector<16x16x128xf32>
    %6 = arith.mulf %1, %5 : vector<16x16x128xf32>
    %c0_5 = arith.constant 0 : index
    %c0_6 = arith.constant 0 : index
    %7 = vector.load %arg3[%c0_5, %c0_6] : memref<1x128xf32, #tpu.memory_space<vmem>>, vector<1x128xf32>
    %8 = vector.shape_cast %7 : vector<1x128xf32> to vector<128xf32>
    %9 = vector.shape_cast %8 : vector<128xf32> to vector<1x1x128xf32>
    %10 = vector.broadcast %9 : vector<1x1x128xf32> to vector<16x16x128xf32>
    %11 = arith.addf %6, %10 : vector<16x16x128xf32>
    %c0_7 = arith.constant 0 : index
    %c0_8 = arith.constant 0 : index
    %c0_9 = arith.constant 0 : index
    %c0_10 = arith.constant 0 : index
    %12 = vector.load %arg4[%c0_7, %c0_8, %c0_9, %c0_10] : memref<1x16x16x128xf32, #tpu.memory_space<vmem>>, vector<1x16x16x128xf32>
    %13 = vector.shape_cast %12 : vector<1x16x16x128xf32> to vector<16x16x128xf32>
    %14 = arith.addf %11, %13 : vector<16x16x128xf32>
    %cst = arith.constant 0.000000e+00 : f32
    %15 = vector.broadcast %cst : f32 to vector<16x16x128xf32>
    %16 = arith.maximumf %14, %15 : vector<16x16x128xf32>
    %c0_11 = arith.constant 0 : index
    %c0_12 = arith.constant 0 : index
    %c0_13 = arith.constant 0 : index
    %c0_14 = arith.constant 0 : index
    %17 = vector.load %arg5[%c0_11, %c0_12, %c0_13, %c0_14] : memref<1x16x16x128xf32, #tpu.memory_space<vmem>>, vector<1x16x16x128xf32>
    %18 = vector.shape_cast %17 : vector<1x16x16x128xf32> to vector<16x16x128xf32>
    %19 = vector.shape_cast %16 : vector<16x16x128xf32> to vector<1x16x16x128xf32>
    tpu.vector_store %arg5[%c0_11, %c0_12, %c0_13, %c0_14], %19 {strides = array<i32>} : memref<1x16x16x128xf32, #tpu.memory_space<vmem>>, vector<1x16x16x128xf32>,
    return
  }
  func.func @transform_0(%arg0: i32) -> (i32, i32, i32, i32) {
    %c0_i32 = arith.constant 0 : i32
    %c0_i32_0 = arith.constant 0 : i32
    %c0_i32_1 = arith.constant 0 : i32
    %c0_i32_2 = arith.constant 0 : i32
    return %arg0, %c0_i32, %c0_i32_0, %c0_i32_1 : i32, i32, i32, i32
  }
  func.func @transform_1(%arg0: i32) -> (i32, i32) {
    %c0_i32 = arith.constant 0 : i32
    %c0_i32_0 = arith.constant 0 : i32
    %c0_i32_1 = arith.constant 0 : i32
    return %c0_i32, %c0_i32_0 : i32, i32
  }
  func.func @transform_2(%arg0: i32) -> (i32, i32) {
    %c0_i32 = arith.constant 0 : i32
    %c0_i32_0 = arith.constant 0 : i32
    %c0_i32_1 = arith.constant 0 : i32
    return %c0_i32, %c0_i32_0 : i32, i32
  }
  func.func @transform_3(%arg0: i32) -> (i32, i32, i32, i32) {
    %c0_i32 = arith.constant 0 : i32
    %c0_i32_0 = arith.constant 0 : i32
    %c0_i32_1 = arith.constant 0 : i32
    %c0_i32_2 = arith.constant 0 : i32
    return %arg0, %c0_i32, %c0_i32_0, %c0_i32_1 : i32, i32, i32, i32
  }
  func.func @transform_4(%arg0: i32) -> (i32, i32, i32, i32) {
    %c0_i32 = arith.constant 0 : i32
    %c0_i32_0 = arith.constant 0 : i32
    %c0_i32_1 = arith.constant 0 : i32
    %c0_i32_2 = arith.constant 0 : i32
    return %arg0, %c0_i32, %c0_i32_0, %c0_i32_1 : i32, i32, i32, i32
  }
}

module attributes {stable_mosaic.version = 11 : i64} {
  func.func @kernel(%arg0: i32, %arg1: memref<1x16x16x128xf32, #tpu.memory_space<vmem>>, %arg2: memref<1x128xf32, #tpu.memory_space<vmem>>, %arg3: memref<1x128xf32, #tpu.memory_space<vmem>>, %arg4: memref<9x128x128xbf16, #tpu.memory_space<vmem>>, %arg5: memref<1x16x16x128xf32, #tpu.memory_space<vmem>>, %arg6: memref<1x1x128xf32, #tpu.memory_space<vmem>>, %arg7: memref<1x1x128xf32, #tpu.memory_space<vmem>>, %arg8: memref<18x18x128xf32, #tpu.memory_space<vmem>>) attributes {dimension_semantics = [#tpu.dimension_semantics<parallel>], iteration_bounds = array<i64: 2>, scalar_prefetch = 0 : i64, scratch_operands = 1 : i64, tpu.core_type = #tpu.core_type<tc>, window_params = [{transform_indices = @transform_0, window_bounds = array<i64: 1, 16, 16, 128>}, {pipeline_mode = #tpu.pipeline_mode<synchronous>, transform_indices = @transform_1, window_bounds = array<i64: 1, 128>}, {pipeline_mode = #tpu.pipeline_mode<synchronous>, transform_indices = @transform_2, window_bounds = array<i64: 1, 128>}, {pipeline_mode = #tpu.pipeline_mode<synchronous>, transform_indices = @transform_3, window_bounds = array<i64: 9, 128, 128>}, {transform_indices = @transform_4, window_bounds = array<i64: 1, 16, 16, 128>}, {transform_indices = @transform_5, window_bounds = array<i64: 1, 1, 128>}, {transform_indices = @transform_6, window_bounds = array<i64: 1, 1, 128>}]} {
    %c0 = arith.constant 0 : index
    %c0_0 = arith.constant 0 : index
    %0 = vector.load %arg2[%c0, %c0_0] : memref<1x128xf32, #tpu.memory_space<vmem>>, vector<1x128xf32>
    %1 = vector.shape_cast %0 : vector<1x128xf32> to vector<128xf32>
    %c0_1 = arith.constant 0 : index
    %c0_2 = arith.constant 0 : index
    %2 = vector.load %arg3[%c0_1, %c0_2] : memref<1x128xf32, #tpu.memory_space<vmem>>, vector<1x128xf32>
    %3 = vector.shape_cast %2 : vector<1x128xf32> to vector<128xf32>
    %cst = arith.constant 0.000000e+00 : f32
    %4 = vector.broadcast %cst : f32 to vector<18x18x128xf32>
    %c0_3 = arith.constant 0 : index
    %c0_4 = arith.constant 0 : index
    %c0_5 = arith.constant 0 : index
    %5 = vector.load %arg8[%c0_3, %c0_4, %c0_5] : memref<18x18x128xf32, #tpu.memory_space<vmem>>, vector<18x18x128xf32>
    tpu.vector_store %arg8[%c0_3, %c0_4, %c0_5], %4 {strides = array<i32>} : memref<18x18x128xf32, #tpu.memory_space<vmem>>, vector<18x18x128xf32>,
    %c0_6 = arith.constant 0 : index
    %c0_7 = arith.constant 0 : index
    %c0_8 = arith.constant 0 : index
    %c0_9 = arith.constant 0 : index
    %6 = vector.load %arg1[%c0_6, %c0_7, %c0_8, %c0_9] : memref<1x16x16x128xf32, #tpu.memory_space<vmem>>, vector<1x16x16x128xf32>
    %7 = vector.shape_cast %6 : vector<1x16x16x128xf32> to vector<16x16x128xf32>
    %8 = vector.shape_cast %1 : vector<128xf32> to vector<1x1x128xf32>
    %9 = vector.broadcast %8 : vector<1x1x128xf32> to vector<16x16x128xf32>
    %10 = arith.mulf %7, %9 : vector<16x16x128xf32>
    %11 = vector.shape_cast %3 : vector<128xf32> to vector<1x1x128xf32>
    %12 = vector.broadcast %11 : vector<1x1x128xf32> to vector<16x16x128xf32>
    %13 = arith.addf %10, %12 : vector<16x16x128xf32>
    %c1 = arith.constant 1 : index
    %c1_10 = arith.constant 1 : index
    %c0_11 = arith.constant 0 : index
    %14 = vector.load %arg8[%c1, %c1_10, %c0_11] : memref<18x18x128xf32, #tpu.memory_space<vmem>>, vector<16x16x128xf32>
    tpu.vector_store %arg8[%c1, %c1_10, %c0_11], %13 {strides = array<i32>} : memref<18x18x128xf32, #tpu.memory_space<vmem>>, vector<16x16x128xf32>,
    %cst_12 = arith.constant 0.000000e+00 : f32
    %15 = vector.broadcast %cst_12 : f32 to vector<256x128xf32>
    %c0_13 = arith.constant 0 : index
    %c0_14 = arith.constant 0 : index
    %c0_15 = arith.constant 0 : index
    %16 = vector.load %arg8[%c0_13, %c0_14, %c0_15] : memref<18x18x128xf32, #tpu.memory_space<vmem>>, vector<16x16x128xf32>
    %17 = vector.shape_cast %16 : vector<16x16x128xf32> to vector<256x128xf32>
    %18 = arith.truncf %17 : vector<256x128xf32> to vector<256x128xbf16>
    %c0_16 = arith.constant 0 : index
    %c0_17 = arith.constant 0 : index
    %c0_18 = arith.constant 0 : index
    %19 = vector.load %arg4[%c0_16, %c0_17, %c0_18] : memref<9x128x128xbf16, #tpu.memory_space<vmem>>, vector<1x128x128xbf16>
    %20 = vector.shape_cast %19 : vector<1x128x128xbf16> to vector<128x128xbf16>
    %cst_19 = arith.constant dense<0.000000e+00> : vector<256x128xf32>
    %21 = tpu.matmul %18, %20, %cst_19 {dimension_numbers = #tpu.dot_dimension_numbers<[1], [0], [0], [1], [0, 0, 1, 1], [], []>} : vector<256x128xbf16>, vector<128x128xbf16>, vector<256x128xf32> -> vector<256x128xf32>
    %22 = arith.addf %15, %21 : vector<256x128xf32>
    %c0_20 = arith.constant 0 : index
    %c1_21 = arith.constant 1 : index
    %c0_22 = arith.constant 0 : index
    %23 = vector.load %arg8[%c0_20, %c1_21, %c0_22] : memref<18x18x128xf32, #tpu.memory_space<vmem>>, vector<16x16x128xf32>
    %24 = vector.shape_cast %23 : vector<16x16x128xf32> to vector<256x128xf32>
    %25 = arith.truncf %24 : vector<256x128xf32> to vector<256x128xbf16>
    %c1_23 = arith.constant 1 : index
    %c0_24 = arith.constant 0 : index
    %c0_25 = arith.constant 0 : index
    %26 = vector.load %arg4[%c1_23, %c0_24, %c0_25] : memref<9x128x128xbf16, #tpu.memory_space<vmem>>, vector<1x128x128xbf16>
    %27 = vector.shape_cast %26 : vector<1x128x128xbf16> to vector<128x128xbf16>
    %cst_26 = arith.constant dense<0.000000e+00> : vector<256x128xf32>
    %28 = tpu.matmul %25, %27, %cst_26 {dimension_numbers = #tpu.dot_dimension_numbers<[1], [0], [0], [1], [0, 0, 1, 1], [], []>} : vector<256x128xbf16>, vector<128x128xbf16>, vector<256x128xf32> -> vector<256x128xf32>
    %29 = arith.addf %22, %28 : vector<256x128xf32>
    %c0_27 = arith.constant 0 : index
    %c2 = arith.constant 2 : index
    %c0_28 = arith.constant 0 : index
    %30 = vector.load %arg8[%c0_27, %c2, %c0_28] : memref<18x18x128xf32, #tpu.memory_space<vmem>>, vector<16x16x128xf32>
    %31 = vector.shape_cast %30 : vector<16x16x128xf32> to vector<256x128xf32>
    %32 = arith.truncf %31 : vector<256x128xf32> to vector<256x128xbf16>
    %c2_29 = arith.constant 2 : index
    %c0_30 = arith.constant 0 : index
    %c0_31 = arith.constant 0 : index
    %33 = vector.load %arg4[%c2_29, %c0_30, %c0_31] : memref<9x128x128xbf16, #tpu.memory_space<vmem>>, vector<1x128x128xbf16>
    %34 = vector.shape_cast %33 : vector<1x128x128xbf16> to vector<128x128xbf16>
    %cst_32 = arith.constant dense<0.000000e+00> : vector<256x128xf32>
    %35 = tpu.matmul %32, %34, %cst_32 {dimension_numbers = #tpu.dot_dimension_numbers<[1], [0], [0], [1], [0, 0, 1, 1], [], []>} : vector<256x128xbf16>, vector<128x128xbf16>, vector<256x128xf32> -> vector<256x128xf32>
    %36 = arith.addf %29, %35 : vector<256x128xf32>
    %c1_33 = arith.constant 1 : index
    %c0_34 = arith.constant 0 : index
    %c0_35 = arith.constant 0 : index
    %37 = vector.load %arg8[%c1_33, %c0_34, %c0_35] : memref<18x18x128xf32, #tpu.memory_space<vmem>>, vector<16x16x128xf32>
    %38 = vector.shape_cast %37 : vector<16x16x128xf32> to vector<256x128xf32>
    %39 = arith.truncf %38 : vector<256x128xf32> to vector<256x128xbf16>
    %c3 = arith.constant 3 : index
    %c0_36 = arith.constant 0 : index
    %c0_37 = arith.constant 0 : index
    %40 = vector.load %arg4[%c3, %c0_36, %c0_37] : memref<9x128x128xbf16, #tpu.memory_space<vmem>>, vector<1x128x128xbf16>
    %41 = vector.shape_cast %40 : vector<1x128x128xbf16> to vector<128x128xbf16>
    %cst_38 = arith.constant dense<0.000000e+00> : vector<256x128xf32>
    %42 = tpu.matmul %39, %41, %cst_38 {dimension_numbers = #tpu.dot_dimension_numbers<[1], [0], [0], [1], [0, 0, 1, 1], [], []>} : vector<256x128xbf16>, vector<128x128xbf16>, vector<256x128xf32> -> vector<256x128xf32>
    %43 = arith.addf %36, %42 : vector<256x128xf32>
    %c1_39 = arith.constant 1 : index
    %c1_40 = arith.constant 1 : index
    %c0_41 = arith.constant 0 : index
    %44 = vector.load %arg8[%c1_39, %c1_40, %c0_41] : memref<18x18x128xf32, #tpu.memory_space<vmem>>, vector<16x16x128xf32>
    %45 = vector.shape_cast %44 : vector<16x16x128xf32> to vector<256x128xf32>
    %46 = arith.truncf %45 : vector<256x128xf32> to vector<256x128xbf16>
    %c4 = arith.constant 4 : index
    %c0_42 = arith.constant 0 : index
    %c0_43 = arith.constant 0 : index
    %47 = vector.load %arg4[%c4, %c0_42, %c0_43] : memref<9x128x128xbf16, #tpu.memory_space<vmem>>, vector<1x128x128xbf16>
    %48 = vector.shape_cast %47 : vector<1x128x128xbf16> to vector<128x128xbf16>
    %cst_44 = arith.constant dense<0.000000e+00> : vector<256x128xf32>
    %49 = tpu.matmul %46, %48, %cst_44 {dimension_numbers = #tpu.dot_dimension_numbers<[1], [0], [0], [1], [0, 0, 1, 1], [], []>} : vector<256x128xbf16>, vector<128x128xbf16>, vector<256x128xf32> -> vector<256x128xf32>
    %50 = arith.addf %43, %49 : vector<256x128xf32>
    %c1_45 = arith.constant 1 : index
    %c2_46 = arith.constant 2 : index
    %c0_47 = arith.constant 0 : index
    %51 = vector.load %arg8[%c1_45, %c2_46, %c0_47] : memref<18x18x128xf32, #tpu.memory_space<vmem>>, vector<16x16x128xf32>
    %52 = vector.shape_cast %51 : vector<16x16x128xf32> to vector<256x128xf32>
    %53 = arith.truncf %52 : vector<256x128xf32> to vector<256x128xbf16>
    %c5 = arith.constant 5 : index
    %c0_48 = arith.constant 0 : index
    %c0_49 = arith.constant 0 : index
    %54 = vector.load %arg4[%c5, %c0_48, %c0_49] : memref<9x128x128xbf16, #tpu.memory_space<vmem>>, vector<1x128x128xbf16>
    %55 = vector.shape_cast %54 : vector<1x128x128xbf16> to vector<128x128xbf16>
    %cst_50 = arith.constant dense<0.000000e+00> : vector<256x128xf32>
    %56 = tpu.matmul %53, %55, %cst_50 {dimension_numbers = #tpu.dot_dimension_numbers<[1], [0], [0], [1], [0, 0, 1, 1], [], []>} : vector<256x128xbf16>, vector<128x128xbf16>, vector<256x128xf32> -> vector<256x128xf32>
    %57 = arith.addf %50, %56 : vector<256x128xf32>
    %c2_51 = arith.constant 2 : index
    %c0_52 = arith.constant 0 : index
    %c0_53 = arith.constant 0 : index
    %58 = vector.load %arg8[%c2_51, %c0_52, %c0_53] : memref<18x18x128xf32, #tpu.memory_space<vmem>>, vector<16x16x128xf32>
    %59 = vector.shape_cast %58 : vector<16x16x128xf32> to vector<256x128xf32>
    %60 = arith.truncf %59 : vector<256x128xf32> to vector<256x128xbf16>
    %c6 = arith.constant 6 : index
    %c0_54 = arith.constant 0 : index
    %c0_55 = arith.constant 0 : index
    %61 = vector.load %arg4[%c6, %c0_54, %c0_55] : memref<9x128x128xbf16, #tpu.memory_space<vmem>>, vector<1x128x128xbf16>
    %62 = vector.shape_cast %61 : vector<1x128x128xbf16> to vector<128x128xbf16>
    %cst_56 = arith.constant dense<0.000000e+00> : vector<256x128xf32>
    %63 = tpu.matmul %60, %62, %cst_56 {dimension_numbers = #tpu.dot_dimension_numbers<[1], [0], [0], [1], [0, 0, 1, 1], [], []>} : vector<256x128xbf16>, vector<128x128xbf16>, vector<256x128xf32> -> vector<256x128xf32>
    %64 = arith.addf %57, %63 : vector<256x128xf32>
    %c2_57 = arith.constant 2 : index
    %c1_58 = arith.constant 1 : index
    %c0_59 = arith.constant 0 : index
    %65 = vector.load %arg8[%c2_57, %c1_58, %c0_59] : memref<18x18x128xf32, #tpu.memory_space<vmem>>, vector<16x16x128xf32>
    %66 = vector.shape_cast %65 : vector<16x16x128xf32> to vector<256x128xf32>
    %67 = arith.truncf %66 : vector<256x128xf32> to vector<256x128xbf16>
    %c7 = arith.constant 7 : index
    %c0_60 = arith.constant 0 : index
    %c0_61 = arith.constant 0 : index
    %68 = vector.load %arg4[%c7, %c0_60, %c0_61] : memref<9x128x128xbf16, #tpu.memory_space<vmem>>, vector<1x128x128xbf16>
    %69 = vector.shape_cast %68 : vector<1x128x128xbf16> to vector<128x128xbf16>
    %cst_62 = arith.constant dense<0.000000e+00> : vector<256x128xf32>
    %70 = tpu.matmul %67, %69, %cst_62 {dimension_numbers = #tpu.dot_dimension_numbers<[1], [0], [0], [1], [0, 0, 1, 1], [], []>} : vector<256x128xbf16>, vector<128x128xbf16>, vector<256x128xf32> -> vector<256x128xf32>
    %71 = arith.addf %64, %70 : vector<256x128xf32>
    %c2_63 = arith.constant 2 : index
    %c2_64 = arith.constant 2 : index
    %c0_65 = arith.constant 0 : index
    %72 = vector.load %arg8[%c2_63, %c2_64, %c0_65] : memref<18x18x128xf32, #tpu.memory_space<vmem>>, vector<16x16x128xf32>
    %73 = vector.shape_cast %72 : vector<16x16x128xf32> to vector<256x128xf32>
    %74 = arith.truncf %73 : vector<256x128xf32> to vector<256x128xbf16>
    %c8 = arith.constant 8 : index
    %c0_66 = arith.constant 0 : index
    %c0_67 = arith.constant 0 : index
    %75 = vector.load %arg4[%c8, %c0_66, %c0_67] : memref<9x128x128xbf16, #tpu.memory_space<vmem>>, vector<1x128x128xbf16>
    %76 = vector.shape_cast %75 : vector<1x128x128xbf16> to vector<128x128xbf16>
    %cst_68 = arith.constant dense<0.000000e+00> : vector<256x128xf32>
    %77 = tpu.matmul %74, %76, %cst_68 {dimension_numbers = #tpu.dot_dimension_numbers<[1], [0], [0], [1], [0, 0, 1, 1], [], []>} : vector<256x128xbf16>, vector<128x128xbf16>, vector<256x128xf32> -> vector<256x128xf32>
    %78 = arith.addf %71, %77 : vector<256x128xf32>
    %cst_69 = arith.constant 0.000000e+00 : f32
    %79 = vector.broadcast %cst_69 : f32 to vector<256x128xf32>
    %80 = arith.maximumf %78, %79 : vector<256x128xf32>
    %81 = vector.shape_cast %80 : vector<256x128xf32> to vector<16x16x128xf32>
    %c0_70 = arith.constant 0 : index
    %c0_71 = arith.constant 0 : index
    %c0_72 = arith.constant 0 : index
    %c0_73 = arith.constant 0 : index
    %82 = vector.load %arg5[%c0_70, %c0_71, %c0_72, %c0_73] : memref<1x16x16x128xf32, #tpu.memory_space<vmem>>, vector<1x16x16x128xf32>
    %83 = vector.shape_cast %82 : vector<1x16x16x128xf32> to vector<16x16x128xf32>
    %84 = vector.shape_cast %81 : vector<16x16x128xf32> to vector<1x16x16x128xf32>
    tpu.vector_store %arg5[%c0_70, %c0_71, %c0_72, %c0_73], %84 {strides = array<i32>} : memref<1x16x16x128xf32, #tpu.memory_space<vmem>>, vector<1x16x16x128xf32>,
    %cst_74 = arith.constant dense<0.000000e+00> : vector<128xf32>
    %85 = vector.multi_reduction <add>, %80, %cst_74 [0] : vector<256x128xf32> to vector<128xf32>
    %86 = vector.shape_cast %85 : vector<128xf32> to vector<1x128xf32>
    %87 = vector.shape_cast %86 : vector<1x128xf32> to vector<1x1x128xf32>
    %c0_75 = arith.constant 0 : index
    %c0_76 = arith.constant 0 : index
    %c0_77 = arith.constant 0 : index
    %88 = vector.load %arg6[%c0_75, %c0_76, %c0_77] : memref<1x1x128xf32, #tpu.memory_space<vmem>>, vector<1x1x128xf32>
    tpu.vector_store %arg6[%c0_75, %c0_76, %c0_77], %87 {strides = array<i32>} : memref<1x1x128xf32, #tpu.memory_space<vmem>>, vector<1x1x128xf32>,
    %89 = arith.mulf %80, %80 : vector<256x128xf32>
    %cst_78 = arith.constant dense<0.000000e+00> : vector<128xf32>
    %90 = vector.multi_reduction <add>, %89, %cst_78 [0] : vector<256x128xf32> to vector<128xf32>
    %91 = vector.shape_cast %90 : vector<128xf32> to vector<1x128xf32>
    %92 = vector.shape_cast %91 : vector<1x128xf32> to vector<1x1x128xf32>
    %c0_79 = arith.constant 0 : index
    %c0_80 = arith.constant 0 : index
    %c0_81 = arith.constant 0 : index
    %93 = vector.load %arg7[%c0_79, %c0_80, %c0_81] : memref<1x1x128xf32, #tpu.memory_space<vmem>>, vector<1x1x128xf32>
    tpu.vector_store %arg7[%c0_79, %c0_80, %c0_81], %92 {strides = array<i32>} : memref<1x1x128xf32, #tpu.memory_space<vmem>>, vector<1x1x128xf32>,
    return
  }
  func.func @transform_0(%arg0: i32) -> (i32, i32, i32, i32) {
    %c0_i32 = arith.constant 0 : i32
    %c0_i32_0 = arith.constant 0 : i32
    %c0_i32_1 = arith.constant 0 : i32
    %c0_i32_2 = arith.constant 0 : i32
    return %arg0, %c0_i32, %c0_i32_0, %c0_i32_1 : i32, i32, i32, i32
  }
  func.func @transform_1(%arg0: i32) -> (i32, i32) {
    %c0_i32 = arith.constant 0 : i32
    %c0_i32_0 = arith.constant 0 : i32
    %c0_i32_1 = arith.constant 0 : i32
    return %c0_i32, %c0_i32_0 : i32, i32
  }
  func.func @transform_2(%arg0: i32) -> (i32, i32) {
    %c0_i32 = arith.constant 0 : i32
    %c0_i32_0 = arith.constant 0 : i32
    %c0_i32_1 = arith.constant 0 : i32
    return %c0_i32, %c0_i32_0 : i32, i32
  }
  func.func @transform_3(%arg0: i32) -> (i32, i32, i32) {
    %c0_i32 = arith.constant 0 : i32
    %c0_i32_0 = arith.constant 0 : i32
    %c0_i32_1 = arith.constant 0 : i32
    %c0_i32_2 = arith.constant 0 : i32
    return %c0_i32, %c0_i32_0, %c0_i32_1 : i32, i32, i32
  }
  func.func @transform_4(%arg0: i32) -> (i32, i32, i32, i32) {
    %c0_i32 = arith.constant 0 : i32
    %c0_i32_0 = arith.constant 0 : i32
    %c0_i32_1 = arith.constant 0 : i32
    %c0_i32_2 = arith.constant 0 : i32
    return %arg0, %c0_i32, %c0_i32_0, %c0_i32_1 : i32, i32, i32, i32
  }
  func.func @transform_5(%arg0: i32) -> (i32, i32, i32) {
    %c0_i32 = arith.constant 0 : i32
    %c0_i32_0 = arith.constant 0 : i32
    %c0_i32_1 = arith.constant 0 : i32
    return %arg0, %c0_i32, %c0_i32_0 : i32, i32, i32
  }
  func.func @transform_6(%arg0: i32) -> (i32, i32, i32) {
    %c0_i32 = arith.constant 0 : i32
    %c0_i32_0 = arith.constant 0 : i32
    %c0_i32_1 = arith.constant 0 : i32
    return %arg0, %c0_i32, %c0_i32_0 : i32, i32, i32
  }
}

</mosaic_0001>

<llo_original>
// kernel: basic_block_forward.5
$region0: #{basic_block_forward.5}
  #allocation0 [shape = 'u32[]', space=smem, size = 0x4, offset = 0x4, fixed_abs, tag = 'smem constant byte address 0x4 - core index']
  #allocation1 [shape = 'u32[144,128]{1,0:T(1,128)}', space=vmem, size = 0x12000, scoped, tag = 'internal scratch']
  %s0 = inlined_call_operand.vmem [shape: f32[2,16,16,128], index: 0, kind: input, shape index: {}]
  %s1 = inlined_call_operand.vmem [shape: f32[1,128], index: 1, kind: input, shape index: {}]
  %s2 = inlined_call_operand.vmem [shape: f32[1,128], index: 2, kind: input, shape index: {}]
  %s3 = inlined_call_operand.vmem [shape: f32[2,16,16,128], index: 3, kind: input, shape index: {}]
  %s4 = inlined_call_operand.vmem [shape: f32[2,16,16,128], index: 4, kind: output, shape index: {}]
  %s5 = sld [smem:[#allocation0]]
  $region49: #{basic_block_forward.5} parent=0
    _
  %s7 = ssub.s32 1, %s5
  %s8 = scalar_select 0, %s7, %s5
  loop: start=0, step=1, limit=4
  $region2: #{basic_block_forward.5} parent=0 // loop_pre_header
    _
  $region3: #{basic_block_forward.5} parent=0 // loop_header
    %s10 = sphi 0, %s14
    %p11 = scmp.ge.s32.totalorder %s10, 4
    %s20 = sphi 0, %s22
    %s23 = sphi 0, %s20
    %s24 = sphi 0, %s23
    %s40 = sphi 0, %s24
    %s44 = sphi 0, %s44
    %s46 = sphi 0, %s44
    %s47 = sphi 0, %s46
    %s61 = sphi 0, %s47
    %s65 = sphi 0, %s65
    %s67 = sphi 0, %s65
    %s68 = sphi 0, %s67
    %s82 = sphi 0, %s68
    %s88 = sphi 0, %s90
    %s91 = sphi 0, %s88
    %s92 = sphi 0, %s91
    %s108 = sphi 0, %s92
    %s114 = sphi 0, %s116
    %s117 = sphi 0, %s114
    %s118 = sphi 0, %s117
    %s134 = sphi 0, %s118
  $region4: #{basic_block_forward.5} parent=0 // loop_header_branch
    %13 = sbr.rel (%p11) target = $region8
  $region5: #{basic_block_forward.5} parent=0 // loop_body
    %s15 = ssub.s32 %s10, 1
    %s16 = ssub.s32 %s10, 2
    %s17 = sadd.s32 %s10, 1
    %s18 = ssub.s32 %s10, %s17
    %p19 = scmp.eq.s32.totalorder %s18, 0
    %s21 = sadd.s32 %s20, 1
    %s22 = scalar_select %p19, %s20, %s21
    %p25 = pneg %p19
    %p26 = scmp.eq.s32.totalorder %s10, 1
    %p27 = por %p25, %p26
    %p28 = scmp.ne.s32.totalorder %s20, %s23
    %p29 = scmp.eq.s32.totalorder %s10, 0
    %p30 = por %p28, %p29
    %p31 = scmp.ne.s32.totalorder %s20, %s23
    %p32 = scmp.eq.s32.totalorder %s15, 1
    %p33 = por %p31, %p32
    %p34 = scmp.ne.s32.totalorder %s23, %s24
    %p35 = scmp.eq.s32.totalorder %s15, 0
    %p36 = por %p34, %p35
    %p37 = scmp.ne.s32.totalorder %s23, %s24
    %p38 = scmp.eq.s32.totalorder %s16, 1
    %p39 = por %p37, %p38
    %p41 = scmp.ne.s32.totalorder %s24, %s40
    %p42 = scmp.eq.s32.totalorder %s16, 0
    %p43 = por %p41, %p42
    %s45 = sadd.s32 %s44, 1
    %p48 = scmp.eq.s32.totalorder %s10, 1
    %p49 = scmp.ne.s32.totalorder %s44, %s46
    %p50 = scmp.eq.s32.totalorder %s10, 0
    %p51 = por %p49, %p50
    %p52 = scmp.ne.s32.totalorder %s44, %s46
    %p53 = scmp.eq.s32.totalorder %s15, 1
    %p54 = por %p52, %p53
    %p55 = scmp.ne.s32.totalorder %s46, %s47
    %p56 = scmp.eq.s32.totalorder %s15, 0
    %p57 = por %p55, %p56
    %p58 = scmp.ne.s32.totalorder %s46, %s47
    %p59 = scmp.eq.s32.totalorder %s16, 1
    %p60 = por %p58, %p59
    %p62 = scmp.ne.s32.totalorder %s47, %s61
    %p63 = scmp.eq.s32.totalorder %s16, 0
    %p64 = por %p62, %p63
    %s66 = sadd.s32 %s65, 1
    %p69 = scmp.eq.s32.totalorder %s10, 1
    %p70 = scmp.ne.s32.totalorder %s65, %s67
    %p71 = scmp.eq.s32.totalorder %s10, 0
    %p72 = por %p70, %p71
    %p73 = scmp.ne.s32.totalorder %s65, %s67
    %p74 = scmp.eq.s32.totalorder %s15, 1
    %p75 = por %p73, %p74
    %p76 = scmp.ne.s32.totalorder %s67, %s68
    %p77 = scmp.eq.s32.totalorder %s15, 0
    %p78 = por %p76, %p77
    %p79 = scmp.ne.s32.totalorder %s67, %s68
    %p80 = scmp.eq.s32.totalorder %s16, 1
    %p81 = por %p79, %p80
    %p83 = scmp.ne.s32.totalorder %s68, %s82
    %p84 = scmp.eq.s32.totalorder %s16, 0
    %p85 = por %p83, %p84
    %s86 = ssub.s32 %s10, %s17
    %p87 = scmp.eq.s32.totalorder %s86, 0
    %s89 = sadd.s32 %s88, 1
    %s90 = scalar_select %p87, %s88, %s89
    %p93 = pneg %p87
    %p94 = scmp.eq.s32.totalorder %s10, 1
    %p95 = por %p93, %p94
    %p96 = scmp.ne.s32.totalorder %s88, %s91
    %p97 = scmp.eq.s32.totalorder %s10, 0
    %p98 = por %p96, %p97
    %p99 = scmp.ne.s32.totalorder %s88, %s91
    %p100 = scmp.eq.s32.totalorder %s15, 1
    %p101 = por %p99, %p100
    %p102 = scmp.ne.s32.totalorder %s91, %s92
    %p103 = scmp.eq.s32.totalorder %s15, 0
    %p104 = por %p102, %p103
    %p105 = scmp.ne.s32.totalorder %s91, %s92
    %p106 = scmp.eq.s32.totalorder %s16, 1
    %p107 = por %p105, %p106
    %p109 = scmp.ne.s32.totalorder %s92, %s108
    %p110 = scmp.eq.s32.totalorder %s16, 0
    %p111 = por %p109, %p110
    %s112 = ssub.s32 %s10, %s17
    %p113 = scmp.eq.s32.totalorder %s112, 0
    %s115 = sadd.s32 %s114, 1
    %s116 = scalar_select %p113, %s114, %s115
    %p119 = pneg %p113
    %p120 = scmp.eq.s32.totalorder %s10, 1
    %p121 = por %p119, %p120
    %p122 = scmp.ne.s32.totalorder %s114, %s117
    %p123 = scmp.eq.s32.totalorder %s10, 0
    %p124 = por %p122, %p123
    %p125 = scmp.ne.s32.totalorder %s114, %s117
    %p126 = scmp.eq.s32.totalorder %s15, 1
    %p127 = por %p125, %p126
    %p128 = scmp.ne.s32.totalorder %s117, %s118
    %p129 = scmp.eq.s32.totalorder %s15, 0
    %p130 = por %p128, %p129
    %p131 = scmp.ne.s32.totalorder %s117, %s118
    %p132 = scmp.eq.s32.totalorder %s16, 1
    %p133 = por %p131, %p132
    %p135 = scmp.ne.s32.totalorder %s118, %s134
    %p136 = scmp.eq.s32.totalorder %s16, 0
    %p137 = por %p135, %p136
    %p138 = scmp.le.s32.totalorder 1, %s10
    %p139 = scmp.lt.s32.totalorder %s10, 3
    %p140 = pnand %p138, %p139
    %p141 = pneg %p140
    // Predicated region
    $region9: #{basic_block_forward.5} parent=5 // pred_check
      _
    $region10: #{basic_block_forward.5} parent=5 // pred_check_branch
      %143 = sbr.rel (%p140) target = $region12
    $region11: #{basic_block_forward.5} parent=5 // pred_region
      %s144 = ssub.s32 %s10, 1
      // Predicated region
      $region13: #{basic_block_forward.5} parent=11 // pred_check
        %p145 = pneg %p57
      $region14: #{basic_block_forward.5} parent=11 // pred_check_branch
        %147 = sbr.rel (%p145) target = $region16
      $region15: #{basic_block_forward.5} parent=11 // pred_region
        _
      $region16: #{basic_block_forward.5} parent=11 // pred_fallthru
        _
      // Predicated region
      $region17: #{basic_block_forward.5} parent=11 // pred_check
        %p148 = pneg %p78
      $region18: #{basic_block_forward.5} parent=11 // pred_check_branch
        %150 = sbr.rel (%p148) target = $region20
      $region19: #{basic_block_forward.5} parent=11 // pred_region
        _
      $region20: #{basic_block_forward.5} parent=11 // pred_fallthru
        _
    $region12: #{basic_block_forward.5} parent=5 // pred_fallthru
      _
    %p151 = scmp.lt.s32.totalorder %s10, 2
    // Predicated region
    $region21: #{basic_block_forward.5} parent=5 // pred_check
      %p152 = pneg %p151
    $region22: #{basic_block_forward.5} parent=5 // pred_check_branch
      %154 = sbr.rel (%p152) target = $region24
    $region23: #{basic_block_forward.5} parent=5 // pred_region
      // Predicated region
      $region25: #{basic_block_forward.5} parent=23 // pred_check
        %p155 = pneg %p30
      $region26: #{basic_block_forward.5} parent=23 // pred_check_branch
        %157 = sbr.rel (%p155) target = $region28
      $region27: #{basic_block_forward.5} parent=23 // pred_region
        %p158 = scmp.lt.s32.totalorder %s10, 1
        %s159 = scalar_select %p158, %s10, 1
        %s160 = smul.addr %s159, 32
        %s161 = smul.addr %s160, 8
        %s162 = scalar_lea.vmem %s0, %s161
      $region28: #{basic_block_forward.5} parent=23 // pred_fallthru
        _
      // Predicated region
      $region29: #{basic_block_forward.5} parent=23 // pred_check
        %p163 = pneg %p98
      $region30: #{basic_block_forward.5} parent=23 // pred_check_branch
        %165 = sbr.rel (%p163) target = $region32
      $region31: #{basic_block_forward.5} parent=23 // pred_region
        %p166 = scmp.lt.s32.totalorder %s10, 1
        %s167 = scalar_select %p166, %s10, 1
        %s168 = smul.addr %s167, 32
        %s169 = smul.addr %s168, 8
        %s170 = scalar_lea.vmem %s3, %s169
      $region32: #{basic_block_forward.5} parent=23 // pred_fallthru
        _
    $region24: #{basic_block_forward.5} parent=5 // pred_fallthru
      _
    %p171 = scmp.le.s32.totalorder 1, %s10
    %p172 = scmp.lt.s32.totalorder %s10, 3
    %p173 = pnand %p171, %p172
    %p174 = pneg %p173
    // Predicated region
    $region33: #{basic_block_forward.5} parent=5 // pred_check
      _
    $region34: #{basic_block_forward.5} parent=5 // pred_check_branch
      %176 = sbr.rel (%p173) target = $region36
    $region35: #{basic_block_forward.5} parent=5 // pred_region
      %s177 = ssub.s32 %s10, 1
      %p178 = scmp.lt.s32.totalorder %s15, 1
      %s179 = scalar_select %p178, %s15, 1
      %s180 = smul.addr %s179, 32
      %s181 = smul.addr %s180, 8
      %s182 = scalar_lea.vmem %s0, %s181
      %p183 = pneg %p36
      %p184 = pneg %p33
      %p185 = pneg %p57
      %p186 = pneg %p54
      %p187 = pneg %p78
      %p188 = pneg %p75
      %p189 = scmp.lt.s32.totalorder %s15, 1
      %s190 = scalar_select %p189, %s15, 1
      %s191 = smul.addr %s190, 32
      %s192 = smul.addr %s191, 8
      %s193 = scalar_lea.vmem %s3, %s192
      %p194 = pneg %p104
      %p195 = pneg %p101
      %p196 = pneg %p130
      %p197 = pneg %p127
      %p198 = scmp.lt.s32.totalorder %s15, 1
      %s199 = scalar_select %p198, %s15, 1
      %s200 = smul.addr %s199, 32
      %s201 = smul.addr %s200, 8
      %s202 = scalar_lea.vmem %s4, %s201
      %p203 = scmp.lt.s32.totalorder %s15, 1
      %s204 = scalar_select %p203, %s15, 1
      %s205 = smul.addr %s204, 32
      %s206 = smul.addr %s205, 8
      %s207 = scalar_lea.vmem %s0, %s206
      %p208 = scmp.lt.s32.totalorder %s15, 1
      %s209 = scalar_select %p208, %s15, 1
      %s210 = smul.addr %s209, 32
      %s211 = smul.addr %s210, 8
      %s212 = scalar_lea.vmem %s3, %s211
      %p213 = scmp.lt.s32.totalorder %s15, 1
      %s214 = scalar_select %p213, %s15, 1
      %s215 = smul.addr %s214, 32
      %s216 = smul.addr %s215, 8
      %s217 = scalar_lea.vmem %s4, %s216
      %v218 = vld [vmem:[%s207] sm:$0xff]
      %v219 = vld [vmem:[%s207 + $0x8] sm:$0xff]
      %v220 = vld [vmem:[%s207 + $0x10] sm:$0xff]
      %v221 = vld [vmem:[%s207 + $0x18] sm:$0xff]
      %v222 = vld [vmem:[%s207 + $0x20] sm:$0xff]
      %v223 = vld [vmem:[%s207 + $0x28] sm:$0xff]
      %v224 = vld [vmem:[%s207 + $0x30] sm:$0xff]
      %v225 = vld [vmem:[%s207 + $0x38] sm:$0xff]
      %v226 = vld [vmem:[%s207 + $0x40] sm:$0xff]
      %v227 = vld [vmem:[%s207 + $0x48] sm:$0xff]
      %v228 = vld [vmem:[%s207 + $0x50] sm:$0xff]
      %v229 = vld [vmem:[%s207 + $0x58] sm:$0xff]
      %v230 = vld [vmem:[%s207 + $0x60] sm:$0xff]
      %v231 = vld [vmem:[%s207 + $0x68] sm:$0xff]
      %v232 = vld [vmem:[%s207 + $0x70] sm:$0xff]
      %v233 = vld [vmem:[%s207 + $0x78] sm:$0xff]
      %v234 = vld [vmem:[%s207 + $0x80] sm:$0xff]
      %v235 = vld [vmem:[%s207 + $0x88] sm:$0xff]
      %v236 = vld [vmem:[%s207 + $0x90] sm:$0xff]
      %v237 = vld [vmem:[%s207 + $0x98] sm:$0xff]
      %v238 = vld [vmem:[%s207 + $0xa0] sm:$0xff]
      %v239 = vld [vmem:[%s207 + $0xa8] sm:$0xff]
      %v240 = vld [vmem:[%s207 + $0xb0] sm:$0xff]
      %v241 = vld [vmem:[%s207 + $0xb8] sm:$0xff]
      %v242 = vld [vmem:[%s207 + $0xc0] sm:$0xff]
      %v243 = vld [vmem:[%s207 + $0xc8] sm:$0xff]
      %v244 = vld [vmem:[%s207 + $0xd0] sm:$0xff]
      %v245 = vld [vmem:[%s207 + $0xd8] sm:$0xff]
      %v246 = vld [vmem:[%s207 + $0xe0] sm:$0xff]
      %v247 = vld [vmem:[%s207 + $0xe8] sm:$0xff]
      %v248 = vld [vmem:[%s207 + $0xf0] sm:$0xff]
      %v249 = vld [vmem:[%s207 + $0xf8] sm:$0xff]
      %v250 = vld [vmem:[%s1] sm:$0x1]
      %v252 = vlaneseq
      %v253 = vshrl.u32 %v252, 7
      %v254 = vsub.s32 0, %v253
      %v255 = vrot.slane %v250, %v254
      %v257 = vmul.f32 %v218, %v255
      %v258 = vmul.f32 %v219, %v255
      %v259 = vmul.f32 %v220, %v255
      %v260 = vmul.f32 %v221, %v255
      %v261 = vmul.f32 %v222, %v255
      %v262 = vmul.f32 %v223, %v255
      %v263 = vmul.f32 %v224, %v255
      %v264 = vmul.f32 %v225, %v255
      %v265 = vmul.f32 %v226, %v255
      %v266 = vmul.f32 %v227, %v255
      %v267 = vmul.f32 %v228, %v255
      %v268 = vmul.f32 %v229, %v255
      %v269 = vmul.f32 %v230, %v255
      %v270 = vmul.f32 %v231, %v255
      %v271 = vmul.f32 %v232, %v255
      %v272 = vmul.f32 %v233, %v255
      %v273 = vmul.f32 %v234, %v255
      %v274 = vmul.f32 %v235, %v255
      %v275 = vmul.f32 %v236, %v255
      %v276 = vmul.f32 %v237, %v255
      %v277 = vmul.f32 %v238, %v255
      %v278 = vmul.f32 %v239, %v255
      %v279 = vmul.f32 %v240, %v255
      %v280 = vmul.f32 %v241, %v255
      %v281 = vmul.f32 %v242, %v255
      %v282 = vmul.f32 %v243, %v255
      %v283 = vmul.f32 %v244, %v255
      %v284 = vmul.f32 %v245, %v255
      %v285 = vmul.f32 %v246, %v255
      %v286 = vmul.f32 %v247, %v255
      %v287 = vmul.f32 %v248, %v255
      %v288 = vmul.f32 %v249, %v255
      %v289 = vld [vmem:[%s2] sm:$0x1]
      %v291 = vlaneseq
      %v292 = vshrl.u32 %v291, 7
      %v293 = vsub.s32 0, %v292
      %v294 = vrot.slane %v289, %v293
      %v296 = vadd.f32 %v257, %v294
      %v297 = vadd.f32 %v258, %v294
      %v298 = vadd.f32 %v259, %v294
      %v299 = vadd.f32 %v260, %v294
      %v300 = vadd.f32 %v261, %v294
      %v301 = vadd.f32 %v262, %v294
      %v302 = vadd.f32 %v263, %v294
      %v303 = vadd.f32 %v264, %v294
      %v304 = vadd.f32 %v265, %v294
      %v305 = vadd.f32 %v266, %v294
      %v306 = vadd.f32 %v267, %v294
      %v307 = vadd.f32 %v268, %v294
      %v308 = vadd.f32 %v269, %v294
      %v309 = vadd.f32 %v270, %v294
      %v310 = vadd.f32 %v271, %v294
      %v311 = vadd.f32 %v272, %v294
      %v312 = vadd.f32 %v273, %v294
      %v313 = vadd.f32 %v274, %v294
      %v314 = vadd.f32 %v275, %v294
      %v315 = vadd.f32 %v276, %v294
      %v316 = vadd.f32 %v277, %v294
      %v317 = vadd.f32 %v278, %v294
      %v318 = vadd.f32 %v279, %v294
      %v319 = vadd.f32 %v280, %v294
      %v320 = vadd.f32 %v281, %v294
      %v321 = vadd.f32 %v282, %v294
      %v322 = vadd.f32 %v283, %v294
      %v323 = vadd.f32 %v284, %v294
      %v324 = vadd.f32 %v285, %v294
      %v325 = vadd.f32 %v286, %v294
      %v326 = vadd.f32 %v287, %v294
      %v327 = vadd.f32 %v288, %v294
      %v328 = vld [vmem:[%s212] sm:$0xff]
      %v329 = vld [vmem:[%s212 + $0x8] sm:$0xff]
      %v330 = vld [vmem:[%s212 + $0x10] sm:$0xff]
      %v331 = vld [vmem:[%s212 + $0x18] sm:$0xff]
      %v332 = vld [vmem:[%s212 + $0x20] sm:$0xff]
      %v333 = vld [vmem:[%s212 + $0x28] sm:$0xff]
      %v334 = vld [vmem:[%s212 + $0x30] sm:$0xff]
      %v335 = vld [vmem:[%s212 + $0x38] sm:$0xff]
      %v336 = vld [vmem:[%s212 + $0x40] sm:$0xff]
      %v337 = vld [vmem:[%s212 + $0x48] sm:$0xff]
      %v338 = vld [vmem:[%s212 + $0x50] sm:$0xff]
      %v339 = vld [vmem:[%s212 + $0x58] sm:$0xff]
      %v340 = vld [vmem:[%s212 + $0x60] sm:$0xff]
      %v341 = vld [vmem:[%s212 + $0x68] sm:$0xff]
      %v342 = vld [vmem:[%s212 + $0x70] sm:$0xff]
      %v343 = vld [vmem:[%s212 + $0x78] sm:$0xff]
      %v344 = vld [vmem:[%s212 + $0x80] sm:$0xff]
      %v345 = vld [vmem:[%s212 + $0x88] sm:$0xff]
      %v346 = vld [vmem:[%s212 + $0x90] sm:$0xff]
      %v347 = vld [vmem:[%s212 + $0x98] sm:$0xff]
      %v348 = vld [vmem:[%s212 + $0xa0] sm:$0xff]
      %v349 = vld [vmem:[%s212 + $0xa8] sm:$0xff]
      %v350 = vld [vmem:[%s212 + $0xb0] sm:$0xff]
      %v351 = vld [vmem:[%s212 + $0xb8] sm:$0xff]
      %v352 = vld [vmem:[%s212 + $0xc0] sm:$0xff]
      %v353 = vld [vmem:[%s212 + $0xc8] sm:$0xff]
      %v354 = vld [vmem:[%s212 + $0xd0] sm:$0xff]
      %v355 = vld [vmem:[%s212 + $0xd8] sm:$0xff]
      %v356 = vld [vmem:[%s212 + $0xe0] sm:$0xff]
      %v357 = vld [vmem:[%s212 + $0xe8] sm:$0xff]
      %v358 = vld [vmem:[%s212 + $0xf0] sm:$0xff]
      %v359 = vld [vmem:[%s212 + $0xf8] sm:$0xff]
      %v360 = vadd.f32 %v296, %v328
      %v361 = vadd.f32 %v297, %v329
      %v362 = vadd.f32 %v298, %v330
      %v363 = vadd.f32 %v299, %v331
      %v364 = vadd.f32 %v300, %v332
      %v365 = vadd.f32 %v301, %v333
      %v366 = vadd.f32 %v302, %v334
      %v367 = vadd.f32 %v303, %v335
      %v368 = vadd.f32 %v304, %v336
      %v369 = vadd.f32 %v305, %v337
      %v370 = vadd.f32 %v306, %v338
      %v371 = vadd.f32 %v307, %v339
      %v372 = vadd.f32 %v308, %v340
      %v373 = vadd.f32 %v309, %v341
      %v374 = vadd.f32 %v310, %v342
      %v375 = vadd.f32 %v311, %v343
      %v376 = vadd.f32 %v312, %v344
      %v377 = vadd.f32 %v313, %v345
      %v378 = vadd.f32 %v314, %v346
      %v379 = vadd.f32 %v315, %v347
      %v380 = vadd.f32 %v316, %v348
      %v381 = vadd.f32 %v317, %v349
      %v382 = vadd.f32 %v318, %v350
      %v383 = vadd.f32 %v319, %v351
      %v384 = vadd.f32 %v320, %v352
      %v385 = vadd.f32 %v321, %v353
      %v386 = vadd.f32 %v322, %v354
      %v387 = vadd.f32 %v323, %v355
      %v388 = vadd.f32 %v324, %v356
      %v389 = vadd.f32 %v325, %v357
      %v390 = vadd.f32 %v326, %v358
      %v391 = vadd.f32 %v327, %v359
      %v392 = vmax.f32 %v360, 0.0
      %v393 = vmax.f32 %v361, 0.0
      %v394 = vmax.f32 %v362, 0.0
      %v395 = vmax.f32 %v363, 0.0
      %v396 = vmax.f32 %v364, 0.0
      %v397 = vmax.f32 %v365, 0.0
      %v398 = vmax.f32 %v366, 0.0
      %v399 = vmax.f32 %v367, 0.0
      %v400 = vmax.f32 %v368, 0.0
      %v401 = vmax.f32 %v369, 0.0
      %v402 = vmax.f32 %v370, 0.0
      %v403 = vmax.f32 %v371, 0.0
      %v404 = vmax.f32 %v372, 0.0
      %v405 = vmax.f32 %v373, 0.0
      %v406 = vmax.f32 %v374, 0.0
      %v407 = vmax.f32 %v375, 0.0
      %v408 = vmax.f32 %v376, 0.0
      %v409 = vmax.f32 %v377, 0.0
      %v410 = vmax.f32 %v378, 0.0
      %v411 = vmax.f32 %v379, 0.0
      %v412 = vmax.f32 %v380, 0.0
      %v413 = vmax.f32 %v381, 0.0
      %v414 = vmax.f32 %v382, 0.0
      %v415 = vmax.f32 %v383, 0.0
      %v416 = vmax.f32 %v384, 0.0
      %v417 = vmax.f32 %v385, 0.0
      %v418 = vmax.f32 %v386, 0.0
      %v419 = vmax.f32 %v387, 0.0
      %v420 = vmax.f32 %v388, 0.0
      %v421 = vmax.f32 %v389, 0.0
      %v422 = vmax.f32 %v390, 0.0
      %v423 = vmax.f32 %v391, 0.0
      %424 = vst [vmem:[%s217] sm:$0xff] %v392
      %425 = vst [vmem:[%s217 + $0x8] sm:$0xff] %v393
      %426 = vst [vmem:[%s217 + $0x10] sm:$0xff] %v394
      %427 = vst [vmem:[%s217 + $0x18] sm:$0xff] %v395
      %428 = vst [vmem:[%s217 + $0x20] sm:$0xff] %v396
      %429 = vst [vmem:[%s217 + $0x28] sm:$0xff] %v397
      %430 = vst [vmem:[%s217 + $0x30] sm:$0xff] %v398
      %431 = vst [vmem:[%s217 + $0x38] sm:$0xff] %v399
      %432 = vst [vmem:[%s217 + $0x40] sm:$0xff] %v400
      %433 = vst [vmem:[%s217 + $0x48] sm:$0xff] %v401
      %434 = vst [vmem:[%s217 + $0x50] sm:$0xff] %v402
      %435 = vst [vmem:[%s217 + $0x58] sm:$0xff] %v403
      %436 = vst [vmem:[%s217 + $0x60] sm:$0xff] %v404
      %437 = vst [vmem:[%s217 + $0x68] sm:$0xff] %v405
      %438 = vst [vmem:[%s217 + $0x70] sm:$0xff] %v406
      %439 = vst [vmem:[%s217 + $0x78] sm:$0xff] %v407
      %440 = vst [vmem:[%s217 + $0x80] sm:$0xff] %v408
      %441 = vst [vmem:[%s217 + $0x88] sm:$0xff] %v409
      %442 = vst [vmem:[%s217 + $0x90] sm:$0xff] %v410
      %443 = vst [vmem:[%s217 + $0x98] sm:$0xff] %v411
      %444 = vst [vmem:[%s217 + $0xa0] sm:$0xff] %v412
      %445 = vst [vmem:[%s217 + $0xa8] sm:$0xff] %v413
      %446 = vst [vmem:[%s217 + $0xb0] sm:$0xff] %v414
      %447 = vst [vmem:[%s217 + $0xb8] sm:$0xff] %v415
      %448 = vst [vmem:[%s217 + $0xc0] sm:$0xff] %v416
      %449 = vst [vmem:[%s217 + $0xc8] sm:$0xff] %v417
      %450 = vst [vmem:[%s217 + $0xd0] sm:$0xff] %v418
      %451 = vst [vmem:[%s217 + $0xd8] sm:$0xff] %v419
      %452 = vst [vmem:[%s217 + $0xe0] sm:$0xff] %v420
      %453 = vst [vmem:[%s217 + $0xe8] sm:$0xff] %v421
      %454 = vst [vmem:[%s217 + $0xf0] sm:$0xff] %v422
      %455 = vst [vmem:[%s217 + $0xf8] sm:$0xff] %v423
      %p456 = scmp.lt.s32.totalorder %s15, 1
      %s457 = scalar_select %p456, %s15, 1
      %s458 = smul.addr %s457, 32
      %s459 = smul.addr %s458, 8
      %s460 = scalar_lea.vmem %s4, %s459
      // Predicated region
      $region37: #{basic_block_forward.5} parent=35 // pred_check
        %p461 = pneg %p127
      $region38: #{basic_block_forward.5} parent=35 // pred_check_branch
        %463 = sbr.rel (%p461) target = $region40
      $region39: #{basic_block_forward.5} parent=35 // pred_region
        _
      $region40: #{basic_block_forward.5} parent=35 // pred_fallthru
        _
    $region36: #{basic_block_forward.5} parent=5 // pred_fallthru
      _
    %p464 = scmp.le.s32.totalorder 2, %s10
    // Predicated region
    $region41: #{basic_block_forward.5} parent=5 // pred_check
      %p465 = pneg %p464
    $region42: #{basic_block_forward.5} parent=5 // pred_check_branch
      %467 = sbr.rel (%p465) target = $region44
    $region43: #{basic_block_forward.5} parent=5 // pred_region
      %s468 = ssub.s32 %s10, 2
      // Predicated region
      $region45: #{basic_block_forward.5} parent=43 // pred_check
        %p469 = pneg %p133
      $region46: #{basic_block_forward.5} parent=43 // pred_check_branch
        %471 = sbr.rel (%p469) target = $region48
      $region47: #{basic_block_forward.5} parent=43 // pred_region
        %p472 = scmp.lt.s32.totalorder %s16, 1
        %s473 = scalar_select %p472, %s16, 1
        %s474 = smul.addr %s473, 32
        %s475 = smul.addr %s474, 8
        %s476 = scalar_lea.vmem %s4, %s475
      $region48: #{basic_block_forward.5} parent=43 // pred_fallthru
        _
    $region44: #{basic_block_forward.5} parent=5 // pred_fallthru
      _
  $region6: #{basic_block_forward.5} parent=0 // loop_footer
    %s14 = sadd.s32 1, %s10
  $region7: #{basic_block_forward.5} parent=0 // loop_footer_branch
    %9 = sbr.rel target = $region3
  $region8: #{basic_block_forward.5} parent=0 // loop_exit
    _

// kernel: basic_block_forward.4
$region0: #{basic_block_forward.4}
  #allocation0 [shape = 'u32[]', space=smem, size = 0x4, offset = 0x4, fixed_abs, tag = 'smem constant byte address 0x4 - core index']
  #allocation1 [shape = 'u32[144,128]{1,0:T(1,128)}', space=vmem, size = 0x12000, scoped, tag = 'internal scratch']
  #allocation2 [shape = 'f32[18,18,128]{2,1,0:T(8,128)}', space=vmem, size = 0x36000, scoped, tag = 'scratch operand']
  %s0 = inlined_call_operand.vmem [shape: f32[2,16,16,128], index: 0, kind: input, shape index: {}]
  %s1 = inlined_call_operand.vmem [shape: f32[1,128], index: 1, kind: input, shape index: {}]
  %s2 = inlined_call_operand.vmem [shape: f32[1,128], index: 2, kind: input, shape index: {}]
  %s3 = inlined_call_operand.vmem [shape: bf16[9,128,128], index: 3, kind: input, shape index: {}]
  %s4 = inlined_call_operand.vmem [shape: f32[2,16,16,128], index: 4, kind: output, shape index: {0}]
  %s5 = inlined_call_operand.vmem [shape: f32[2,1,128], index: 5, kind: output, shape index: {1}]
  %s6 = inlined_call_operand.vmem [shape: f32[2,1,128], index: 6, kind: output, shape index: {2}]
  %7 = xla_tuple %s4, %s5, %s6
  %s8 = sld [smem:[#allocation0]]
  $region65: #{basic_block_forward.4} parent=0
    _
  %s10 = ssub.s32 1, %s8
  %s11 = scalar_select 0, %s10, %s8
  loop: start=0, step=1, limit=4
  $region2: #{basic_block_forward.4} parent=0 // loop_pre_header
    _
  $region3: #{basic_block_forward.4} parent=0 // loop_header
    %s13 = sphi 0, %s17
    %p14 = scmp.ge.s32.totalorder %s13, 4
    %s23 = sphi 0, %s25
    %s26 = sphi 0, %s23
    %s27 = sphi 0, %s26
    %s43 = sphi 0, %s27
    %s47 = sphi 0, %s47
    %s49 = sphi 0, %s47
    %s50 = sphi 0, %s49
    %s64 = sphi 0, %s50
    %s68 = sphi 0, %s68
    %s70 = sphi 0, %s68
    %s71 = sphi 0, %s70
    %s85 = sphi 0, %s71
    %s89 = sphi 0, %s89
    %s91 = sphi 0, %s89
    %s92 = sphi 0, %s91
    %s106 = sphi 0, %s92
    %s112 = sphi 0, %s114
    %s115 = sphi 0, %s112
    %s116 = sphi 0, %s115
    %s132 = sphi 0, %s116
    %s138 = sphi 0, %s140
    %s141 = sphi 0, %s138
    %s142 = sphi 0, %s141
    %s158 = sphi 0, %s142
    %s164 = sphi 0, %s166
    %s167 = sphi 0, %s164
    %s168 = sphi 0, %s167
    %s184 = sphi 0, %s168
  $region4: #{basic_block_forward.4} parent=0 // loop_header_branch
    %16 = sbr.rel (%p14) target = $region8
  $region5: #{basic_block_forward.4} parent=0 // loop_body
    %s18 = ssub.s32 %s13, 1
    %s19 = ssub.s32 %s13, 2
    %s20 = sadd.s32 %s13, 1
    %s21 = ssub.s32 %s13, %s20
    %p22 = scmp.eq.s32.totalorder %s21, 0
    %s24 = sadd.s32 %s23, 1
    %s25 = scalar_select %p22, %s23, %s24
    %p28 = pneg %p22
    %p29 = scmp.eq.s32.totalorder %s13, 1
    %p30 = por %p28, %p29
    %p31 = scmp.ne.s32.totalorder %s23, %s26
    %p32 = scmp.eq.s32.totalorder %s13, 0
    %p33 = por %p31, %p32
    %p34 = scmp.ne.s32.totalorder %s23, %s26
    %p35 = scmp.eq.s32.totalorder %s18, 1
    %p36 = por %p34, %p35
    %p37 = scmp.ne.s32.totalorder %s26, %s27
    %p38 = scmp.eq.s32.totalorder %s18, 0
    %p39 = por %p37, %p38
    %p40 = scmp.ne.s32.totalorder %s26, %s27
    %p41 = scmp.eq.s32.totalorder %s19, 1
    %p42 = por %p40, %p41
    %p44 = scmp.ne.s32.totalorder %s27, %s43
    %p45 = scmp.eq.s32.totalorder %s19, 0
    %p46 = por %p44, %p45
    %s48 = sadd.s32 %s47, 1
    %p51 = scmp.eq.s32.totalorder %s13, 1
    %p52 = scmp.ne.s32.totalorder %s47, %s49
    %p53 = scmp.eq.s32.totalorder %s13, 0
    %p54 = por %p52, %p53
    %p55 = scmp.ne.s32.totalorder %s47, %s49
    %p56 = scmp.eq.s32.totalorder %s18, 1
    %p57 = por %p55, %p56
    %p58 = scmp.ne.s32.totalorder %s49, %s50
    %p59 = scmp.eq.s32.totalorder %s18, 0
    %p60 = por %p58, %p59
    %p61 = scmp.ne.s32.totalorder %s49, %s50
    %p62 = scmp.eq.s32.totalorder %s19, 1
    %p63 = por %p61, %p62
    %p65 = scmp.ne.s32.totalorder %s50, %s64
    %p66 = scmp.eq.s32.totalorder %s19, 0
    %p67 = por %p65, %p66
    %s69 = sadd.s32 %s68, 1
    %p72 = scmp.eq.s32.totalorder %s13, 1
    %p73 = scmp.ne.s32.totalorder %s68, %s70
    %p74 = scmp.eq.s32.totalorder %s13, 0
    %p75 = por %p73, %p74
    %p76 = scmp.ne.s32.totalorder %s68, %s70
    %p77 = scmp.eq.s32.totalorder %s18, 1
    %p78 = por %p76, %p77
    %p79 = scmp.ne.s32.totalorder %s70, %s71
    %p80 = scmp.eq.s32.totalorder %s18, 0
    %p81 = por %p79, %p80
    %p82 = scmp.ne.s32.totalorder %s70, %s71
    %p83 = scmp.eq.s32.totalorder %s19, 1
    %p84 = por %p82, %p83
    %p86 = scmp.ne.s32.totalorder %s71, %s85
    %p87 = scmp.eq.s32.totalorder %s19, 0
    %p88 = por %p86, %p87
    %s90 = sadd.s32 %s89, 1
    %p93 = scmp.eq.s32.totalorder %s13, 1
    %p94 = scmp.ne.s32.totalorder %s89, %s91
    %p95 = scmp.eq.s32.totalorder %s13, 0
    %p96 = por %p94, %p95
    %p97 = scmp.ne.s32.totalorder %s89, %s91
    %p98 = scmp.eq.s32.totalorder %s18, 1
    %p99 = por %p97, %p98
    %p100 = scmp.ne.s32.totalorder %s91, %s92
    %p101 = scmp.eq.s32.totalorder %s18, 0
    %p102 = por %p100, %p101
    %p103 = scmp.ne.s32.totalorder %s91, %s92
    %p104 = scmp.eq.s32.totalorder %s19, 1
    %p105 = por %p103, %p104
    %p107 = scmp.ne.s32.totalorder %s92, %s106
    %p108 = scmp.eq.s32.totalorder %s19, 0
    %p109 = por %p107, %p108
    %s110 = ssub.s32 %s13, %s20
    %p111 = scmp.eq.s32.totalorder %s110, 0
    %s113 = sadd.s32 %s112, 1
    %s114 = scalar_select %p111, %s112, %s113
    %p117 = pneg %p111
    %p118 = scmp.eq.s32.totalorder %s13, 1
    %p119 = por %p117, %p118
    %p120 = scmp.ne.s32.totalorder %s112, %s115
    %p121 = scmp.eq.s32.totalorder %s13, 0
    %p122 = por %p120, %p121
    %p123 = scmp.ne.s32.totalorder %s112, %s115
    %p124 = scmp.eq.s32.totalorder %s18, 1
    %p125 = por %p123, %p124
    %p126 = scmp.ne.s32.totalorder %s115, %s116
    %p127 = scmp.eq.s32.totalorder %s18, 0
    %p128 = por %p126, %p127
    %p129 = scmp.ne.s32.totalorder %s115, %s116
    %p130 = scmp.eq.s32.totalorder %s19, 1
    %p131 = por %p129, %p130
    %p133 = scmp.ne.s32.totalorder %s116, %s132
    %p134 = scmp.eq.s32.totalorder %s19, 0
    %p135 = por %p133, %p134
    %s136 = ssub.s32 %s13, %s20
    %p137 = scmp.eq.s32.totalorder %s136, 0
    %s139 = sadd.s32 %s138, 1
    %s140 = scalar_select %p137, %s138, %s139
    %p143 = pneg %p137
    %p144 = scmp.eq.s32.totalorder %s13, 1
    %p145 = por %p143, %p144
    %p146 = scmp.ne.s32.totalorder %s138, %s141
    %p147 = scmp.eq.s32.totalorder %s13, 0
    %p148 = por %p146, %p147
    %p149 = scmp.ne.s32.totalorder %s138, %s141
    %p150 = scmp.eq.s32.totalorder %s18, 1
    %p151 = por %p149, %p150
    %p152 = scmp.ne.s32.totalorder %s141, %s142
    %p153 = scmp.eq.s32.totalorder %s18, 0
    %p154 = por %p152, %p153
    %p155 = scmp.ne.s32.totalorder %s141, %s142
    %p156 = scmp.eq.s32.totalorder %s19, 1
    %p157 = por %p155, %p156
    %p159 = scmp.ne.s32.totalorder %s142, %s158
    %p160 = scmp.eq.s32.totalorder %s19, 0
    %p161 = por %p159, %p160
    %s162 = ssub.s32 %s13, %s20
    %p163 = scmp.eq.s32.totalorder %s162, 0
    %s165 = sadd.s32 %s164, 1
    %s166 = scalar_select %p163, %s164, %s165
    %p169 = pneg %p163
    %p170 = scmp.eq.s32.totalorder %s13, 1
    %p171 = por %p169, %p170
    %p172 = scmp.ne.s32.totalorder %s164, %s167
    %p173 = scmp.eq.s32.totalorder %s13, 0
    %p174 = por %p172, %p173
    %p175 = scmp.ne.s32.totalorder %s164, %s167
    %p176 = scmp.eq.s32.totalorder %s18, 1
    %p177 = por %p175, %p176
    %p178 = scmp.ne.s32.totalorder %s167, %s168
    %p179 = scmp.eq.s32.totalorder %s18, 0
    %p180 = por %p178, %p179
    %p181 = scmp.ne.s32.totalorder %s167, %s168
    %p182 = scmp.eq.s32.totalorder %s19, 1
    %p183 = por %p181, %p182
    %p185 = scmp.ne.s32.totalorder %s168, %s184
    %p186 = scmp.eq.s32.totalorder %s19, 0
    %p187 = por %p185, %p186
    %p188 = scmp.le.s32.totalorder 1, %s13
    %p189 = scmp.lt.s32.totalorder %s13, 3
    %p190 = pnand %p188, %p189
    %p191 = pneg %p190
    // Predicated region
    $region9: #{basic_block_forward.4} parent=5 // pred_check
      _
    $region10: #{basic_block_forward.4} parent=5 // pred_check_branch
      %193 = sbr.rel (%p190) target = $region12
    $region11: #{basic_block_forward.4} parent=5 // pred_region
      %s194 = ssub.s32 %s13, 1
      // Predicated region
      $region13: #{basic_block_forward.4} parent=11 // pred_check
        %p195 = pneg %p60
      $region14: #{basic_block_forward.4} parent=11 // pred_check_branch
        %197 = sbr.rel (%p195) target = $region16
      $region15: #{basic_block_forward.4} parent=11 // pred_region
        _
      $region16: #{basic_block_forward.4} parent=11 // pred_fallthru
        _
      // Predicated region
      $region17: #{basic_block_forward.4} parent=11 // pred_check
        %p198 = pneg %p81
      $region18: #{basic_block_forward.4} parent=11 // pred_check_branch
        %200 = sbr.rel (%p198) target = $region20
      $region19: #{basic_block_forward.4} parent=11 // pred_region
        _
      $region20: #{basic_block_forward.4} parent=11 // pred_fallthru
        _
      // Predicated region
      $region21: #{basic_block_forward.4} parent=11 // pred_check
        %p201 = pneg %p102
      $region22: #{basic_block_forward.4} parent=11 // pred_check_branch
        %203 = sbr.rel (%p201) target = $region24
      $region23: #{basic_block_forward.4} parent=11 // pred_region
        _
      $region24: #{basic_block_forward.4} parent=11 // pred_fallthru
        _
    $region12: #{basic_block_forward.4} parent=5 // pred_fallthru
      _
    %p204 = scmp.lt.s32.totalorder %s13, 2
    // Predicated region
    $region25: #{basic_block_forward.4} parent=5 // pred_check
      %p205 = pneg %p204
    $region26: #{basic_block_forward.4} parent=5 // pred_check_branch
      %207 = sbr.rel (%p205) target = $region28
    $region27: #{basic_block_forward.4} parent=5 // pred_region
      // Predicated region
      $region29: #{basic_block_forward.4} parent=27 // pred_check
        %p208 = pneg %p33
      $region30: #{basic_block_forward.4} parent=27 // pred_check_branch
        %210 = sbr.rel (%p208) target = $region32
      $region31: #{basic_block_forward.4} parent=27 // pred_region
        %p211 = scmp.lt.s32.totalorder %s13, 1
        %s212 = scalar_select %p211, %s13, 1
        %s213 = smul.addr %s212, 32
        %s214 = smul.addr %s213, 8
        %s215 = scalar_lea.vmem %s0, %s214
      $region32: #{basic_block_forward.4} parent=27 // pred_fallthru
        _
    $region28: #{basic_block_forward.4} parent=5 // pred_fallthru
      _
    %p216 = scmp.le.s32.totalorder 1, %s13
    %p217 = scmp.lt.s32.totalorder %s13, 3
    %p218 = pnand %p216, %p217
    %p219 = pneg %p218
    // Predicated region
    $region33: #{basic_block_forward.4} parent=5 // pred_check
      _
    $region34: #{basic_block_forward.4} parent=5 // pred_check_branch
      %221 = sbr.rel (%p218) target = $region36
    $region35: #{basic_block_forward.4} parent=5 // pred_region
      %s222 = ssub.s32 %s13, 1
      %p223 = scmp.lt.s32.totalorder %s18, 1
      %s224 = scalar_select %p223, %s18, 1
      %s225 = smul.addr %s224, 32
      %s226 = smul.addr %s225, 8
      %s227 = scalar_lea.vmem %s0, %s226
      %p228 = pneg %p39
      %p229 = pneg %p36
      %p230 = pneg %p60
      %p231 = pneg %p57
      %p232 = pneg %p81
      %p233 = pneg %p78
      %p234 = pneg %p102
      %p235 = pneg %p99
      %p236 = pneg %p128
      %p237 = pneg %p125
      %p238 = scmp.lt.s32.totalorder %s18, 1
      %s239 = scalar_select %p238, %s18, 1
      %s240 = smul.addr %s239, 32
      %s241 = smul.addr %s240, 8
      %s242 = scalar_lea.vmem %s4, %s241
      %p243 = pneg %p154
      %p244 = pneg %p151
      %p245 = scmp.lt.s32.totalorder %s18, 1
      %s246 = scalar_select %p245, %s18, 1
      %s247 = scalar_lea.vmem %s5, %s246
      %p248 = pneg %p180
      %p249 = pneg %p177
      %p250 = scmp.lt.s32.totalorder %s18, 1
      %s251 = scalar_select %p250, %s18, 1
      %s252 = scalar_lea.vmem %s6, %s251
      %p253 = scmp.lt.s32.totalorder %s18, 1
      %s254 = scalar_select %p253, %s18, 1
      %s255 = smul.addr %s254, 32
      %s256 = smul.addr %s255, 8
      %s257 = scalar_lea.vmem %s0, %s256
      %p258 = scmp.lt.s32.totalorder %s18, 1
      %s259 = scalar_select %p258, %s18, 1
      %s260 = smul.addr %s259, 32
      %s261 = smul.addr %s260, 8
      %s262 = scalar_lea.vmem %s4, %s261
      %p263 = scmp.lt.s32.totalorder %s18, 1
      %s264 = scalar_select %p263, %s18, 1
      %s265 = scalar_lea.vmem %s5, %s264
      %p266 = scmp.lt.s32.totalorder %s18, 1
      %s267 = scalar_select %p266, %s18, 1
      %s268 = scalar_lea.vmem %s6, %s267
      %v270 = vld [vmem:[%s1] sm:$0x1]
      %v271 = vld [vmem:[%s2] sm:$0x1]
      %272 = vst [vmem:[#allocation2] sm:$0xff] 0.0
      %273 = vst [vmem:[#allocation2 + $0x8] sm:$0xff] 0.0
      %274 = vst [vmem:[#allocation2 + $0x10] sm:$0x3] 0.0
      %275 = vst [vmem:[#allocation2 + $0x18] sm:$0xff] 0.0
      %276 = vst [vmem:[#allocation2 + $0x20] sm:$0xff] 0.0
      %277 = vst [vmem:[#allocation2 + $0x28] sm:$0x3] 0.0
      %278 = vst [vmem:[#allocation2 + $0x30] sm:$0xff] 0.0
      %279 = vst [vmem:[#allocation2 + $0x38] sm:$0xff] 0.0
      %280 = vst [vmem:[#allocation2 + $0x40] sm:$0x3] 0.0
      %281 = vst [vmem:[#allocation2 + $0x48] sm:$0xff] 0.0
      %282 = vst [vmem:[#allocation2 + $0x50] sm:$0xff] 0.0
      %283 = vst [vmem:[#allocation2 + $0x58] sm:$0x3] 0.0
      %284 = vst [vmem:[#allocation2 + $0x60] sm:$0xff] 0.0
      %285 = vst [vmem:[#allocation2 + $0x68] sm:$0xff] 0.0
      %286 = vst [vmem:[#allocation2 + $0x70] sm:$0x3] 0.0
      %287 = vst [vmem:[#allocation2 + $0x78] sm:$0xff] 0.0
      %288 = vst [vmem:[#allocation2 + $0x80] sm:$0xff] 0.0
      %289 = vst [vmem:[#allocation2 + $0x88] sm:$0x3] 0.0
      %290 = vst [vmem:[#allocation2 + $0x90] sm:$0xff] 0.0
      %291 = vst [vmem:[#allocation2 + $0x98] sm:$0xff] 0.0
      %292 = vst [vmem:[#allocation2 + $0xa0] sm:$0x3] 0.0
      %293 = vst [vmem:[#allocation2 + $0xa8] sm:$0xff] 0.0
      %294 = vst [vmem:[#allocation2 + $0xb0] sm:$0xff] 0.0
      %295 = vst [vmem:[#allocation2 + $0xb8] sm:$0x3] 0.0
      %296 = vst [vmem:[#allocation2 + $0xc0] sm:$0xff] 0.0
      %297 = vst [vmem:[#allocation2 + $0xc8] sm:$0xff] 0.0
      %298 = vst [vmem:[#allocation2 + $0xd0] sm:$0x3] 0.0
      %299 = vst [vmem:[#allocation2 + $0xd8] sm:$0xff] 0.0
      %300 = vst [vmem:[#allocation2 + $0xe0] sm:$0xff] 0.0
      %301 = vst [vmem:[#allocation2 + $0xe8] sm:$0x3] 0.0
      %302 = vst [vmem:[#allocation2 + $0xf0] sm:$0xff] 0.0
      %303 = vst [vmem:[#allocation2 + $0xf8] sm:$0xff] 0.0
      %304 = vst [vmem:[#allocation2 + $0x100] sm:$0x3] 0.0
      %305 = vst [vmem:[#allocation2 + $0x108] sm:$0xff] 0.0
      %306 = vst [vmem:[#allocation2 + $0x110] sm:$0xff] 0.0
      %307 = vst [vmem:[#allocation2 + $0x118] sm:$0x3] 0.0
      %308 = vst [vmem:[#allocation2 + $0x120] sm:$0xff] 0.0
      %309 = vst [vmem:[#allocation2 + $0x128] sm:$0xff] 0.0
      %310 = vst [vmem:[#allocation2 + $0x130] sm:$0x3] 0.0
      %311 = vst [vmem:[#allocation2 + $0x138] sm:$0xff] 0.0
      %312 = vst [vmem:[#allocation2 + $0x140] sm:$0xff] 0.0
      %313 = vst [vmem:[#allocation2 + $0x148] sm:$0x3] 0.0
      %314 = vst [vmem:[#allocation2 + $0x150] sm:$0xff] 0.0
      %315 = vst [vmem:[#allocation2 + $0x158] sm:$0xff] 0.0
      %316 = vst [vmem:[#allocation2 + $0x160] sm:$0x3] 0.0
      %317 = vst [vmem:[#allocation2 + $0x168] sm:$0xff] 0.0
      %318 = vst [vmem:[#allocation2 + $0x170] sm:$0xff] 0.0
      %319 = vst [vmem:[#allocation2 + $0x178] sm:$0x3] 0.0
      %320 = vst [vmem:[#allocation2 + $0x180] sm:$0xff] 0.0
      %321 = vst [vmem:[#allocation2 + $0x188] sm:$0xff] 0.0
      %322 = vst [vmem:[#allocation2 + $0x190] sm:$0x3] 0.0
      %323 = vst [vmem:[#allocation2 + $0x198] sm:$0xff] 0.0
      %324 = vst [vmem:[#allocation2 + $0x1a0] sm:$0xff] 0.0
      %325 = vst [vmem:[#allocation2 + $0x1a8] sm:$0x3] 0.0
      %v326 = vld [vmem:[%s257] sm:$0xff]
      %v327 = vld [vmem:[%s257 + $0x8] sm:$0xff]
      %v328 = vld [vmem:[%s257 + $0x10] sm:$0xff]
      %v329 = vld [vmem:[%s257 + $0x18] sm:$0xff]
      %v330 = vld [vmem:[%s257 + $0x20] sm:$0xff]
      %v331 = vld [vmem:[%s257 + $0x28] sm:$0xff]
      %v332 = vld [vmem:[%s257 + $0x30] sm:$0xff]
      %v333 = vld [vmem:[%s257 + $0x38] sm:$0xff]
      %v334 = vld [vmem:[%s257 + $0x40] sm:$0xff]
      %v335 = vld [vmem:[%s257 + $0x48] sm:$0xff]
      %v336 = vld [vmem:[%s257 + $0x50] sm:$0xff]
      %v337 = vld [vmem:[%s257 + $0x58] sm:$0xff]
      %v338 = vld [vmem:[%s257 + $0x60] sm:$0xff]
      %v339 = vld [vmem:[%s257 + $0x68] sm:$0xff]
      %v340 = vld [vmem:[%s257 + $0x70] sm:$0xff]
      %v341 = vld [vmem:[%s257 + $0x78] sm:$0xff]
      %v342 = vld [vmem:[%s257 + $0x80] sm:$0xff]
      %v343 = vld [vmem:[%s257 + $0x88] sm:$0xff]
      %v344 = vld [vmem:[%s257 + $0x90] sm:$0xff]
      %v345 = vld [vmem:[%s257 + $0x98] sm:$0xff]
      %v346 = vld [vmem:[%s257 + $0xa0] sm:$0xff]
      %v347 = vld [vmem:[%s257 + $0xa8] sm:$0xff]
      %v348 = vld [vmem:[%s257 + $0xb0] sm:$0xff]
      %v349 = vld [vmem:[%s257 + $0xb8] sm:$0xff]
      %v350 = vld [vmem:[%s257 + $0xc0] sm:$0xff]
      %v351 = vld [vmem:[%s257 + $0xc8] sm:$0xff]
      %v352 = vld [vmem:[%s257 + $0xd0] sm:$0xff]
      %v353 = vld [vmem:[%s257 + $0xd8] sm:$0xff]
      %v354 = vld [vmem:[%s257 + $0xe0] sm:$0xff]
      %v355 = vld [vmem:[%s257 + $0xe8] sm:$0xff]
      %v356 = vld [vmem:[%s257 + $0xf0] sm:$0xff]
      %v357 = vld [vmem:[%s257 + $0xf8] sm:$0xff]
      %v359 = vlaneseq
      %v360 = vshrl.u32 %v359, 7
      %v361 = vsub.s32 0, %v360
      %v362 = vrot.slane %v270, %v361
      %v364 = vmul.f32 %v326, %v362
      %v365 = vmul.f32 %v327, %v362
      %v366 = vmul.f32 %v328, %v362
      %v367 = vmul.f32 %v329, %v362
      %v368 = vmul.f32 %v330, %v362
      %v369 = vmul.f32 %v331, %v362
      %v370 = vmul.f32 %v332, %v362
      %v371 = vmul.f32 %v333, %v362
      %v372 = vmul.f32 %v334, %v362
      %v373 = vmul.f32 %v335, %v362
      %v374 = vmul.f32 %v336, %v362
      %v375 = vmul.f32 %v337, %v362
      %v376 = vmul.f32 %v338, %v362
      %v377 = vmul.f32 %v339, %v362
      %v378 = vmul.f32 %v340, %v362
      %v379 = vmul.f32 %v341, %v362
      %v380 = vmul.f32 %v342, %v362
      %v381 = vmul.f32 %v343, %v362
      %v382 = vmul.f32 %v344, %v362
      %v383 = vmul.f32 %v345, %v362
      %v384 = vmul.f32 %v346, %v362
      %v385 = vmul.f32 %v347, %v362
      %v386 = vmul.f32 %v348, %v362
      %v387 = vmul.f32 %v349, %v362
      %v388 = vmul.f32 %v350, %v362
      %v389 = vmul.f32 %v351, %v362
      %v390 = vmul.f32 %v352, %v362
      %v391 = vmul.f32 %v353, %v362
      %v392 = vmul.f32 %v354, %v362
      %v393 = vmul.f32 %v355, %v362
      %v394 = vmul.f32 %v356, %v362
      %v395 = vmul.f32 %v357, %v362
      %v397 = vlaneseq
      %v398 = vshrl.u32 %v397, 7
      %v399 = vsub.s32 0, %v398
      %v400 = vrot.slane %v271, %v399
      %v402 = vadd.f32 %v364, %v400
      %v403 = vadd.f32 %v365, %v400
      %v404 = vadd.f32 %v366, %v400
      %v405 = vadd.f32 %v367, %v400
      %v406 = vadd.f32 %v368, %v400
      %v407 = vadd.f32 %v369, %v400
      %v408 = vadd.f32 %v370, %v400
      %v409 = vadd.f32 %v371, %v400
      %v410 = vadd.f32 %v372, %v400
      %v411 = vadd.f32 %v373, %v400
      %v412 = vadd.f32 %v374, %v400
      %v413 = vadd.f32 %v375, %v400
      %v414 = vadd.f32 %v376, %v400
      %v415 = vadd.f32 %v377, %v400
      %v416 = vadd.f32 %v378, %v400
      %v417 = vadd.f32 %v379, %v400
      %v418 = vadd.f32 %v380, %v400
      %v419 = vadd.f32 %v381, %v400
      %v420 = vadd.f32 %v382, %v400
      %v421 = vadd.f32 %v383, %v400
      %v422 = vadd.f32 %v384, %v400
      %v423 = vadd.f32 %v385, %v400
      %v424 = vadd.f32 %v386, %v400
      %v425 = vadd.f32 %v387, %v400
      %v426 = vadd.f32 %v388, %v400
      %v427 = vadd.f32 %v389, %v400
      %v428 = vadd.f32 %v390, %v400
      %v429 = vadd.f32 %v391, %v400
      %v430 = vadd.f32 %v392, %v400
      %v431 = vadd.f32 %v393, %v400
      %v432 = vadd.f32 %v394, %v400
      %v433 = vadd.f32 %v395, %v400
      %s434 = scalar_lea.vmem [#allocation2], 24
      %435 = vst [vmem:[%s434 + $0x1] sm:$0xff] %v402
      %436 = vst [vmem:[%s434 + $0x9] sm:$0xff] %v403
      %437 = vst [vmem:[%s434 + $0x19] sm:$0xff] %v404
      %438 = vst [vmem:[%s434 + $0x21] sm:$0xff] %v405
      %439 = vst [vmem:[%s434 + $0x31] sm:$0xff] %v406
      %440 = vst [vmem:[%s434 + $0x39] sm:$0xff] %v407
      %441 = vst [vmem:[%s434 + $0x49] sm:$0xff] %v408
      %442 = vst [vmem:[%s434 + $0x51] sm:$0xff] %v409
      %443 = vst [vmem:[%s434 + $0x61] sm:$0xff] %v410
      %444 = vst [vmem:[%s434 + $0x69] sm:$0xff] %v411
      %445 = vst [vmem:[%s434 + $0x79] sm:$0xff] %v412
      %446 = vst [vmem:[%s434 + $0x81] sm:$0xff] %v413
      %447 = vst [vmem:[%s434 + $0x91] sm:$0xff] %v414
      %448 = vst [vmem:[%s434 + $0x99] sm:$0xff] %v415
      %449 = vst [vmem:[%s434 + $0xa9] sm:$0xff] %v416
      %450 = vst [vmem:[%s434 + $0xb1] sm:$0xff] %v417
      %451 = vst [vmem:[%s434 + $0xc1] sm:$0xff] %v418
      %452 = vst [vmem:[%s434 + $0xc9] sm:$0xff] %v419
      %453 = vst [vmem:[%s434 + $0xd9] sm:$0xff] %v420
      %454 = vst [vmem:[%s434 + $0xe1] sm:$0xff] %v421
      %455 = vst [vmem:[%s434 + $0xf1] sm:$0xff] %v422
      %456 = vst [vmem:[%s434 + $0xf9] sm:$0xff] %v423
      %457 = vst [vmem:[%s434 + $0x109] sm:$0xff] %v424
      %458 = vst [vmem:[%s434 + $0x111] sm:$0xff] %v425
      %459 = vst [vmem:[%s434 + $0x121] sm:$0xff] %v426
      %460 = vst [vmem:[%s434 + $0x129] sm:$0xff] %v427
      %461 = vst [vmem:[%s434 + $0x139] sm:$0xff] %v428
      %462 = vst [vmem:[%s434 + $0x141] sm:$0xff] %v429
      %463 = vst [vmem:[%s434 + $0x151] sm:$0xff] %v430
      %464 = vst [vmem:[%s434 + $0x159] sm:$0xff] %v431
      %465 = vst [vmem:[%s434 + $0x169] sm:$0xff] %v432
      %466 = vst [vmem:[%s434 + $0x171] sm:$0xff] %v433
      %v467 = vld [vmem:[#allocation2] sm:$0xff]
      %v468 = vld [vmem:[#allocation2 + $0x8] sm:$0xff]
      %v469 = vld [vmem:[#allocation2 + $0x18] sm:$0xff]
      %v470 = vld [vmem:[#allocation2 + $0x20] sm:$0xff]
      %v471 = vld [vmem:[#allocation2 + $0x30] sm:$0xff]
      %v472 = vld [vmem:[#allocation2 + $0x38] sm:$0xff]
      %v473 = vld [vmem:[#allocation2 + $0x48] sm:$0xff]
      %v474 = vld [vmem:[#allocation2 + $0x50] sm:$0xff]
      %v475 = vld [vmem:[#allocation2 + $0x60] sm:$0xff]
      %v476 = vld [vmem:[#allocation2 + $0x68] sm:$0xff]
      %v477 = vld [vmem:[#allocation2 + $0x78] sm:$0xff]
      %v478 = vld [vmem:[#allocation2 + $0x80] sm:$0xff]
      %v479 = vld [vmem:[#allocation2 + $0x90] sm:$0xff]
      %v480 = vld [vmem:[#allocation2 + $0x98] sm:$0xff]
      %v481 = vld [vmem:[#allocation2 + $0xa8] sm:$0xff]
      %v482 = vld [vmem:[#allocation2 + $0xb0] sm:$0xff]
      %v483 = vld [vmem:[#allocation2 + $0xc0] sm:$0xff]
      %v484 = vld [vmem:[#allocation2 + $0xc8] sm:$0xff]
      %v485 = vld [vmem:[#allocation2 + $0xd8] sm:$0xff]
      %v486 = vld [vmem:[#allocation2 + $0xe0] sm:$0xff]
      %v487 = vld [vmem:[#allocation2 + $0xf0] sm:$0xff]
      %v488 = vld [vmem:[#allocation2 + $0xf8] sm:$0xff]
      %v489 = vld [vmem:[#allocation2 + $0x108] sm:$0xff]
      %v490 = vld [vmem:[#allocation2 + $0x110] sm:$0xff]
      %v491 = vld [vmem:[#allocation2 + $0x120] sm:$0xff]
      %v492 = vld [vmem:[#allocation2 + $0x128] sm:$0xff]
      %v493 = vld [vmem:[#allocation2 + $0x138] sm:$0xff]
      %v494 = vld [vmem:[#allocation2 + $0x140] sm:$0xff]
      %v495 = vld [vmem:[#allocation2 + $0x150] sm:$0xff]
      %v496 = vld [vmem:[#allocation2 + $0x158] sm:$0xff]
      %v497 = vld [vmem:[#allocation2 + $0x168] sm:$0xff]
      %v498 = vld [vmem:[#allocation2 + $0x170] sm:$0xff]
      %v499 = vpack.c.bf16 %v468, %v467
      %v500 = vpack.c.bf16 %v470, %v469
      %v501 = vpack.c.bf16 %v472, %v471
      %v502 = vpack.c.bf16 %v474, %v473
      %v503 = vpack.c.bf16 %v476, %v475
      %v504 = vpack.c.bf16 %v478, %v477
      %v505 = vpack.c.bf16 %v480, %v479
      %v506 = vpack.c.bf16 %v482, %v481
      %v507 = vpack.c.bf16 %v484, %v483
      %v508 = vpack.c.bf16 %v486, %v485
      %v509 = vpack.c.bf16 %v488, %v487
      %v510 = vpack.c.bf16 %v490, %v489
      %v511 = vpack.c.bf16 %v492, %v491
      %v512 = vpack.c.bf16 %v494, %v493
      %v513 = vpack.c.bf16 %v496, %v495
      %v514 = vpack.c.bf16 %v498, %v497
      %v515 = vld [vmem:[%s3] sm:$0xf]
      %v516 = vld [vmem:[%s3 + $0x4] sm:$0xf]
      %v517 = vld [vmem:[%s3 + $0x8] sm:$0xf]
      %v518 = vld [vmem:[%s3 + $0xc] sm:$0xf]
      %v519 = vld [vmem:[%s3 + $0x10] sm:$0xf]
      %v520 = vld [vmem:[%s3 + $0x14] sm:$0xf]
      %v521 = vld [vmem:[%s3 + $0x18] sm:$0xf]
      %v522 = vld [vmem:[%s3 + $0x1c] sm:$0xf]
      %v523 = vld [vmem:[%s3 + $0x20] sm:$0xf]
      %v524 = vld [vmem:[%s3 + $0x24] sm:$0xf]
      %v525 = vld [vmem:[%s3 + $0x28] sm:$0xf]
      %v526 = vld [vmem:[%s3 + $0x2c] sm:$0xf]
      %v527 = vld [vmem:[%s3 + $0x30] sm:$0xf]
      %v528 = vld [vmem:[%s3 + $0x34] sm:$0xf]
      %v529 = vld [vmem:[%s3 + $0x38] sm:$0xf]
      %v530 = vld [vmem:[%s3 + $0x3c] sm:$0xf]
      %v531 = vld [vmem:[#allocation2 + $0x1] sm:$0xff]
      %v532 = vld [vmem:[#allocation2 + $0x9] sm:$0xff]
      %v533 = vld [vmem:[#allocation2 + $0x19] sm:$0xff]
      %v534 = vld [vmem:[#allocation2 + $0x21] sm:$0xff]
      %v535 = vld [vmem:[#allocation2 + $0x31] sm:$0xff]
      %v536 = vld [vmem:[#allocation2 + $0x39] sm:$0xff]
      %v537 = vld [vmem:[#allocation2 + $0x49] sm:$0xff]
      %v538 = vld [vmem:[#allocation2 + $0x51] sm:$0xff]
      %v539 = vld [vmem:[#allocation2 + $0x61] sm:$0xff]
      %v540 = vld [vmem:[#allocation2 + $0x69] sm:$0xff]
      %v541 = vld [vmem:[#allocation2 + $0x79] sm:$0xff]
      %v542 = vld [vmem:[#allocation2 + $0x81] sm:$0xff]
      %v543 = vld [vmem:[#allocation2 + $0x91] sm:$0xff]
      %v544 = vld [vmem:[#allocation2 + $0x99] sm:$0xff]
      %v545 = vld [vmem:[#allocation2 + $0xa9] sm:$0xff]
      %v546 = vld [vmem:[#allocation2 + $0xb1] sm:$0xff]
      %v547 = vld [vmem:[#allocation2 + $0xc1] sm:$0xff]
      %v548 = vld [vmem:[#allocation2 + $0xc9] sm:$0xff]
      %v549 = vld [vmem:[#allocation2 + $0xd9] sm:$0xff]
      %v550 = vld [vmem:[#allocation2 + $0xe1] sm:$0xff]
      %v551 = vld [vmem:[#allocation2 + $0xf1] sm:$0xff]
      %v552 = vld [vmem:[#allocation2 + $0xf9] sm:$0xff]
      %v553 = vld [vmem:[#allocation2 + $0x109] sm:$0xff]
      %v554 = vld [vmem:[#allocation2 + $0x111] sm:$0xff]
      %v555 = vld [vmem:[#allocation2 + $0x121] sm:$0xff]
      %v556 = vld [vmem:[#allocation2 + $0x129] sm:$0xff]
      %v557 = vld [vmem:[#allocation2 + $0x139] sm:$0xff]
      %v558 = vld [vmem:[#allocation2 + $0x141] sm:$0xff]
      %v559 = vld [vmem:[#allocation2 + $0x151] sm:$0xff]
      %v560 = vld [vmem:[#allocation2 + $0x159] sm:$0xff]
      %v561 = vld [vmem:[#allocation2 + $0x169] sm:$0xff]
      %v562 = vld [vmem:[#allocation2 + $0x171] sm:$0xff]
      %v563 = vpack.c.bf16 %v532, %v531
      %v564 = vpack.c.bf16 %v534, %v533
      %v565 = vpack.c.bf16 %v536, %v535
      %v566 = vpack.c.bf16 %v538, %v537
      %v567 = vpack.c.bf16 %v540, %v539
      %v568 = vpack.c.bf16 %v542, %v541
      %v569 = vpack.c.bf16 %v544, %v543
      %v570 = vpack.c.bf16 %v546, %v545
      %v571 = vpack.c.bf16 %v548, %v547
      %v572 = vpack.c.bf16 %v550, %v549
      %v573 = vpack.c.bf16 %v552, %v551
      %v574 = vpack.c.bf16 %v554, %v553
      %v575 = vpack.c.bf16 %v556, %v555
      %v576 = vpack.c.bf16 %v558, %v557
      %v577 = vpack.c.bf16 %v560, %v559
      %v578 = vpack.c.bf16 %v562, %v561
      %s579 = scalar_lea.vmem %s3, 64
      %v580 = vld [vmem:[%s579] sm:$0xf]
      %v581 = vld [vmem:[%s579 + $0x4] sm:$0xf]
      %v582 = vld [vmem:[%s579 + $0x8] sm:$0xf]
      %v583 = vld [vmem:[%s579 + $0xc] sm:$0xf]
      %v584 = vld [vmem:[%s579 + $0x10] sm:$0xf]
      %v585 = vld [vmem:[%s579 + $0x14] sm:$0xf]
      %v586 = vld [vmem:[%s579 + $0x18] sm:$0xf]
      %v587 = vld [vmem:[%s579 + $0x1c] sm:$0xf]
      %v588 = vld [vmem:[%s579 + $0x20] sm:$0xf]
      %v589 = vld [vmem:[%s579 + $0x24] sm:$0xf]
      %v590 = vld [vmem:[%s579 + $0x28] sm:$0xf]
      %v591 = vld [vmem:[%s579 + $0x2c] sm:$0xf]
      %v592 = vld [vmem:[%s579 + $0x30] sm:$0xf]
      %v593 = vld [vmem:[%s579 + $0x34] sm:$0xf]
      %v594 = vld [vmem:[%s579 + $0x38] sm:$0xf]
      %v595 = vld [vmem:[%s579 + $0x3c] sm:$0xf]
      %v612 = vunpack.c.l.b16 %v580
      %v613 = vunpack.c.l.b16 %v581
      %v614 = vunpack.c.l.b16 %v582
      %v615 = vunpack.c.l.b16 %v583
      %v616 = vunpack.c.l.b16 %v584
      %v617 = vunpack.c.l.b16 %v585
      %v618 = vunpack.c.l.b16 %v586
      %v619 = vunpack.c.l.b16 %v587
      %v620 = vunpack.c.l.b16 %v588
      %v621 = vunpack.c.l.b16 %v589
      %v622 = vunpack.c.l.b16 %v590
      %v623 = vunpack.c.l.b16 %v591
      %v624 = vunpack.c.l.b16 %v592
      %v625 = vunpack.c.l.b16 %v593
      %v626 = vunpack.c.l.b16 %v594
      %v627 = vunpack.c.l.b16 %v595
      %v628 = vpack.c.b16 %v613, %v612
      %v629 = vpack.c.b16 %v615, %v614
      %v630 = vpack.c.b16 %v617, %v616
      %v631 = vpack.c.b16 %v619, %v618
      %v632 = vpack.c.b16 %v621, %v620
      %v633 = vpack.c.b16 %v623, %v622
      %v634 = vpack.c.b16 %v625, %v624
      %v635 = vpack.c.b16 %v627, %v626
      %644 = vmatprep.subr.bf16.mxu0 0
      %645 = vmatpush1.bf16.msra.mxu0 %v628
      %646 = vmatprep.subr.bf16.mxu0 0
      %647 = vmatpush1.bf16.msra.mxu0 %v629
      %648 = vmatprep.subr.bf16.mxu0 0
      %649 = vmatpush1.bf16.msra.mxu0 %v630
      %650 = vmatprep.subr.bf16.mxu0 0
      %651 = vmatpush1.bf16.msra.mxu0 %v631
      %652 = vmatprep.subr.bf16.mxu0 0
      %653 = vmatpush1.bf16.msra.mxu0 %v632
      %654 = vmatprep.subr.bf16.mxu0 0
      %655 = vmatpush1.bf16.msra.mxu0 %v633
      %656 = vmatprep.subr.bf16.mxu0 0
      %657 = vmatpush1.bf16.msra.mxu0 %v634
      %658 = vmatprep.subr.bf16.mxu0 0
      %659 = vmatpush1.bf16.msra.mxu0 %v635
      %660 = vmatprep.subr.bf16.mxu0 0
      %661 = vmatpush1.bf16.msra.mxu0 0
      %662 = vmatprep.subr.bf16.mxu0 0
      %663 = vmatpush1.bf16.msra.mxu0 0
      %664 = vmatprep.subr.bf16.mxu0 0
      %665 = vmatpush1.bf16.msra.mxu0 0
      %666 = vmatprep.subr.bf16.mxu0 0
      %667 = vmatpush1.bf16.msra.mxu0 0
      %668 = vmatprep.subr.bf16.mxu0 0
      %669 = vmatpush1.bf16.msra.mxu0 0
      %670 = vmatprep.subr.bf16.mxu0 0
      %671 = vmatpush1.bf16.msra.mxu0 0
      %672 = vmatprep.subr.bf16.mxu0 0
      %673 = vmatpush1.bf16.msra.mxu0 0
      %674 = vmatprep.subr.bf16.mxu0 0
      %675 = vmatpush1.bf16.msra.mxu0 0
      %676 = vmatprep.mubr.bf16.mxu0 0
      %677 = vmatmul.mubr.bf16.gmra.mrb[0].mxu0 %v563
      %v678 = vpop.f32.mrb[0].mxu0
      %v679 = vadd.f32 0.0, %v678
      %v680 = vpop.f32.mrb[0].mxu0
      %v681 = vpop.f32.mrb[0].mxu0
      %v682 = vadd.f32 0.0, %v681
      %v683 = vpop.f32.mrb[0].mxu0
      %684 = vmatprep.mubr.bf16.mxu0 0
      %685 = vmatmul.mubr.bf16.gmra.mrb[0].mxu0 %v564
      %v686 = vpop.f32.mrb[0].mxu0
      %v687 = vadd.f32 0.0, %v686
      %v688 = vpop.f32.mrb[0].mxu0
      %v689 = vpop.f32.mrb[0].mxu0
      %v690 = vadd.f32 0.0, %v689
      %v691 = vpop.f32.mrb[0].mxu0
      %692 = vmatprep.mubr.bf16.mxu0 0
      %693 = vmatmul.mubr.bf16.gmra.mrb[0].mxu0 %v565
      %v694 = vpop.f32.mrb[0].mxu0
      %v695 = vadd.f32 0.0, %v694
      %v696 = vpop.f32.mrb[0].mxu0
      %v697 = vpop.f32.mrb[0].mxu0
      %v698 = vadd.f32 0.0, %v697
      %v699 = vpop.f32.mrb[0].mxu0
      %700 = vmatprep.mubr.bf16.mxu0 0
      %701 = vmatmul.mubr.bf16.gmra.mrb[0].mxu0 %v566
      %v702 = vpop.f32.mrb[0].mxu0
      %v703 = vadd.f32 0.0, %v702
      %v704 = vpop.f32.mrb[0].mxu0
      %v705 = vpop.f32.mrb[0].mxu0
      %v706 = vadd.f32 0.0, %v705
      %v707 = vpop.f32.mrb[0].mxu0
      %708 = vmatprep.mubr.bf16.mxu0 0
      %709 = vmatmul.mubr.bf16.gmra.mrb[0].mxu0 %v567
      %v710 = vpop.f32.mrb[0].mxu0
      %v711 = vadd.f32 0.0, %v710
      %v712 = vpop.f32.mrb[0].mxu0
      %v713 = vpop.f32.mrb[0].mxu0
      %v714 = vadd.f32 0.0, %v713
      %v715 = vpop.f32.mrb[0].mxu0
      %716 = vmatprep.mubr.bf16.mxu0 0
      %717 = vmatmul.mubr.bf16.gmra.mrb[0].mxu0 %v568
      %v718 = vpop.f32.mrb[0].mxu0
      %v719 = vadd.f32 0.0, %v718
      %v720 = vpop.f32.mrb[0].mxu0
      %v721 = vpop.f32.mrb[0].mxu0
      %v722 = vadd.f32 0.0, %v721
      %v723 = vpop.f32.mrb[0].mxu0
      %724 = vmatprep.mubr.bf16.mxu0 0
      %725 = vmatmul.mubr.bf16.gmra.mrb[0].mxu0 %v569
      %v726 = vpop.f32.mrb[0].mxu0
      %v727 = vadd.f32 0.0, %v726
      %v728 = vpop.f32.mrb[0].mxu0
      %v729 = vpop.f32.mrb[0].mxu0
      %v730 = vadd.f32 0.0, %v729
      %v731 = vpop.f32.mrb[0].mxu0
      %732 = vmatprep.mubr.bf16.mxu0 0
      %733 = vmatmul.mubr.bf16.gmra.mrb[0].mxu0 %v570
      %v734 = vpop.f32.mrb[0].mxu0
      %v735 = vadd.f32 0.0, %v734
      %v736 = vpop.f32.mrb[0].mxu0
      %v737 = vpop.f32.mrb[0].mxu0
      %v738 = vadd.f32 0.0, %v737
      %v739 = vpop.f32.mrb[0].mxu0
      %740 = vmatprep.mubr.bf16.mxu0 0
      %741 = vmatmul.mubr.bf16.gmra.mrb[0].mxu0 %v571
      %v742 = vpop.f32.mrb[0].mxu0
      %v743 = vadd.f32 0.0, %v742
      %v744 = vpop.f32.mrb[0].mxu0
      %v745 = vpop.f32.mrb[0].mxu0
      %v746 = vadd.f32 0.0, %v745
      %v747 = vpop.f32.mrb[0].mxu0
      %748 = vmatprep.mubr.bf16.mxu0 0
      %749 = vmatmul.mubr.bf16.gmra.mrb[0].mxu0 %v572
      %v750 = vpop.f32.mrb[0].mxu0
      %v751 = vadd.f32 0.0, %v750
      %v752 = vpop.f32.mrb[0].mxu0
      %v753 = vpop.f32.mrb[0].mxu0
      %v754 = vadd.f32 0.0, %v753
      %v755 = vpop.f32.mrb[0].mxu0
      %756 = vmatprep.mubr.bf16.mxu0 0
      %757 = vmatmul.mubr.bf16.gmra.mrb[0].mxu0 %v573
      %v758 = vpop.f32.mrb[0].mxu0
      %v759 = vadd.f32 0.0, %v758
      %v760 = vpop.f32.mrb[0].mxu0
      %v761 = vpop.f32.mrb[0].mxu0
      %v762 = vadd.f32 0.0, %v761
      %v763 = vpop.f32.mrb[0].mxu0
      %764 = vmatprep.mubr.bf16.mxu0 0
      %765 = vmatmul.mubr.bf16.gmra.mrb[0].mxu0 %v574
      %v766 = vpop.f32.mrb[0].mxu0
      %v767 = vadd.f32 0.0, %v766
      %v768 = vpop.f32.mrb[0].mxu0
      %v769 = vpop.f32.mrb[0].mxu0
      %v770 = vadd.f32 0.0, %v769
      %v771 = vpop.f32.mrb[0].mxu0
      %772 = vmatprep.mubr.bf16.mxu0 0
      %773 = vmatmul.mubr.bf16.gmra.mrb[0].mxu0 %v575
      %v774 = vpop.f32.mrb[0].mxu0
      %v775 = vadd.f32 0.0, %v774
      %v776 = vpop.f32.mrb[0].mxu0
      %v777 = vpop.f32.mrb[0].mxu0
      %v778 = vadd.f32 0.0, %v777
      %v779 = vpop.f32.mrb[0].mxu0
      %780 = vmatprep.mubr.bf16.mxu0 0
      %781 = vmatmul.mubr.bf16.gmra.mrb[0].mxu0 %v576
      %v782 = vpop.f32.mrb[0].mxu0
      %v783 = vadd.f32 0.0, %v782
      %v784 = vpop.f32.mrb[0].mxu0
      %v785 = vpop.f32.mrb[0].mxu0
      %v786 = vadd.f32 0.0, %v785
      %v787 = vpop.f32.mrb[0].mxu0
      %788 = vmatprep.mubr.bf16.mxu0 0
      %789 = vmatmul.mubr.bf16.gmra.mrb[0].mxu0 %v577
      %v790 = vpop.f32.mrb[0].mxu0
      %v791 = vadd.f32 0.0, %v790
      %v792 = vpop.f32.mrb[0].mxu0
      %v793 = vpop.f32.mrb[0].mxu0
      %v794 = vadd.f32 0.0, %v793
      %v795 = vpop.f32.mrb[0].mxu0
      %796 = vmatprep.mubr.bf16.mxu0 0
      %797 = vmatmul.mubr.bf16.gmra.mrb[0].mxu0 %v578
      %v798 = vpop.f32.mrb[0].mxu0
      %v799 = vadd.f32 0.0, %v798
      %v800 = vpop.f32.mrb[0].mxu0
      %v801 = vpop.f32.mrb[0].mxu0
      %v802 = vadd.f32 0.0, %v801
      %v803 = vpop.f32.mrb[0].mxu0
      %804 = vdwg.mxu0
      %v821 = vunpack.c.l.b16 %v515
      %v822 = vunpack.c.l.b16 %v516
      %v823 = vunpack.c.l.b16 %v517
      %v824 = vunpack.c.l.b16 %v518
      %v825 = vunpack.c.l.b16 %v519
      %v826 = vunpack.c.l.b16 %v520
      %v827 = vunpack.c.l.b16 %v521
      %v828 = vunpack.c.l.b16 %v522
      %v829 = vunpack.c.l.b16 %v523
      %v830 = vunpack.c.l.b16 %v524
      %v831 = vunpack.c.l.b16 %v525
      %v832 = vunpack.c.l.b16 %v526
      %v833 = vunpack.c.l.b16 %v527
      %v834 = vunpack.c.l.b16 %v528
      %v835 = vunpack.c.l.b16 %v529
      %v836 = vunpack.c.l.b16 %v530
      %v837 = vpack.c.b16 %v822, %v821
      %v838 = vpack.c.b16 %v824, %v823
      %v839 = vpack.c.b16 %v826, %v825
      %v840 = vpack.c.b16 %v828, %v827
      %v841 = vpack.c.b16 %v830, %v829
      %v842 = vpack.c.b16 %v832, %v831
      %v843 = vpack.c.b16 %v834, %v833
      %v844 = vpack.c.b16 %v836, %v835
      %853 = vmatprep.subr.bf16.mxu0 0
      %854 = vmatpush1.bf16.msra.mxu0 %v837
      %855 = vmatprep.subr.bf16.mxu0 0
      %856 = vmatpush1.bf16.msra.mxu0 %v838
      %857 = vmatprep.subr.bf16.mxu0 0
      %858 = vmatpush1.bf16.msra.mxu0 %v839
      %859 = vmatprep.subr.bf16.mxu0 0
      %860 = vmatpush1.bf16.msra.mxu0 %v840
      %861 = vmatprep.subr.bf16.mxu0 0
      %862 = vmatpush1.bf16.msra.mxu0 %v841
      %863 = vmatprep.subr.bf16.mxu0 0
      %864 = vmatpush1.bf16.msra.mxu0 %v842
      %865 = vmatprep.subr.bf16.mxu0 0
      %866 = vmatpush1.bf16.msra.mxu0 %v843
      %867 = vmatprep.subr.bf16.mxu0 0
      %868 = vmatpush1.bf16.msra.mxu0 %v844
      %869 = vmatprep.subr.bf16.mxu0 0
      %870 = vmatpush1.bf16.msra.mxu0 0
      %871 = vmatprep.subr.bf16.mxu0 0
      %872 = vmatpush1.bf16.msra.mxu0 0
      %873 = vmatprep.subr.bf16.mxu0 0
      %874 = vmatpush1.bf16.msra.mxu0 0
      %875 = vmatprep.subr.bf16.mxu0 0
      %876 = vmatpush1.bf16.msra.mxu0 0
      %877 = vmatprep.subr.bf16.mxu0 0
      %878 = vmatpush1.bf16.msra.mxu0 0
      %879 = vmatprep.subr.bf16.mxu0 0
      %880 = vmatpush1.bf16.msra.mxu0 0
      %881 = vmatprep.subr.bf16.mxu0 0
      %882 = vmatpush1.bf16.msra.mxu0 0
      %883 = vmatprep.subr.bf16.mxu0 0
      %884 = vmatpush1.bf16.msra.mxu0 0
      %885 = vmatprep.mubr.bf16.mxu0 0
      %886 = vmatmul.mubr.bf16.gmra.mrb[0].mxu0 %v499
      %v887 = vpop.f32.mrb[0].mxu0
      %v888 = vadd.f32 %v679, %v887
      %v889 = vpop.f32.mrb[0].mxu0
      %v890 = vpop.f32.mrb[0].mxu0
      %v891 = vadd.f32 %v682, %v890
      %v892 = vpop.f32.mrb[0].mxu0
      %893 = vmatprep.mubr.bf16.mxu0 0
      %894 = vmatmul.mubr.bf16.gmra.mrb[0].mxu0 %v500
      %v895 = vpop.f32.mrb[0].mxu0
      %v896 = vadd.f32 %v687, %v895
      %v897 = vpop.f32.mrb[0].mxu0
      %v898 = vpop.f32.mrb[0].mxu0
      %v899 = vadd.f32 %v690, %v898
      %v900 = vpop.f32.mrb[0].mxu0
      %901 = vmatprep.mubr.bf16.mxu0 0
      %902 = vmatmul.mubr.bf16.gmra.mrb[0].mxu0 %v501
      %v903 = vpop.f32.mrb[0].mxu0
      %v904 = vadd.f32 %v695, %v903
      %v905 = vpop.f32.mrb[0].mxu0
      %v906 = vpop.f32.mrb[0].mxu0
      %v907 = vadd.f32 %v698, %v906
      %v908 = vpop.f32.mrb[0].mxu0
      %909 = vmatprep.mubr.bf16.mxu0 0
      %910 = vmatmul.mubr.bf16.gmra.mrb[0].mxu0 %v502
      %v911 = vpop.f32.mrb[0].mxu0
      %v912 = vadd.f32 %v703, %v911
      %v913 = vpop.f32.mrb[0].mxu0
      %v914 = vpop.f32.mrb[0].mxu0
      %v915 = vadd.f32 %v706, %v914
      %v916 = vpop.f32.mrb[0].mxu0
      %917 = vmatprep.mubr.bf16.mxu0 0
      %918 = vmatmul.mubr.bf16.gmra.mrb[0].mxu0 %v503
      %v919 = vpop.f32.mrb[0].mxu0
      %v920 = vadd.f32 %v711, %v919
      %v921 = vpop.f32.mrb[0].mxu0
      %v922 = vpop.f32.mrb[0].mxu0
      %v923 = vadd.f32 %v714, %v922
      %v924 = vpop.f32.mrb[0].mxu0
      %925 = vmatprep.mubr.bf16.mxu0 0
      %926 = vmatmul.mubr.bf16.gmra.mrb[0].mxu0 %v504
      %v927 = vpop.f32.mrb[0].mxu0
      %v928 = vadd.f32 %v719, %v927
      %v929 = vpop.f32.mrb[0].mxu0
      %v930 = vpop.f32.mrb[0].mxu0
      %v931 = vadd.f32 %v722, %v930
      %v932 = vpop.f32.mrb[0].mxu0
      %933 = vmatprep.mubr.bf16.mxu0 0
      %934 = vmatmul.mubr.bf16.gmra.mrb[0].mxu0 %v505
      %v935 = vpop.f32.mrb[0].mxu0
      %v936 = vadd.f32 %v727, %v935
      %v937 = vpop.f32.mrb[0].mxu0
      %v938 = vpop.f32.mrb[0].mxu0
      %v939 = vadd.f32 %v730, %v938
      %v940 = vpop.f32.mrb[0].mxu0
      %941 = vmatprep.mubr.bf16.mxu0 0
      %942 = vmatmul.mubr.bf16.gmra.mrb[0].mxu0 %v506
      %v943 = vpop.f32.mrb[0].mxu0
      %v944 = vadd.f32 %v735, %v943
      %v945 = vpop.f32.mrb[0].mxu0
      %v946 = vpop.f32.mrb[0].mxu0
      %v947 = vadd.f32 %v738, %v946
      %v948 = vpop.f32.mrb[0].mxu0
      %949 = vmatprep.mubr.bf16.mxu0 0
      %950 = vmatmul.mubr.bf16.gmra.mrb[0].mxu0 %v507
      %v951 = vpop.f32.mrb[0].mxu0
      %v952 = vadd.f32 %v743, %v951
      %v953 = vpop.f32.mrb[0].mxu0
      %v954 = vpop.f32.mrb[0].mxu0
      %v955 = vadd.f32 %v746, %v954
      %v956 = vpop.f32.mrb[0].mxu0
      %957 = vmatprep.mubr.bf16.mxu0 0
      %958 = vmatmul.mubr.bf16.gmra.mrb[0].mxu0 %v508
      %v959 = vpop.f32.mrb[0].mxu0
      %v960 = vadd.f32 %v751, %v959
      %v961 = vpop.f32.mrb[0].mxu0
      %v962 = vpop.f32.mrb[0].mxu0
      %v963 = vadd.f32 %v754, %v962
      %v964 = vpop.f32.mrb[0].mxu0
      %965 = vmatprep.mubr.bf16.mxu0 0
      %966 = vmatmul.mubr.bf16.gmra.mrb[0].mxu0 %v509
      %v967 = vpop.f32.mrb[0].mxu0
      %v968 = vadd.f32 %v759, %v967
      %v969 = vpop.f32.mrb[0].mxu0
      %v970 = vpop.f32.mrb[0].mxu0
      %v971 = vadd.f32 %v762, %v970
      %v972 = vpop.f32.mrb[0].mxu0
      %973 = vmatprep.mubr.bf16.mxu0 0
      %974 = vmatmul.mubr.bf16.gmra.mrb[0].mxu0 %v510
      %v975 = vpop.f32.mrb[0].mxu0
      %v976 = vadd.f32 %v767, %v975
      %v977 = vpop.f32.mrb[0].mxu0
      %v978 = vpop.f32.mrb[0].mxu0
      %v979 = vadd.f32 %v770, %v978
      %v980 = vpop.f32.mrb[0].mxu0
      %981 = vmatprep.mubr.bf16.mxu0 0
      %982 = vmatmul.mubr.bf16.gmra.mrb[0].mxu0 %v511
      %v983 = vpop.f32.mrb[0].mxu0
      %v984 = vadd.f32 %v775, %v983
      %v985 = vpop.f32.mrb[0].mxu0
      %v986 = vpop.f32.mrb[0].mxu0
      %v987 = vadd.f32 %v778, %v986
      %v988 = vpop.f32.mrb[0].mxu0
      %989 = vmatprep.mubr.bf16.mxu0 0
      %990 = vmatmul.mubr.bf16.gmra.mrb[0].mxu0 %v512
      %v991 = vpop.f32.mrb[0].mxu0
      %v992 = vadd.f32 %v783, %v991
      %v993 = vpop.f32.mrb[0].mxu0
      %v994 = vpop.f32.mrb[0].mxu0
      %v995 = vadd.f32 %v786, %v994
      %v996 = vpop.f32.mrb[0].mxu0
      %997 = vmatprep.mubr.bf16.mxu0 0
      %998 = vmatmul.mubr.bf16.gmra.mrb[0].mxu0 %v513
      %v999 = vpop.f32.mrb[0].mxu0
      %v1000 = vadd.f32 %v791, %v999
      %v1001 = vpop.f32.mrb[0].mxu0
      %v1002 = vpop.f32.mrb[0].mxu0
      %v1003 = vadd.f32 %v794, %v1002
      %v1004 = vpop.f32.mrb[0].mxu0
      %1005 = vmatprep.mubr.bf16.mxu0 0
      %1006 = vmatmul.mubr.bf16.gmra.mrb[0].mxu0 %v514
      %v1007 = vpop.f32.mrb[0].mxu0
      %v1008 = vadd.f32 %v799, %v1007
      %v1009 = vpop.f32.mrb[0].mxu0
      %v1010 = vpop.f32.mrb[0].mxu0
      %v1011 = vadd.f32 %v802, %v1010
      %v1012 = vpop.f32.mrb[0].mxu0
      %1013 = vdwg.mxu0
      %v1014 = vld [vmem:[#allocation2 + $0x2] sm:$0xff]
      %v1015 = vld [vmem:[#allocation2 + $0xa] sm:$0xff]
      %v1016 = vld [vmem:[#allocation2 + $0x1a] sm:$0xff]
      %v1017 = vld [vmem:[#allocation2 + $0x22] sm:$0xff]
      %v1018 = vld [vmem:[#allocation2 + $0x32] sm:$0xff]
      %v1019 = vld [vmem:[#allocation2 + $0x3a] sm:$0xff]
      %v1020 = vld [vmem:[#allocation2 + $0x4a] sm:$0xff]
      %v1021 = vld [vmem:[#allocation2 + $0x52] sm:$0xff]
      %v1022 = vld [vmem:[#allocation2 + $0x62] sm:$0xff]
      %v1023 = vld [vmem:[#allocation2 + $0x6a] sm:$0xff]
      %v1024 = vld [vmem:[#allocation2 + $0x7a] sm:$0xff]
      %v1025 = vld [vmem:[#allocation2 + $0x82] sm:$0xff]
      %v1026 = vld [vmem:[#allocation2 + $0x92] sm:$0xff]
      %v1027 = vld [vmem:[#allocation2 + $0x9a] sm:$0xff]
      %v1028 = vld [vmem:[#allocation2 + $0xaa] sm:$0xff]
      %v1029 = vld [vmem:[#allocation2 + $0xb2] sm:$0xff]
      %v1030 = vld [vmem:[#allocation2 + $0xc2] sm:$0xff]
      %v1031 = vld [vmem:[#allocation2 + $0xca] sm:$0xff]
      %v1032 = vld [vmem:[#allocation2 + $0xda] sm:$0xff]
      %v1033 = vld [vmem:[#allocation2 + $0xe2] sm:$0xff]
      %v1034 = vld [vmem:[#allocation2 + $0xf2] sm:$0xff]
      %v1035 = vld [vmem:[#allocation2 + $0xfa] sm:$0xff]
      %v1036 = vld [vmem:[#allocation2 + $0x10a] sm:$0xff]
      %v1037 = vld [vmem:[#allocation2 + $0x112] sm:$0xff]
      %v1038 = vld [vmem:[#allocation2 + $0x122] sm:$0xff]
      %v1039 = vld [vmem:[#allocation2 + $0x12a] sm:$0xff]
      %v1040 = vld [vmem:[#allocation2 + $0x13a] sm:$0xff]
      %v1041 = vld [vmem:[#allocation2 + $0x142] sm:$0xff]
      %v1042 = vld [vmem:[#allocation2 + $0x152] sm:$0xff]
      %v1043 = vld [vmem:[#allocation2 + $0x15a] sm:$0xff]
      %v1044 = vld [vmem:[#allocation2 + $0x16a] sm:$0xff]
      %v1045 = vld [vmem:[#allocation2 + $0x172] sm:$0xff]
      %v1046 = vpack.c.bf16 %v1015, %v1014
      %v1047 = vpack.c.bf16 %v1017, %v1016
      %v1048 = vpack.c.bf16 %v1019, %v1018
      %v1049 = vpack.c.bf16 %v1021, %v1020
      %v1050 = vpack.c.bf16 %v1023, %v1022
      %v1051 = vpack.c.bf16 %v1025, %v1024
      %v1052 = vpack.c.bf16 %v1027, %v1026
      %v1053 = vpack.c.bf16 %v1029, %v1028
      %v1054 = vpack.c.bf16 %v1031, %v1030
      %v1055 = vpack.c.bf16 %v1033, %v1032
      %v1056 = vpack.c.bf16 %v1035, %v1034
      %v1057 = vpack.c.bf16 %v1037, %v1036
      %v1058 = vpack.c.bf16 %v1039, %v1038
      %v1059 = vpack.c.bf16 %v1041, %v1040
      %v1060 = vpack.c.bf16 %v1043, %v1042
      %v1061 = vpack.c.bf16 %v1045, %v1044
      %s1062 = scalar_lea.vmem %s3, 128
      %v1063 = vld [vmem:[%s1062] sm:$0xf]
      %v1064 = vld [vmem:[%s1062 + $0x4] sm:$0xf]
      %v1065 = vld [vmem:[%s1062 + $0x8] sm:$0xf]
      %v1066 = vld [vmem:[%s1062 + $0xc] sm:$0xf]
      %v1067 = vld [vmem:[%s1062 + $0x10] sm:$0xf]
      %v1068 = vld [vmem:[%s1062 + $0x14] sm:$0xf]
      %v1069 = vld [vmem:[%s1062 + $0x18] sm:$0xf]
      %v1070 = vld [vmem:[%s1062 + $0x1c] sm:$0xf]
      %v1071 = vld [vmem:[%s1062 + $0x20] sm:$0xf]
      %v1072 = vld [vmem:[%s1062 + $0x24] sm:$0xf]
      %v1073 = vld [vmem:[%s1062 + $0x28] sm:$0xf]
      %v1074 = vld [vmem:[%s1062 + $0x2c] sm:$0xf]
      %v1075 = vld [vmem:[%s1062 + $0x30] sm:$0xf]
      %v1076 = vld [vmem:[%s1062 + $0x34] sm:$0xf]
      %v1077 = vld [vmem:[%s1062 + $0x38] sm:$0xf]
      %v1078 = vld [vmem:[%s1062 + $0x3c] sm:$0xf]
      %v1095 = vunpack.c.l.b16 %v1063
      %v1096 = vunpack.c.l.b16 %v1064
      %v1097 = vunpack.c.l.b16 %v1065
      %v1098 = vunpack.c.l.b16 %v1066
      %v1099 = vunpack.c.l.b16 %v1067
      %v1100 = vunpack.c.l.b16 %v1068
      %v1101 = vunpack.c.l.b16 %v1069
      %v1102 = vunpack.c.l.b16 %v1070
      %v1103 = vunpack.c.l.b16 %v1071
      %v1104 = vunpack.c.l.b16 %v1072
      %v1105 = vunpack.c.l.b16 %v1073
      %v1106 = vunpack.c.l.b16 %v1074
      %v1107 = vunpack.c.l.b16 %v1075
      %v1108 = vunpack.c.l.b16 %v1076
      %v1109 = vunpack.c.l.b16 %v1077
      %v1110 = vunpack.c.l.b16 %v1078
      %v1111 = vpack.c.b16 %v1096, %v1095
      %v1112 = vpack.c.b16 %v1098, %v1097
      %v1113 = vpack.c.b16 %v1100, %v1099
      %v1114 = vpack.c.b16 %v1102, %v1101
      %v1115 = vpack.c.b16 %v1104, %v1103
      %v1116 = vpack.c.b16 %v1106, %v1105
      %v1117 = vpack.c.b16 %v1108, %v1107
      %v1118 = vpack.c.b16 %v1110, %v1109
      %1127 = vmatprep.subr.bf16.mxu0 0
      %1128 = vmatpush1.bf16.msra.mxu0 %v1111
      %1129 = vmatprep.subr.bf16.mxu0 0
      %1130 = vmatpush1.bf16.msra.mxu0 %v1112
      %1131 = vmatprep.subr.bf16.mxu0 0
      %1132 = vmatpush1.bf16.msra.mxu0 %v1113
      %1133 = vmatprep.subr.bf16.mxu0 0
      %1134 = vmatpush1.bf16.msra.mxu0 %v1114
      %1135 = vmatprep.subr.bf16.mxu0 0
      %1136 = vmatpush1.bf16.msra.mxu0 %v1115
      %1137 = vmatprep.subr.bf16.mxu0 0
      %1138 = vmatpush1.bf16.msra.mxu0 %v1116
      %1139 = vmatprep.subr.bf16.mxu0 0
      %1140 = vmatpush1.bf16.msra.mxu0 %v1117
      %1141 = vmatprep.subr.bf16.mxu0 0
      %1142 = vmatpush1.bf16.msra.mxu0 %v1118
      %1143 = vmatprep.subr.bf16.mxu0 0
      %1144 = vmatpush1.bf16.msra.mxu0 0
      %1145 = vmatprep.subr.bf16.mxu0 0
      %1146 = vmatpush1.bf16.msra.mxu0 0
      %1147 = vmatprep.subr.bf16.mxu0 0
      %1148 = vmatpush1.bf16.msra.mxu0 0
      %1149 = vmatprep.subr.bf16.mxu0 0
      %1150 = vmatpush1.bf16.msra.mxu0 0
      %1151 = vmatprep.subr.bf16.mxu0 0
      %1152 = vmatpush1.bf16.msra.mxu0 0
      %1153 = vmatprep.subr.bf16.mxu0 0
      %1154 = vmatpush1.bf16.msra.mxu0 0
      %1155 = vmatprep.subr.bf16.mxu0 0
      %1156 = vmatpush1.bf16.msra.mxu0 0
      %1157 = vmatprep.subr.bf16.mxu0 0
      %1158 = vmatpush1.bf16.msra.mxu0 0
      %1159 = vmatprep.mubr.bf16.mxu0 0
      %1160 = vmatmul.mubr.bf16.gmra.mrb[0].mxu0 %v1046
      %v1161 = vpop.f32.mrb[0].mxu0
      %v1162 = vadd.f32 0.0, %v1161
      %v1163 = vpop.f32.mrb[0].mxu0
      %v1164 = vpop.f32.mrb[0].mxu0
      %v1165 = vadd.f32 0.0, %v1164
      %v1166 = vpop.f32.mrb[0].mxu0
      %1167 = vmatprep.mubr.bf16.mxu0 0
      %1168 = vmatmul.mubr.bf16.gmra.mrb[0].mxu0 %v1047
      %v1169 = vpop.f32.mrb[0].mxu0
      %v1170 = vadd.f32 0.0, %v1169
      %v1171 = vpop.f32.mrb[0].mxu0
      %v1172 = vpop.f32.mrb[0].mxu0
      %v1173 = vadd.f32 0.0, %v1172
      %v1174 = vpop.f32.mrb[0].mxu0
      %1175 = vmatprep.mubr.bf16.mxu0 0
      %1176 = vmatmul.mubr.bf16.gmra.mrb[0].mxu0 %v1048
      %v1177 = vpop.f32.mrb[0].mxu0
      %v1178 = vadd.f32 0.0, %v1177
      %v1179 = vpop.f32.mrb[0].mxu0
      %v1180 = vpop.f32.mrb[0].mxu0
      %v1181 = vadd.f32 0.0, %v1180
      %v1182 = vpop.f32.mrb[0].mxu0
      %1183 = vmatprep.mubr.bf16.mxu0 0
      %1184 = vmatmul.mubr.bf16.gmra.mrb[0].mxu0 %v1049
      %v1185 = vpop.f32.mrb[0].mxu0
      %v1186 = vadd.f32 0.0, %v1185
      %v1187 = vpop.f32.mrb[0].mxu0
      %v1188 = vpop.f32.mrb[0].mxu0
      %v1189 = vadd.f32 0.0, %v1188
      %v1190 = vpop.f32.mrb[0].mxu0
      %1191 = vmatprep.mubr.bf16.mxu0 0
      %1192 = vmatmul.mubr.bf16.gmra.mrb[0].mxu0 %v1050
      %v1193 = vpop.f32.mrb[0].mxu0
      %v1194 = vadd.f32 0.0, %v1193
      %v1195 = vpop.f32.mrb[0].mxu0
      %v1196 = vpop.f32.mrb[0].mxu0
      %v1197 = vadd.f32 0.0, %v1196
      %v1198 = vpop.f32.mrb[0].mxu0
      %1199 = vmatprep.mubr.bf16.mxu0 0
      %1200 = vmatmul.mubr.bf16.gmra.mrb[0].mxu0 %v1051
      %v1201 = vpop.f32.mrb[0].mxu0
      %v1202 = vadd.f32 0.0, %v1201
      %v1203 = vpop.f32.mrb[0].mxu0
      %v1204 = vpop.f32.mrb[0].mxu0
      %v1205 = vadd.f32 0.0, %v1204
      %v1206 = vpop.f32.mrb[0].mxu0
      %1207 = vmatprep.mubr.bf16.mxu0 0
      %1208 = vmatmul.mubr.bf16.gmra.mrb[0].mxu0 %v1052
      %v1209 = vpop.f32.mrb[0].mxu0
      %v1210 = vadd.f32 0.0, %v1209
      %v1211 = vpop.f32.mrb[0].mxu0
      %v1212 = vpop.f32.mrb[0].mxu0
      %v1213 = vadd.f32 0.0, %v1212
      %v1214 = vpop.f32.mrb[0].mxu0
      %1215 = vmatprep.mubr.bf16.mxu0 0
      %1216 = vmatmul.mubr.bf16.gmra.mrb[0].mxu0 %v1053
      %v1217 = vpop.f32.mrb[0].mxu0
      %v1218 = vadd.f32 0.0, %v1217
      %v1219 = vpop.f32.mrb[0].mxu0
      %v1220 = vpop.f32.mrb[0].mxu0
      %v1221 = vadd.f32 0.0, %v1220
      %v1222 = vpop.f32.mrb[0].mxu0
      %1223 = vmatprep.mubr.bf16.mxu0 0
      %1224 = vmatmul.mubr.bf16.gmra.mrb[0].mxu0 %v1054
      %v1225 = vpop.f32.mrb[0].mxu0
      %v1226 = vadd.f32 0.0, %v1225
      %v1227 = vpop.f32.mrb[0].mxu0
      %v1228 = vpop.f32.mrb[0].mxu0
      %v1229 = vadd.f32 0.0, %v1228
      %v1230 = vpop.f32.mrb[0].mxu0
      %1231 = vmatprep.mubr.bf16.mxu0 0
      %1232 = vmatmul.mubr.bf16.gmra.mrb[0].mxu0 %v1055
      %v1233 = vpop.f32.mrb[0].mxu0
      %v1234 = vadd.f32 0.0, %v1233
      %v1235 = vpop.f32.mrb[0].mxu0
      %v1236 = vpop.f32.mrb[0].mxu0
      %v1237 = vadd.f32 0.0, %v1236
      %v1238 = vpop.f32.mrb[0].mxu0
      %1239 = vmatprep.mubr.bf16.mxu0 0
      %1240 = vmatmul.mubr.bf16.gmra.mrb[0].mxu0 %v1056
      %v1241 = vpop.f32.mrb[0].mxu0
      %v1242 = vadd.f32 0.0, %v1241
      %v1243 = vpop.f32.mrb[0].mxu0
      %v1244 = vpop.f32.mrb[0].mxu0
      %v1245 = vadd.f32 0.0, %v1244
      %v1246 = vpop.f32.mrb[0].mxu0
      %1247 = vmatprep.mubr.bf16.mxu0 0
      %1248 = vmatmul.mubr.bf16.gmra.mrb[0].mxu0 %v1057
      %v1249 = vpop.f32.mrb[0].mxu0
      %v1250 = vadd.f32 0.0, %v1249
      %v1251 = vpop.f32.mrb[0].mxu0
      %v1252 = vpop.f32.mrb[0].mxu0
      %v1253 = vadd.f32 0.0, %v1252
      %v1254 = vpop.f32.mrb[0].mxu0
      %1255 = vmatprep.mubr.bf16.mxu0 0
      %1256 = vmatmul.mubr.bf16.gmra.mrb[0].mxu0 %v1058
      %v1257 = vpop.f32.mrb[0].mxu0
      %v1258 = vadd.f32 0.0, %v1257
      %v1259 = vpop.f32.mrb[0].mxu0
      %v1260 = vpop.f32.mrb[0].mxu0
      %v1261 = vadd.f32 0.0, %v1260
      %v1262 = vpop.f32.mrb[0].mxu0
      %1263 = vmatprep.mubr.bf16.mxu0 0
      %1264 = vmatmul.mubr.bf16.gmra.mrb[0].mxu0 %v1059
      %v1265 = vpop.f32.mrb[0].mxu0
      %v1266 = vadd.f32 0.0, %v1265
      %v1267 = vpop.f32.mrb[0].mxu0
      %v1268 = vpop.f32.mrb[0].mxu0
      %v1269 = vadd.f32 0.0, %v1268
      %v1270 = vpop.f32.mrb[0].mxu0
      %1271 = vmatprep.mubr.bf16.mxu0 0
      %1272 = vmatmul.mubr.bf16.gmra.mrb[0].mxu0 %v1060
      %v1273 = vpop.f32.mrb[0].mxu0
      %v1274 = vadd.f32 0.0, %v1273
      %v1275 = vpop.f32.mrb[0].mxu0
      %v1276 = vpop.f32.mrb[0].mxu0
      %v1277 = vadd.f32 0.0, %v1276
      %v1278 = vpop.f32.mrb[0].mxu0
      %1279 = vmatprep.mubr.bf16.mxu0 0
      %1280 = vmatmul.mubr.bf16.gmra.mrb[0].mxu0 %v1061
      %v1281 = vpop.f32.mrb[0].mxu0
      %v1282 = vadd.f32 0.0, %v1281
      %v1283 = vpop.f32.mrb[0].mxu0
      %v1284 = vpop.f32.mrb[0].mxu0
      %v1285 = vadd.f32 0.0, %v1284
      %v1286 = vpop.f32.mrb[0].mxu0
      %1287 = vdwg.mxu0
      %v1288 = vadd.f32 %v888, %v1162
      %v1289 = vadd.f32 %v891, %v1165
      %v1290 = vadd.f32 %v896, %v1170
      %v1291 = vadd.f32 %v899, %v1173
      %v1292 = vadd.f32 %v904, %v1178
      %v1293 = vadd.f32 %v907, %v1181
      %v1294 = vadd.f32 %v912, %v1186
      %v1295 = vadd.f32 %v915, %v1189
      %v1296 = vadd.f32 %v920, %v1194
      %v1297 = vadd.f32 %v923, %v1197
      %v1298 = vadd.f32 %v928, %v1202
      %v1299 = vadd.f32 %v931, %v1205
      %v1300 = vadd.f32 %v936, %v1210
      %v1301 = vadd.f32 %v939, %v1213
      %v1302 = vadd.f32 %v944, %v1218
      %v1303 = vadd.f32 %v947, %v1221
      %v1304 = vadd.f32 %v952, %v1226
      %v1305 = vadd.f32 %v955, %v1229
      %v1306 = vadd.f32 %v960, %v1234
      %v1307 = vadd.f32 %v963, %v1237
      %v1308 = vadd.f32 %v968, %v1242
      %v1309 = vadd.f32 %v971, %v1245
      %v1310 = vadd.f32 %v976, %v1250
      %v1311 = vadd.f32 %v979, %v1253
      %v1312 = vadd.f32 %v984, %v1258
      %v1313 = vadd.f32 %v987, %v1261
      %v1314 = vadd.f32 %v992, %v1266
      %v1315 = vadd.f32 %v995, %v1269
      %v1316 = vadd.f32 %v1000, %v1274
      %v1317 = vadd.f32 %v1003, %v1277
      %v1318 = vadd.f32 %v1008, %v1282
      %v1319 = vadd.f32 %v1011, %v1285
      %v1320 = vld [vmem:[%s434] sm:$0xff]
      %v1321 = vld [vmem:[%s434 + $0x8] sm:$0xff]
      %v1322 = vld [vmem:[%s434 + $0x18] sm:$0xff]
      %v1323 = vld [vmem:[%s434 + $0x20] sm:$0xff]
      %v1324 = vld [vmem:[%s434 + $0x30] sm:$0xff]
      %v1325 = vld [vmem:[%s434 + $0x38] sm:$0xff]
      %v1326 = vld [vmem:[%s434 + $0x48] sm:$0xff]
      %v1327 = vld [vmem:[%s434 + $0x50] sm:$0xff]
      %v1328 = vld [vmem:[%s434 + $0x60] sm:$0xff]
      %v1329 = vld [vmem:[%s434 + $0x68] sm:$0xff]
      %v1330 = vld [vmem:[%s434 + $0x78] sm:$0xff]
      %v1331 = vld [vmem:[%s434 + $0x80] sm:$0xff]
      %v1332 = vld [vmem:[%s434 + $0x90] sm:$0xff]
      %v1333 = vld [vmem:[%s434 + $0x98] sm:$0xff]
      %v1334 = vld [vmem:[%s434 + $0xa8] sm:$0xff]
      %v1335 = vld [vmem:[%s434 + $0xb0] sm:$0xff]
      %v1336 = vld [vmem:[%s434 + $0xc0] sm:$0xff]
      %v1337 = vld [vmem:[%s434 + $0xc8] sm:$0xff]
      %v1338 = vld [vmem:[%s434 + $0xd8] sm:$0xff]
      %v1339 = vld [vmem:[%s434 + $0xe0] sm:$0xff]
      %v1340 = vld [vmem:[%s434 + $0xf0] sm:$0xff]
      %v1341 = vld [vmem:[%s434 + $0xf8] sm:$0xff]
      %v1342 = vld [vmem:[%s434 + $0x108] sm:$0xff]
      %v1343 = vld [vmem:[%s434 + $0x110] sm:$0xff]
      %v1344 = vld [vmem:[%s434 + $0x120] sm:$0xff]
      %v1345 = vld [vmem:[%s434 + $0x128] sm:$0xff]
      %v1346 = vld [vmem:[%s434 + $0x138] sm:$0xff]
      %v1347 = vld [vmem:[%s434 + $0x140] sm:$0xff]
      %v1348 = vld [vmem:[%s434 + $0x150] sm:$0xff]
      %v1349 = vld [vmem:[%s434 + $0x158] sm:$0xff]
      %v1350 = vld [vmem:[%s434 + $0x168] sm:$0xff]
      %v1351 = vld [vmem:[%s434 + $0x170] sm:$0xff]
      %v1352 = vpack.c.bf16 %v1321, %v1320
      %v1353 = vpack.c.bf16 %v1323, %v1322
      %v1354 = vpack.c.bf16 %v1325, %v1324
      %v1355 = vpack.c.bf16 %v1327, %v1326
      %v1356 = vpack.c.bf16 %v1329, %v1328
      %v1357 = vpack.c.bf16 %v1331, %v1330
      %v1358 = vpack.c.bf16 %v1333, %v1332
      %v1359 = vpack.c.bf16 %v1335, %v1334
      %v1360 = vpack.c.bf16 %v1337, %v1336
      %v1361 = vpack.c.bf16 %v1339, %v1338
      %v1362 = vpack.c.bf16 %v1341, %v1340
      %v1363 = vpack.c.bf16 %v1343, %v1342
      %v1364 = vpack.c.bf16 %v1345, %v1344
      %v1365 = vpack.c.bf16 %v1347, %v1346
      %v1366 = vpack.c.bf16 %v1349, %v1348
      %v1367 = vpack.c.bf16 %v1351, %v1350
      %s1368 = scalar_lea.vmem %s3, 192
      %v1369 = vld [vmem:[%s1368] sm:$0xf]
      %v1370 = vld [vmem:[%s1368 + $0x4] sm:$0xf]
      %v1371 = vld [vmem:[%s1368 + $0x8] sm:$0xf]
      %v1372 = vld [vmem:[%s1368 + $0xc] sm:$0xf]
      %v1373 = vld [vmem:[%s1368 + $0x10] sm:$0xf]
      %v1374 = vld [vmem:[%s1368 + $0x14] sm:$0xf]
      %v1375 = vld [vmem:[%s1368 + $0x18] sm:$0xf]
      %v1376 = vld [vmem:[%s1368 + $0x1c] sm:$0xf]
      %v1377 = vld [vmem:[%s1368 + $0x20] sm:$0xf]
      %v1378 = vld [vmem:[%s1368 + $0x24] sm:$0xf]
      %v1379 = vld [vmem:[%s1368 + $0x28] sm:$0xf]
      %v1380 = vld [vmem:[%s1368 + $0x2c] sm:$0xf]
      %v1381 = vld [vmem:[%s1368 + $0x30] sm:$0xf]
      %v1382 = vld [vmem:[%s1368 + $0x34] sm:$0xf]
      %v1383 = vld [vmem:[%s1368 + $0x38] sm:$0xf]
      %v1384 = vld [vmem:[%s1368 + $0x3c] sm:$0xf]
      %v1401 = vunpack.c.l.b16 %v1369
      %v1402 = vunpack.c.l.b16 %v1370
      %v1403 = vunpack.c.l.b16 %v1371
      %v1404 = vunpack.c.l.b16 %v1372
      %v1405 = vunpack.c.l.b16 %v1373
      %v1406 = vunpack.c.l.b16 %v1374
      %v1407 = vunpack.c.l.b16 %v1375
      %v1408 = vunpack.c.l.b16 %v1376
      %v1409 = vunpack.c.l.b16 %v1377
      %v1410 = vunpack.c.l.b16 %v1378
      %v1411 = vunpack.c.l.b16 %v1379
      %v1412 = vunpack.c.l.b16 %v1380
      %v1413 = vunpack.c.l.b16 %v1381
      %v1414 = vunpack.c.l.b16 %v1382
      %v1415 = vunpack.c.l.b16 %v1383
      %v1416 = vunpack.c.l.b16 %v1384
      %v1417 = vpack.c.b16 %v1402, %v1401
      %v1418 = vpack.c.b16 %v1404, %v1403
      %v1419 = vpack.c.b16 %v1406, %v1405
      %v1420 = vpack.c.b16 %v1408, %v1407
      %v1421 = vpack.c.b16 %v1410, %v1409
      %v1422 = vpack.c.b16 %v1412, %v1411
      %v1423 = vpack.c.b16 %v1414, %v1413
      %v1424 = vpack.c.b16 %v1416, %v1415
      %1433 = vmatprep.subr.bf16.mxu0 0
      %1434 = vmatpush1.bf16.msra.mxu0 %v1417
      %1435 = vmatprep.subr.bf16.mxu0 0
      %1436 = vmatpush1.bf16.msra.mxu0 %v1418
      %1437 = vmatprep.subr.bf16.mxu0 0
      %1438 = vmatpush1.bf16.msra.mxu0 %v1419
      %1439 = vmatprep.subr.bf16.mxu0 0
      %1440 = vmatpush1.bf16.msra.mxu0 %v1420
      %1441 = vmatprep.subr.bf16.mxu0 0
      %1442 = vmatpush1.bf16.msra.mxu0 %v1421
      %1443 = vmatprep.subr.bf16.mxu0 0
      %1444 = vmatpush1.bf16.msra.mxu0 %v1422
      %1445 = vmatprep.subr.bf16.mxu0 0
      %1446 = vmatpush1.bf16.msra.mxu0 %v1423
      %1447 = vmatprep.subr.bf16.mxu0 0
      %1448 = vmatpush1.bf16.msra.mxu0 %v1424
      %1449 = vmatprep.subr.bf16.mxu0 0
      %1450 = vmatpush1.bf16.msra.mxu0 0
      %1451 = vmatprep.subr.bf16.mxu0 0
      %1452 = vmatpush1.bf16.msra.mxu0 0
      %1453 = vmatprep.subr.bf16.mxu0 0
      %1454 = vmatpush1.bf16.msra.mxu0 0
      %1455 = vmatprep.subr.bf16.mxu0 0
      %1456 = vmatpush1.bf16.msra.mxu0 0
      %1457 = vmatprep.subr.bf16.mxu0 0
      %1458 = vmatpush1.bf16.msra.mxu0 0
      %1459 = vmatprep.subr.bf16.mxu0 0
      %1460 = vmatpush1.bf16.msra.mxu0 0
      %1461 = vmatprep.subr.bf16.mxu0 0
      %1462 = vmatpush1.bf16.msra.mxu0 0
      %1463 = vmatprep.subr.bf16.mxu0 0
      %1464 = vmatpush1.bf16.msra.mxu0 0
      %1465 = vmatprep.mubr.bf16.mxu0 0
      %1466 = vmatmul.mubr.bf16.gmra.mrb[0].mxu0 %v1352
      %v1467 = vpop.f32.mrb[0].mxu0
      %v1468 = vadd.f32 0.0, %v1467
      %v1469 = vpop.f32.mrb[0].mxu0
      %v1470 = vpop.f32.mrb[0].mxu0
      %v1471 = vadd.f32 0.0, %v1470
      %v1472 = vpop.f32.mrb[0].mxu0
      %1473 = vmatprep.mubr.bf16.mxu0 0
      %1474 = vmatmul.mubr.bf16.gmra.mrb[0].mxu0 %v1353
      %v1475 = vpop.f32.mrb[0].mxu0
      %v1476 = vadd.f32 0.0, %v1475
      %v1477 = vpop.f32.mrb[0].mxu0
      %v1478 = vpop.f32.mrb[0].mxu0
      %v1479 = vadd.f32 0.0, %v1478
      %v1480 = vpop.f32.mrb[0].mxu0
      %1481 = vmatprep.mubr.bf16.mxu0 0
      %1482 = vmatmul.mubr.bf16.gmra.mrb[0].mxu0 %v1354
      %v1483 = vpop.f32.mrb[0].mxu0
      %v1484 = vadd.f32 0.0, %v1483
      %v1485 = vpop.f32.mrb[0].mxu0
      %v1486 = vpop.f32.mrb[0].mxu0
      %v1487 = vadd.f32 0.0, %v1486
      %v1488 = vpop.f32.mrb[0].mxu0
      %1489 = vmatprep.mubr.bf16.mxu0 0
      %1490 = vmatmul.mubr.bf16.gmra.mrb[0].mxu0 %v1355
      %v1491 = vpop.f32.mrb[0].mxu0
      %v1492 = vadd.f32 0.0, %v1491
      %v1493 = vpop.f32.mrb[0].mxu0
      %v1494 = vpop.f32.mrb[0].mxu0
      %v1495 = vadd.f32 0.0, %v1494
      %v1496 = vpop.f32.mrb[0].mxu0
      %1497 = vmatprep.mubr.bf16.mxu0 0
      %1498 = vmatmul.mubr.bf16.gmra.mrb[0].mxu0 %v1356
      %v1499 = vpop.f32.mrb[0].mxu0
      %v1500 = vadd.f32 0.0, %v1499
      %v1501 = vpop.f32.mrb[0].mxu0
      %v1502 = vpop.f32.mrb[0].mxu0
      %v1503 = vadd.f32 0.0, %v1502
      %v1504 = vpop.f32.mrb[0].mxu0
      %1505 = vmatprep.mubr.bf16.mxu0 0
      %1506 = vmatmul.mubr.bf16.gmra.mrb[0].mxu0 %v1357
      %v1507 = vpop.f32.mrb[0].mxu0
      %v1508 = vadd.f32 0.0, %v1507
      %v1509 = vpop.f32.mrb[0].mxu0
      %v1510 = vpop.f32.mrb[0].mxu0
      %v1511 = vadd.f32 0.0, %v1510
      %v1512 = vpop.f32.mrb[0].mxu0
      %1513 = vmatprep.mubr.bf16.mxu0 0
      %1514 = vmatmul.mubr.bf16.gmra.mrb[0].mxu0 %v1358
      %v1515 = vpop.f32.mrb[0].mxu0
      %v1516 = vadd.f32 0.0, %v1515
      %v1517 = vpop.f32.mrb[0].mxu0
      %v1518 = vpop.f32.mrb[0].mxu0
      %v1519 = vadd.f32 0.0, %v1518
      %v1520 = vpop.f32.mrb[0].mxu0
      %1521 = vmatprep.mubr.bf16.mxu0 0
      %1522 = vmatmul.mubr.bf16.gmra.mrb[0].mxu0 %v1359
      %v1523 = vpop.f32.mrb[0].mxu0
      %v1524 = vadd.f32 0.0, %v1523
      %v1525 = vpop.f32.mrb[0].mxu0
      %v1526 = vpop.f32.mrb[0].mxu0
      %v1527 = vadd.f32 0.0, %v1526
      %v1528 = vpop.f32.mrb[0].mxu0
      %1529 = vmatprep.mubr.bf16.mxu0 0
      %1530 = vmatmul.mubr.bf16.gmra.mrb[0].mxu0 %v1360
      %v1531 = vpop.f32.mrb[0].mxu0
      %v1532 = vadd.f32 0.0, %v1531
      %v1533 = vpop.f32.mrb[0].mxu0
      %v1534 = vpop.f32.mrb[0].mxu0
      %v1535 = vadd.f32 0.0, %v1534
      %v1536 = vpop.f32.mrb[0].mxu0
      %1537 = vmatprep.mubr.bf16.mxu0 0
      %1538 = vmatmul.mubr.bf16.gmra.mrb[0].mxu0 %v1361
      %v1539 = vpop.f32.mrb[0].mxu0
      %v1540 = vadd.f32 0.0, %v1539
      %v1541 = vpop.f32.mrb[0].mxu0
      %v1542 = vpop.f32.mrb[0].mxu0
      %v1543 = vadd.f32 0.0, %v1542
      %v1544 = vpop.f32.mrb[0].mxu0
      %1545 = vmatprep.mubr.bf16.mxu0 0
      %1546 = vmatmul.mubr.bf16.gmra.mrb[0].mxu0 %v1362
      %v1547 = vpop.f32.mrb[0].mxu0
      %v1548 = vadd.f32 0.0, %v1547
      %v1549 = vpop.f32.mrb[0].mxu0
      %v1550 = vpop.f32.mrb[0].mxu0
      %v1551 = vadd.f32 0.0, %v1550
      %v1552 = vpop.f32.mrb[0].mxu0
      %1553 = vmatprep.mubr.bf16.mxu0 0
      %1554 = vmatmul.mubr.bf16.gmra.mrb[0].mxu0 %v1363
      %v1555 = vpop.f32.mrb[0].mxu0
      %v1556 = vadd.f32 0.0, %v1555
      %v1557 = vpop.f32.mrb[0].mxu0
      %v1558 = vpop.f32.mrb[0].mxu0
      %v1559 = vadd.f32 0.0, %v1558
      %v1560 = vpop.f32.mrb[0].mxu0
      %1561 = vmatprep.mubr.bf16.mxu0 0
      %1562 = vmatmul.mubr.bf16.gmra.mrb[0].mxu0 %v1364
      %v1563 = vpop.f32.mrb[0].mxu0
      %v1564 = vadd.f32 0.0, %v1563
      %v1565 = vpop.f32.mrb[0].mxu0
      %v1566 = vpop.f32.mrb[0].mxu0
      %v1567 = vadd.f32 0.0, %v1566
      %v1568 = vpop.f32.mrb[0].mxu0
      %1569 = vmatprep.mubr.bf16.mxu0 0
      %1570 = vmatmul.mubr.bf16.gmra.mrb[0].mxu0 %v1365
      %v1571 = vpop.f32.mrb[0].mxu0
      %v1572 = vadd.f32 0.0, %v1571
      %v1573 = vpop.f32.mrb[0].mxu0
      %v1574 = vpop.f32.mrb[0].mxu0
      %v1575 = vadd.f32 0.0, %v1574
      %v1576 = vpop.f32.mrb[0].mxu0
      %1577 = vmatprep.mubr.bf16.mxu0 0
      %1578 = vmatmul.mubr.bf16.gmra.mrb[0].mxu0 %v1366
      %v1579 = vpop.f32.mrb[0].mxu0
      %v1580 = vadd.f32 0.0, %v1579
      %v1581 = vpop.f32.mrb[0].mxu0
      %v1582 = vpop.f32.mrb[0].mxu0
      %v1583 = vadd.f32 0.0, %v1582
      %v1584 = vpop.f32.mrb[0].mxu0
      %1585 = vmatprep.mubr.bf16.mxu0 0
      %1586 = vmatmul.mubr.bf16.gmra.mrb[0].mxu0 %v1367
      %v1587 = vpop.f32.mrb[0].mxu0
      %v1588 = vadd.f32 0.0, %v1587
      %v1589 = vpop.f32.mrb[0].mxu0
      %v1590 = vpop.f32.mrb[0].mxu0
      %v1591 = vadd.f32 0.0, %v1590
      %v1592 = vpop.f32.mrb[0].mxu0
      %1593 = vdwg.mxu0
      %v1594 = vadd.f32 %v1288, %v1468
      %v1595 = vadd.f32 %v1289, %v1471
      %v1596 = vadd.f32 %v1290, %v1476
      %v1597 = vadd.f32 %v1291, %v1479
      %v1598 = vadd.f32 %v1292, %v1484
      %v1599 = vadd.f32 %v1293, %v1487
      %v1600 = vadd.f32 %v1294, %v1492
      %v1601 = vadd.f32 %v1295, %v1495
      %v1602 = vadd.f32 %v1296, %v1500
      %v1603 = vadd.f32 %v1297, %v1503
      %v1604 = vadd.f32 %v1298, %v1508
      %v1605 = vadd.f32 %v1299, %v1511
      %v1606 = vadd.f32 %v1300, %v1516
      %v1607 = vadd.f32 %v1301, %v1519
      %v1608 = vadd.f32 %v1302, %v1524
      %v1609 = vadd.f32 %v1303, %v1527
      %v1610 = vadd.f32 %v1304, %v1532
      %v1611 = vadd.f32 %v1305, %v1535
      %v1612 = vadd.f32 %v1306, %v1540
      %v1613 = vadd.f32 %v1307, %v1543
      %v1614 = vadd.f32 %v1308, %v1548
      %v1615 = vadd.f32 %v1309, %v1551
      %v1616 = vadd.f32 %v1310, %v1556
      %v1617 = vadd.f32 %v1311, %v1559
      %v1618 = vadd.f32 %v1312, %v1564
      %v1619 = vadd.f32 %v1313, %v1567
      %v1620 = vadd.f32 %v1314, %v1572
      %v1621 = vadd.f32 %v1315, %v1575
      %v1622 = vadd.f32 %v1316, %v1580
      %v1623 = vadd.f32 %v1317, %v1583
      %v1624 = vadd.f32 %v1318, %v1588
      %v1625 = vadd.f32 %v1319, %v1591
      %v1626 = vld [vmem:[%s434 + $0x1] sm:$0xff]
      %v1627 = vld [vmem:[%s434 + $0x9] sm:$0xff]
      %v1628 = vld [vmem:[%s434 + $0x19] sm:$0xff]
      %v1629 = vld [vmem:[%s434 + $0x21] sm:$0xff]
      %v1630 = vld [vmem:[%s434 + $0x31] sm:$0xff]
      %v1631 = vld [vmem:[%s434 + $0x39] sm:$0xff]
      %v1632 = vld [vmem:[%s434 + $0x49] sm:$0xff]
      %v1633 = vld [vmem:[%s434 + $0x51] sm:$0xff]
      %v1634 = vld [vmem:[%s434 + $0x61] sm:$0xff]
      %v1635 = vld [vmem:[%s434 + $0x69] sm:$0xff]
      %v1636 = vld [vmem:[%s434 + $0x79] sm:$0xff]
      %v1637 = vld [vmem:[%s434 + $0x81] sm:$0xff]
      %v1638 = vld [vmem:[%s434 + $0x91] sm:$0xff]
      %v1639 = vld [vmem:[%s434 + $0x99] sm:$0xff]
      %v1640 = vld [vmem:[%s434 + $0xa9] sm:$0xff]
      %v1641 = vld [vmem:[%s434 + $0xb1] sm:$0xff]
      %v1642 = vld [vmem:[%s434 + $0xc1] sm:$0xff]
      %v1643 = vld [vmem:[%s434 + $0xc9] sm:$0xff]
      %v1644 = vld [vmem:[%s434 + $0xd9] sm:$0xff]
      %v1645 = vld [vmem:[%s434 + $0xe1] sm:$0xff]
      %v1646 = vld [vmem:[%s434 + $0xf1] sm:$0xff]
      %v1647 = vld [vmem:[%s434 + $0xf9] sm:$0xff]
      %v1648 = vld [vmem:[%s434 + $0x109] sm:$0xff]
      %v1649 = vld [vmem:[%s434 + $0x111] sm:$0xff]
      %v1650 = vld [vmem:[%s434 + $0x121] sm:$0xff]
      %v1651 = vld [vmem:[%s434 + $0x129] sm:$0xff]
      %v1652 = vld [vmem:[%s434 + $0x139] sm:$0xff]
      %v1653 = vld [vmem:[%s434 + $0x141] sm:$0xff]
      %v1654 = vld [vmem:[%s434 + $0x151] sm:$0xff]
      %v1655 = vld [vmem:[%s434 + $0x159] sm:$0xff]
      %v1656 = vld [vmem:[%s434 + $0x169] sm:$0xff]
      %v1657 = vld [vmem:[%s434 + $0x171] sm:$0xff]
      %v1658 = vpack.c.bf16 %v1627, %v1626
      %v1659 = vpack.c.bf16 %v1629, %v1628
      %v1660 = vpack.c.bf16 %v1631, %v1630
      %v1661 = vpack.c.bf16 %v1633, %v1632
      %v1662 = vpack.c.bf16 %v1635, %v1634
      %v1663 = vpack.c.bf16 %v1637, %v1636
      %v1664 = vpack.c.bf16 %v1639, %v1638
      %v1665 = vpack.c.bf16 %v1641, %v1640
      %v1666 = vpack.c.bf16 %v1643, %v1642
      %v1667 = vpack.c.bf16 %v1645, %v1644
      %v1668 = vpack.c.bf16 %v1647, %v1646
      %v1669 = vpack.c.bf16 %v1649, %v1648
      %v1670 = vpack.c.bf16 %v1651, %v1650
      %v1671 = vpack.c.bf16 %v1653, %v1652
      %v1672 = vpack.c.bf16 %v1655, %v1654
      %v1673 = vpack.c.bf16 %v1657, %v1656
      %s1674 = scalar_lea.vmem %s3, 256
      %v1675 = vld [vmem:[%s1674] sm:$0xf]
      %v1676 = vld [vmem:[%s1674 + $0x4] sm:$0xf]
      %v1677 = vld [vmem:[%s1674 + $0x8] sm:$0xf]
      %v1678 = vld [vmem:[%s1674 + $0xc] sm:$0xf]
      %v1679 = vld [vmem:[%s1674 + $0x10] sm:$0xf]
      %v1680 = vld [vmem:[%s1674 + $0x14] sm:$0xf]
      %v1681 = vld [vmem:[%s1674 + $0x18] sm:$0xf]
      %v1682 = vld [vmem:[%s1674 + $0x1c] sm:$0xf]
      %v1683 = vld [vmem:[%s1674 + $0x20] sm:$0xf]
      %v1684 = vld [vmem:[%s1674 + $0x24] sm:$0xf]
      %v1685 = vld [vmem:[%s1674 + $0x28] sm:$0xf]
      %v1686 = vld [vmem:[%s1674 + $0x2c] sm:$0xf]
      %v1687 = vld [vmem:[%s1674 + $0x30] sm:$0xf]
      %v1688 = vld [vmem:[%s1674 + $0x34] sm:$0xf]
      %v1689 = vld [vmem:[%s1674 + $0x38] sm:$0xf]
      %v1690 = vld [vmem:[%s1674 + $0x3c] sm:$0xf]
      %v1707 = vunpack.c.l.b16 %v1675
      %v1708 = vunpack.c.l.b16 %v1676
      %v1709 = vunpack.c.l.b16 %v1677
      %v1710 = vunpack.c.l.b16 %v1678
      %v1711 = vunpack.c.l.b16 %v1679
      %v1712 = vunpack.c.l.b16 %v1680
      %v1713 = vunpack.c.l.b16 %v1681
      %v1714 = vunpack.c.l.b16 %v1682
      %v1715 = vunpack.c.l.b16 %v1683
      %v1716 = vunpack.c.l.b16 %v1684
      %v1717 = vunpack.c.l.b16 %v1685
      %v1718 = vunpack.c.l.b16 %v1686
      %v1719 = vunpack.c.l.b16 %v1687
      %v1720 = vunpack.c.l.b16 %v1688
      %v1721 = vunpack.c.l.b16 %v1689
      %v1722 = vunpack.c.l.b16 %v1690
      %v1723 = vpack.c.b16 %v1708, %v1707
      %v1724 = vpack.c.b16 %v1710, %v1709
      %v1725 = vpack.c.b16 %v1712, %v1711
      %v1726 = vpack.c.b16 %v1714, %v1713
      %v1727 = vpack.c.b16 %v1716, %v1715
      %v1728 = vpack.c.b16 %v1718, %v1717
      %v1729 = vpack.c.b16 %v1720, %v1719
      %v1730 = vpack.c.b16 %v1722, %v1721
      %1739 = vmatprep.subr.bf16.mxu0 0
      %1740 = vmatpush1.bf16.msra.mxu0 %v1723
      %1741 = vmatprep.subr.bf16.mxu0 0
      %1742 = vmatpush1.bf16.msra.mxu0 %v1724
      %1743 = vmatprep.subr.bf16.mxu0 0
      %1744 = vmatpush1.bf16.msra.mxu0 %v1725
      %1745 = vmatprep.subr.bf16.mxu0 0
      %1746 = vmatpush1.bf16.msra.mxu0 %v1726
      %1747 = vmatprep.subr.bf16.mxu0 0
      %1748 = vmatpush1.bf16.msra.mxu0 %v1727
      %1749 = vmatprep.subr.bf16.mxu0 0
      %1750 = vmatpush1.bf16.msra.mxu0 %v1728
      %1751 = vmatprep.subr.bf16.mxu0 0
      %1752 = vmatpush1.bf16.msra.mxu0 %v1729
      %1753 = vmatprep.subr.bf16.mxu0 0
      %1754 = vmatpush1.bf16.msra.mxu0 %v1730
      %1755 = vmatprep.subr.bf16.mxu0 0
      %1756 = vmatpush1.bf16.msra.mxu0 0
      %1757 = vmatprep.subr.bf16.mxu0 0
      %1758 = vmatpush1.bf16.msra.mxu0 0
      %1759 = vmatprep.subr.bf16.mxu0 0
      %1760 = vmatpush1.bf16.msra.mxu0 0
      %1761 = vmatprep.subr.bf16.mxu0 0
      %1762 = vmatpush1.bf16.msra.mxu0 0
      %1763 = vmatprep.subr.bf16.mxu0 0
      %1764 = vmatpush1.bf16.msra.mxu0 0
      %1765 = vmatprep.subr.bf16.mxu0 0
      %1766 = vmatpush1.bf16.msra.mxu0 0
      %1767 = vmatprep.subr.bf16.mxu0 0
      %1768 = vmatpush1.bf16.msra.mxu0 0
      %1769 = vmatprep.subr.bf16.mxu0 0
      %1770 = vmatpush1.bf16.msra.mxu0 0
      %1771 = vmatprep.mubr.bf16.mxu0 0
      %1772 = vmatmul.mubr.bf16.gmra.mrb[0].mxu0 %v1658
      %v1773 = vpop.f32.mrb[0].mxu0
      %v1774 = vadd.f32 0.0, %v1773
      %v1775 = vpop.f32.mrb[0].mxu0
      %v1776 = vpop.f32.mrb[0].mxu0
      %v1777 = vadd.f32 0.0, %v1776
      %v1778 = vpop.f32.mrb[0].mxu0
      %1779 = vmatprep.mubr.bf16.mxu0 0
      %1780 = vmatmul.mubr.bf16.gmra.mrb[0].mxu0 %v1659
      %v1781 = vpop.f32.mrb[0].mxu0
      %v1782 = vadd.f32 0.0, %v1781
      %v1783 = vpop.f32.mrb[0].mxu0
      %v1784 = vpop.f32.mrb[0].mxu0
      %v1785 = vadd.f32 0.0, %v1784
      %v1786 = vpop.f32.mrb[0].mxu0
      %1787 = vmatprep.mubr.bf16.mxu0 0
      %1788 = vmatmul.mubr.bf16.gmra.mrb[0].mxu0 %v1660
      %v1789 = vpop.f32.mrb[0].mxu0
      %v1790 = vadd.f32 0.0, %v1789
      %v1791 = vpop.f32.mrb[0].mxu0
      %v1792 = vpop.f32.mrb[0].mxu0
      %v1793 = vadd.f32 0.0, %v1792
      %v1794 = vpop.f32.mrb[0].mxu0
      %1795 = vmatprep.mubr.bf16.mxu0 0
      %1796 = vmatmul.mubr.bf16.gmra.mrb[0].mxu0 %v1661
      %v1797 = vpop.f32.mrb[0].mxu0
      %v1798 = vadd.f32 0.0, %v1797
      %v1799 = vpop.f32.mrb[0].mxu0
      %v1800 = vpop.f32.mrb[0].mxu0
      %v1801 = vadd.f32 0.0, %v1800
      %v1802 = vpop.f32.mrb[0].mxu0
      %1803 = vmatprep.mubr.bf16.mxu0 0
      %1804 = vmatmul.mubr.bf16.gmra.mrb[0].mxu0 %v1662
      %v1805 = vpop.f32.mrb[0].mxu0
      %v1806 = vadd.f32 0.0, %v1805
      %v1807 = vpop.f32.mrb[0].mxu0
      %v1808 = vpop.f32.mrb[0].mxu0
      %v1809 = vadd.f32 0.0, %v1808
      %v1810 = vpop.f32.mrb[0].mxu0
      %1811 = vmatprep.mubr.bf16.mxu0 0
      %1812 = vmatmul.mubr.bf16.gmra.mrb[0].mxu0 %v1663
      %v1813 = vpop.f32.mrb[0].mxu0
      %v1814 = vadd.f32 0.0, %v1813
      %v1815 = vpop.f32.mrb[0].mxu0
      %v1816 = vpop.f32.mrb[0].mxu0
      %v1817 = vadd.f32 0.0, %v1816
      %v1818 = vpop.f32.mrb[0].mxu0
      %1819 = vmatprep.mubr.bf16.mxu0 0
      %1820 = vmatmul.mubr.bf16.gmra.mrb[0].mxu0 %v1664
      %v1821 = vpop.f32.mrb[0].mxu0
      %v1822 = vadd.f32 0.0, %v1821
      %v1823 = vpop.f32.mrb[0].mxu0
      %v1824 = vpop.f32.mrb[0].mxu0
      %v1825 = vadd.f32 0.0, %v1824
      %v1826 = vpop.f32.mrb[0].mxu0
      %1827 = vmatprep.mubr.bf16.mxu0 0
      %1828 = vmatmul.mubr.bf16.gmra.mrb[0].mxu0 %v1665
      %v1829 = vpop.f32.mrb[0].mxu0
      %v1830 = vadd.f32 0.0, %v1829
      %v1831 = vpop.f32.mrb[0].mxu0
      %v1832 = vpop.f32.mrb[0].mxu0
      %v1833 = vadd.f32 0.0, %v1832
      %v1834 = vpop.f32.mrb[0].mxu0
      %1835 = vmatprep.mubr.bf16.mxu0 0
      %1836 = vmatmul.mubr.bf16.gmra.mrb[0].mxu0 %v1666
      %v1837 = vpop.f32.mrb[0].mxu0
      %v1838 = vadd.f32 0.0, %v1837
      %v1839 = vpop.f32.mrb[0].mxu0
      %v1840 = vpop.f32.mrb[0].mxu0
      %v1841 = vadd.f32 0.0, %v1840
      %v1842 = vpop.f32.mrb[0].mxu0
      %1843 = vmatprep.mubr.bf16.mxu0 0
      %1844 = vmatmul.mubr.bf16.gmra.mrb[0].mxu0 %v1667
      %v1845 = vpop.f32.mrb[0].mxu0
      %v1846 = vadd.f32 0.0, %v1845
      %v1847 = vpop.f32.mrb[0].mxu0
      %v1848 = vpop.f32.mrb[0].mxu0
      %v1849 = vadd.f32 0.0, %v1848
      %v1850 = vpop.f32.mrb[0].mxu0
      %1851 = vmatprep.mubr.bf16.mxu0 0
      %1852 = vmatmul.mubr.bf16.gmra.mrb[0].mxu0 %v1668
      %v1853 = vpop.f32.mrb[0].mxu0
      %v1854 = vadd.f32 0.0, %v1853
      %v1855 = vpop.f32.mrb[0].mxu0
      %v1856 = vpop.f32.mrb[0].mxu0
      %v1857 = vadd.f32 0.0, %v1856
      %v1858 = vpop.f32.mrb[0].mxu0
      %1859 = vmatprep.mubr.bf16.mxu0 0
      %1860 = vmatmul.mubr.bf16.gmra.mrb[0].mxu0 %v1669
      %v1861 = vpop.f32.mrb[0].mxu0
      %v1862 = vadd.f32 0.0, %v1861
      %v1863 = vpop.f32.mrb[0].mxu0
      %v1864 = vpop.f32.mrb[0].mxu0
      %v1865 = vadd.f32 0.0, %v1864
      %v1866 = vpop.f32.mrb[0].mxu0
      %1867 = vmatprep.mubr.bf16.mxu0 0
      %1868 = vmatmul.mubr.bf16.gmra.mrb[0].mxu0 %v1670
      %v1869 = vpop.f32.mrb[0].mxu0
      %v1870 = vadd.f32 0.0, %v1869
      %v1871 = vpop.f32.mrb[0].mxu0
      %v1872 = vpop.f32.mrb[0].mxu0
      %v1873 = vadd.f32 0.0, %v1872
      %v1874 = vpop.f32.mrb[0].mxu0
      %1875 = vmatprep.mubr.bf16.mxu0 0
      %1876 = vmatmul.mubr.bf16.gmra.mrb[0].mxu0 %v1671
      %v1877 = vpop.f32.mrb[0].mxu0
      %v1878 = vadd.f32 0.0, %v1877
      %v1879 = vpop.f32.mrb[0].mxu0
      %v1880 = vpop.f32.mrb[0].mxu0
      %v1881 = vadd.f32 0.0, %v1880
      %v1882 = vpop.f32.mrb[0].mxu0
      %1883 = vmatprep.mubr.bf16.mxu0 0
      %1884 = vmatmul.mubr.bf16.gmra.mrb[0].mxu0 %v1672
      %v1885 = vpop.f32.mrb[0].mxu0
      %v1886 = vadd.f32 0.0, %v1885
      %v1887 = vpop.f32.mrb[0].mxu0
      %v1888 = vpop.f32.mrb[0].mxu0
      %v1889 = vadd.f32 0.0, %v1888
      %v1890 = vpop.f32.mrb[0].mxu0
      %1891 = vmatprep.mubr.bf16.mxu0 0
      %1892 = vmatmul.mubr.bf16.gmra.mrb[0].mxu0 %v1673
      %v1893 = vpop.f32.mrb[0].mxu0
      %v1894 = vadd.f32 0.0, %v1893
      %v1895 = vpop.f32.mrb[0].mxu0
      %v1896 = vpop.f32.mrb[0].mxu0
      %v1897 = vadd.f32 0.0, %v1896
      %v1898 = vpop.f32.mrb[0].mxu0
      %1899 = vdwg.mxu0
      %v1900 = vadd.f32 %v1594, %v1774
      %v1901 = vadd.f32 %v1595, %v1777
      %v1902 = vadd.f32 %v1596, %v1782
      %v1903 = vadd.f32 %v1597, %v1785
      %v1904 = vadd.f32 %v1598, %v1790
      %v1905 = vadd.f32 %v1599, %v1793
      %v1906 = vadd.f32 %v1600, %v1798
      %v1907 = vadd.f32 %v1601, %v1801
      %v1908 = vadd.f32 %v1602, %v1806
      %v1909 = vadd.f32 %v1603, %v1809
      %v1910 = vadd.f32 %v1604, %v1814
      %v1911 = vadd.f32 %v1605, %v1817
      %v1912 = vadd.f32 %v1606, %v1822
      %v1913 = vadd.f32 %v1607, %v1825
      %v1914 = vadd.f32 %v1608, %v1830
      %v1915 = vadd.f32 %v1609, %v1833
      %v1916 = vadd.f32 %v1610, %v1838
      %v1917 = vadd.f32 %v1611, %v1841
      %v1918 = vadd.f32 %v1612, %v1846
      %v1919 = vadd.f32 %v1613, %v1849
      %v1920 = vadd.f32 %v1614, %v1854
      %v1921 = vadd.f32 %v1615, %v1857
      %v1922 = vadd.f32 %v1616, %v1862
      %v1923 = vadd.f32 %v1617, %v1865
      %v1924 = vadd.f32 %v1618, %v1870
      %v1925 = vadd.f32 %v1619, %v1873
      %v1926 = vadd.f32 %v1620, %v1878
      %v1927 = vadd.f32 %v1621, %v1881
      %v1928 = vadd.f32 %v1622, %v1886
      %v1929 = vadd.f32 %v1623, %v1889
      %v1930 = vadd.f32 %v1624, %v1894
      %v1931 = vadd.f32 %v1625, %v1897
      %v1932 = vld [vmem:[%s434 + $0x2] sm:$0xff]
      %v1933 = vld [vmem:[%s434 + $0xa] sm:$0xff]
      %v1934 = vld [vmem:[%s434 + $0x1a] sm:$0xff]
      %v1935 = vld [vmem:[%s434 + $0x22] sm:$0xff]
      %v1936 = vld [vmem:[%s434 + $0x32] sm:$0xff]
      %v1937 = vld [vmem:[%s434 + $0x3a] sm:$0xff]
      %v1938 = vld [vmem:[%s434 + $0x4a] sm:$0xff]
      %v1939 = vld [vmem:[%s434 + $0x52] sm:$0xff]
      %v1940 = vld [vmem:[%s434 + $0x62] sm:$0xff]
      %v1941 = vld [vmem:[%s434 + $0x6a] sm:$0xff]
      %v1942 = vld [vmem:[%s434 + $0x7a] sm:$0xff]
      %v1943 = vld [vmem:[%s434 + $0x82] sm:$0xff]
      %v1944 = vld [vmem:[%s434 + $0x92] sm:$0xff]
      %v1945 = vld [vmem:[%s434 + $0x9a] sm:$0xff]
      %v1946 = vld [vmem:[%s434 + $0xaa] sm:$0xff]
      %v1947 = vld [vmem:[%s434 + $0xb2] sm:$0xff]
      %v1948 = vld [vmem:[%s434 + $0xc2] sm:$0xff]
      %v1949 = vld [vmem:[%s434 + $0xca] sm:$0xff]
      %v1950 = vld [vmem:[%s434 + $0xda] sm:$0xff]
      %v1951 = vld [vmem:[%s434 + $0xe2] sm:$0xff]
      %v1952 = vld [vmem:[%s434 + $0xf2] sm:$0xff]
      %v1953 = vld [vmem:[%s434 + $0xfa] sm:$0xff]
      %v1954 = vld [vmem:[%s434 + $0x10a] sm:$0xff]
      %v1955 = vld [vmem:[%s434 + $0x112] sm:$0xff]
      %v1956 = vld [vmem:[%s434 + $0x122] sm:$0xff]
      %v1957 = vld [vmem:[%s434 + $0x12a] sm:$0xff]
      %v1958 = vld [vmem:[%s434 + $0x13a] sm:$0xff]
      %v1959 = vld [vmem:[%s434 + $0x142] sm:$0xff]
      %v1960 = vld [vmem:[%s434 + $0x152] sm:$0xff]
      %v1961 = vld [vmem:[%s434 + $0x15a] sm:$0xff]
      %v1962 = vld [vmem:[%s434 + $0x16a] sm:$0xff]
      %v1963 = vld [vmem:[%s434 + $0x172] sm:$0xff]
      %v1964 = vpack.c.bf16 %v1933, %v1932
      %v1965 = vpack.c.bf16 %v1935, %v1934
      %v1966 = vpack.c.bf16 %v1937, %v1936
      %v1967 = vpack.c.bf16 %v1939, %v1938
      %v1968 = vpack.c.bf16 %v1941, %v1940
      %v1969 = vpack.c.bf16 %v1943, %v1942
      %v1970 = vpack.c.bf16 %v1945, %v1944
      %v1971 = vpack.c.bf16 %v1947, %v1946
      %v1972 = vpack.c.bf16 %v1949, %v1948
      %v1973 = vpack.c.bf16 %v1951, %v1950
      %v1974 = vpack.c.bf16 %v1953, %v1952
      %v1975 = vpack.c.bf16 %v1955, %v1954
      %v1976 = vpack.c.bf16 %v1957, %v1956
      %v1977 = vpack.c.bf16 %v1959, %v1958
      %v1978 = vpack.c.bf16 %v1961, %v1960
      %v1979 = vpack.c.bf16 %v1963, %v1962
      %s1980 = scalar_lea.vmem %s3, 320
      %v1981 = vld [vmem:[%s1980] sm:$0xf]
      %v1982 = vld [vmem:[%s1980 + $0x4] sm:$0xf]
      %v1983 = vld [vmem:[%s1980 + $0x8] sm:$0xf]
      %v1984 = vld [vmem:[%s1980 + $0xc] sm:$0xf]
      %v1985 = vld [vmem:[%s1980 + $0x10] sm:$0xf]
      %v1986 = vld [vmem:[%s1980 + $0x14] sm:$0xf]
      %v1987 = vld [vmem:[%s1980 + $0x18] sm:$0xf]
      %v1988 = vld [vmem:[%s1980 + $0x1c] sm:$0xf]
      %v1989 = vld [vmem:[%s1980 + $0x20] sm:$0xf]
      %v1990 = vld [vmem:[%s1980 + $0x24] sm:$0xf]
      %v1991 = vld [vmem:[%s1980 + $0x28] sm:$0xf]
      %v1992 = vld [vmem:[%s1980 + $0x2c] sm:$0xf]
      %v1993 = vld [vmem:[%s1980 + $0x30] sm:$0xf]
      %v1994 = vld [vmem:[%s1980 + $0x34] sm:$0xf]
      %v1995 = vld [vmem:[%s1980 + $0x38] sm:$0xf]
      %v1996 = vld [vmem:[%s1980 + $0x3c] sm:$0xf]
      %v2013 = vunpack.c.l.b16 %v1981
      %v2014 = vunpack.c.l.b16 %v1982
      %v2015 = vunpack.c.l.b16 %v1983
      %v2016 = vunpack.c.l.b16 %v1984
      %v2017 = vunpack.c.l.b16 %v1985
      %v2018 = vunpack.c.l.b16 %v1986
      %v2019 = vunpack.c.l.b16 %v1987
      %v2020 = vunpack.c.l.b16 %v1988
      %v2021 = vunpack.c.l.b16 %v1989
      %v2022 = vunpack.c.l.b16 %v1990
      %v2023 = vunpack.c.l.b16 %v1991
      %v2024 = vunpack.c.l.b16 %v1992
      %v2025 = vunpack.c.l.b16 %v1993
      %v2026 = vunpack.c.l.b16 %v1994
      %v2027 = vunpack.c.l.b16 %v1995
      %v2028 = vunpack.c.l.b16 %v1996
      %v2029 = vpack.c.b16 %v2014, %v2013
      %v2030 = vpack.c.b16 %v2016, %v2015
      %v2031 = vpack.c.b16 %v2018, %v2017
      %v2032 = vpack.c.b16 %v2020, %v2019
      %v2033 = vpack.c.b16 %v2022, %v2021
      %v2034 = vpack.c.b16 %v2024, %v2023
      %v2035 = vpack.c.b16 %v2026, %v2025
      %v2036 = vpack.c.b16 %v2028, %v2027
      %2045 = vmatprep.subr.bf16.mxu0 0
      %2046 = vmatpush1.bf16.msra.mxu0 %v2029
      %2047 = vmatprep.subr.bf16.mxu0 0
      %2048 = vmatpush1.bf16.msra.mxu0 %v2030
      %2049 = vmatprep.subr.bf16.mxu0 0
      %2050 = vmatpush1.bf16.msra.mxu0 %v2031
      %2051 = vmatprep.subr.bf16.mxu0 0
      %2052 = vmatpush1.bf16.msra.mxu0 %v2032
      %2053 = vmatprep.subr.bf16.mxu0 0
      %2054 = vmatpush1.bf16.msra.mxu0 %v2033
      %2055 = vmatprep.subr.bf16.mxu0 0
      %2056 = vmatpush1.bf16.msra.mxu0 %v2034
      %2057 = vmatprep.subr.bf16.mxu0 0
      %2058 = vmatpush1.bf16.msra.mxu0 %v2035
      %2059 = vmatprep.subr.bf16.mxu0 0
      %2060 = vmatpush1.bf16.msra.mxu0 %v2036
      %2061 = vmatprep.subr.bf16.mxu0 0
      %2062 = vmatpush1.bf16.msra.mxu0 0
      %2063 = vmatprep.subr.bf16.mxu0 0
      %2064 = vmatpush1.bf16.msra.mxu0 0
      %2065 = vmatprep.subr.bf16.mxu0 0
      %2066 = vmatpush1.bf16.msra.mxu0 0
      %2067 = vmatprep.subr.bf16.mxu0 0
      %2068 = vmatpush1.bf16.msra.mxu0 0
      %2069 = vmatprep.subr.bf16.mxu0 0
      %2070 = vmatpush1.bf16.msra.mxu0 0
      %2071 = vmatprep.subr.bf16.mxu0 0
      %2072 = vmatpush1.bf16.msra.mxu0 0
      %2073 = vmatprep.subr.bf16.mxu0 0
      %2074 = vmatpush1.bf16.msra.mxu0 0
      %2075 = vmatprep.subr.bf16.mxu0 0
      %2076 = vmatpush1.bf16.msra.mxu0 0
      %2077 = vmatprep.mubr.bf16.mxu0 0
      %2078 = vmatmul.mubr.bf16.gmra.mrb[0].mxu0 %v1964
      %v2079 = vpop.f32.mrb[0].mxu0
      %v2080 = vadd.f32 0.0, %v2079
      %v2081 = vpop.f32.mrb[0].mxu0
      %v2082 = vpop.f32.mrb[0].mxu0
      %v2083 = vadd.f32 0.0, %v2082
      %v2084 = vpop.f32.mrb[0].mxu0
      %2085 = vmatprep.mubr.bf16.mxu0 0
      %2086 = vmatmul.mubr.bf16.gmra.mrb[0].mxu0 %v1965
      %v2087 = vpop.f32.mrb[0].mxu0
      %v2088 = vadd.f32 0.0, %v2087
      %v2089 = vpop.f32.mrb[0].mxu0
      %v2090 = vpop.f32.mrb[0].mxu0
      %v2091 = vadd.f32 0.0, %v2090
      %v2092 = vpop.f32.mrb[0].mxu0
      %2093 = vmatprep.mubr.bf16.mxu0 0
      %2094 = vmatmul.mubr.bf16.gmra.mrb[0].mxu0 %v1966
      %v2095 = vpop.f32.mrb[0].mxu0
      %v2096 = vadd.f32 0.0, %v2095
      %v2097 = vpop.f32.mrb[0].mxu0
      %v2098 = vpop.f32.mrb[0].mxu0
      %v2099 = vadd.f32 0.0, %v2098
      %v2100 = vpop.f32.mrb[0].mxu0
      %2101 = vmatprep.mubr.bf16.mxu0 0
      %2102 = vmatmul.mubr.bf16.gmra.mrb[0].mxu0 %v1967
      %v2103 = vpop.f32.mrb[0].mxu0
      %v2104 = vadd.f32 0.0, %v2103
      %v2105 = vpop.f32.mrb[0].mxu0
      %v2106 = vpop.f32.mrb[0].mxu0
      %v2107 = vadd.f32 0.0, %v2106
      %v2108 = vpop.f32.mrb[0].mxu0
      %2109 = vmatprep.mubr.bf16.mxu0 0
      %2110 = vmatmul.mubr.bf16.gmra.mrb[0].mxu0 %v1968
      %v2111 = vpop.f32.mrb[0].mxu0
      %v2112 = vadd.f32 0.0, %v2111
      %v2113 = vpop.f32.mrb[0].mxu0
      %v2114 = vpop.f32.mrb[0].mxu0
      %v2115 = vadd.f32 0.0, %v2114
      %v2116 = vpop.f32.mrb[0].mxu0
      %2117 = vmatprep.mubr.bf16.mxu0 0
      %2118 = vmatmul.mubr.bf16.gmra.mrb[0].mxu0 %v1969
      %v2119 = vpop.f32.mrb[0].mxu0
      %v2120 = vadd.f32 0.0, %v2119
      %v2121 = vpop.f32.mrb[0].mxu0
      %v2122 = vpop.f32.mrb[0].mxu0
      %v2123 = vadd.f32 0.0, %v2122
      %v2124 = vpop.f32.mrb[0].mxu0
      %2125 = vmatprep.mubr.bf16.mxu0 0
      %2126 = vmatmul.mubr.bf16.gmra.mrb[0].mxu0 %v1970
      %v2127 = vpop.f32.mrb[0].mxu0
      %v2128 = vadd.f32 0.0, %v2127
      %v2129 = vpop.f32.mrb[0].mxu0
      %v2130 = vpop.f32.mrb[0].mxu0
      %v2131 = vadd.f32 0.0, %v2130
      %v2132 = vpop.f32.mrb[0].mxu0
      %2133 = vmatprep.mubr.bf16.mxu0 0
      %2134 = vmatmul.mubr.bf16.gmra.mrb[0].mxu0 %v1971
      %v2135 = vpop.f32.mrb[0].mxu0
      %v2136 = vadd.f32 0.0, %v2135
      %v2137 = vpop.f32.mrb[0].mxu0
      %v2138 = vpop.f32.mrb[0].mxu0
      %v2139 = vadd.f32 0.0, %v2138
      %v2140 = vpop.f32.mrb[0].mxu0
      %2141 = vmatprep.mubr.bf16.mxu0 0
      %2142 = vmatmul.mubr.bf16.gmra.mrb[0].mxu0 %v1972
      %v2143 = vpop.f32.mrb[0].mxu0
      %v2144 = vadd.f32 0.0, %v2143
      %v2145 = vpop.f32.mrb[0].mxu0
      %v2146 = vpop.f32.mrb[0].mxu0
      %v2147 = vadd.f32 0.0, %v2146
      %v2148 = vpop.f32.mrb[0].mxu0
      %2149 = vmatprep.mubr.bf16.mxu0 0
      %2150 = vmatmul.mubr.bf16.gmra.mrb[0].mxu0 %v1973
      %v2151 = vpop.f32.mrb[0].mxu0
      %v2152 = vadd.f32 0.0, %v2151
      %v2153 = vpop.f32.mrb[0].mxu0
      %v2154 = vpop.f32.mrb[0].mxu0
      %v2155 = vadd.f32 0.0, %v2154
      %v2156 = vpop.f32.mrb[0].mxu0
      %2157 = vmatprep.mubr.bf16.mxu0 0
      %2158 = vmatmul.mubr.bf16.gmra.mrb[0].mxu0 %v1974
      %v2159 = vpop.f32.mrb[0].mxu0
      %v2160 = vadd.f32 0.0, %v2159
      %v2161 = vpop.f32.mrb[0].mxu0
      %v2162 = vpop.f32.mrb[0].mxu0
      %v2163 = vadd.f32 0.0, %v2162
      %v2164 = vpop.f32.mrb[0].mxu0
      %2165 = vmatprep.mubr.bf16.mxu0 0
      %2166 = vmatmul.mubr.bf16.gmra.mrb[0].mxu0 %v1975
      %v2167 = vpop.f32.mrb[0].mxu0
      %v2168 = vadd.f32 0.0, %v2167
      %v2169 = vpop.f32.mrb[0].mxu0
      %v2170 = vpop.f32.mrb[0].mxu0
      %v2171 = vadd.f32 0.0, %v2170
      %v2172 = vpop.f32.mrb[0].mxu0
      %2173 = vmatprep.mubr.bf16.mxu0 0
      %2174 = vmatmul.mubr.bf16.gmra.mrb[0].mxu0 %v1976
      %v2175 = vpop.f32.mrb[0].mxu0
      %v2176 = vadd.f32 0.0, %v2175
      %v2177 = vpop.f32.mrb[0].mxu0
      %v2178 = vpop.f32.mrb[0].mxu0
      %v2179 = vadd.f32 0.0, %v2178
      %v2180 = vpop.f32.mrb[0].mxu0
      %2181 = vmatprep.mubr.bf16.mxu0 0
      %2182 = vmatmul.mubr.bf16.gmra.mrb[0].mxu0 %v1977
      %v2183 = vpop.f32.mrb[0].mxu0
      %v2184 = vadd.f32 0.0, %v2183
      %v2185 = vpop.f32.mrb[0].mxu0
      %v2186 = vpop.f32.mrb[0].mxu0
      %v2187 = vadd.f32 0.0, %v2186
      %v2188 = vpop.f32.mrb[0].mxu0
      %2189 = vmatprep.mubr.bf16.mxu0 0
      %2190 = vmatmul.mubr.bf16.gmra.mrb[0].mxu0 %v1978
      %v2191 = vpop.f32.mrb[0].mxu0
      %v2192 = vadd.f32 0.0, %v2191
      %v2193 = vpop.f32.mrb[0].mxu0
      %v2194 = vpop.f32.mrb[0].mxu0
      %v2195 = vadd.f32 0.0, %v2194
      %v2196 = vpop.f32.mrb[0].mxu0
      %2197 = vmatprep.mubr.bf16.mxu0 0
      %2198 = vmatmul.mubr.bf16.gmra.mrb[0].mxu0 %v1979
      %v2199 = vpop.f32.mrb[0].mxu0
      %v2200 = vadd.f32 0.0, %v2199
      %v2201 = vpop.f32.mrb[0].mxu0
      %v2202 = vpop.f32.mrb[0].mxu0
      %v2203 = vadd.f32 0.0, %v2202
      %v2204 = vpop.f32.mrb[0].mxu0
      %2205 = vdwg.mxu0
      %v2206 = vadd.f32 %v1900, %v2080
      %v2207 = vadd.f32 %v1901, %v2083
      %v2208 = vadd.f32 %v1902, %v2088
      %v2209 = vadd.f32 %v1903, %v2091
      %v2210 = vadd.f32 %v1904, %v2096
      %v2211 = vadd.f32 %v1905, %v2099
      %v2212 = vadd.f32 %v1906, %v2104
      %v2213 = vadd.f32 %v1907, %v2107
      %v2214 = vadd.f32 %v1908, %v2112
      %v2215 = vadd.f32 %v1909, %v2115
      %v2216 = vadd.f32 %v1910, %v2120
      %v2217 = vadd.f32 %v1911, %v2123
      %v2218 = vadd.f32 %v1912, %v2128
      %v2219 = vadd.f32 %v1913, %v2131
      %v2220 = vadd.f32 %v1914, %v2136
      %v2221 = vadd.f32 %v1915, %v2139
      %v2222 = vadd.f32 %v1916, %v2144
      %v2223 = vadd.f32 %v1917, %v2147
      %v2224 = vadd.f32 %v1918, %v2152
      %v2225 = vadd.f32 %v1919, %v2155
      %v2226 = vadd.f32 %v1920, %v2160
      %v2227 = vadd.f32 %v1921, %v2163
      %v2228 = vadd.f32 %v1922, %v2168
      %v2229 = vadd.f32 %v1923, %v2171
      %v2230 = vadd.f32 %v1924, %v2176
      %v2231 = vadd.f32 %v1925, %v2179
      %v2232 = vadd.f32 %v1926, %v2184
      %v2233 = vadd.f32 %v1927, %v2187
      %v2234 = vadd.f32 %v1928, %v2192
      %v2235 = vadd.f32 %v1929, %v2195
      %v2236 = vadd.f32 %v1930, %v2200
      %v2237 = vadd.f32 %v1931, %v2203
      %s2238 = scalar_lea.vmem [#allocation2], 48
      %v2239 = vld [vmem:[%s2238] sm:$0xff]
      %v2240 = vld [vmem:[%s2238 + $0x8] sm:$0xff]
      %v2241 = vld [vmem:[%s2238 + $0x18] sm:$0xff]
      %v2242 = vld [vmem:[%s2238 + $0x20] sm:$0xff]
      %v2243 = vld [vmem:[%s2238 + $0x30] sm:$0xff]
      %v2244 = vld [vmem:[%s2238 + $0x38] sm:$0xff]
      %v2245 = vld [vmem:[%s2238 + $0x48] sm:$0xff]
      %v2246 = vld [vmem:[%s2238 + $0x50] sm:$0xff]
      %v2247 = vld [vmem:[%s2238 + $0x60] sm:$0xff]
      %v2248 = vld [vmem:[%s2238 + $0x68] sm:$0xff]
      %v2249 = vld [vmem:[%s2238 + $0x78] sm:$0xff]
      %v2250 = vld [vmem:[%s2238 + $0x80] sm:$0xff]
      %v2251 = vld [vmem:[%s2238 + $0x90] sm:$0xff]
      %v2252 = vld [vmem:[%s2238 + $0x98] sm:$0xff]
      %v2253 = vld [vmem:[%s2238 + $0xa8] sm:$0xff]
      %v2254 = vld [vmem:[%s2238 + $0xb0] sm:$0xff]
      %v2255 = vld [vmem:[%s2238 + $0xc0] sm:$0xff]
      %v2256 = vld [vmem:[%s2238 + $0xc8] sm:$0xff]
      %v2257 = vld [vmem:[%s2238 + $0xd8] sm:$0xff]
      %v2258 = vld [vmem:[%s2238 + $0xe0] sm:$0xff]
      %v2259 = vld [vmem:[%s2238 + $0xf0] sm:$0xff]
      %v2260 = vld [vmem:[%s2238 + $0xf8] sm:$0xff]
      %v2261 = vld [vmem:[%s2238 + $0x108] sm:$0xff]
      %v2262 = vld [vmem:[%s2238 + $0x110] sm:$0xff]
      %v2263 = vld [vmem:[%s2238 + $0x120] sm:$0xff]
      %v2264 = vld [vmem:[%s2238 + $0x128] sm:$0xff]
      %v2265 = vld [vmem:[%s2238 + $0x138] sm:$0xff]
      %v2266 = vld [vmem:[%s2238 + $0x140] sm:$0xff]
      %v2267 = vld [vmem:[%s2238 + $0x150] sm:$0xff]
      %v2268 = vld [vmem:[%s2238 + $0x158] sm:$0xff]
      %v2269 = vld [vmem:[%s2238 + $0x168] sm:$0xff]
      %v2270 = vld [vmem:[%s2238 + $0x170] sm:$0xff]
      %v2271 = vpack.c.bf16 %v2240, %v2239
      %v2272 = vpack.c.bf16 %v2242, %v2241
      %v2273 = vpack.c.bf16 %v2244, %v2243
      %v2274 = vpack.c.bf16 %v2246, %v2245
      %v2275 = vpack.c.bf16 %v2248, %v2247
      %v2276 = vpack.c.bf16 %v2250, %v2249
      %v2277 = vpack.c.bf16 %v2252, %v2251
      %v2278 = vpack.c.bf16 %v2254, %v2253
      %v2279 = vpack.c.bf16 %v2256, %v2255
      %v2280 = vpack.c.bf16 %v2258, %v2257
      %v2281 = vpack.c.bf16 %v2260, %v2259
      %v2282 = vpack.c.bf16 %v2262, %v2261
      %v2283 = vpack.c.bf16 %v2264, %v2263
      %v2284 = vpack.c.bf16 %v2266, %v2265
      %v2285 = vpack.c.bf16 %v2268, %v2267
      %v2286 = vpack.c.bf16 %v2270, %v2269
      %s2287 = scalar_lea.vmem %s3, 384
      %v2288 = vld [vmem:[%s2287] sm:$0xf]
      %v2289 = vld [vmem:[%s2287 + $0x4] sm:$0xf]
      %v2290 = vld [vmem:[%s2287 + $0x8] sm:$0xf]
      %v2291 = vld [vmem:[%s2287 + $0xc] sm:$0xf]
      %v2292 = vld [vmem:[%s2287 + $0x10] sm:$0xf]
      %v2293 = vld [vmem:[%s2287 + $0x14] sm:$0xf]
      %v2294 = vld [vmem:[%s2287 + $0x18] sm:$0xf]
      %v2295 = vld [vmem:[%s2287 + $0x1c] sm:$0xf]
      %v2296 = vld [vmem:[%s2287 + $0x20] sm:$0xf]
      %v2297 = vld [vmem:[%s2287 + $0x24] sm:$0xf]
      %v2298 = vld [vmem:[%s2287 + $0x28] sm:$0xf]
      %v2299 = vld [vmem:[%s2287 + $0x2c] sm:$0xf]
      %v2300 = vld [vmem:[%s2287 + $0x30] sm:$0xf]
      %v2301 = vld [vmem:[%s2287 + $0x34] sm:$0xf]
      %v2302 = vld [vmem:[%s2287 + $0x38] sm:$0xf]
      %v2303 = vld [vmem:[%s2287 + $0x3c] sm:$0xf]
      %v2320 = vunpack.c.l.b16 %v2288
      %v2321 = vunpack.c.l.b16 %v2289
      %v2322 = vunpack.c.l.b16 %v2290
      %v2323 = vunpack.c.l.b16 %v2291
      %v2324 = vunpack.c.l.b16 %v2292
      %v2325 = vunpack.c.l.b16 %v2293
      %v2326 = vunpack.c.l.b16 %v2294
      %v2327 = vunpack.c.l.b16 %v2295
      %v2328 = vunpack.c.l.b16 %v2296
      %v2329 = vunpack.c.l.b16 %v2297
      %v2330 = vunpack.c.l.b16 %v2298
      %v2331 = vunpack.c.l.b16 %v2299
      %v2332 = vunpack.c.l.b16 %v2300
      %v2333 = vunpack.c.l.b16 %v2301
      %v2334 = vunpack.c.l.b16 %v2302
      %v2335 = vunpack.c.l.b16 %v2303
      %v2336 = vpack.c.b16 %v2321, %v2320
      %v2337 = vpack.c.b16 %v2323, %v2322
      %v2338 = vpack.c.b16 %v2325, %v2324
      %v2339 = vpack.c.b16 %v2327, %v2326
      %v2340 = vpack.c.b16 %v2329, %v2328
      %v2341 = vpack.c.b16 %v2331, %v2330
      %v2342 = vpack.c.b16 %v2333, %v2332
      %v2343 = vpack.c.b16 %v2335, %v2334
      %2352 = vmatprep.subr.bf16.mxu0 0
      %2353 = vmatpush1.bf16.msra.mxu0 %v2336
      %2354 = vmatprep.subr.bf16.mxu0 0
      %2355 = vmatpush1.bf16.msra.mxu0 %v2337
      %2356 = vmatprep.subr.bf16.mxu0 0
      %2357 = vmatpush1.bf16.msra.mxu0 %v2338
      %2358 = vmatprep.subr.bf16.mxu0 0
      %2359 = vmatpush1.bf16.msra.mxu0 %v2339
      %2360 = vmatprep.subr.bf16.mxu0 0
      %2361 = vmatpush1.bf16.msra.mxu0 %v2340
      %2362 = vmatprep.subr.bf16.mxu0 0
      %2363 = vmatpush1.bf16.msra.mxu0 %v2341
      %2364 = vmatprep.subr.bf16.mxu0 0
      %2365 = vmatpush1.bf16.msra.mxu0 %v2342
      %2366 = vmatprep.subr.bf16.mxu0 0
      %2367 = vmatpush1.bf16.msra.mxu0 %v2343
      %2368 = vmatprep.subr.bf16.mxu0 0
      %2369 = vmatpush1.bf16.msra.mxu0 0
      %2370 = vmatprep.subr.bf16.mxu0 0
      %2371 = vmatpush1.bf16.msra.mxu0 0
      %2372 = vmatprep.subr.bf16.mxu0 0
      %2373 = vmatpush1.bf16.msra.mxu0 0
      %2374 = vmatprep.subr.bf16.mxu0 0
      %2375 = vmatpush1.bf16.msra.mxu0 0
      %2376 = vmatprep.subr.bf16.mxu0 0
      %2377 = vmatpush1.bf16.msra.mxu0 0
      %2378 = vmatprep.subr.bf16.mxu0 0
      %2379 = vmatpush1.bf16.msra.mxu0 0
      %2380 = vmatprep.subr.bf16.mxu0 0
      %2381 = vmatpush1.bf16.msra.mxu0 0
      %2382 = vmatprep.subr.bf16.mxu0 0
      %2383 = vmatpush1.bf16.msra.mxu0 0
      %2384 = vmatprep.mubr.bf16.mxu0 0
      %2385 = vmatmul.mubr.bf16.gmra.mrb[0].mxu0 %v2271
      %v2386 = vpop.f32.mrb[0].mxu0
      %v2387 = vadd.f32 0.0, %v2386
      %v2388 = vpop.f32.mrb[0].mxu0
      %v2389 = vpop.f32.mrb[0].mxu0
      %v2390 = vadd.f32 0.0, %v2389
      %v2391 = vpop.f32.mrb[0].mxu0
      %2392 = vmatprep.mubr.bf16.mxu0 0
      %2393 = vmatmul.mubr.bf16.gmra.mrb[0].mxu0 %v2272
      %v2394 = vpop.f32.mrb[0].mxu0
      %v2395 = vadd.f32 0.0, %v2394
      %v2396 = vpop.f32.mrb[0].mxu0
      %v2397 = vpop.f32.mrb[0].mxu0
      %v2398 = vadd.f32 0.0, %v2397
      %v2399 = vpop.f32.mrb[0].mxu0
      %2400 = vmatprep.mubr.bf16.mxu0 0
      %2401 = vmatmul.mubr.bf16.gmra.mrb[0].mxu0 %v2273
      %v2402 = vpop.f32.mrb[0].mxu0
      %v2403 = vadd.f32 0.0, %v2402
      %v2404 = vpop.f32.mrb[0].mxu0
      %v2405 = vpop.f32.mrb[0].mxu0
      %v2406 = vadd.f32 0.0, %v2405
      %v2407 = vpop.f32.mrb[0].mxu0
      %2408 = vmatprep.mubr.bf16.mxu0 0
      %2409 = vmatmul.mubr.bf16.gmra.mrb[0].mxu0 %v2274
      %v2410 = vpop.f32.mrb[0].mxu0
      %v2411 = vadd.f32 0.0, %v2410
      %v2412 = vpop.f32.mrb[0].mxu0
      %v2413 = vpop.f32.mrb[0].mxu0
      %v2414 = vadd.f32 0.0, %v2413
      %v2415 = vpop.f32.mrb[0].mxu0
      %2416 = vmatprep.mubr.bf16.mxu0 0
      %2417 = vmatmul.mubr.bf16.gmra.mrb[0].mxu0 %v2275
      %v2418 = vpop.f32.mrb[0].mxu0
      %v2419 = vadd.f32 0.0, %v2418
      %v2420 = vpop.f32.mrb[0].mxu0
      %v2421 = vpop.f32.mrb[0].mxu0
      %v2422 = vadd.f32 0.0, %v2421
      %v2423 = vpop.f32.mrb[0].mxu0
      %2424 = vmatprep.mubr.bf16.mxu0 0
      %2425 = vmatmul.mubr.bf16.gmra.mrb[0].mxu0 %v2276
      %v2426 = vpop.f32.mrb[0].mxu0
      %v2427 = vadd.f32 0.0, %v2426
      %v2428 = vpop.f32.mrb[0].mxu0
      %v2429 = vpop.f32.mrb[0].mxu0
      %v2430 = vadd.f32 0.0, %v2429
      %v2431 = vpop.f32.mrb[0].mxu0
      %2432 = vmatprep.mubr.bf16.mxu0 0
      %2433 = vmatmul.mubr.bf16.gmra.mrb[0].mxu0 %v2277
      %v2434 = vpop.f32.mrb[0].mxu0
      %v2435 = vadd.f32 0.0, %v2434
      %v2436 = vpop.f32.mrb[0].mxu0
      %v2437 = vpop.f32.mrb[0].mxu0
      %v2438 = vadd.f32 0.0, %v2437
      %v2439 = vpop.f32.mrb[0].mxu0
      %2440 = vmatprep.mubr.bf16.mxu0 0
      %2441 = vmatmul.mubr.bf16.gmra.mrb[0].mxu0 %v2278
      %v2442 = vpop.f32.mrb[0].mxu0
      %v2443 = vadd.f32 0.0, %v2442
      %v2444 = vpop.f32.mrb[0].mxu0
      %v2445 = vpop.f32.mrb[0].mxu0
      %v2446 = vadd.f32 0.0, %v2445
      %v2447 = vpop.f32.mrb[0].mxu0
      %2448 = vmatprep.mubr.bf16.mxu0 0
      %2449 = vmatmul.mubr.bf16.gmra.mrb[0].mxu0 %v2279
      %v2450 = vpop.f32.mrb[0].mxu0
      %v2451 = vadd.f32 0.0, %v2450
      %v2452 = vpop.f32.mrb[0].mxu0
      %v2453 = vpop.f32.mrb[0].mxu0
      %v2454 = vadd.f32 0.0, %v2453
      %v2455 = vpop.f32.mrb[0].mxu0
      %2456 = vmatprep.mubr.bf16.mxu0 0
      %2457 = vmatmul.mubr.bf16.gmra.mrb[0].mxu0 %v2280
      %v2458 = vpop.f32.mrb[0].mxu0
      %v2459 = vadd.f32 0.0, %v2458
      %v2460 = vpop.f32.mrb[0].mxu0
      %v2461 = vpop.f32.mrb[0].mxu0
      %v2462 = vadd.f32 0.0, %v2461
      %v2463 = vpop.f32.mrb[0].mxu0
      %2464 = vmatprep.mubr.bf16.mxu0 0
      %2465 = vmatmul.mubr.bf16.gmra.mrb[0].mxu0 %v2281
      %v2466 = vpop.f32.mrb[0].mxu0
      %v2467 = vadd.f32 0.0, %v2466
      %v2468 = vpop.f32.mrb[0].mxu0
      %v2469 = vpop.f32.mrb[0].mxu0
      %v2470 = vadd.f32 0.0, %v2469
      %v2471 = vpop.f32.mrb[0].mxu0
      %2472 = vmatprep.mubr.bf16.mxu0 0
      %2473 = vmatmul.mubr.bf16.gmra.mrb[0].mxu0 %v2282
      %v2474 = vpop.f32.mrb[0].mxu0
      %v2475 = vadd.f32 0.0, %v2474
      %v2476 = vpop.f32.mrb[0].mxu0
      %v2477 = vpop.f32.mrb[0].mxu0
      %v2478 = vadd.f32 0.0, %v2477
      %v2479 = vpop.f32.mrb[0].mxu0
      %2480 = vmatprep.mubr.bf16.mxu0 0
      %2481 = vmatmul.mubr.bf16.gmra.mrb[0].mxu0 %v2283
      %v2482 = vpop.f32.mrb[0].mxu0
      %v2483 = vadd.f32 0.0, %v2482
      %v2484 = vpop.f32.mrb[0].mxu0
      %v2485 = vpop.f32.mrb[0].mxu0
      %v2486 = vadd.f32 0.0, %v2485
      %v2487 = vpop.f32.mrb[0].mxu0
      %2488 = vmatprep.mubr.bf16.mxu0 0
      %2489 = vmatmul.mubr.bf16.gmra.mrb[0].mxu0 %v2284
      %v2490 = vpop.f32.mrb[0].mxu0
      %v2491 = vadd.f32 0.0, %v2490
      %v2492 = vpop.f32.mrb[0].mxu0
      %v2493 = vpop.f32.mrb[0].mxu0
      %v2494 = vadd.f32 0.0, %v2493
      %v2495 = vpop.f32.mrb[0].mxu0
      %2496 = vmatprep.mubr.bf16.mxu0 0
      %2497 = vmatmul.mubr.bf16.gmra.mrb[0].mxu0 %v2285
      %v2498 = vpop.f32.mrb[0].mxu0
      %v2499 = vadd.f32 0.0, %v2498
      %v2500 = vpop.f32.mrb[0].mxu0
      %v2501 = vpop.f32.mrb[0].mxu0
      %v2502 = vadd.f32 0.0, %v2501
      %v2503 = vpop.f32.mrb[0].mxu0
      %2504 = vmatprep.mubr.bf16.mxu0 0
      %2505 = vmatmul.mubr.bf16.gmra.mrb[0].mxu0 %v2286
      %v2506 = vpop.f32.mrb[0].mxu0
      %v2507 = vadd.f32 0.0, %v2506
      %v2508 = vpop.f32.mrb[0].mxu0
      %v2509 = vpop.f32.mrb[0].mxu0
      %v2510 = vadd.f32 0.0, %v2509
      %v2511 = vpop.f32.mrb[0].mxu0
      %2512 = vdwg.mxu0
      %v2513 = vadd.f32 %v2206, %v2387
      %v2514 = vadd.f32 %v2207, %v2390
      %v2515 = vadd.f32 %v2208, %v2395
      %v2516 = vadd.f32 %v2209, %v2398
      %v2517 = vadd.f32 %v2210, %v2403
      %v2518 = vadd.f32 %v2211, %v2406
      %v2519 = vadd.f32 %v2212, %v2411
      %v2520 = vadd.f32 %v2213, %v2414
      %v2521 = vadd.f32 %v2214, %v2419
      %v2522 = vadd.f32 %v2215, %v2422
      %v2523 = vadd.f32 %v2216, %v2427
      %v2524 = vadd.f32 %v2217, %v2430
      %v2525 = vadd.f32 %v2218, %v2435
      %v2526 = vadd.f32 %v2219, %v2438
      %v2527 = vadd.f32 %v2220, %v2443
      %v2528 = vadd.f32 %v2221, %v2446
      %v2529 = vadd.f32 %v2222, %v2451
      %v2530 = vadd.f32 %v2223, %v2454
      %v2531 = vadd.f32 %v2224, %v2459
      %v2532 = vadd.f32 %v2225, %v2462
      %v2533 = vadd.f32 %v2226, %v2467
      %v2534 = vadd.f32 %v2227, %v2470
      %v2535 = vadd.f32 %v2228, %v2475
      %v2536 = vadd.f32 %v2229, %v2478
      %v2537 = vadd.f32 %v2230, %v2483
      %v2538 = vadd.f32 %v2231, %v2486
      %v2539 = vadd.f32 %v2232, %v2491
      %v2540 = vadd.f32 %v2233, %v2494
      %v2541 = vadd.f32 %v2234, %v2499
      %v2542 = vadd.f32 %v2235, %v2502
      %v2543 = vadd.f32 %v2236, %v2507
      %v2544 = vadd.f32 %v2237, %v2510
      %v2545 = vld [vmem:[%s2238 + $0x1] sm:$0xff]
      %v2546 = vld [vmem:[%s2238 + $0x9] sm:$0xff]
      %v2547 = vld [vmem:[%s2238 + $0x19] sm:$0xff]
      %v2548 = vld [vmem:[%s2238 + $0x21] sm:$0xff]
      %v2549 = vld [vmem:[%s2238 + $0x31] sm:$0xff]
      %v2550 = vld [vmem:[%s2238 + $0x39] sm:$0xff]
      %v2551 = vld [vmem:[%s2238 + $0x49] sm:$0xff]
      %v2552 = vld [vmem:[%s2238 + $0x51] sm:$0xff]
      %v2553 = vld [vmem:[%s2238 + $0x61] sm:$0xff]
      %v2554 = vld [vmem:[%s2238 + $0x69] sm:$0xff]
      %v2555 = vld [vmem:[%s2238 + $0x79] sm:$0xff]
      %v2556 = vld [vmem:[%s2238 + $0x81] sm:$0xff]
      %v2557 = vld [vmem:[%s2238 + $0x91] sm:$0xff]
      %v2558 = vld [vmem:[%s2238 + $0x99] sm:$0xff]
      %v2559 = vld [vmem:[%s2238 + $0xa9] sm:$0xff]
      %v2560 = vld [vmem:[%s2238 + $0xb1] sm:$0xff]
      %v2561 = vld [vmem:[%s2238 + $0xc1] sm:$0xff]
      %v2562 = vld [vmem:[%s2238 + $0xc9] sm:$0xff]
      %v2563 = vld [vmem:[%s2238 + $0xd9] sm:$0xff]
      %v2564 = vld [vmem:[%s2238 + $0xe1] sm:$0xff]
      %v2565 = vld [vmem:[%s2238 + $0xf1] sm:$0xff]
      %v2566 = vld [vmem:[%s2238 + $0xf9] sm:$0xff]
      %v2567 = vld [vmem:[%s2238 + $0x109] sm:$0xff]
      %v2568 = vld [vmem:[%s2238 + $0x111] sm:$0xff]
      %v2569 = vld [vmem:[%s2238 + $0x121] sm:$0xff]
      %v2570 = vld [vmem:[%s2238 + $0x129] sm:$0xff]
      %v2571 = vld [vmem:[%s2238 + $0x139] sm:$0xff]
      %v2572 = vld [vmem:[%s2238 + $0x141] sm:$0xff]
      %v2573 = vld [vmem:[%s2238 + $0x151] sm:$0xff]
      %v2574 = vld [vmem:[%s2238 + $0x159] sm:$0xff]
      %v2575 = vld [vmem:[%s2238 + $0x169] sm:$0xff]
      %v2576 = vld [vmem:[%s2238 + $0x171] sm:$0xff]
      %v2577 = vpack.c.bf16 %v2546, %v2545
      %v2578 = vpack.c.bf16 %v2548, %v2547
      %v2579 = vpack.c.bf16 %v2550, %v2549
      %v2580 = vpack.c.bf16 %v2552, %v2551
      %v2581 = vpack.c.bf16 %v2554, %v2553
      %v2582 = vpack.c.bf16 %v2556, %v2555
      %v2583 = vpack.c.bf16 %v2558, %v2557
      %v2584 = vpack.c.bf16 %v2560, %v2559
      %v2585 = vpack.c.bf16 %v2562, %v2561
      %v2586 = vpack.c.bf16 %v2564, %v2563
      %v2587 = vpack.c.bf16 %v2566, %v2565
      %v2588 = vpack.c.bf16 %v2568, %v2567
      %v2589 = vpack.c.bf16 %v2570, %v2569
      %v2590 = vpack.c.bf16 %v2572, %v2571
      %v2591 = vpack.c.bf16 %v2574, %v2573
      %v2592 = vpack.c.bf16 %v2576, %v2575
      %s2593 = scalar_lea.vmem %s3, 448
      %v2594 = vld [vmem:[%s2593] sm:$0xf]
      %v2595 = vld [vmem:[%s2593 + $0x4] sm:$0xf]
      %v2596 = vld [vmem:[%s2593 + $0x8] sm:$0xf]
      %v2597 = vld [vmem:[%s2593 + $0xc] sm:$0xf]
      %v2598 = vld [vmem:[%s2593 + $0x10] sm:$0xf]
      %v2599 = vld [vmem:[%s2593 + $0x14] sm:$0xf]
      %v2600 = vld [vmem:[%s2593 + $0x18] sm:$0xf]
      %v2601 = vld [vmem:[%s2593 + $0x1c] sm:$0xf]
      %v2602 = vld [vmem:[%s2593 + $0x20] sm:$0xf]
      %v2603 = vld [vmem:[%s2593 + $0x24] sm:$0xf]
      %v2604 = vld [vmem:[%s2593 + $0x28] sm:$0xf]
      %v2605 = vld [vmem:[%s2593 + $0x2c] sm:$0xf]
      %v2606 = vld [vmem:[%s2593 + $0x30] sm:$0xf]
      %v2607 = vld [vmem:[%s2593 + $0x34] sm:$0xf]
      %v2608 = vld [vmem:[%s2593 + $0x38] sm:$0xf]
      %v2609 = vld [vmem:[%s2593 + $0x3c] sm:$0xf]
      %v2626 = vunpack.c.l.b16 %v2594
      %v2627 = vunpack.c.l.b16 %v2595
      %v2628 = vunpack.c.l.b16 %v2596
      %v2629 = vunpack.c.l.b16 %v2597
      %v2630 = vunpack.c.l.b16 %v2598
      %v2631 = vunpack.c.l.b16 %v2599
      %v2632 = vunpack.c.l.b16 %v2600
      %v2633 = vunpack.c.l.b16 %v2601
      %v2634 = vunpack.c.l.b16 %v2602
      %v2635 = vunpack.c.l.b16 %v2603
      %v2636 = vunpack.c.l.b16 %v2604
      %v2637 = vunpack.c.l.b16 %v2605
      %v2638 = vunpack.c.l.b16 %v2606
      %v2639 = vunpack.c.l.b16 %v2607
      %v2640 = vunpack.c.l.b16 %v2608
      %v2641 = vunpack.c.l.b16 %v2609
      %v2642 = vpack.c.b16 %v2627, %v2626
      %v2643 = vpack.c.b16 %v2629, %v2628
      %v2644 = vpack.c.b16 %v2631, %v2630
      %v2645 = vpack.c.b16 %v2633, %v2632
      %v2646 = vpack.c.b16 %v2635, %v2634
      %v2647 = vpack.c.b16 %v2637, %v2636
      %v2648 = vpack.c.b16 %v2639, %v2638
      %v2649 = vpack.c.b16 %v2641, %v2640
      %2658 = vmatprep.subr.bf16.mxu0 0
      %2659 = vmatpush1.bf16.msra.mxu0 %v2642
      %2660 = vmatprep.subr.bf16.mxu0 0
      %2661 = vmatpush1.bf16.msra.mxu0 %v2643
      %2662 = vmatprep.subr.bf16.mxu0 0
      %2663 = vmatpush1.bf16.msra.mxu0 %v2644
      %2664 = vmatprep.subr.bf16.mxu0 0
      %2665 = vmatpush1.bf16.msra.mxu0 %v2645
      %2666 = vmatprep.subr.bf16.mxu0 0
      %2667 = vmatpush1.bf16.msra.mxu0 %v2646
      %2668 = vmatprep.subr.bf16.mxu0 0
      %2669 = vmatpush1.bf16.msra.mxu0 %v2647
      %2670 = vmatprep.subr.bf16.mxu0 0
      %2671 = vmatpush1.bf16.msra.mxu0 %v2648
      %2672 = vmatprep.subr.bf16.mxu0 0
      %2673 = vmatpush1.bf16.msra.mxu0 %v2649
      %2674 = vmatprep.subr.bf16.mxu0 0
      %2675 = vmatpush1.bf16.msra.mxu0 0
      %2676 = vmatprep.subr.bf16.mxu0 0
      %2677 = vmatpush1.bf16.msra.mxu0 0
      %2678 = vmatprep.subr.bf16.mxu0 0
      %2679 = vmatpush1.bf16.msra.mxu0 0
      %2680 = vmatprep.subr.bf16.mxu0 0
      %2681 = vmatpush1.bf16.msra.mxu0 0
      %2682 = vmatprep.subr.bf16.mxu0 0
      %2683 = vmatpush1.bf16.msra.mxu0 0
      %2684 = vmatprep.subr.bf16.mxu0 0
      %2685 = vmatpush1.bf16.msra.mxu0 0
      %2686 = vmatprep.subr.bf16.mxu0 0
      %2687 = vmatpush1.bf16.msra.mxu0 0
      %2688 = vmatprep.subr.bf16.mxu0 0
      %2689 = vmatpush1.bf16.msra.mxu0 0
      %2690 = vmatprep.mubr.bf16.mxu0 0
      %2691 = vmatmul.mubr.bf16.gmra.mrb[0].mxu0 %v2577
      %v2692 = vpop.f32.mrb[0].mxu0
      %v2693 = vadd.f32 0.0, %v2692
      %v2694 = vpop.f32.mrb[0].mxu0
      %v2695 = vpop.f32.mrb[0].mxu0
      %v2696 = vadd.f32 0.0, %v2695
      %v2697 = vpop.f32.mrb[0].mxu0
      %2698 = vmatprep.mubr.bf16.mxu0 0
      %2699 = vmatmul.mubr.bf16.gmra.mrb[0].mxu0 %v2578
      %v2700 = vpop.f32.mrb[0].mxu0
      %v2701 = vadd.f32 0.0, %v2700
      %v2702 = vpop.f32.mrb[0].mxu0
      %v2703 = vpop.f32.mrb[0].mxu0
      %v2704 = vadd.f32 0.0, %v2703
      %v2705 = vpop.f32.mrb[0].mxu0
      %2706 = vmatprep.mubr.bf16.mxu0 0
      %2707 = vmatmul.mubr.bf16.gmra.mrb[0].mxu0 %v2579
      %v2708 = vpop.f32.mrb[0].mxu0
      %v2709 = vadd.f32 0.0, %v2708
      %v2710 = vpop.f32.mrb[0].mxu0
      %v2711 = vpop.f32.mrb[0].mxu0
      %v2712 = vadd.f32 0.0, %v2711
      %v2713 = vpop.f32.mrb[0].mxu0
      %2714 = vmatprep.mubr.bf16.mxu0 0
      %2715 = vmatmul.mubr.bf16.gmra.mrb[0].mxu0 %v2580
      %v2716 = vpop.f32.mrb[0].mxu0
      %v2717 = vadd.f32 0.0, %v2716
      %v2718 = vpop.f32.mrb[0].mxu0
      %v2719 = vpop.f32.mrb[0].mxu0
      %v2720 = vadd.f32 0.0, %v2719
      %v2721 = vpop.f32.mrb[0].mxu0
      %2722 = vmatprep.mubr.bf16.mxu0 0
      %2723 = vmatmul.mubr.bf16.gmra.mrb[0].mxu0 %v2581
      %v2724 = vpop.f32.mrb[0].mxu0
      %v2725 = vadd.f32 0.0, %v2724
      %v2726 = vpop.f32.mrb[0].mxu0
      %v2727 = vpop.f32.mrb[0].mxu0
      %v2728 = vadd.f32 0.0, %v2727
      %v2729 = vpop.f32.mrb[0].mxu0
      %2730 = vmatprep.mubr.bf16.mxu0 0
      %2731 = vmatmul.mubr.bf16.gmra.mrb[0].mxu0 %v2582
      %v2732 = vpop.f32.mrb[0].mxu0
      %v2733 = vadd.f32 0.0, %v2732
      %v2734 = vpop.f32.mrb[0].mxu0
      %v2735 = vpop.f32.mrb[0].mxu0
      %v2736 = vadd.f32 0.0, %v2735
      %v2737 = vpop.f32.mrb[0].mxu0
      %2738 = vmatprep.mubr.bf16.mxu0 0
      %2739 = vmatmul.mubr.bf16.gmra.mrb[0].mxu0 %v2583
      %v2740 = vpop.f32.mrb[0].mxu0
      %v2741 = vadd.f32 0.0, %v2740
      %v2742 = vpop.f32.mrb[0].mxu0
      %v2743 = vpop.f32.mrb[0].mxu0
      %v2744 = vadd.f32 0.0, %v2743
      %v2745 = vpop.f32.mrb[0].mxu0
      %2746 = vmatprep.mubr.bf16.mxu0 0
      %2747 = vmatmul.mubr.bf16.gmra.mrb[0].mxu0 %v2584
      %v2748 = vpop.f32.mrb[0].mxu0
      %v2749 = vadd.f32 0.0, %v2748
      %v2750 = vpop.f32.mrb[0].mxu0
      %v2751 = vpop.f32.mrb[0].mxu0
      %v2752 = vadd.f32 0.0, %v2751
      %v2753 = vpop.f32.mrb[0].mxu0
      %2754 = vmatprep.mubr.bf16.mxu0 0
      %2755 = vmatmul.mubr.bf16.gmra.mrb[0].mxu0 %v2585
      %v2756 = vpop.f32.mrb[0].mxu0
      %v2757 = vadd.f32 0.0, %v2756
      %v2758 = vpop.f32.mrb[0].mxu0
      %v2759 = vpop.f32.mrb[0].mxu0
      %v2760 = vadd.f32 0.0, %v2759
      %v2761 = vpop.f32.mrb[0].mxu0
      %2762 = vmatprep.mubr.bf16.mxu0 0
      %2763 = vmatmul.mubr.bf16.gmra.mrb[0].mxu0 %v2586
      %v2764 = vpop.f32.mrb[0].mxu0
      %v2765 = vadd.f32 0.0, %v2764
      %v2766 = vpop.f32.mrb[0].mxu0
      %v2767 = vpop.f32.mrb[0].mxu0
      %v2768 = vadd.f32 0.0, %v2767
      %v2769 = vpop.f32.mrb[0].mxu0
      %2770 = vmatprep.mubr.bf16.mxu0 0
      %2771 = vmatmul.mubr.bf16.gmra.mrb[0].mxu0 %v2587
      %v2772 = vpop.f32.mrb[0].mxu0
      %v2773 = vadd.f32 0.0, %v2772
      %v2774 = vpop.f32.mrb[0].mxu0
      %v2775 = vpop.f32.mrb[0].mxu0
      %v2776 = vadd.f32 0.0, %v2775
      %v2777 = vpop.f32.mrb[0].mxu0
      %2778 = vmatprep.mubr.bf16.mxu0 0
      %2779 = vmatmul.mubr.bf16.gmra.mrb[0].mxu0 %v2588
      %v2780 = vpop.f32.mrb[0].mxu0
      %v2781 = vadd.f32 0.0, %v2780
      %v2782 = vpop.f32.mrb[0].mxu0
      %v2783 = vpop.f32.mrb[0].mxu0
      %v2784 = vadd.f32 0.0, %v2783
      %v2785 = vpop.f32.mrb[0].mxu0
      %2786 = vmatprep.mubr.bf16.mxu0 0
      %2787 = vmatmul.mubr.bf16.gmra.mrb[0].mxu0 %v2589
      %v2788 = vpop.f32.mrb[0].mxu0
      %v2789 = vadd.f32 0.0, %v2788
      %v2790 = vpop.f32.mrb[0].mxu0
      %v2791 = vpop.f32.mrb[0].mxu0
      %v2792 = vadd.f32 0.0, %v2791
      %v2793 = vpop.f32.mrb[0].mxu0
      %2794 = vmatprep.mubr.bf16.mxu0 0
      %2795 = vmatmul.mubr.bf16.gmra.mrb[0].mxu0 %v2590
      %v2796 = vpop.f32.mrb[0].mxu0
      %v2797 = vadd.f32 0.0, %v2796
      %v2798 = vpop.f32.mrb[0].mxu0
      %v2799 = vpop.f32.mrb[0].mxu0
      %v2800 = vadd.f32 0.0, %v2799
      %v2801 = vpop.f32.mrb[0].mxu0
      %2802 = vmatprep.mubr.bf16.mxu0 0
      %2803 = vmatmul.mubr.bf16.gmra.mrb[0].mxu0 %v2591
      %v2804 = vpop.f32.mrb[0].mxu0
      %v2805 = vadd.f32 0.0, %v2804
      %v2806 = vpop.f32.mrb[0].mxu0
      %v2807 = vpop.f32.mrb[0].mxu0
      %v2808 = vadd.f32 0.0, %v2807
      %v2809 = vpop.f32.mrb[0].mxu0
      %2810 = vmatprep.mubr.bf16.mxu0 0
      %2811 = vmatmul.mubr.bf16.gmra.mrb[0].mxu0 %v2592
      %v2812 = vpop.f32.mrb[0].mxu0
      %v2813 = vadd.f32 0.0, %v2812
      %v2814 = vpop.f32.mrb[0].mxu0
      %v2815 = vpop.f32.mrb[0].mxu0
      %v2816 = vadd.f32 0.0, %v2815
      %v2817 = vpop.f32.mrb[0].mxu0
      %2818 = vdwg.mxu0
      %v2819 = vadd.f32 %v2513, %v2693
      %v2820 = vadd.f32 %v2514, %v2696
      %v2821 = vadd.f32 %v2515, %v2701
      %v2822 = vadd.f32 %v2516, %v2704
      %v2823 = vadd.f32 %v2517, %v2709
      %v2824 = vadd.f32 %v2518, %v2712
      %v2825 = vadd.f32 %v2519, %v2717
      %v2826 = vadd.f32 %v2520, %v2720
      %v2827 = vadd.f32 %v2521, %v2725
      %v2828 = vadd.f32 %v2522, %v2728
      %v2829 = vadd.f32 %v2523, %v2733
      %v2830 = vadd.f32 %v2524, %v2736
      %v2831 = vadd.f32 %v2525, %v2741
      %v2832 = vadd.f32 %v2526, %v2744
      %v2833 = vadd.f32 %v2527, %v2749
      %v2834 = vadd.f32 %v2528, %v2752
      %v2835 = vadd.f32 %v2529, %v2757
      %v2836 = vadd.f32 %v2530, %v2760
      %v2837 = vadd.f32 %v2531, %v2765
      %v2838 = vadd.f32 %v2532, %v2768
      %v2839 = vadd.f32 %v2533, %v2773
      %v2840 = vadd.f32 %v2534, %v2776
      %v2841 = vadd.f32 %v2535, %v2781
      %v2842 = vadd.f32 %v2536, %v2784
      %v2843 = vadd.f32 %v2537, %v2789
      %v2844 = vadd.f32 %v2538, %v2792
      %v2845 = vadd.f32 %v2539, %v2797
      %v2846 = vadd.f32 %v2540, %v2800
      %v2847 = vadd.f32 %v2541, %v2805
      %v2848 = vadd.f32 %v2542, %v2808
      %v2849 = vadd.f32 %v2543, %v2813
      %v2850 = vadd.f32 %v2544, %v2816
      %v2851 = vld [vmem:[%s2238 + $0x2] sm:$0xff]
      %v2852 = vld [vmem:[%s2238 + $0xa] sm:$0xff]
      %v2853 = vld [vmem:[%s2238 + $0x1a] sm:$0xff]
      %v2854 = vld [vmem:[%s2238 + $0x22] sm:$0xff]
      %v2855 = vld [vmem:[%s2238 + $0x32] sm:$0xff]
      %v2856 = vld [vmem:[%s2238 + $0x3a] sm:$0xff]
      %v2857 = vld [vmem:[%s2238 + $0x4a] sm:$0xff]
      %v2858 = vld [vmem:[%s2238 + $0x52] sm:$0xff]
      %v2859 = vld [vmem:[%s2238 + $0x62] sm:$0xff]
      %v2860 = vld [vmem:[%s2238 + $0x6a] sm:$0xff]
      %v2861 = vld [vmem:[%s2238 + $0x7a] sm:$0xff]
      %v2862 = vld [vmem:[%s2238 + $0x82] sm:$0xff]
      %v2863 = vld [vmem:[%s2238 + $0x92] sm:$0xff]
      %v2864 = vld [vmem:[%s2238 + $0x9a] sm:$0xff]
      %v2865 = vld [vmem:[%s2238 + $0xaa] sm:$0xff]
      %v2866 = vld [vmem:[%s2238 + $0xb2] sm:$0xff]
      %v2867 = vld [vmem:[%s2238 + $0xc2] sm:$0xff]
      %v2868 = vld [vmem:[%s2238 + $0xca] sm:$0xff]
      %v2869 = vld [vmem:[%s2238 + $0xda] sm:$0xff]
      %v2870 = vld [vmem:[%s2238 + $0xe2] sm:$0xff]
      %v2871 = vld [vmem:[%s2238 + $0xf2] sm:$0xff]
      %v2872 = vld [vmem:[%s2238 + $0xfa] sm:$0xff]
      %v2873 = vld [vmem:[%s2238 + $0x10a] sm:$0xff]
      %v2874 = vld [vmem:[%s2238 + $0x112] sm:$0xff]
      %v2875 = vld [vmem:[%s2238 + $0x122] sm:$0xff]
      %v2876 = vld [vmem:[%s2238 + $0x12a] sm:$0xff]
      %v2877 = vld [vmem:[%s2238 + $0x13a] sm:$0xff]
      %v2878 = vld [vmem:[%s2238 + $0x142] sm:$0xff]
      %v2879 = vld [vmem:[%s2238 + $0x152] sm:$0xff]
      %v2880 = vld [vmem:[%s2238 + $0x15a] sm:$0xff]
      %v2881 = vld [vmem:[%s2238 + $0x16a] sm:$0xff]
      %v2882 = vld [vmem:[%s2238 + $0x172] sm:$0xff]
      %v2883 = vpack.c.bf16 %v2852, %v2851
      %v2884 = vpack.c.bf16 %v2854, %v2853
      %v2885 = vpack.c.bf16 %v2856, %v2855
      %v2886 = vpack.c.bf16 %v2858, %v2857
      %v2887 = vpack.c.bf16 %v2860, %v2859
      %v2888 = vpack.c.bf16 %v2862, %v2861
      %v2889 = vpack.c.bf16 %v2864, %v2863
      %v2890 = vpack.c.bf16 %v2866, %v2865
      %v2891 = vpack.c.bf16 %v2868, %v2867
      %v2892 = vpack.c.bf16 %v2870, %v2869
      %v2893 = vpack.c.bf16 %v2872, %v2871
      %v2894 = vpack.c.bf16 %v2874, %v2873
      %v2895 = vpack.c.bf16 %v2876, %v2875
      %v2896 = vpack.c.bf16 %v2878, %v2877
      %v2897 = vpack.c.bf16 %v2880, %v2879
      %v2898 = vpack.c.bf16 %v2882, %v2881
      %s2899 = scalar_lea.vmem %s3, 512
      %v2900 = vld [vmem:[%s2899] sm:$0xf]
      %v2901 = vld [vmem:[%s2899 + $0x4] sm:$0xf]
      %v2902 = vld [vmem:[%s2899 + $0x8] sm:$0xf]
      %v2903 = vld [vmem:[%s2899 + $0xc] sm:$0xf]
      %v2904 = vld [vmem:[%s2899 + $0x10] sm:$0xf]
      %v2905 = vld [vmem:[%s2899 + $0x14] sm:$0xf]
      %v2906 = vld [vmem:[%s2899 + $0x18] sm:$0xf]
      %v2907 = vld [vmem:[%s2899 + $0x1c] sm:$0xf]
      %v2908 = vld [vmem:[%s2899 + $0x20] sm:$0xf]
      %v2909 = vld [vmem:[%s2899 + $0x24] sm:$0xf]
      %v2910 = vld [vmem:[%s2899 + $0x28] sm:$0xf]
      %v2911 = vld [vmem:[%s2899 + $0x2c] sm:$0xf]
      %v2912 = vld [vmem:[%s2899 + $0x30] sm:$0xf]
      %v2913 = vld [vmem:[%s2899 + $0x34] sm:$0xf]
      %v2914 = vld [vmem:[%s2899 + $0x38] sm:$0xf]
      %v2915 = vld [vmem:[%s2899 + $0x3c] sm:$0xf]
      %v2932 = vunpack.c.l.b16 %v2900
      %v2933 = vunpack.c.l.b16 %v2901
      %v2934 = vunpack.c.l.b16 %v2902
      %v2935 = vunpack.c.l.b16 %v2903
      %v2936 = vunpack.c.l.b16 %v2904
      %v2937 = vunpack.c.l.b16 %v2905
      %v2938 = vunpack.c.l.b16 %v2906
      %v2939 = vunpack.c.l.b16 %v2907
      %v2940 = vunpack.c.l.b16 %v2908
      %v2941 = vunpack.c.l.b16 %v2909
      %v2942 = vunpack.c.l.b16 %v2910
      %v2943 = vunpack.c.l.b16 %v2911
      %v2944 = vunpack.c.l.b16 %v2912
      %v2945 = vunpack.c.l.b16 %v2913
      %v2946 = vunpack.c.l.b16 %v2914
      %v2947 = vunpack.c.l.b16 %v2915
      %v2948 = vpack.c.b16 %v2933, %v2932
      %v2949 = vpack.c.b16 %v2935, %v2934
      %v2950 = vpack.c.b16 %v2937, %v2936
      %v2951 = vpack.c.b16 %v2939, %v2938
      %v2952 = vpack.c.b16 %v2941, %v2940
      %v2953 = vpack.c.b16 %v2943, %v2942
      %v2954 = vpack.c.b16 %v2945, %v2944
      %v2955 = vpack.c.b16 %v2947, %v2946
      %2964 = vmatprep.subr.bf16.mxu0 0
      %2965 = vmatpush1.bf16.msra.mxu0 %v2948
      %2966 = vmatprep.subr.bf16.mxu0 0
      %2967 = vmatpush1.bf16.msra.mxu0 %v2949
      %2968 = vmatprep.subr.bf16.mxu0 0
      %2969 = vmatpush1.bf16.msra.mxu0 %v2950
      %2970 = vmatprep.subr.bf16.mxu0 0
      %2971 = vmatpush1.bf16.msra.mxu0 %v2951
      %2972 = vmatprep.subr.bf16.mxu0 0
      %2973 = vmatpush1.bf16.msra.mxu0 %v2952
      %2974 = vmatprep.subr.bf16.mxu0 0
      %2975 = vmatpush1.bf16.msra.mxu0 %v2953
      %2976 = vmatprep.subr.bf16.mxu0 0
      %2977 = vmatpush1.bf16.msra.mxu0 %v2954
      %2978 = vmatprep.subr.bf16.mxu0 0
      %2979 = vmatpush1.bf16.msra.mxu0 %v2955
      %2980 = vmatprep.subr.bf16.mxu0 0
      %2981 = vmatpush1.bf16.msra.mxu0 0
      %2982 = vmatprep.subr.bf16.mxu0 0
      %2983 = vmatpush1.bf16.msra.mxu0 0
      %2984 = vmatprep.subr.bf16.mxu0 0
      %2985 = vmatpush1.bf16.msra.mxu0 0
      %2986 = vmatprep.subr.bf16.mxu0 0
      %2987 = vmatpush1.bf16.msra.mxu0 0
      %2988 = vmatprep.subr.bf16.mxu0 0
      %2989 = vmatpush1.bf16.msra.mxu0 0
      %2990 = vmatprep.subr.bf16.mxu0 0
      %2991 = vmatpush1.bf16.msra.mxu0 0
      %2992 = vmatprep.subr.bf16.mxu0 0
      %2993 = vmatpush1.bf16.msra.mxu0 0
      %2994 = vmatprep.subr.bf16.mxu0 0
      %2995 = vmatpush1.bf16.msra.mxu0 0
      %2996 = vmatprep.mubr.bf16.mxu0 0
      %2997 = vmatmul.mubr.bf16.gmra.mrb[0].mxu0 %v2883
      %v2998 = vpop.f32.mrb[0].mxu0
      %v2999 = vadd.f32 0.0, %v2998
      %v3000 = vpop.f32.mrb[0].mxu0
      %v3001 = vpop.f32.mrb[0].mxu0
      %v3002 = vadd.f32 0.0, %v3001
      %v3003 = vpop.f32.mrb[0].mxu0
      %3004 = vmatprep.mubr.bf16.mxu0 0
      %3005 = vmatmul.mubr.bf16.gmra.mrb[0].mxu0 %v2884
      %v3006 = vpop.f32.mrb[0].mxu0
      %v3007 = vadd.f32 0.0, %v3006
      %v3008 = vpop.f32.mrb[0].mxu0
      %v3009 = vpop.f32.mrb[0].mxu0
      %v3010 = vadd.f32 0.0, %v3009
      %v3011 = vpop.f32.mrb[0].mxu0
      %3012 = vmatprep.mubr.bf16.mxu0 0
      %3013 = vmatmul.mubr.bf16.gmra.mrb[0].mxu0 %v2885
      %v3014 = vpop.f32.mrb[0].mxu0
      %v3015 = vadd.f32 0.0, %v3014
      %v3016 = vpop.f32.mrb[0].mxu0
      %v3017 = vpop.f32.mrb[0].mxu0
      %v3018 = vadd.f32 0.0, %v3017
      %v3019 = vpop.f32.mrb[0].mxu0
      %3020 = vmatprep.mubr.bf16.mxu0 0
      %3021 = vmatmul.mubr.bf16.gmra.mrb[0].mxu0 %v2886
      %v3022 = vpop.f32.mrb[0].mxu0
      %v3023 = vadd.f32 0.0, %v3022
      %v3024 = vpop.f32.mrb[0].mxu0
      %v3025 = vpop.f32.mrb[0].mxu0
      %v3026 = vadd.f32 0.0, %v3025
      %v3027 = vpop.f32.mrb[0].mxu0
      %3028 = vmatprep.mubr.bf16.mxu0 0
      %3029 = vmatmul.mubr.bf16.gmra.mrb[0].mxu0 %v2887
      %v3030 = vpop.f32.mrb[0].mxu0
      %v3031 = vadd.f32 0.0, %v3030
      %v3032 = vpop.f32.mrb[0].mxu0
      %v3033 = vpop.f32.mrb[0].mxu0
      %v3034 = vadd.f32 0.0, %v3033
      %v3035 = vpop.f32.mrb[0].mxu0
      %3036 = vmatprep.mubr.bf16.mxu0 0
      %3037 = vmatmul.mubr.bf16.gmra.mrb[0].mxu0 %v2888
      %v3038 = vpop.f32.mrb[0].mxu0
      %v3039 = vadd.f32 0.0, %v3038
      %v3040 = vpop.f32.mrb[0].mxu0
      %v3041 = vpop.f32.mrb[0].mxu0
      %v3042 = vadd.f32 0.0, %v3041
      %v3043 = vpop.f32.mrb[0].mxu0
      %3044 = vmatprep.mubr.bf16.mxu0 0
      %3045 = vmatmul.mubr.bf16.gmra.mrb[0].mxu0 %v2889
      %v3046 = vpop.f32.mrb[0].mxu0
      %v3047 = vadd.f32 0.0, %v3046
      %v3048 = vpop.f32.mrb[0].mxu0
      %v3049 = vpop.f32.mrb[0].mxu0
      %v3050 = vadd.f32 0.0, %v3049
      %v3051 = vpop.f32.mrb[0].mxu0
      %3052 = vmatprep.mubr.bf16.mxu0 0
      %3053 = vmatmul.mubr.bf16.gmra.mrb[0].mxu0 %v2890
      %v3054 = vpop.f32.mrb[0].mxu0
      %v3055 = vadd.f32 0.0, %v3054
      %v3056 = vpop.f32.mrb[0].mxu0
      %v3057 = vpop.f32.mrb[0].mxu0
      %v3058 = vadd.f32 0.0, %v3057
      %v3059 = vpop.f32.mrb[0].mxu0
      %3060 = vmatprep.mubr.bf16.mxu0 0
      %3061 = vmatmul.mubr.bf16.gmra.mrb[0].mxu0 %v2891
      %v3062 = vpop.f32.mrb[0].mxu0
      %v3063 = vadd.f32 0.0, %v3062
      %v3064 = vpop.f32.mrb[0].mxu0
      %v3065 = vpop.f32.mrb[0].mxu0
      %v3066 = vadd.f32 0.0, %v3065
      %v3067 = vpop.f32.mrb[0].mxu0
      %3068 = vmatprep.mubr.bf16.mxu0 0
      %3069 = vmatmul.mubr.bf16.gmra.mrb[0].mxu0 %v2892
      %v3070 = vpop.f32.mrb[0].mxu0
      %v3071 = vadd.f32 0.0, %v3070
      %v3072 = vpop.f32.mrb[0].mxu0
      %v3073 = vpop.f32.mrb[0].mxu0
      %v3074 = vadd.f32 0.0, %v3073
      %v3075 = vpop.f32.mrb[0].mxu0
      %3076 = vmatprep.mubr.bf16.mxu0 0
      %3077 = vmatmul.mubr.bf16.gmra.mrb[0].mxu0 %v2893
      %v3078 = vpop.f32.mrb[0].mxu0
      %v3079 = vadd.f32 0.0, %v3078
      %v3080 = vpop.f32.mrb[0].mxu0
      %v3081 = vpop.f32.mrb[0].mxu0
      %v3082 = vadd.f32 0.0, %v3081
      %v3083 = vpop.f32.mrb[0].mxu0
      %3084 = vmatprep.mubr.bf16.mxu0 0
      %3085 = vmatmul.mubr.bf16.gmra.mrb[0].mxu0 %v2894
      %v3086 = vpop.f32.mrb[0].mxu0
      %v3087 = vadd.f32 0.0, %v3086
      %v3088 = vpop.f32.mrb[0].mxu0
      %v3089 = vpop.f32.mrb[0].mxu0
      %v3090 = vadd.f32 0.0, %v3089
      %v3091 = vpop.f32.mrb[0].mxu0
      %3092 = vmatprep.mubr.bf16.mxu0 0
      %3093 = vmatmul.mubr.bf16.gmra.mrb[0].mxu0 %v2895
      %v3094 = vpop.f32.mrb[0].mxu0
      %v3095 = vadd.f32 0.0, %v3094
      %v3096 = vpop.f32.mrb[0].mxu0
      %v3097 = vpop.f32.mrb[0].mxu0
      %v3098 = vadd.f32 0.0, %v3097
      %v3099 = vpop.f32.mrb[0].mxu0
      %3100 = vmatprep.mubr.bf16.mxu0 0
      %3101 = vmatmul.mubr.bf16.gmra.mrb[0].mxu0 %v2896
      %v3102 = vpop.f32.mrb[0].mxu0
      %v3103 = vadd.f32 0.0, %v3102
      %v3104 = vpop.f32.mrb[0].mxu0
      %v3105 = vpop.f32.mrb[0].mxu0
      %v3106 = vadd.f32 0.0, %v3105
      %v3107 = vpop.f32.mrb[0].mxu0
      %3108 = vmatprep.mubr.bf16.mxu0 0
      %3109 = vmatmul.mubr.bf16.gmra.mrb[0].mxu0 %v2897
      %v3110 = vpop.f32.mrb[0].mxu0
      %v3111 = vadd.f32 0.0, %v3110
      %v3112 = vpop.f32.mrb[0].mxu0
      %v3113 = vpop.f32.mrb[0].mxu0
      %v3114 = vadd.f32 0.0, %v3113
      %v3115 = vpop.f32.mrb[0].mxu0
      %3116 = vmatprep.mubr.bf16.mxu0 0
      %3117 = vmatmul.mubr.bf16.gmra.mrb[0].mxu0 %v2898
      %v3118 = vpop.f32.mrb[0].mxu0
      %v3119 = vadd.f32 0.0, %v3118
      %v3120 = vpop.f32.mrb[0].mxu0
      %v3121 = vpop.f32.mrb[0].mxu0
      %v3122 = vadd.f32 0.0, %v3121
      %v3123 = vpop.f32.mrb[0].mxu0
      %3124 = vdwg.mxu0
      %v3125 = vadd.f32 %v2819, %v2999
      %v3126 = vadd.f32 %v2820, %v3002
      %v3127 = vadd.f32 %v2821, %v3007
      %v3128 = vadd.f32 %v2822, %v3010
      %v3129 = vadd.f32 %v2823, %v3015
      %v3130 = vadd.f32 %v2824, %v3018
      %v3131 = vadd.f32 %v2825, %v3023
      %v3132 = vadd.f32 %v2826, %v3026
      %v3133 = vadd.f32 %v2827, %v3031
      %v3134 = vadd.f32 %v2828, %v3034
      %v3135 = vadd.f32 %v2829, %v3039
      %v3136 = vadd.f32 %v2830, %v3042
      %v3137 = vadd.f32 %v2831, %v3047
      %v3138 = vadd.f32 %v2832, %v3050
      %v3139 = vadd.f32 %v2833, %v3055
      %v3140 = vadd.f32 %v2834, %v3058
      %v3141 = vadd.f32 %v2835, %v3063
      %v3142 = vadd.f32 %v2836, %v3066
      %v3143 = vadd.f32 %v2837, %v3071
      %v3144 = vadd.f32 %v2838, %v3074
      %v3145 = vadd.f32 %v2839, %v3079
      %v3146 = vadd.f32 %v2840, %v3082
      %v3147 = vadd.f32 %v2841, %v3087
      %v3148 = vadd.f32 %v2842, %v3090
      %v3149 = vadd.f32 %v2843, %v3095
      %v3150 = vadd.f32 %v2844, %v3098
      %v3151 = vadd.f32 %v2845, %v3103
      %v3152 = vadd.f32 %v2846, %v3106
      %v3153 = vadd.f32 %v2847, %v3111
      %v3154 = vadd.f32 %v2848, %v3114
      %v3155 = vadd.f32 %v2849, %v3119
      %v3156 = vadd.f32 %v2850, %v3122
      %3157 = vst [vmem:[%s262] sm:$0xff] %v3125
      %3158 = vst [vmem:[%s262 + $0x8] sm:$0xff] %v3126
      %3159 = vst [vmem:[%s262 + $0x10] sm:$0xff] %v3127
      %3160 = vst [vmem:[%s262 + $0x18] sm:$0xff] %v3128
      %3161 = vst [vmem:[%s262 + $0x20] sm:$0xff] %v3129
      %3162 = vst [vmem:[%s262 + $0x28] sm:$0xff] %v3130
      %3163 = vst [vmem:[%s262 + $0x30] sm:$0xff] %v3131
      %3164 = vst [vmem:[%s262 + $0x38] sm:$0xff] %v3132
      %3165 = vst [vmem:[%s262 + $0x40] sm:$0xff] %v3133
      %3166 = vst [vmem:[%s262 + $0x48] sm:$0xff] %v3134
      %3167 = vst [vmem:[%s262 + $0x50] sm:$0xff] %v3135
      %3168 = vst [vmem:[%s262 + $0x58] sm:$0xff] %v3136
      %3169 = vst [vmem:[%s262 + $0x60] sm:$0xff] %v3137
      %3170 = vst [vmem:[%s262 + $0x68] sm:$0xff] %v3138
      %3171 = vst [vmem:[%s262 + $0x70] sm:$0xff] %v3139
      %3172 = vst [vmem:[%s262 + $0x78] sm:$0xff] %v3140
      %3173 = vst [vmem:[%s262 + $0x80] sm:$0xff] %v3141
      %3174 = vst [vmem:[%s262 + $0x88] sm:$0xff] %v3142
      %3175 = vst [vmem:[%s262 + $0x90] sm:$0xff] %v3143
      %3176 = vst [vmem:[%s262 + $0x98] sm:$0xff] %v3144
      %3177 = vst [vmem:[%s262 + $0xa0] sm:$0xff] %v3145
      %3178 = vst [vmem:[%s262 + $0xa8] sm:$0xff] %v3146
      %3179 = vst [vmem:[%s262 + $0xb0] sm:$0xff] %v3147
      %3180 = vst [vmem:[%s262 + $0xb8] sm:$0xff] %v3148
      %3181 = vst [vmem:[%s262 + $0xc0] sm:$0xff] %v3149
      %3182 = vst [vmem:[%s262 + $0xc8] sm:$0xff] %v3150
      %3183 = vst [vmem:[%s262 + $0xd0] sm:$0xff] %v3151
      %3184 = vst [vmem:[%s262 + $0xd8] sm:$0xff] %v3152
      %3185 = vst [vmem:[%s262 + $0xe0] sm:$0xff] %v3153
      %3186 = vst [vmem:[%s262 + $0xe8] sm:$0xff] %v3154
      %3187 = vst [vmem:[%s262 + $0xf0] sm:$0xff] %v3155
      %3188 = vst [vmem:[%s262 + $0xf8] sm:$0xff] %v3156
      %v3189 = vadd.f32 %v3125, %v3126
      %v3190 = vadd.f32 %v3189, %v3127
      %v3191 = vadd.f32 %v3190, %v3128
      %v3192 = vadd.f32 %v3191, %v3129
      %v3193 = vadd.f32 %v3192, %v3130
      %v3194 = vadd.f32 %v3193, %v3131
      %v3195 = vadd.f32 %v3194, %v3132
      %v3196 = vadd.f32 %v3195, %v3133
      %v3197 = vadd.f32 %v3196, %v3134
      %v3198 = vadd.f32 %v3197, %v3135
      %v3199 = vadd.f32 %v3198, %v3136
      %v3200 = vadd.f32 %v3199, %v3137
      %v3201 = vadd.f32 %v3200, %v3138
      %v3202 = vadd.f32 %v3201, %v3139
      %v3203 = vadd.f32 %v3202, %v3140
      %v3204 = vadd.f32 %v3203, %v3141
      %v3205 = vadd.f32 %v3204, %v3142
      %v3206 = vadd.f32 %v3205, %v3143
      %v3207 = vadd.f32 %v3206, %v3144
      %v3208 = vadd.f32 %v3207, %v3145
      %v3209 = vadd.f32 %v3208, %v3146
      %v3210 = vadd.f32 %v3209, %v3147
      %v3211 = vadd.f32 %v3210, %v3148
      %v3212 = vadd.f32 %v3211, %v3149
      %v3213 = vadd.f32 %v3212, %v3150
      %v3214 = vadd.f32 %v3213, %v3151
      %v3215 = vadd.f32 %v3214, %v3152
      %v3216 = vadd.f32 %v3215, %v3153
      %v3217 = vadd.f32 %v3216, %v3154
      %v3218 = vadd.f32 %v3217, %v3155
      %v3219 = vadd.f32 %v3218, %v3156
      %v3220 = vrot.slane %v3219, 4
      %v3221 = vadd.f32 %v3219, %v3220
      %v3222 = vrot.slane %v3221, 2
      %v3223 = vadd.f32 %v3221, %v3222
      %v3224 = vrot.slane %v3223, 1
      %v3225 = vadd.f32 %v3223, %v3224
      %3226 = vst [vmem:[%s265] sm:$0x1] %v3225
      %v3227 = vmul.f32 %v3125, %v3125
      %v3228 = vmul.f32 %v3126, %v3126
      %v3229 = vmul.f32 %v3127, %v3127
      %v3230 = vmul.f32 %v3128, %v3128
      %v3231 = vmul.f32 %v3129, %v3129
      %v3232 = vmul.f32 %v3130, %v3130
      %v3233 = vmul.f32 %v3131, %v3131
      %v3234 = vmul.f32 %v3132, %v3132
      %v3235 = vmul.f32 %v3133, %v3133
      %v3236 = vmul.f32 %v3134, %v3134
      %v3237 = vmul.f32 %v3135, %v3135
      %v3238 = vmul.f32 %v3136, %v3136
      %v3239 = vmul.f32 %v3137, %v3137
      %v3240 = vmul.f32 %v3138, %v3138
      %v3241 = vmul.f32 %v3139, %v3139
      %v3242 = vmul.f32 %v3140, %v3140
      %v3243 = vmul.f32 %v3141, %v3141
      %v3244 = vmul.f32 %v3142, %v3142
      %v3245 = vmul.f32 %v3143, %v3143
      %v3246 = vmul.f32 %v3144, %v3144
      %v3247 = vmul.f32 %v3145, %v3145
      %v3248 = vmul.f32 %v3146, %v3146
      %v3249 = vmul.f32 %v3147, %v3147
      %v3250 = vmul.f32 %v3148, %v3148
      %v3251 = vmul.f32 %v3149, %v3149
      %v3252 = vmul.f32 %v3150, %v3150
      %v3253 = vmul.f32 %v3151, %v3151
      %v3254 = vmul.f32 %v3152, %v3152
      %v3255 = vmul.f32 %v3153, %v3153
      %v3256 = vmul.f32 %v3154, %v3154
      %v3257 = vmul.f32 %v3155, %v3155
      %v3258 = vmul.f32 %v3156, %v3156
      %v3259 = vadd.f32 %v3227, %v3228
      %v3260 = vadd.f32 %v3259, %v3229
      %v3261 = vadd.f32 %v3260, %v3230
      %v3262 = vadd.f32 %v3261, %v3231
      %v3263 = vadd.f32 %v3262, %v3232
      %v3264 = vadd.f32 %v3263, %v3233
      %v3265 = vadd.f32 %v3264, %v3234
      %v3266 = vadd.f32 %v3265, %v3235
      %v3267 = vadd.f32 %v3266, %v3236
      %v3268 = vadd.f32 %v3267, %v3237
      %v3269 = vadd.f32 %v3268, %v3238
      %v3270 = vadd.f32 %v3269, %v3239
      %v3271 = vadd.f32 %v3270, %v3240
      %v3272 = vadd.f32 %v3271, %v3241
      %v3273 = vadd.f32 %v3272, %v3242
      %v3274 = vadd.f32 %v3273, %v3243
      %v3275 = vadd.f32 %v3274, %v3244
      %v3276 = vadd.f32 %v3275, %v3245
      %v3277 = vadd.f32 %v3276, %v3246
      %v3278 = vadd.f32 %v3277, %v3247
      %v3279 = vadd.f32 %v3278, %v3248
      %v3280 = vadd.f32 %v3279, %v3249
      %v3281 = vadd.f32 %v3280, %v3250
      %v3282 = vadd.f32 %v3281, %v3251
      %v3283 = vadd.f32 %v3282, %v3252
      %v3284 = vadd.f32 %v3283, %v3253
      %v3285 = vadd.f32 %v3284, %v3254
      %v3286 = vadd.f32 %v3285, %v3255
      %v3287 = vadd.f32 %v3286, %v3256
      %v3288 = vadd.f32 %v3287, %v3257
      %v3289 = vadd.f32 %v3288, %v3258
      %v3290 = vrot.slane %v3289, 4
      %v3291 = vadd.f32 %v3289, %v3290
      %v3292 = vrot.slane %v3291, 2
      %v3293 = vadd.f32 %v3291, %v3292
      %v3294 = vrot.slane %v3293, 1
      %v3295 = vadd.f32 %v3293, %v3294
      %3296 = vst [vmem:[%s268] sm:$0x1] %v3295
      %p3297 = scmp.lt.s32.totalorder %s18, 1
      %s3298 = scalar_select %p3297, %s18, 1
      %s3299 = smul.addr %s3298, 32
      %s3300 = smul.addr %s3299, 8
      %s3301 = scalar_lea.vmem %s4, %s3300
      %p3302 = scmp.lt.s32.totalorder %s18, 1
      %s3303 = scalar_select %p3302, %s18, 1
      %s3304 = scalar_lea.vmem %s5, %s3303
      %p3305 = scmp.lt.s32.totalorder %s18, 1
      %s3306 = scalar_select %p3305, %s18, 1
      %s3307 = scalar_lea.vmem %s6, %s3306
      // Predicated region
      $region37: #{basic_block_forward.4} parent=35 // pred_check
        %p3308 = pneg %p125
      $region38: #{basic_block_forward.4} parent=35 // pred_check_branch
        %3310 = sbr.rel (%p3308) target = $region40
      $region39: #{basic_block_forward.4} parent=35 // pred_region
        _
      $region40: #{basic_block_forward.4} parent=35 // pred_fallthru
        _
      // Predicated region
      $region41: #{basic_block_forward.4} parent=35 // pred_check
        %p3311 = pneg %p151
      $region42: #{basic_block_forward.4} parent=35 // pred_check_branch
        %3313 = sbr.rel (%p3311) target = $region44
      $region43: #{basic_block_forward.4} parent=35 // pred_region
        _
      $region44: #{basic_block_forward.4} parent=35 // pred_fallthru
        _
      // Predicated region
      $region45: #{basic_block_forward.4} parent=35 // pred_check
        %p3314 = pneg %p177
      $region46: #{basic_block_forward.4} parent=35 // pred_check_branch
        %3316 = sbr.rel (%p3314) target = $region48
      $region47: #{basic_block_forward.4} parent=35 // pred_region
        _
      $region48: #{basic_block_forward.4} parent=35 // pred_fallthru
        _
    $region36: #{basic_block_forward.4} parent=5 // pred_fallthru
      _
    %p3317 = scmp.le.s32.totalorder 2, %s13
    // Predicated region
    $region49: #{basic_block_forward.4} parent=5 // pred_check
      %p3318 = pneg %p3317
    $region50: #{basic_block_forward.4} parent=5 // pred_check_branch
      %3320 = sbr.rel (%p3318) target = $region52
    $region51: #{basic_block_forward.4} parent=5 // pred_region
      %s3321 = ssub.s32 %s13, 2
      // Predicated region
      $region53: #{basic_block_forward.4} parent=51 // pred_check
        %p3322 = pneg %p131
      $region54: #{basic_block_forward.4} parent=51 // pred_check_branch
        %3324 = sbr.rel (%p3322) target = $region56
      $region55: #{basic_block_forward.4} parent=51 // pred_region
        %p3325 = scmp.lt.s32.totalorder %s19, 1
        %s3326 = scalar_select %p3325, %s19, 1
        %s3327 = smul.addr %s3326, 32
        %s3328 = smul.addr %s3327, 8
        %s3329 = scalar_lea.vmem %s4, %s3328
      $region56: #{basic_block_forward.4} parent=51 // pred_fallthru
        _
      // Predicated region
      $region57: #{basic_block_forward.4} parent=51 // pred_check
        %p3330 = pneg %p157
      $region58: #{basic_block_forward.4} parent=51 // pred_check_branch
        %3332 = sbr.rel (%p3330) target = $region60
      $region59: #{basic_block_forward.4} parent=51 // pred_region
        %p3333 = scmp.lt.s32.totalorder %s19, 1
        %s3334 = scalar_select %p3333, %s19, 1
        %s3335 = scalar_lea.vmem %s5, %s3334
      $region60: #{basic_block_forward.4} parent=51 // pred_fallthru
        _
      // Predicated region
      $region61: #{basic_block_forward.4} parent=51 // pred_check
        %p3336 = pneg %p183
      $region62: #{basic_block_forward.4} parent=51 // pred_check_branch
        %3338 = sbr.rel (%p3336) target = $region64
      $region63: #{basic_block_forward.4} parent=51 // pred_region
        %p3339 = scmp.lt.s32.totalorder %s19, 1
        %s3340 = scalar_select %p3339, %s19, 1
        %s3341 = scalar_lea.vmem %s6, %s3340
      $region64: #{basic_block_forward.4} parent=51 // pred_fallthru
        _
    $region52: #{basic_block_forward.4} parent=5 // pred_fallthru
      _
  $region6: #{basic_block_forward.4} parent=0 // loop_footer
    %s17 = sadd.s32 1, %s13
  $region7: #{basic_block_forward.4} parent=0 // loop_footer_branch
    %12 = sbr.rel target = $region3
  $region8: #{basic_block_forward.4} parent=0 // loop_exit
    _

// kernel: basic_block_forward.3
$region0: #{basic_block_forward.3}
  #allocation0 [shape = 'u32[]', space=smem, size = 0x4, offset = 0x4, fixed_abs, tag = 'smem constant byte address 0x4 - core index']
  #allocation1 [shape = 'u32[144,128]{1,0:T(1,128)}', space=vmem, size = 0x12000, scoped, tag = 'internal scratch']
  #allocation2 [shape = 'f32[18,18,128]{2,1,0:T(8,128)}', space=vmem, size = 0x36000, scoped, tag = 'scratch operand']
  %s0 = inlined_call_operand.vmem [shape: f32[2,16,16,128], index: 0, kind: input, shape index: {}]
  %s1 = inlined_call_operand.vmem [shape: f32[1,128], index: 1, kind: input, shape index: {}]
  %s2 = inlined_call_operand.vmem [shape: f32[1,128], index: 2, kind: input, shape index: {}]
  %s3 = inlined_call_operand.vmem [shape: bf16[9,128,128], index: 3, kind: input, shape index: {}]
  %s4 = inlined_call_operand.vmem [shape: f32[2,16,16,128], index: 4, kind: output, shape index: {0}]
  %s5 = inlined_call_operand.vmem [shape: f32[2,1,128], index: 5, kind: output, shape index: {1}]
  %s6 = inlined_call_operand.vmem [shape: f32[2,1,128], index: 6, kind: output, shape index: {2}]
  %7 = xla_tuple %s4, %s5, %s6
  %s8 = sld [smem:[#allocation0]]
  $region65: #{basic_block_forward.3} parent=0
    _
  %s10 = ssub.s32 1, %s8
  %s11 = scalar_select 0, %s10, %s8
  loop: start=0, step=1, limit=4
  $region2: #{basic_block_forward.3} parent=0 // loop_pre_header
    _
  $region3: #{basic_block_forward.3} parent=0 // loop_header
    %s13 = sphi 0, %s17
    %p14 = scmp.ge.s32.totalorder %s13, 4
    %s23 = sphi 0, %s25
    %s26 = sphi 0, %s23
    %s27 = sphi 0, %s26
    %s43 = sphi 0, %s27
    %s47 = sphi 0, %s47
    %s49 = sphi 0, %s47
    %s50 = sphi 0, %s49
    %s64 = sphi 0, %s50
    %s68 = sphi 0, %s68
    %s70 = sphi 0, %s68
    %s71 = sphi 0, %s70
    %s85 = sphi 0, %s71
    %s89 = sphi 0, %s89
    %s91 = sphi 0, %s89
    %s92 = sphi 0, %s91
    %s106 = sphi 0, %s92
    %s112 = sphi 0, %s114
    %s115 = sphi 0, %s112
    %s116 = sphi 0, %s115
    %s132 = sphi 0, %s116
    %s138 = sphi 0, %s140
    %s141 = sphi 0, %s138
    %s142 = sphi 0, %s141
    %s158 = sphi 0, %s142
    %s164 = sphi 0, %s166
    %s167 = sphi 0, %s164
    %s168 = sphi 0, %s167
    %s184 = sphi 0, %s168
  $region4: #{basic_block_forward.3} parent=0 // loop_header_branch
    %16 = sbr.rel (%p14) target = $region8
  $region5: #{basic_block_forward.3} parent=0 // loop_body
    %s18 = ssub.s32 %s13, 1
    %s19 = ssub.s32 %s13, 2
    %s20 = sadd.s32 %s13, 1
    %s21 = ssub.s32 %s13, %s20
    %p22 = scmp.eq.s32.totalorder %s21, 0
    %s24 = sadd.s32 %s23, 1
    %s25 = scalar_select %p22, %s23, %s24
    %p28 = pneg %p22
    %p29 = scmp.eq.s32.totalorder %s13, 1
    %p30 = por %p28, %p29
    %p31 = scmp.ne.s32.totalorder %s23, %s26
    %p32 = scmp.eq.s32.totalorder %s13, 0
    %p33 = por %p31, %p32
    %p34 = scmp.ne.s32.totalorder %s23, %s26
    %p35 = scmp.eq.s32.totalorder %s18, 1
    %p36 = por %p34, %p35
    %p37 = scmp.ne.s32.totalorder %s26, %s27
    %p38 = scmp.eq.s32.totalorder %s18, 0
    %p39 = por %p37, %p38
    %p40 = scmp.ne.s32.totalorder %s26, %s27
    %p41 = scmp.eq.s32.totalorder %s19, 1
    %p42 = por %p40, %p41
    %p44 = scmp.ne.s32.totalorder %s27, %s43
    %p45 = scmp.eq.s32.totalorder %s19, 0
    %p46 = por %p44, %p45
    %s48 = sadd.s32 %s47, 1
    %p51 = scmp.eq.s32.totalorder %s13, 1
    %p52 = scmp.ne.s32.totalorder %s47, %s49
    %p53 = scmp.eq.s32.totalorder %s13, 0
    %p54 = por %p52, %p53
    %p55 = scmp.ne.s32.totalorder %s47, %s49
    %p56 = scmp.eq.s32.totalorder %s18, 1
    %p57 = por %p55, %p56
    %p58 = scmp.ne.s32.totalorder %s49, %s50
    %p59 = scmp.eq.s32.totalorder %s18, 0
    %p60 = por %p58, %p59
    %p61 = scmp.ne.s32.totalorder %s49, %s50
    %p62 = scmp.eq.s32.totalorder %s19, 1
    %p63 = por %p61, %p62
    %p65 = scmp.ne.s32.totalorder %s50, %s64
    %p66 = scmp.eq.s32.totalorder %s19, 0
    %p67 = por %p65, %p66
    %s69 = sadd.s32 %s68, 1
    %p72 = scmp.eq.s32.totalorder %s13, 1
    %p73 = scmp.ne.s32.totalorder %s68, %s70
    %p74 = scmp.eq.s32.totalorder %s13, 0
    %p75 = por %p73, %p74
    %p76 = scmp.ne.s32.totalorder %s68, %s70
    %p77 = scmp.eq.s32.totalorder %s18, 1
    %p78 = por %p76, %p77
    %p79 = scmp.ne.s32.totalorder %s70, %s71
    %p80 = scmp.eq.s32.totalorder %s18, 0
    %p81 = por %p79, %p80
    %p82 = scmp.ne.s32.totalorder %s70, %s71
    %p83 = scmp.eq.s32.totalorder %s19, 1
    %p84 = por %p82, %p83
    %p86 = scmp.ne.s32.totalorder %s71, %s85
    %p87 = scmp.eq.s32.totalorder %s19, 0
    %p88 = por %p86, %p87
    %s90 = sadd.s32 %s89, 1
    %p93 = scmp.eq.s32.totalorder %s13, 1
    %p94 = scmp.ne.s32.totalorder %s89, %s91
    %p95 = scmp.eq.s32.totalorder %s13, 0
    %p96 = por %p94, %p95
    %p97 = scmp.ne.s32.totalorder %s89, %s91
    %p98 = scmp.eq.s32.totalorder %s18, 1
    %p99 = por %p97, %p98
    %p100 = scmp.ne.s32.totalorder %s91, %s92
    %p101 = scmp.eq.s32.totalorder %s18, 0
    %p102 = por %p100, %p101
    %p103 = scmp.ne.s32.totalorder %s91, %s92
    %p104 = scmp.eq.s32.totalorder %s19, 1
    %p105 = por %p103, %p104
    %p107 = scmp.ne.s32.totalorder %s92, %s106
    %p108 = scmp.eq.s32.totalorder %s19, 0
    %p109 = por %p107, %p108
    %s110 = ssub.s32 %s13, %s20
    %p111 = scmp.eq.s32.totalorder %s110, 0
    %s113 = sadd.s32 %s112, 1
    %s114 = scalar_select %p111, %s112, %s113
    %p117 = pneg %p111
    %p118 = scmp.eq.s32.totalorder %s13, 1
    %p119 = por %p117, %p118
    %p120 = scmp.ne.s32.totalorder %s112, %s115
    %p121 = scmp.eq.s32.totalorder %s13, 0
    %p122 = por %p120, %p121
    %p123 = scmp.ne.s32.totalorder %s112, %s115
    %p124 = scmp.eq.s32.totalorder %s18, 1
    %p125 = por %p123, %p124
    %p126 = scmp.ne.s32.totalorder %s115, %s116
    %p127 = scmp.eq.s32.totalorder %s18, 0
    %p128 = por %p126, %p127
    %p129 = scmp.ne.s32.totalorder %s115, %s116
    %p130 = scmp.eq.s32.totalorder %s19, 1
    %p131 = por %p129, %p130
    %p133 = scmp.ne.s32.totalorder %s116, %s132
    %p134 = scmp.eq.s32.totalorder %s19, 0
    %p135 = por %p133, %p134
    %s136 = ssub.s32 %s13, %s20
    %p137 = scmp.eq.s32.totalorder %s136, 0
    %s139 = sadd.s32 %s138, 1
    %s140 = scalar_select %p137, %s138, %s139
    %p143 = pneg %p137
    %p144 = scmp.eq.s32.totalorder %s13, 1
    %p145 = por %p143, %p144
    %p146 = scmp.ne.s32.totalorder %s138, %s141
    %p147 = scmp.eq.s32.totalorder %s13, 0
    %p148 = por %p146, %p147
    %p149 = scmp.ne.s32.totalorder %s138, %s141
    %p150 = scmp.eq.s32.totalorder %s18, 1
    %p151 = por %p149, %p150
    %p152 = scmp.ne.s32.totalorder %s141, %s142
    %p153 = scmp.eq.s32.totalorder %s18, 0
    %p154 = por %p152, %p153
    %p155 = scmp.ne.s32.totalorder %s141, %s142
    %p156 = scmp.eq.s32.totalorder %s19, 1
    %p157 = por %p155, %p156
    %p159 = scmp.ne.s32.totalorder %s142, %s158
    %p160 = scmp.eq.s32.totalorder %s19, 0
    %p161 = por %p159, %p160
    %s162 = ssub.s32 %s13, %s20
    %p163 = scmp.eq.s32.totalorder %s162, 0
    %s165 = sadd.s32 %s164, 1
    %s166 = scalar_select %p163, %s164, %s165
    %p169 = pneg %p163
    %p170 = scmp.eq.s32.totalorder %s13, 1
    %p171 = por %p169, %p170
    %p172 = scmp.ne.s32.totalorder %s164, %s167
    %p173 = scmp.eq.s32.totalorder %s13, 0
    %p174 = por %p172, %p173
    %p175 = scmp.ne.s32.totalorder %s164, %s167
    %p176 = scmp.eq.s32.totalorder %s18, 1
    %p177 = por %p175, %p176
    %p178 = scmp.ne.s32.totalorder %s167, %s168
    %p179 = scmp.eq.s32.totalorder %s18, 0
    %p180 = por %p178, %p179
    %p181 = scmp.ne.s32.totalorder %s167, %s168
    %p182 = scmp.eq.s32.totalorder %s19, 1
    %p183 = por %p181, %p182
    %p185 = scmp.ne.s32.totalorder %s168, %s184
    %p186 = scmp.eq.s32.totalorder %s19, 0
    %p187 = por %p185, %p186
    %p188 = scmp.le.s32.totalorder 1, %s13
    %p189 = scmp.lt.s32.totalorder %s13, 3
    %p190 = pnand %p188, %p189
    %p191 = pneg %p190
    // Predicated region
    $region9: #{basic_block_forward.3} parent=5 // pred_check
      _
    $region10: #{basic_block_forward.3} parent=5 // pred_check_branch
      %193 = sbr.rel (%p190) target = $region12
    $region11: #{basic_block_forward.3} parent=5 // pred_region
      %s194 = ssub.s32 %s13, 1
      // Predicated region
      $region13: #{basic_block_forward.3} parent=11 // pred_check
        %p195 = pneg %p60
      $region14: #{basic_block_forward.3} parent=11 // pred_check_branch
        %197 = sbr.rel (%p195) target = $region16
      $region15: #{basic_block_forward.3} parent=11 // pred_region
        _
      $region16: #{basic_block_forward.3} parent=11 // pred_fallthru
        _
      // Predicated region
      $region17: #{basic_block_forward.3} parent=11 // pred_check
        %p198 = pneg %p81
      $region18: #{basic_block_forward.3} parent=11 // pred_check_branch
        %200 = sbr.rel (%p198) target = $region20
      $region19: #{basic_block_forward.3} parent=11 // pred_region
        _
      $region20: #{basic_block_forward.3} parent=11 // pred_fallthru
        _
      // Predicated region
      $region21: #{basic_block_forward.3} parent=11 // pred_check
        %p201 = pneg %p102
      $region22: #{basic_block_forward.3} parent=11 // pred_check_branch
        %203 = sbr.rel (%p201) target = $region24
      $region23: #{basic_block_forward.3} parent=11 // pred_region
        _
      $region24: #{basic_block_forward.3} parent=11 // pred_fallthru
        _
    $region12: #{basic_block_forward.3} parent=5 // pred_fallthru
      _
    %p204 = scmp.lt.s32.totalorder %s13, 2
    // Predicated region
    $region25: #{basic_block_forward.3} parent=5 // pred_check
      %p205 = pneg %p204
    $region26: #{basic_block_forward.3} parent=5 // pred_check_branch
      %207 = sbr.rel (%p205) target = $region28
    $region27: #{basic_block_forward.3} parent=5 // pred_region
      // Predicated region
      $region29: #{basic_block_forward.3} parent=27 // pred_check
        %p208 = pneg %p33
      $region30: #{basic_block_forward.3} parent=27 // pred_check_branch
        %210 = sbr.rel (%p208) target = $region32
      $region31: #{basic_block_forward.3} parent=27 // pred_region
        %p211 = scmp.lt.s32.totalorder %s13, 1
        %s212 = scalar_select %p211, %s13, 1
        %s213 = smul.addr %s212, 32
        %s214 = smul.addr %s213, 8
        %s215 = scalar_lea.vmem %s0, %s214
      $region32: #{basic_block_forward.3} parent=27 // pred_fallthru
        _
    $region28: #{basic_block_forward.3} parent=5 // pred_fallthru
      _
    %p216 = scmp.le.s32.totalorder 1, %s13
    %p217 = scmp.lt.s32.totalorder %s13, 3
    %p218 = pnand %p216, %p217
    %p219 = pneg %p218
    // Predicated region
    $region33: #{basic_block_forward.3} parent=5 // pred_check
      _
    $region34: #{basic_block_forward.3} parent=5 // pred_check_branch
      %221 = sbr.rel (%p218) target = $region36
    $region35: #{basic_block_forward.3} parent=5 // pred_region
      %s222 = ssub.s32 %s13, 1
      %p223 = scmp.lt.s32.totalorder %s18, 1
      %s224 = scalar_select %p223, %s18, 1
      %s225 = smul.addr %s224, 32
      %s226 = smul.addr %s225, 8
      %s227 = scalar_lea.vmem %s0, %s226
      %p228 = pneg %p39
      %p229 = pneg %p36
      %p230 = pneg %p60
      %p231 = pneg %p57
      %p232 = pneg %p81
      %p233 = pneg %p78
      %p234 = pneg %p102
      %p235 = pneg %p99
      %p236 = pneg %p128
      %p237 = pneg %p125
      %p238 = scmp.lt.s32.totalorder %s18, 1
      %s239 = scalar_select %p238, %s18, 1
      %s240 = smul.addr %s239, 32
      %s241 = smul.addr %s240, 8
      %s242 = scalar_lea.vmem %s4, %s241
      %p243 = pneg %p154
      %p244 = pneg %p151
      %p245 = scmp.lt.s32.totalorder %s18, 1
      %s246 = scalar_select %p245, %s18, 1
      %s247 = scalar_lea.vmem %s5, %s246
      %p248 = pneg %p180
      %p249 = pneg %p177
      %p250 = scmp.lt.s32.totalorder %s18, 1
      %s251 = scalar_select %p250, %s18, 1
      %s252 = scalar_lea.vmem %s6, %s251
      %p253 = scmp.lt.s32.totalorder %s18, 1
      %s254 = scalar_select %p253, %s18, 1
      %s255 = smul.addr %s254, 32
      %s256 = smul.addr %s255, 8
      %s257 = scalar_lea.vmem %s0, %s256
      %p258 = scmp.lt.s32.totalorder %s18, 1
      %s259 = scalar_select %p258, %s18, 1
      %s260 = smul.addr %s259, 32
      %s261 = smul.addr %s260, 8
      %s262 = scalar_lea.vmem %s4, %s261
      %p263 = scmp.lt.s32.totalorder %s18, 1
      %s264 = scalar_select %p263, %s18, 1
      %s265 = scalar_lea.vmem %s5, %s264
      %p266 = scmp.lt.s32.totalorder %s18, 1
      %s267 = scalar_select %p266, %s18, 1
      %s268 = scalar_lea.vmem %s6, %s267
      %v270 = vld [vmem:[%s1] sm:$0x1]
      %v271 = vld [vmem:[%s2] sm:$0x1]
      %272 = vst [vmem:[#allocation2] sm:$0xff] 0.0
      %273 = vst [vmem:[#allocation2 + $0x8] sm:$0xff] 0.0
      %274 = vst [vmem:[#allocation2 + $0x10] sm:$0x3] 0.0
      %275 = vst [vmem:[#allocation2 + $0x18] sm:$0xff] 0.0
      %276 = vst [vmem:[#allocation2 + $0x20] sm:$0xff] 0.0
      %277 = vst [vmem:[#allocation2 + $0x28] sm:$0x3] 0.0
      %278 = vst [vmem:[#allocation2 + $0x30] sm:$0xff] 0.0
      %279 = vst [vmem:[#allocation2 + $0x38] sm:$0xff] 0.0
      %280 = vst [vmem:[#allocation2 + $0x40] sm:$0x3] 0.0
      %281 = vst [vmem:[#allocation2 + $0x48] sm:$0xff] 0.0
      %282 = vst [vmem:[#allocation2 + $0x50] sm:$0xff] 0.0
      %283 = vst [vmem:[#allocation2 + $0x58] sm:$0x3] 0.0
      %284 = vst [vmem:[#allocation2 + $0x60] sm:$0xff] 0.0
      %285 = vst [vmem:[#allocation2 + $0x68] sm:$0xff] 0.0
      %286 = vst [vmem:[#allocation2 + $0x70] sm:$0x3] 0.0
      %287 = vst [vmem:[#allocation2 + $0x78] sm:$0xff] 0.0
      %288 = vst [vmem:[#allocation2 + $0x80] sm:$0xff] 0.0
      %289 = vst [vmem:[#allocation2 + $0x88] sm:$0x3] 0.0
      %290 = vst [vmem:[#allocation2 + $0x90] sm:$0xff] 0.0
      %291 = vst [vmem:[#allocation2 + $0x98] sm:$0xff] 0.0
      %292 = vst [vmem:[#allocation2 + $0xa0] sm:$0x3] 0.0
      %293 = vst [vmem:[#allocation2 + $0xa8] sm:$0xff] 0.0
      %294 = vst [vmem:[#allocation2 + $0xb0] sm:$0xff] 0.0
      %295 = vst [vmem:[#allocation2 + $0xb8] sm:$0x3] 0.0
      %296 = vst [vmem:[#allocation2 + $0xc0] sm:$0xff] 0.0
      %297 = vst [vmem:[#allocation2 + $0xc8] sm:$0xff] 0.0
      %298 = vst [vmem:[#allocation2 + $0xd0] sm:$0x3] 0.0
      %299 = vst [vmem:[#allocation2 + $0xd8] sm:$0xff] 0.0
      %300 = vst [vmem:[#allocation2 + $0xe0] sm:$0xff] 0.0
      %301 = vst [vmem:[#allocation2 + $0xe8] sm:$0x3] 0.0
      %302 = vst [vmem:[#allocation2 + $0xf0] sm:$0xff] 0.0
      %303 = vst [vmem:[#allocation2 + $0xf8] sm:$0xff] 0.0
      %304 = vst [vmem:[#allocation2 + $0x100] sm:$0x3] 0.0
      %305 = vst [vmem:[#allocation2 + $0x108] sm:$0xff] 0.0
      %306 = vst [vmem:[#allocation2 + $0x110] sm:$0xff] 0.0
      %307 = vst [vmem:[#allocation2 + $0x118] sm:$0x3] 0.0
      %308 = vst [vmem:[#allocation2 + $0x120] sm:$0xff] 0.0
      %309 = vst [vmem:[#allocation2 + $0x128] sm:$0xff] 0.0
      %310 = vst [vmem:[#allocation2 + $0x130] sm:$0x3] 0.0
      %311 = vst [vmem:[#allocation2 + $0x138] sm:$0xff] 0.0
      %312 = vst [vmem:[#allocation2 + $0x140] sm:$0xff] 0.0
      %313 = vst [vmem:[#allocation2 + $0x148] sm:$0x3] 0.0
      %314 = vst [vmem:[#allocation2 + $0x150] sm:$0xff] 0.0
      %315 = vst [vmem:[#allocation2 + $0x158] sm:$0xff] 0.0
      %316 = vst [vmem:[#allocation2 + $0x160] sm:$0x3] 0.0
      %317 = vst [vmem:[#allocation2 + $0x168] sm:$0xff] 0.0
      %318 = vst [vmem:[#allocation2 + $0x170] sm:$0xff] 0.0
      %319 = vst [vmem:[#allocation2 + $0x178] sm:$0x3] 0.0
      %320 = vst [vmem:[#allocation2 + $0x180] sm:$0xff] 0.0
      %321 = vst [vmem:[#allocation2 + $0x188] sm:$0xff] 0.0
      %322 = vst [vmem:[#allocation2 + $0x190] sm:$0x3] 0.0
      %323 = vst [vmem:[#allocation2 + $0x198] sm:$0xff] 0.0
      %324 = vst [vmem:[#allocation2 + $0x1a0] sm:$0xff] 0.0
      %325 = vst [vmem:[#allocation2 + $0x1a8] sm:$0x3] 0.0
      %v326 = vld [vmem:[%s257] sm:$0xff]
      %v327 = vld [vmem:[%s257 + $0x8] sm:$0xff]
      %v328 = vld [vmem:[%s257 + $0x10] sm:$0xff]
      %v329 = vld [vmem:[%s257 + $0x18] sm:$0xff]
      %v330 = vld [vmem:[%s257 + $0x20] sm:$0xff]
      %v331 = vld [vmem:[%s257 + $0x28] sm:$0xff]
      %v332 = vld [vmem:[%s257 + $0x30] sm:$0xff]
      %v333 = vld [vmem:[%s257 + $0x38] sm:$0xff]
      %v334 = vld [vmem:[%s257 + $0x40] sm:$0xff]
      %v335 = vld [vmem:[%s257 + $0x48] sm:$0xff]
      %v336 = vld [vmem:[%s257 + $0x50] sm:$0xff]
      %v337 = vld [vmem:[%s257 + $0x58] sm:$0xff]
      %v338 = vld [vmem:[%s257 + $0x60] sm:$0xff]
      %v339 = vld [vmem:[%s257 + $0x68] sm:$0xff]
      %v340 = vld [vmem:[%s257 + $0x70] sm:$0xff]
      %v341 = vld [vmem:[%s257 + $0x78] sm:$0xff]
      %v342 = vld [vmem:[%s257 + $0x80] sm:$0xff]
      %v343 = vld [vmem:[%s257 + $0x88] sm:$0xff]
      %v344 = vld [vmem:[%s257 + $0x90] sm:$0xff]
      %v345 = vld [vmem:[%s257 + $0x98] sm:$0xff]
      %v346 = vld [vmem:[%s257 + $0xa0] sm:$0xff]
      %v347 = vld [vmem:[%s257 + $0xa8] sm:$0xff]
      %v348 = vld [vmem:[%s257 + $0xb0] sm:$0xff]
      %v349 = vld [vmem:[%s257 + $0xb8] sm:$0xff]
      %v350 = vld [vmem:[%s257 + $0xc0] sm:$0xff]
      %v351 = vld [vmem:[%s257 + $0xc8] sm:$0xff]
      %v352 = vld [vmem:[%s257 + $0xd0] sm:$0xff]
      %v353 = vld [vmem:[%s257 + $0xd8] sm:$0xff]
      %v354 = vld [vmem:[%s257 + $0xe0] sm:$0xff]
      %v355 = vld [vmem:[%s257 + $0xe8] sm:$0xff]
      %v356 = vld [vmem:[%s257 + $0xf0] sm:$0xff]
      %v357 = vld [vmem:[%s257 + $0xf8] sm:$0xff]
      %v359 = vlaneseq
      %v360 = vshrl.u32 %v359, 7
      %v361 = vsub.s32 0, %v360
      %v362 = vrot.slane %v270, %v361
      %v364 = vmul.f32 %v326, %v362
      %v365 = vmul.f32 %v327, %v362
      %v366 = vmul.f32 %v328, %v362
      %v367 = vmul.f32 %v329, %v362
      %v368 = vmul.f32 %v330, %v362
      %v369 = vmul.f32 %v331, %v362
      %v370 = vmul.f32 %v332, %v362
      %v371 = vmul.f32 %v333, %v362
      %v372 = vmul.f32 %v334, %v362
      %v373 = vmul.f32 %v335, %v362
      %v374 = vmul.f32 %v336, %v362
      %v375 = vmul.f32 %v337, %v362
      %v376 = vmul.f32 %v338, %v362
      %v377 = vmul.f32 %v339, %v362
      %v378 = vmul.f32 %v340, %v362
      %v379 = vmul.f32 %v341, %v362
      %v380 = vmul.f32 %v342, %v362
      %v381 = vmul.f32 %v343, %v362
      %v382 = vmul.f32 %v344, %v362
      %v383 = vmul.f32 %v345, %v362
      %v384 = vmul.f32 %v346, %v362
      %v385 = vmul.f32 %v347, %v362
      %v386 = vmul.f32 %v348, %v362
      %v387 = vmul.f32 %v349, %v362
      %v388 = vmul.f32 %v350, %v362
      %v389 = vmul.f32 %v351, %v362
      %v390 = vmul.f32 %v352, %v362
      %v391 = vmul.f32 %v353, %v362
      %v392 = vmul.f32 %v354, %v362
      %v393 = vmul.f32 %v355, %v362
      %v394 = vmul.f32 %v356, %v362
      %v395 = vmul.f32 %v357, %v362
      %v397 = vlaneseq
      %v398 = vshrl.u32 %v397, 7
      %v399 = vsub.s32 0, %v398
      %v400 = vrot.slane %v271, %v399
      %v402 = vadd.f32 %v364, %v400
      %v403 = vadd.f32 %v365, %v400
      %v404 = vadd.f32 %v366, %v400
      %v405 = vadd.f32 %v367, %v400
      %v406 = vadd.f32 %v368, %v400
      %v407 = vadd.f32 %v369, %v400
      %v408 = vadd.f32 %v370, %v400
      %v409 = vadd.f32 %v371, %v400
      %v410 = vadd.f32 %v372, %v400
      %v411 = vadd.f32 %v373, %v400
      %v412 = vadd.f32 %v374, %v400
      %v413 = vadd.f32 %v375, %v400
      %v414 = vadd.f32 %v376, %v400
      %v415 = vadd.f32 %v377, %v400
      %v416 = vadd.f32 %v378, %v400
      %v417 = vadd.f32 %v379, %v400
      %v418 = vadd.f32 %v380, %v400
      %v419 = vadd.f32 %v381, %v400
      %v420 = vadd.f32 %v382, %v400
      %v421 = vadd.f32 %v383, %v400
      %v422 = vadd.f32 %v384, %v400
      %v423 = vadd.f32 %v385, %v400
      %v424 = vadd.f32 %v386, %v400
      %v425 = vadd.f32 %v387, %v400
      %v426 = vadd.f32 %v388, %v400
      %v427 = vadd.f32 %v389, %v400
      %v428 = vadd.f32 %v390, %v400
      %v429 = vadd.f32 %v391, %v400
      %v430 = vadd.f32 %v392, %v400
      %v431 = vadd.f32 %v393, %v400
      %v432 = vadd.f32 %v394, %v400
      %v433 = vadd.f32 %v395, %v400
      %s434 = scalar_lea.vmem [#allocation2], 24
      %435 = vst [vmem:[%s434 + $0x1] sm:$0xff] %v402
      %436 = vst [vmem:[%s434 + $0x9] sm:$0xff] %v403
      %437 = vst [vmem:[%s434 + $0x19] sm:$0xff] %v404
      %438 = vst [vmem:[%s434 + $0x21] sm:$0xff] %v405
      %439 = vst [vmem:[%s434 + $0x31] sm:$0xff] %v406
      %440 = vst [vmem:[%s434 + $0x39] sm:$0xff] %v407
      %441 = vst [vmem:[%s434 + $0x49] sm:$0xff] %v408
      %442 = vst [vmem:[%s434 + $0x51] sm:$0xff] %v409
      %443 = vst [vmem:[%s434 + $0x61] sm:$0xff] %v410
      %444 = vst [vmem:[%s434 + $0x69] sm:$0xff] %v411
      %445 = vst [vmem:[%s434 + $0x79] sm:$0xff] %v412
      %446 = vst [vmem:[%s434 + $0x81] sm:$0xff] %v413
      %447 = vst [vmem:[%s434 + $0x91] sm:$0xff] %v414
      %448 = vst [vmem:[%s434 + $0x99] sm:$0xff] %v415
      %449 = vst [vmem:[%s434 + $0xa9] sm:$0xff] %v416
      %450 = vst [vmem:[%s434 + $0xb1] sm:$0xff] %v417
      %451 = vst [vmem:[%s434 + $0xc1] sm:$0xff] %v418
      %452 = vst [vmem:[%s434 + $0xc9] sm:$0xff] %v419
      %453 = vst [vmem:[%s434 + $0xd9] sm:$0xff] %v420
      %454 = vst [vmem:[%s434 + $0xe1] sm:$0xff] %v421
      %455 = vst [vmem:[%s434 + $0xf1] sm:$0xff] %v422
      %456 = vst [vmem:[%s434 + $0xf9] sm:$0xff] %v423
      %457 = vst [vmem:[%s434 + $0x109] sm:$0xff] %v424
      %458 = vst [vmem:[%s434 + $0x111] sm:$0xff] %v425
      %459 = vst [vmem:[%s434 + $0x121] sm:$0xff] %v426
      %460 = vst [vmem:[%s434 + $0x129] sm:$0xff] %v427
      %461 = vst [vmem:[%s434 + $0x139] sm:$0xff] %v428
      %462 = vst [vmem:[%s434 + $0x141] sm:$0xff] %v429
      %463 = vst [vmem:[%s434 + $0x151] sm:$0xff] %v430
      %464 = vst [vmem:[%s434 + $0x159] sm:$0xff] %v431
      %465 = vst [vmem:[%s434 + $0x169] sm:$0xff] %v432
      %466 = vst [vmem:[%s434 + $0x171] sm:$0xff] %v433
      %v467 = vld [vmem:[#allocation2] sm:$0xff]
      %v468 = vld [vmem:[#allocation2 + $0x8] sm:$0xff]
      %v469 = vld [vmem:[#allocation2 + $0x18] sm:$0xff]
      %v470 = vld [vmem:[#allocation2 + $0x20] sm:$0xff]
      %v471 = vld [vmem:[#allocation2 + $0x30] sm:$0xff]
      %v472 = vld [vmem:[#allocation2 + $0x38] sm:$0xff]
      %v473 = vld [vmem:[#allocation2 + $0x48] sm:$0xff]
      %v474 = vld [vmem:[#allocation2 + $0x50] sm:$0xff]
      %v475 = vld [vmem:[#allocation2 + $0x60] sm:$0xff]
      %v476 = vld [vmem:[#allocation2 + $0x68] sm:$0xff]
      %v477 = vld [vmem:[#allocation2 + $0x78] sm:$0xff]
      %v478 = vld [vmem:[#allocation2 + $0x80] sm:$0xff]
      %v479 = vld [vmem:[#allocation2 + $0x90] sm:$0xff]
      %v480 = vld [vmem:[#allocation2 + $0x98] sm:$0xff]
      %v481 = vld [vmem:[#allocation2 + $0xa8] sm:$0xff]
      %v482 = vld [vmem:[#allocation2 + $0xb0] sm:$0xff]
      %v483 = vld [vmem:[#allocation2 + $0xc0] sm:$0xff]
      %v484 = vld [vmem:[#allocation2 + $0xc8] sm:$0xff]
      %v485 = vld [vmem:[#allocation2 + $0xd8] sm:$0xff]
      %v486 = vld [vmem:[#allocation2 + $0xe0] sm:$0xff]
      %v487 = vld [vmem:[#allocation2 + $0xf0] sm:$0xff]
      %v488 = vld [vmem:[#allocation2 + $0xf8] sm:$0xff]
      %v489 = vld [vmem:[#allocation2 + $0x108] sm:$0xff]
      %v490 = vld [vmem:[#allocation2 + $0x110] sm:$0xff]
      %v491 = vld [vmem:[#allocation2 + $0x120] sm:$0xff]
      %v492 = vld [vmem:[#allocation2 + $0x128] sm:$0xff]
      %v493 = vld [vmem:[#allocation2 + $0x138] sm:$0xff]
      %v494 = vld [vmem:[#allocation2 + $0x140] sm:$0xff]
      %v495 = vld [vmem:[#allocation2 + $0x150] sm:$0xff]
      %v496 = vld [vmem:[#allocation2 + $0x158] sm:$0xff]
      %v497 = vld [vmem:[#allocation2 + $0x168] sm:$0xff]
      %v498 = vld [vmem:[#allocation2 + $0x170] sm:$0xff]
      %v499 = vpack.c.bf16 %v468, %v467
      %v500 = vpack.c.bf16 %v470, %v469
      %v501 = vpack.c.bf16 %v472, %v471
      %v502 = vpack.c.bf16 %v474, %v473
      %v503 = vpack.c.bf16 %v476, %v475
      %v504 = vpack.c.bf16 %v478, %v477
      %v505 = vpack.c.bf16 %v480, %v479
      %v506 = vpack.c.bf16 %v482, %v481
      %v507 = vpack.c.bf16 %v484, %v483
      %v508 = vpack.c.bf16 %v486, %v485
      %v509 = vpack.c.bf16 %v488, %v487
      %v510 = vpack.c.bf16 %v490, %v489
      %v511 = vpack.c.bf16 %v492, %v491
      %v512 = vpack.c.bf16 %v494, %v493
      %v513 = vpack.c.bf16 %v496, %v495
      %v514 = vpack.c.bf16 %v498, %v497
      %v515 = vld [vmem:[%s3] sm:$0xf]
      %v516 = vld [vmem:[%s3 + $0x4] sm:$0xf]
      %v517 = vld [vmem:[%s3 + $0x8] sm:$0xf]
      %v518 = vld [vmem:[%s3 + $0xc] sm:$0xf]
      %v519 = vld [vmem:[%s3 + $0x10] sm:$0xf]
      %v520 = vld [vmem:[%s3 + $0x14] sm:$0xf]
      %v521 = vld [vmem:[%s3 + $0x18] sm:$0xf]
      %v522 = vld [vmem:[%s3 + $0x1c] sm:$0xf]
      %v523 = vld [vmem:[%s3 + $0x20] sm:$0xf]
      %v524 = vld [vmem:[%s3 + $0x24] sm:$0xf]
      %v525 = vld [vmem:[%s3 + $0x28] sm:$0xf]
      %v526 = vld [vmem:[%s3 + $0x2c] sm:$0xf]
      %v527 = vld [vmem:[%s3 + $0x30] sm:$0xf]
      %v528 = vld [vmem:[%s3 + $0x34] sm:$0xf]
      %v529 = vld [vmem:[%s3 + $0x38] sm:$0xf]
      %v530 = vld [vmem:[%s3 + $0x3c] sm:$0xf]
      %v531 = vld [vmem:[#allocation2 + $0x1] sm:$0xff]
      %v532 = vld [vmem:[#allocation2 + $0x9] sm:$0xff]
      %v533 = vld [vmem:[#allocation2 + $0x19] sm:$0xff]
      %v534 = vld [vmem:[#allocation2 + $0x21] sm:$0xff]
      %v535 = vld [vmem:[#allocation2 + $0x31] sm:$0xff]
      %v536 = vld [vmem:[#allocation2 + $0x39] sm:$0xff]
      %v537 = vld [vmem:[#allocation2 + $0x49] sm:$0xff]
      %v538 = vld [vmem:[#allocation2 + $0x51] sm:$0xff]
      %v539 = vld [vmem:[#allocation2 + $0x61] sm:$0xff]
      %v540 = vld [vmem:[#allocation2 + $0x69] sm:$0xff]
      %v541 = vld [vmem:[#allocation2 + $0x79] sm:$0xff]
      %v542 = vld [vmem:[#allocation2 + $0x81] sm:$0xff]
      %v543 = vld [vmem:[#allocation2 + $0x91] sm:$0xff]
      %v544 = vld [vmem:[#allocation2 + $0x99] sm:$0xff]
      %v545 = vld [vmem:[#allocation2 + $0xa9] sm:$0xff]
      %v546 = vld [vmem:[#allocation2 + $0xb1] sm:$0xff]
      %v547 = vld [vmem:[#allocation2 + $0xc1] sm:$0xff]
      %v548 = vld [vmem:[#allocation2 + $0xc9] sm:$0xff]
      %v549 = vld [vmem:[#allocation2 + $0xd9] sm:$0xff]
      %v550 = vld [vmem:[#allocation2 + $0xe1] sm:$0xff]
      %v551 = vld [vmem:[#allocation2 + $0xf1] sm:$0xff]
      %v552 = vld [vmem:[#allocation2 + $0xf9] sm:$0xff]
      %v553 = vld [vmem:[#allocation2 + $0x109] sm:$0xff]
      %v554 = vld [vmem:[#allocation2 + $0x111] sm:$0xff]
      %v555 = vld [vmem:[#allocation2 + $0x121] sm:$0xff]
      %v556 = vld [vmem:[#allocation2 + $0x129] sm:$0xff]
      %v557 = vld [vmem:[#allocation2 + $0x139] sm:$0xff]
      %v558 = vld [vmem:[#allocation2 + $0x141] sm:$0xff]
      %v559 = vld [vmem:[#allocation2 + $0x151] sm:$0xff]
      %v560 = vld [vmem:[#allocation2 + $0x159] sm:$0xff]
      %v561 = vld [vmem:[#allocation2 + $0x169] sm:$0xff]
      %v562 = vld [vmem:[#allocation2 + $0x171] sm:$0xff]
      %v563 = vpack.c.bf16 %v532, %v531
      %v564 = vpack.c.bf16 %v534, %v533
      %v565 = vpack.c.bf16 %v536, %v535
      %v566 = vpack.c.bf16 %v538, %v537
      %v567 = vpack.c.bf16 %v540, %v539
      %v568 = vpack.c.bf16 %v542, %v541
      %v569 = vpack.c.bf16 %v544, %v543
      %v570 = vpack.c.bf16 %v546, %v545
      %v571 = vpack.c.bf16 %v548, %v547
      %v572 = vpack.c.bf16 %v550, %v549
      %v573 = vpack.c.bf16 %v552, %v551
      %v574 = vpack.c.bf16 %v554, %v553
      %v575 = vpack.c.bf16 %v556, %v555
      %v576 = vpack.c.bf16 %v558, %v557
      %v577 = vpack.c.bf16 %v560, %v559
      %v578 = vpack.c.bf16 %v562, %v561
      %s579 = scalar_lea.vmem %s3, 64
      %v580 = vld [vmem:[%s579] sm:$0xf]
      %v581 = vld [vmem:[%s579 + $0x4] sm:$0xf]
      %v582 = vld [vmem:[%s579 + $0x8] sm:$0xf]
      %v583 = vld [vmem:[%s579 + $0xc] sm:$0xf]
      %v584 = vld [vmem:[%s579 + $0x10] sm:$0xf]
      %v585 = vld [vmem:[%s579 + $0x14] sm:$0xf]
      %v586 = vld [vmem:[%s579 + $0x18] sm:$0xf]
      %v587 = vld [vmem:[%s579 + $0x1c] sm:$0xf]
      %v588 = vld [vmem:[%s579 + $0x20] sm:$0xf]
      %v589 = vld [vmem:[%s579 + $0x24] sm:$0xf]
      %v590 = vld [vmem:[%s579 + $0x28] sm:$0xf]
      %v591 = vld [vmem:[%s579 + $0x2c] sm:$0xf]
      %v592 = vld [vmem:[%s579 + $0x30] sm:$0xf]
      %v593 = vld [vmem:[%s579 + $0x34] sm:$0xf]
      %v594 = vld [vmem:[%s579 + $0x38] sm:$0xf]
      %v595 = vld [vmem:[%s579 + $0x3c] sm:$0xf]
      %v612 = vunpack.c.l.b16 %v580
      %v613 = vunpack.c.l.b16 %v581
      %v614 = vunpack.c.l.b16 %v582
      %v615 = vunpack.c.l.b16 %v583
      %v616 = vunpack.c.l.b16 %v584
      %v617 = vunpack.c.l.b16 %v585
      %v618 = vunpack.c.l.b16 %v586
      %v619 = vunpack.c.l.b16 %v587
      %v620 = vunpack.c.l.b16 %v588
      %v621 = vunpack.c.l.b16 %v589
      %v622 = vunpack.c.l.b16 %v590
      %v623 = vunpack.c.l.b16 %v591
      %v624 = vunpack.c.l.b16 %v592
      %v625 = vunpack.c.l.b16 %v593
      %v626 = vunpack.c.l.b16 %v594
      %v627 = vunpack.c.l.b16 %v595
      %v628 = vpack.c.b16 %v613, %v612
      %v629 = vpack.c.b16 %v615, %v614
      %v630 = vpack.c.b16 %v617, %v616
      %v631 = vpack.c.b16 %v619, %v618
      %v632 = vpack.c.b16 %v621, %v620
      %v633 = vpack.c.b16 %v623, %v622
      %v634 = vpack.c.b16 %v625, %v624
      %v635 = vpack.c.b16 %v627, %v626
      %644 = vmatprep.subr.bf16.mxu0 0
      %645 = vmatpush1.bf16.msra.mxu0 %v628
      %646 = vmatprep.subr.bf16.mxu0 0
      %647 = vmatpush1.bf16.msra.mxu0 %v629
      %648 = vmatprep.subr.bf16.mxu0 0
      %649 = vmatpush1.bf16.msra.mxu0 %v630
      %650 = vmatprep.subr.bf16.mxu0 0
      %651 = vmatpush1.bf16.msra.mxu0 %v631
      %652 = vmatprep.subr.bf16.mxu0 0
      %653 = vmatpush1.bf16.msra.mxu0 %v632
      %654 = vmatprep.subr.bf16.mxu0 0
      %655 = vmatpush1.bf16.msra.mxu0 %v633
      %656 = vmatprep.subr.bf16.mxu0 0
      %657 = vmatpush1.bf16.msra.mxu0 %v634
      %658 = vmatprep.subr.bf16.mxu0 0
      %659 = vmatpush1.bf16.msra.mxu0 %v635
      %660 = vmatprep.subr.bf16.mxu0 0
      %661 = vmatpush1.bf16.msra.mxu0 0
      %662 = vmatprep.subr.bf16.mxu0 0
      %663 = vmatpush1.bf16.msra.mxu0 0
      %664 = vmatprep.subr.bf16.mxu0 0
      %665 = vmatpush1.bf16.msra.mxu0 0
      %666 = vmatprep.subr.bf16.mxu0 0
      %667 = vmatpush1.bf16.msra.mxu0 0
      %668 = vmatprep.subr.bf16.mxu0 0
      %669 = vmatpush1.bf16.msra.mxu0 0
      %670 = vmatprep.subr.bf16.mxu0 0
      %671 = vmatpush1.bf16.msra.mxu0 0
      %672 = vmatprep.subr.bf16.mxu0 0
      %673 = vmatpush1.bf16.msra.mxu0 0
      %674 = vmatprep.subr.bf16.mxu0 0
      %675 = vmatpush1.bf16.msra.mxu0 0
      %676 = vmatprep.mubr.bf16.mxu0 0
      %677 = vmatmul.mubr.bf16.gmra.mrb[0].mxu0 %v563
      %v678 = vpop.f32.mrb[0].mxu0
      %v679 = vadd.f32 0.0, %v678
      %v680 = vpop.f32.mrb[0].mxu0
      %v681 = vpop.f32.mrb[0].mxu0
      %v682 = vadd.f32 0.0, %v681
      %v683 = vpop.f32.mrb[0].mxu0
      %684 = vmatprep.mubr.bf16.mxu0 0
      %685 = vmatmul.mubr.bf16.gmra.mrb[0].mxu0 %v564
      %v686 = vpop.f32.mrb[0].mxu0
      %v687 = vadd.f32 0.0, %v686
      %v688 = vpop.f32.mrb[0].mxu0
      %v689 = vpop.f32.mrb[0].mxu0
      %v690 = vadd.f32 0.0, %v689
      %v691 = vpop.f32.mrb[0].mxu0
      %692 = vmatprep.mubr.bf16.mxu0 0
      %693 = vmatmul.mubr.bf16.gmra.mrb[0].mxu0 %v565
      %v694 = vpop.f32.mrb[0].mxu0
      %v695 = vadd.f32 0.0, %v694
      %v696 = vpop.f32.mrb[0].mxu0
      %v697 = vpop.f32.mrb[0].mxu0
      %v698 = vadd.f32 0.0, %v697
      %v699 = vpop.f32.mrb[0].mxu0
      %700 = vmatprep.mubr.bf16.mxu0 0
      %701 = vmatmul.mubr.bf16.gmra.mrb[0].mxu0 %v566
      %v702 = vpop.f32.mrb[0].mxu0
      %v703 = vadd.f32 0.0, %v702
      %v704 = vpop.f32.mrb[0].mxu0
      %v705 = vpop.f32.mrb[0].mxu0
      %v706 = vadd.f32 0.0, %v705
      %v707 = vpop.f32.mrb[0].mxu0
      %708 = vmatprep.mubr.bf16.mxu0 0
      %709 = vmatmul.mubr.bf16.gmra.mrb[0].mxu0 %v567
      %v710 = vpop.f32.mrb[0].mxu0
      %v711 = vadd.f32 0.0, %v710
      %v712 = vpop.f32.mrb[0].mxu0
      %v713 = vpop.f32.mrb[0].mxu0
      %v714 = vadd.f32 0.0, %v713
      %v715 = vpop.f32.mrb[0].mxu0
      %716 = vmatprep.mubr.bf16.mxu0 0
      %717 = vmatmul.mubr.bf16.gmra.mrb[0].mxu0 %v568
      %v718 = vpop.f32.mrb[0].mxu0
      %v719 = vadd.f32 0.0, %v718
      %v720 = vpop.f32.mrb[0].mxu0
      %v721 = vpop.f32.mrb[0].mxu0
      %v722 = vadd.f32 0.0, %v721
      %v723 = vpop.f32.mrb[0].mxu0
      %724 = vmatprep.mubr.bf16.mxu0 0
      %725 = vmatmul.mubr.bf16.gmra.mrb[0].mxu0 %v569
      %v726 = vpop.f32.mrb[0].mxu0
      %v727 = vadd.f32 0.0, %v726
      %v728 = vpop.f32.mrb[0].mxu0
      %v729 = vpop.f32.mrb[0].mxu0
      %v730 = vadd.f32 0.0, %v729
      %v731 = vpop.f32.mrb[0].mxu0
      %732 = vmatprep.mubr.bf16.mxu0 0
      %733 = vmatmul.mubr.bf16.gmra.mrb[0].mxu0 %v570
      %v734 = vpop.f32.mrb[0].mxu0
      %v735 = vadd.f32 0.0, %v734
      %v736 = vpop.f32.mrb[0].mxu0
      %v737 = vpop.f32.mrb[0].mxu0
      %v738 = vadd.f32 0.0, %v737
      %v739 = vpop.f32.mrb[0].mxu0
      %740 = vmatprep.mubr.bf16.mxu0 0
      %741 = vmatmul.mubr.bf16.gmra.mrb[0].mxu0 %v571
      %v742 = vpop.f32.mrb[0].mxu0
      %v743 = vadd.f32 0.0, %v742
      %v744 = vpop.f32.mrb[0].mxu0
      %v745 = vpop.f32.mrb[0].mxu0
      %v746 = vadd.f32 0.0, %v745
      %v747 = vpop.f32.mrb[0].mxu0
      %748 = vmatprep.mubr.bf16.mxu0 0
      %749 = vmatmul.mubr.bf16.gmra.mrb[0].mxu0 %v572
      %v750 = vpop.f32.mrb[0].mxu0
      %v751 = vadd.f32 0.0, %v750
      %v752 = vpop.f32.mrb[0].mxu0
      %v753 = vpop.f32.mrb[0].mxu0
      %v754 = vadd.f32 0.0, %v753
      %v755 = vpop.f32.mrb[0].mxu0
      %756 = vmatprep.mubr.bf16.mxu0 0
      %757 = vmatmul.mubr.bf16.gmra.mrb[0].mxu0 %v573
      %v758 = vpop.f32.mrb[0].mxu0
      %v759 = vadd.f32 0.0, %v758
      %v760 = vpop.f32.mrb[0].mxu0
      %v761 = vpop.f32.mrb[0].mxu0
      %v762 = vadd.f32 0.0, %v761
      %v763 = vpop.f32.mrb[0].mxu0
      %764 = vmatprep.mubr.bf16.mxu0 0
      %765 = vmatmul.mubr.bf16.gmra.mrb[0].mxu0 %v574
      %v766 = vpop.f32.mrb[0].mxu0
      %v767 = vadd.f32 0.0, %v766
      %v768 = vpop.f32.mrb[0].mxu0
      %v769 = vpop.f32.mrb[0].mxu0
      %v770 = vadd.f32 0.0, %v769
      %v771 = vpop.f32.mrb[0].mxu0
      %772 = vmatprep.mubr.bf16.mxu0 0
      %773 = vmatmul.mubr.bf16.gmra.mrb[0].mxu0 %v575
      %v774 = vpop.f32.mrb[0].mxu0
      %v775 = vadd.f32 0.0, %v774
      %v776 = vpop.f32.mrb[0].mxu0
      %v777 = vpop.f32.mrb[0].mxu0
      %v778 = vadd.f32 0.0, %v777
      %v779 = vpop.f32.mrb[0].mxu0
      %780 = vmatprep.mubr.bf16.mxu0 0
      %781 = vmatmul.mubr.bf16.gmra.mrb[0].mxu0 %v576
      %v782 = vpop.f32.mrb[0].mxu0
      %v783 = vadd.f32 0.0, %v782
      %v784 = vpop.f32.mrb[0].mxu0
      %v785 = vpop.f32.mrb[0].mxu0
      %v786 = vadd.f32 0.0, %v785
      %v787 = vpop.f32.mrb[0].mxu0
      %788 = vmatprep.mubr.bf16.mxu0 0
      %789 = vmatmul.mubr.bf16.gmra.mrb[0].mxu0 %v577
      %v790 = vpop.f32.mrb[0].mxu0
      %v791 = vadd.f32 0.0, %v790
      %v792 = vpop.f32.mrb[0].mxu0
      %v793 = vpop.f32.mrb[0].mxu0
      %v794 = vadd.f32 0.0, %v793
      %v795 = vpop.f32.mrb[0].mxu0
      %796 = vmatprep.mubr.bf16.mxu0 0
      %797 = vmatmul.mubr.bf16.gmra.mrb[0].mxu0 %v578
      %v798 = vpop.f32.mrb[0].mxu0
      %v799 = vadd.f32 0.0, %v798
      %v800 = vpop.f32.mrb[0].mxu0
      %v801 = vpop.f32.mrb[0].mxu0
      %v802 = vadd.f32 0.0, %v801
      %v803 = vpop.f32.mrb[0].mxu0
      %804 = vdwg.mxu0
      %v821 = vunpack.c.l.b16 %v515
      %v822 = vunpack.c.l.b16 %v516
      %v823 = vunpack.c.l.b16 %v517
      %v824 = vunpack.c.l.b16 %v518
      %v825 = vunpack.c.l.b16 %v519
      %v826 = vunpack.c.l.b16 %v520
      %v827 = vunpack.c.l.b16 %v521
      %v828 = vunpack.c.l.b16 %v522
      %v829 = vunpack.c.l.b16 %v523
      %v830 = vunpack.c.l.b16 %v524
      %v831 = vunpack.c.l.b16 %v525
      %v832 = vunpack.c.l.b16 %v526
      %v833 = vunpack.c.l.b16 %v527
      %v834 = vunpack.c.l.b16 %v528
      %v835 = vunpack.c.l.b16 %v529
      %v836 = vunpack.c.l.b16 %v530
      %v837 = vpack.c.b16 %v822, %v821
      %v838 = vpack.c.b16 %v824, %v823
      %v839 = vpack.c.b16 %v826, %v825
      %v840 = vpack.c.b16 %v828, %v827
      %v841 = vpack.c.b16 %v830, %v829
      %v842 = vpack.c.b16 %v832, %v831
      %v843 = vpack.c.b16 %v834, %v833
      %v844 = vpack.c.b16 %v836, %v835
      %853 = vmatprep.subr.bf16.mxu0 0
      %854 = vmatpush1.bf16.msra.mxu0 %v837
      %855 = vmatprep.subr.bf16.mxu0 0
      %856 = vmatpush1.bf16.msra.mxu0 %v838
      %857 = vmatprep.subr.bf16.mxu0 0
      %858 = vmatpush1.bf16.msra.mxu0 %v839
      %859 = vmatprep.subr.bf16.mxu0 0
      %860 = vmatpush1.bf16.msra.mxu0 %v840
      %861 = vmatprep.subr.bf16.mxu0 0
      %862 = vmatpush1.bf16.msra.mxu0 %v841
      %863 = vmatprep.subr.bf16.mxu0 0
      %864 = vmatpush1.bf16.msra.mxu0 %v842
      %865 = vmatprep.subr.bf16.mxu0 0
      %866 = vmatpush1.bf16.msra.mxu0 %v843
      %867 = vmatprep.subr.bf16.mxu0 0
      %868 = vmatpush1.bf16.msra.mxu0 %v844
      %869 = vmatprep.subr.bf16.mxu0 0
      %870 = vmatpush1.bf16.msra.mxu0 0
      %871 = vmatprep.subr.bf16.mxu0 0
      %872 = vmatpush1.bf16.msra.mxu0 0
      %873 = vmatprep.subr.bf16.mxu0 0
      %874 = vmatpush1.bf16.msra.mxu0 0
      %875 = vmatprep.subr.bf16.mxu0 0
      %876 = vmatpush1.bf16.msra.mxu0 0
      %877 = vmatprep.subr.bf16.mxu0 0
      %878 = vmatpush1.bf16.msra.mxu0 0
      %879 = vmatprep.subr.bf16.mxu0 0
      %880 = vmatpush1.bf16.msra.mxu0 0
      %881 = vmatprep.subr.bf16.mxu0 0
      %882 = vmatpush1.bf16.msra.mxu0 0
      %883 = vmatprep.subr.bf16.mxu0 0
      %884 = vmatpush1.bf16.msra.mxu0 0
      %885 = vmatprep.mubr.bf16.mxu0 0
      %886 = vmatmul.mubr.bf16.gmra.mrb[0].mxu0 %v499
      %v887 = vpop.f32.mrb[0].mxu0
      %v888 = vadd.f32 %v679, %v887
      %v889 = vpop.f32.mrb[0].mxu0
      %v890 = vpop.f32.mrb[0].mxu0
      %v891 = vadd.f32 %v682, %v890
      %v892 = vpop.f32.mrb[0].mxu0
      %893 = vmatprep.mubr.bf16.mxu0 0
      %894 = vmatmul.mubr.bf16.gmra.mrb[0].mxu0 %v500
      %v895 = vpop.f32.mrb[0].mxu0
      %v896 = vadd.f32 %v687, %v895
      %v897 = vpop.f32.mrb[0].mxu0
      %v898 = vpop.f32.mrb[0].mxu0
      %v899 = vadd.f32 %v690, %v898
      %v900 = vpop.f32.mrb[0].mxu0
      %901 = vmatprep.mubr.bf16.mxu0 0
      %902 = vmatmul.mubr.bf16.gmra.mrb[0].mxu0 %v501
      %v903 = vpop.f32.mrb[0].mxu0
      %v904 = vadd.f32 %v695, %v903
      %v905 = vpop.f32.mrb[0].mxu0
      %v906 = vpop.f32.mrb[0].mxu0
      %v907 = vadd.f32 %v698, %v906
      %v908 = vpop.f32.mrb[0].mxu0
      %909 = vmatprep.mubr.bf16.mxu0 0
      %910 = vmatmul.mubr.bf16.gmra.mrb[0].mxu0 %v502
      %v911 = vpop.f32.mrb[0].mxu0
      %v912 = vadd.f32 %v703, %v911
      %v913 = vpop.f32.mrb[0].mxu0
      %v914 = vpop.f32.mrb[0].mxu0
      %v915 = vadd.f32 %v706, %v914
      %v916 = vpop.f32.mrb[0].mxu0
      %917 = vmatprep.mubr.bf16.mxu0 0
      %918 = vmatmul.mubr.bf16.gmra.mrb[0].mxu0 %v503
      %v919 = vpop.f32.mrb[0].mxu0
      %v920 = vadd.f32 %v711, %v919
      %v921 = vpop.f32.mrb[0].mxu0
      %v922 = vpop.f32.mrb[0].mxu0
      %v923 = vadd.f32 %v714, %v922
      %v924 = vpop.f32.mrb[0].mxu0
      %925 = vmatprep.mubr.bf16.mxu0 0
      %926 = vmatmul.mubr.bf16.gmra.mrb[0].mxu0 %v504
      %v927 = vpop.f32.mrb[0].mxu0
      %v928 = vadd.f32 %v719, %v927
      %v929 = vpop.f32.mrb[0].mxu0
      %v930 = vpop.f32.mrb[0].mxu0
      %v931 = vadd.f32 %v722, %v930
      %v932 = vpop.f32.mrb[0].mxu0
      %933 = vmatprep.mubr.bf16.mxu0 0
      %934 = vmatmul.mubr.bf16.gmra.mrb[0].mxu0 %v505
      %v935 = vpop.f32.mrb[0].mxu0
      %v936 = vadd.f32 %v727, %v935
      %v937 = vpop.f32.mrb[0].mxu0
      %v938 = vpop.f32.mrb[0].mxu0
      %v939 = vadd.f32 %v730, %v938
      %v940 = vpop.f32.mrb[0].mxu0
      %941 = vmatprep.mubr.bf16.mxu0 0
      %942 = vmatmul.mubr.bf16.gmra.mrb[0].mxu0 %v506
      %v943 = vpop.f32.mrb[0].mxu0
      %v944 = vadd.f32 %v735, %v943
      %v945 = vpop.f32.mrb[0].mxu0
      %v946 = vpop.f32.mrb[0].mxu0
      %v947 = vadd.f32 %v738, %v946
      %v948 = vpop.f32.mrb[0].mxu0
      %949 = vmatprep.mubr.bf16.mxu0 0
      %950 = vmatmul.mubr.bf16.gmra.mrb[0].mxu0 %v507
      %v951 = vpop.f32.mrb[0].mxu0
      %v952 = vadd.f32 %v743, %v951
      %v953 = vpop.f32.mrb[0].mxu0
      %v954 = vpop.f32.mrb[0].mxu0
      %v955 = vadd.f32 %v746, %v954
      %v956 = vpop.f32.mrb[0].mxu0
      %957 = vmatprep.mubr.bf16.mxu0 0
      %958 = vmatmul.mubr.bf16.gmra.mrb[0].mxu0 %v508
      %v959 = vpop.f32.mrb[0].mxu0
      %v960 = vadd.f32 %v751, %v959
      %v961 = vpop.f32.mrb[0].mxu0
      %v962 = vpop.f32.mrb[0].mxu0
      %v963 = vadd.f32 %v754, %v962
      %v964 = vpop.f32.mrb[0].mxu0
      %965 = vmatprep.mubr.bf16.mxu0 0
      %966 = vmatmul.mubr.bf16.gmra.mrb[0].mxu0 %v509
      %v967 = vpop.f32.mrb[0].mxu0
      %v968 = vadd.f32 %v759, %v967
      %v969 = vpop.f32.mrb[0].mxu0
      %v970 = vpop.f32.mrb[0].mxu0
      %v971 = vadd.f32 %v762, %v970
      %v972 = vpop.f32.mrb[0].mxu0
      %973 = vmatprep.mubr.bf16.mxu0 0
      %974 = vmatmul.mubr.bf16.gmra.mrb[0].mxu0 %v510
      %v975 = vpop.f32.mrb[0].mxu0
      %v976 = vadd.f32 %v767, %v975
      %v977 = vpop.f32.mrb[0].mxu0
      %v978 = vpop.f32.mrb[0].mxu0
      %v979 = vadd.f32 %v770, %v978
      %v980 = vpop.f32.mrb[0].mxu0
      %981 = vmatprep.mubr.bf16.mxu0 0
      %982 = vmatmul.mubr.bf16.gmra.mrb[0].mxu0 %v511
      %v983 = vpop.f32.mrb[0].mxu0
      %v984 = vadd.f32 %v775, %v983
      %v985 = vpop.f32.mrb[0].mxu0
      %v986 = vpop.f32.mrb[0].mxu0
      %v987 = vadd.f32 %v778, %v986
      %v988 = vpop.f32.mrb[0].mxu0
      %989 = vmatprep.mubr.bf16.mxu0 0
      %990 = vmatmul.mubr.bf16.gmra.mrb[0].mxu0 %v512
      %v991 = vpop.f32.mrb[0].mxu0
      %v992 = vadd.f32 %v783, %v991
      %v993 = vpop.f32.mrb[0].mxu0
      %v994 = vpop.f32.mrb[0].mxu0
      %v995 = vadd.f32 %v786, %v994
      %v996 = vpop.f32.mrb[0].mxu0
      %997 = vmatprep.mubr.bf16.mxu0 0
      %998 = vmatmul.mubr.bf16.gmra.mrb[0].mxu0 %v513
      %v999 = vpop.f32.mrb[0].mxu0
      %v1000 = vadd.f32 %v791, %v999
      %v1001 = vpop.f32.mrb[0].mxu0
      %v1002 = vpop.f32.mrb[0].mxu0
      %v1003 = vadd.f32 %v794, %v1002
      %v1004 = vpop.f32.mrb[0].mxu0
      %1005 = vmatprep.mubr.bf16.mxu0 0
      %1006 = vmatmul.mubr.bf16.gmra.mrb[0].mxu0 %v514
      %v1007 = vpop.f32.mrb[0].mxu0
      %v1008 = vadd.f32 %v799, %v1007
      %v1009 = vpop.f32.mrb[0].mxu0
      %v1010 = vpop.f32.mrb[0].mxu0
      %v1011 = vadd.f32 %v802, %v1010
      %v1012 = vpop.f32.mrb[0].mxu0
      %1013 = vdwg.mxu0
      %v1014 = vld [vmem:[#allocation2 + $0x2] sm:$0xff]
      %v1015 = vld [vmem:[#allocation2 + $0xa] sm:$0xff]
      %v1016 = vld [vmem:[#allocation2 + $0x1a] sm:$0xff]
      %v1017 = vld [vmem:[#allocation2 + $0x22] sm:$0xff]
      %v1018 = vld [vmem:[#allocation2 + $0x32] sm:$0xff]
      %v1019 = vld [vmem:[#allocation2 + $0x3a] sm:$0xff]
      %v1020 = vld [vmem:[#allocation2 + $0x4a] sm:$0xff]
      %v1021 = vld [vmem:[#allocation2 + $0x52] sm:$0xff]
      %v1022 = vld [vmem:[#allocation2 + $0x62] sm:$0xff]
      %v1023 = vld [vmem:[#allocation2 + $0x6a] sm:$0xff]
      %v1024 = vld [vmem:[#allocation2 + $0x7a] sm:$0xff]
      %v1025 = vld [vmem:[#allocation2 + $0x82] sm:$0xff]
      %v1026 = vld [vmem:[#allocation2 + $0x92] sm:$0xff]
      %v1027 = vld [vmem:[#allocation2 + $0x9a] sm:$0xff]
      %v1028 = vld [vmem:[#allocation2 + $0xaa] sm:$0xff]
      %v1029 = vld [vmem:[#allocation2 + $0xb2] sm:$0xff]
      %v1030 = vld [vmem:[#allocation2 + $0xc2] sm:$0xff]
      %v1031 = vld [vmem:[#allocation2 + $0xca] sm:$0xff]
      %v1032 = vld [vmem:[#allocation2 + $0xda] sm:$0xff]
      %v1033 = vld [vmem:[#allocation2 + $0xe2] sm:$0xff]
      %v1034 = vld [vmem:[#allocation2 + $0xf2] sm:$0xff]
      %v1035 = vld [vmem:[#allocation2 + $0xfa] sm:$0xff]
      %v1036 = vld [vmem:[#allocation2 + $0x10a] sm:$0xff]
      %v1037 = vld [vmem:[#allocation2 + $0x112] sm:$0xff]
      %v1038 = vld [vmem:[#allocation2 + $0x122] sm:$0xff]
      %v1039 = vld [vmem:[#allocation2 + $0x12a] sm:$0xff]
      %v1040 = vld [vmem:[#allocation2 + $0x13a] sm:$0xff]
      %v1041 = vld [vmem:[#allocation2 + $0x142] sm:$0xff]
      %v1042 = vld [vmem:[#allocation2 + $0x152] sm:$0xff]
      %v1043 = vld [vmem:[#allocation2 + $0x15a] sm:$0xff]
      %v1044 = vld [vmem:[#allocation2 + $0x16a] sm:$0xff]
      %v1045 = vld [vmem:[#allocation2 + $0x172] sm:$0xff]
      %v1046 = vpack.c.bf16 %v1015, %v1014
      %v1047 = vpack.c.bf16 %v1017, %v1016
      %v1048 = vpack.c.bf16 %v1019, %v1018
      %v1049 = vpack.c.bf16 %v1021, %v1020
      %v1050 = vpack.c.bf16 %v1023, %v1022
      %v1051 = vpack.c.bf16 %v1025, %v1024
      %v1052 = vpack.c.bf16 %v1027, %v1026
      %v1053 = vpack.c.bf16 %v1029, %v1028
      %v1054 = vpack.c.bf16 %v1031, %v1030
      %v1055 = vpack.c.bf16 %v1033, %v1032
      %v1056 = vpack.c.bf16 %v1035, %v1034
      %v1057 = vpack.c.bf16 %v1037, %v1036
      %v1058 = vpack.c.bf16 %v1039, %v1038
      %v1059 = vpack.c.bf16 %v1041, %v1040
      %v1060 = vpack.c.bf16 %v1043, %v1042
      %v1061 = vpack.c.bf16 %v1045, %v1044
      %s1062 = scalar_lea.vmem %s3, 128
      %v1063 = vld [vmem:[%s1062] sm:$0xf]
      %v1064 = vld [vmem:[%s1062 + $0x4] sm:$0xf]
      %v1065 = vld [vmem:[%s1062 + $0x8] sm:$0xf]
      %v1066 = vld [vmem:[%s1062 + $0xc] sm:$0xf]
      %v1067 = vld [vmem:[%s1062 + $0x10] sm:$0xf]
      %v1068 = vld [vmem:[%s1062 + $0x14] sm:$0xf]
      %v1069 = vld [vmem:[%s1062 + $0x18] sm:$0xf]
      %v1070 = vld [vmem:[%s1062 + $0x1c] sm:$0xf]
      %v1071 = vld [vmem:[%s1062 + $0x20] sm:$0xf]
      %v1072 = vld [vmem:[%s1062 + $0x24] sm:$0xf]
      %v1073 = vld [vmem:[%s1062 + $0x28] sm:$0xf]
      %v1074 = vld [vmem:[%s1062 + $0x2c] sm:$0xf]
      %v1075 = vld [vmem:[%s1062 + $0x30] sm:$0xf]
      %v1076 = vld [vmem:[%s1062 + $0x34] sm:$0xf]
      %v1077 = vld [vmem:[%s1062 + $0x38] sm:$0xf]
      %v1078 = vld [vmem:[%s1062 + $0x3c] sm:$0xf]
      %v1095 = vunpack.c.l.b16 %v1063
      %v1096 = vunpack.c.l.b16 %v1064
      %v1097 = vunpack.c.l.b16 %v1065
      %v1098 = vunpack.c.l.b16 %v1066
      %v1099 = vunpack.c.l.b16 %v1067
      %v1100 = vunpack.c.l.b16 %v1068
      %v1101 = vunpack.c.l.b16 %v1069
      %v1102 = vunpack.c.l.b16 %v1070
      %v1103 = vunpack.c.l.b16 %v1071
      %v1104 = vunpack.c.l.b16 %v1072
      %v1105 = vunpack.c.l.b16 %v1073
      %v1106 = vunpack.c.l.b16 %v1074
      %v1107 = vunpack.c.l.b16 %v1075
      %v1108 = vunpack.c.l.b16 %v1076
      %v1109 = vunpack.c.l.b16 %v1077
      %v1110 = vunpack.c.l.b16 %v1078
      %v1111 = vpack.c.b16 %v1096, %v1095
      %v1112 = vpack.c.b16 %v1098, %v1097
      %v1113 = vpack.c.b16 %v1100, %v1099
      %v1114 = vpack.c.b16 %v1102, %v1101
      %v1115 = vpack.c.b16 %v1104, %v1103
      %v1116 = vpack.c.b16 %v1106, %v1105
      %v1117 = vpack.c.b16 %v1108, %v1107
      %v1118 = vpack.c.b16 %v1110, %v1109
      %1127 = vmatprep.subr.bf16.mxu0 0
      %1128 = vmatpush1.bf16.msra.mxu0 %v1111
      %1129 = vmatprep.subr.bf16.mxu0 0
      %1130 = vmatpush1.bf16.msra.mxu0 %v1112
      %1131 = vmatprep.subr.bf16.mxu0 0
      %1132 = vmatpush1.bf16.msra.mxu0 %v1113
      %1133 = vmatprep.subr.bf16.mxu0 0
      %1134 = vmatpush1.bf16.msra.mxu0 %v1114
      %1135 = vmatprep.subr.bf16.mxu0 0
      %1136 = vmatpush1.bf16.msra.mxu0 %v1115
      %1137 = vmatprep.subr.bf16.mxu0 0
      %1138 = vmatpush1.bf16.msra.mxu0 %v1116
      %1139 = vmatprep.subr.bf16.mxu0 0
      %1140 = vmatpush1.bf16.msra.mxu0 %v1117
      %1141 = vmatprep.subr.bf16.mxu0 0
      %1142 = vmatpush1.bf16.msra.mxu0 %v1118
      %1143 = vmatprep.subr.bf16.mxu0 0
      %1144 = vmatpush1.bf16.msra.mxu0 0
      %1145 = vmatprep.subr.bf16.mxu0 0
      %1146 = vmatpush1.bf16.msra.mxu0 0
      %1147 = vmatprep.subr.bf16.mxu0 0
      %1148 = vmatpush1.bf16.msra.mxu0 0
      %1149 = vmatprep.subr.bf16.mxu0 0
      %1150 = vmatpush1.bf16.msra.mxu0 0
      %1151 = vmatprep.subr.bf16.mxu0 0
      %1152 = vmatpush1.bf16.msra.mxu0 0
      %1153 = vmatprep.subr.bf16.mxu0 0
      %1154 = vmatpush1.bf16.msra.mxu0 0
      %1155 = vmatprep.subr.bf16.mxu0 0
      %1156 = vmatpush1.bf16.msra.mxu0 0
      %1157 = vmatprep.subr.bf16.mxu0 0
      %1158 = vmatpush1.bf16.msra.mxu0 0
      %1159 = vmatprep.mubr.bf16.mxu0 0
      %1160 = vmatmul.mubr.bf16.gmra.mrb[0].mxu0 %v1046
      %v1161 = vpop.f32.mrb[0].mxu0
      %v1162 = vadd.f32 0.0, %v1161
      %v1163 = vpop.f32.mrb[0].mxu0
      %v1164 = vpop.f32.mrb[0].mxu0
      %v1165 = vadd.f32 0.0, %v1164
      %v1166 = vpop.f32.mrb[0].mxu0
      %1167 = vmatprep.mubr.bf16.mxu0 0
      %1168 = vmatmul.mubr.bf16.gmra.mrb[0].mxu0 %v1047
      %v1169 = vpop.f32.mrb[0].mxu0
      %v1170 = vadd.f32 0.0, %v1169
      %v1171 = vpop.f32.mrb[0].mxu0
      %v1172 = vpop.f32.mrb[0].mxu0
      %v1173 = vadd.f32 0.0, %v1172
      %v1174 = vpop.f32.mrb[0].mxu0
      %1175 = vmatprep.mubr.bf16.mxu0 0
      %1176 = vmatmul.mubr.bf16.gmra.mrb[0].mxu0 %v1048
      %v1177 = vpop.f32.mrb[0].mxu0
      %v1178 = vadd.f32 0.0, %v1177
      %v1179 = vpop.f32.mrb[0].mxu0
      %v1180 = vpop.f32.mrb[0].mxu0
      %v1181 = vadd.f32 0.0, %v1180
      %v1182 = vpop.f32.mrb[0].mxu0
      %1183 = vmatprep.mubr.bf16.mxu0 0
      %1184 = vmatmul.mubr.bf16.gmra.mrb[0].mxu0 %v1049
      %v1185 = vpop.f32.mrb[0].mxu0
      %v1186 = vadd.f32 0.0, %v1185
      %v1187 = vpop.f32.mrb[0].mxu0
      %v1188 = vpop.f32.mrb[0].mxu0
      %v1189 = vadd.f32 0.0, %v1188
      %v1190 = vpop.f32.mrb[0].mxu0
      %1191 = vmatprep.mubr.bf16.mxu0 0
      %1192 = vmatmul.mubr.bf16.gmra.mrb[0].mxu0 %v1050
      %v1193 = vpop.f32.mrb[0].mxu0
      %v1194 = vadd.f32 0.0, %v1193
      %v1195 = vpop.f32.mrb[0].mxu0
      %v1196 = vpop.f32.mrb[0].mxu0
      %v1197 = vadd.f32 0.0, %v1196
      %v1198 = vpop.f32.mrb[0].mxu0
      %1199 = vmatprep.mubr.bf16.mxu0 0
      %1200 = vmatmul.mubr.bf16.gmra.mrb[0].mxu0 %v1051
      %v1201 = vpop.f32.mrb[0].mxu0
      %v1202 = vadd.f32 0.0, %v1201
      %v1203 = vpop.f32.mrb[0].mxu0
      %v1204 = vpop.f32.mrb[0].mxu0
      %v1205 = vadd.f32 0.0, %v1204
      %v1206 = vpop.f32.mrb[0].mxu0
      %1207 = vmatprep.mubr.bf16.mxu0 0
      %1208 = vmatmul.mubr.bf16.gmra.mrb[0].mxu0 %v1052
      %v1209 = vpop.f32.mrb[0].mxu0
      %v1210 = vadd.f32 0.0, %v1209
      %v1211 = vpop.f32.mrb[0].mxu0
      %v1212 = vpop.f32.mrb[0].mxu0
      %v1213 = vadd.f32 0.0, %v1212
      %v1214 = vpop.f32.mrb[0].mxu0
      %1215 = vmatprep.mubr.bf16.mxu0 0
      %1216 = vmatmul.mubr.bf16.gmra.mrb[0].mxu0 %v1053
      %v1217 = vpop.f32.mrb[0].mxu0
      %v1218 = vadd.f32 0.0, %v1217
      %v1219 = vpop.f32.mrb[0].mxu0
      %v1220 = vpop.f32.mrb[0].mxu0
      %v1221 = vadd.f32 0.0, %v1220
      %v1222 = vpop.f32.mrb[0].mxu0
      %1223 = vmatprep.mubr.bf16.mxu0 0
      %1224 = vmatmul.mubr.bf16.gmra.mrb[0].mxu0 %v1054
      %v1225 = vpop.f32.mrb[0].mxu0
      %v1226 = vadd.f32 0.0, %v1225
      %v1227 = vpop.f32.mrb[0].mxu0
      %v1228 = vpop.f32.mrb[0].mxu0
      %v1229 = vadd.f32 0.0, %v1228
      %v1230 = vpop.f32.mrb[0].mxu0
      %1231 = vmatprep.mubr.bf16.mxu0 0
      %1232 = vmatmul.mubr.bf16.gmra.mrb[0].mxu0 %v1055
      %v1233 = vpop.f32.mrb[0].mxu0
      %v1234 = vadd.f32 0.0, %v1233
      %v1235 = vpop.f32.mrb[0].mxu0
      %v1236 = vpop.f32.mrb[0].mxu0
      %v1237 = vadd.f32 0.0, %v1236
      %v1238 = vpop.f32.mrb[0].mxu0
      %1239 = vmatprep.mubr.bf16.mxu0 0
      %1240 = vmatmul.mubr.bf16.gmra.mrb[0].mxu0 %v1056
      %v1241 = vpop.f32.mrb[0].mxu0
      %v1242 = vadd.f32 0.0, %v1241
      %v1243 = vpop.f32.mrb[0].mxu0
      %v1244 = vpop.f32.mrb[0].mxu0
      %v1245 = vadd.f32 0.0, %v1244
      %v1246 = vpop.f32.mrb[0].mxu0
      %1247 = vmatprep.mubr.bf16.mxu0 0
      %1248 = vmatmul.mubr.bf16.gmra.mrb[0].mxu0 %v1057
      %v1249 = vpop.f32.mrb[0].mxu0
      %v1250 = vadd.f32 0.0, %v1249
      %v1251 = vpop.f32.mrb[0].mxu0
      %v1252 = vpop.f32.mrb[0].mxu0
      %v1253 = vadd.f32 0.0, %v1252
      %v1254 = vpop.f32.mrb[0].mxu0
      %1255 = vmatprep.mubr.bf16.mxu0 0
      %1256 = vmatmul.mubr.bf16.gmra.mrb[0].mxu0 %v1058
      %v1257 = vpop.f32.mrb[0].mxu0
      %v1258 = vadd.f32 0.0, %v1257
      %v1259 = vpop.f32.mrb[0].mxu0
      %v1260 = vpop.f32.mrb[0].mxu0
      %v1261 = vadd.f32 0.0, %v1260
      %v1262 = vpop.f32.mrb[0].mxu0
      %1263 = vmatprep.mubr.bf16.mxu0 0
      %1264 = vmatmul.mubr.bf16.gmra.mrb[0].mxu0 %v1059
      %v1265 = vpop.f32.mrb[0].mxu0
      %v1266 = vadd.f32 0.0, %v1265
      %v1267 = vpop.f32.mrb[0].mxu0
      %v1268 = vpop.f32.mrb[0].mxu0
      %v1269 = vadd.f32 0.0, %v1268
      %v1270 = vpop.f32.mrb[0].mxu0
      %1271 = vmatprep.mubr.bf16.mxu0 0
      %1272 = vmatmul.mubr.bf16.gmra.mrb[0].mxu0 %v1060
      %v1273 = vpop.f32.mrb[0].mxu0
      %v1274 = vadd.f32 0.0, %v1273
      %v1275 = vpop.f32.mrb[0].mxu0
      %v1276 = vpop.f32.mrb[0].mxu0
      %v1277 = vadd.f32 0.0, %v1276
      %v1278 = vpop.f32.mrb[0].mxu0
      %1279 = vmatprep.mubr.bf16.mxu0 0
      %1280 = vmatmul.mubr.bf16.gmra.mrb[0].mxu0 %v1061
      %v1281 = vpop.f32.mrb[0].mxu0
      %v1282 = vadd.f32 0.0, %v1281
      %v1283 = vpop.f32.mrb[0].mxu0
      %v1284 = vpop.f32.mrb[0].mxu0
      %v1285 = vadd.f32 0.0, %v1284
      %v1286 = vpop.f32.mrb[0].mxu0
      %1287 = vdwg.mxu0
      %v1288 = vadd.f32 %v888, %v1162
      %v1289 = vadd.f32 %v891, %v1165
      %v1290 = vadd.f32 %v896, %v1170
      %v1291 = vadd.f32 %v899, %v1173
      %v1292 = vadd.f32 %v904, %v1178
      %v1293 = vadd.f32 %v907, %v1181
      %v1294 = vadd.f32 %v912, %v1186
      %v1295 = vadd.f32 %v915, %v1189
      %v1296 = vadd.f32 %v920, %v1194
      %v1297 = vadd.f32 %v923, %v1197
      %v1298 = vadd.f32 %v928, %v1202
      %v1299 = vadd.f32 %v931, %v1205
      %v1300 = vadd.f32 %v936, %v1210
      %v1301 = vadd.f32 %v939, %v1213
      %v1302 = vadd.f32 %v944, %v1218
      %v1303 = vadd.f32 %v947, %v1221
      %v1304 = vadd.f32 %v952, %v1226
      %v1305 = vadd.f32 %v955, %v1229
      %v1306 = vadd.f32 %v960, %v1234
      %v1307 = vadd.f32 %v963, %v1237
      %v1308 = vadd.f32 %v968, %v1242
      %v1309 = vadd.f32 %v971, %v1245
      %v1310 = vadd.f32 %v976, %v1250
      %v1311 = vadd.f32 %v979, %v1253
      %v1312 = vadd.f32 %v984, %v1258
      %v1313 = vadd.f32 %v987, %v1261
      %v1314 = vadd.f32 %v992, %v1266
      %v1315 = vadd.f32 %v995, %v1269
      %v1316 = vadd.f32 %v1000, %v1274
      %v1317 = vadd.f32 %v1003, %v1277
      %v1318 = vadd.f32 %v1008, %v1282
      %v1319 = vadd.f32 %v1011, %v1285
      %v1320 = vld [vmem:[%s434] sm:$0xff]
      %v1321 = vld [vmem:[%s434 + $0x8] sm:$0xff]
      %v1322 = vld [vmem:[%s434 + $0x18] sm:$0xff]
      %v1323 = vld [vmem:[%s434 + $0x20] sm:$0xff]
      %v1324 = vld [vmem:[%s434 + $0x30] sm:$0xff]
      %v1325 = vld [vmem:[%s434 + $0x38] sm:$0xff]
      %v1326 = vld [vmem:[%s434 + $0x48] sm:$0xff]
      %v1327 = vld [vmem:[%s434 + $0x50] sm:$0xff]
      %v1328 = vld [vmem:[%s434 + $0x60] sm:$0xff]
      %v1329 = vld [vmem:[%s434 + $0x68] sm:$0xff]
      %v1330 = vld [vmem:[%s434 + $0x78] sm:$0xff]
      %v1331 = vld [vmem:[%s434 + $0x80] sm:$0xff]
      %v1332 = vld [vmem:[%s434 + $0x90] sm:$0xff]
      %v1333 = vld [vmem:[%s434 + $0x98] sm:$0xff]
      %v1334 = vld [vmem:[%s434 + $0xa8] sm:$0xff]
      %v1335 = vld [vmem:[%s434 + $0xb0] sm:$0xff]
      %v1336 = vld [vmem:[%s434 + $0xc0] sm:$0xff]
      %v1337 = vld [vmem:[%s434 + $0xc8] sm:$0xff]
      %v1338 = vld [vmem:[%s434 + $0xd8] sm:$0xff]
      %v1339 = vld [vmem:[%s434 + $0xe0] sm:$0xff]
      %v1340 = vld [vmem:[%s434 + $0xf0] sm:$0xff]
      %v1341 = vld [vmem:[%s434 + $0xf8] sm:$0xff]
      %v1342 = vld [vmem:[%s434 + $0x108] sm:$0xff]
      %v1343 = vld [vmem:[%s434 + $0x110] sm:$0xff]
      %v1344 = vld [vmem:[%s434 + $0x120] sm:$0xff]
      %v1345 = vld [vmem:[%s434 + $0x128] sm:$0xff]
      %v1346 = vld [vmem:[%s434 + $0x138] sm:$0xff]
      %v1347 = vld [vmem:[%s434 + $0x140] sm:$0xff]
      %v1348 = vld [vmem:[%s434 + $0x150] sm:$0xff]
      %v1349 = vld [vmem:[%s434 + $0x158] sm:$0xff]
      %v1350 = vld [vmem:[%s434 + $0x168] sm:$0xff]
      %v1351 = vld [vmem:[%s434 + $0x170] sm:$0xff]
      %v1352 = vpack.c.bf16 %v1321, %v1320
      %v1353 = vpack.c.bf16 %v1323, %v1322
      %v1354 = vpack.c.bf16 %v1325, %v1324
      %v1355 = vpack.c.bf16 %v1327, %v1326
      %v1356 = vpack.c.bf16 %v1329, %v1328
      %v1357 = vpack.c.bf16 %v1331, %v1330
      %v1358 = vpack.c.bf16 %v1333, %v1332
      %v1359 = vpack.c.bf16 %v1335, %v1334
      %v1360 = vpack.c.bf16 %v1337, %v1336
      %v1361 = vpack.c.bf16 %v1339, %v1338
      %v1362 = vpack.c.bf16 %v1341, %v1340
      %v1363 = vpack.c.bf16 %v1343, %v1342
      %v1364 = vpack.c.bf16 %v1345, %v1344
      %v1365 = vpack.c.bf16 %v1347, %v1346
      %v1366 = vpack.c.bf16 %v1349, %v1348
      %v1367 = vpack.c.bf16 %v1351, %v1350
      %s1368 = scalar_lea.vmem %s3, 192
      %v1369 = vld [vmem:[%s1368] sm:$0xf]
      %v1370 = vld [vmem:[%s1368 + $0x4] sm:$0xf]
      %v1371 = vld [vmem:[%s1368 + $0x8] sm:$0xf]
      %v1372 = vld [vmem:[%s1368 + $0xc] sm:$0xf]
      %v1373 = vld [vmem:[%s1368 + $0x10] sm:$0xf]
      %v1374 = vld [vmem:[%s1368 + $0x14] sm:$0xf]
      %v1375 = vld [vmem:[%s1368 + $0x18] sm:$0xf]
      %v1376 = vld [vmem:[%s1368 + $0x1c] sm:$0xf]
      %v1377 = vld [vmem:[%s1368 + $0x20] sm:$0xf]
      %v1378 = vld [vmem:[%s1368 + $0x24] sm:$0xf]
      %v1379 = vld [vmem:[%s1368 + $0x28] sm:$0xf]
      %v1380 = vld [vmem:[%s1368 + $0x2c] sm:$0xf]
      %v1381 = vld [vmem:[%s1368 + $0x30] sm:$0xf]
      %v1382 = vld [vmem:[%s1368 + $0x34] sm:$0xf]
      %v1383 = vld [vmem:[%s1368 + $0x38] sm:$0xf]
      %v1384 = vld [vmem:[%s1368 + $0x3c] sm:$0xf]
      %v1401 = vunpack.c.l.b16 %v1369
      %v1402 = vunpack.c.l.b16 %v1370
      %v1403 = vunpack.c.l.b16 %v1371
      %v1404 = vunpack.c.l.b16 %v1372
      %v1405 = vunpack.c.l.b16 %v1373
      %v1406 = vunpack.c.l.b16 %v1374
      %v1407 = vunpack.c.l.b16 %v1375
      %v1408 = vunpack.c.l.b16 %v1376
      %v1409 = vunpack.c.l.b16 %v1377
      %v1410 = vunpack.c.l.b16 %v1378
      %v1411 = vunpack.c.l.b16 %v1379
      %v1412 = vunpack.c.l.b16 %v1380
      %v1413 = vunpack.c.l.b16 %v1381
      %v1414 = vunpack.c.l.b16 %v1382
      %v1415 = vunpack.c.l.b16 %v1383
      %v1416 = vunpack.c.l.b16 %v1384
      %v1417 = vpack.c.b16 %v1402, %v1401
      %v1418 = vpack.c.b16 %v1404, %v1403
      %v1419 = vpack.c.b16 %v1406, %v1405
      %v1420 = vpack.c.b16 %v1408, %v1407
      %v1421 = vpack.c.b16 %v1410, %v1409
      %v1422 = vpack.c.b16 %v1412, %v1411
      %v1423 = vpack.c.b16 %v1414, %v1413
      %v1424 = vpack.c.b16 %v1416, %v1415
      %1433 = vmatprep.subr.bf16.mxu0 0
      %1434 = vmatpush1.bf16.msra.mxu0 %v1417
      %1435 = vmatprep.subr.bf16.mxu0 0
      %1436 = vmatpush1.bf16.msra.mxu0 %v1418
      %1437 = vmatprep.subr.bf16.mxu0 0
      %1438 = vmatpush1.bf16.msra.mxu0 %v1419
      %1439 = vmatprep.subr.bf16.mxu0 0
      %1440 = vmatpush1.bf16.msra.mxu0 %v1420
      %1441 = vmatprep.subr.bf16.mxu0 0
      %1442 = vmatpush1.bf16.msra.mxu0 %v1421
      %1443 = vmatprep.subr.bf16.mxu0 0
      %1444 = vmatpush1.bf16.msra.mxu0 %v1422
      %1445 = vmatprep.subr.bf16.mxu0 0
      %1446 = vmatpush1.bf16.msra.mxu0 %v1423
      %1447 = vmatprep.subr.bf16.mxu0 0
      %1448 = vmatpush1.bf16.msra.mxu0 %v1424
      %1449 = vmatprep.subr.bf16.mxu0 0
      %1450 = vmatpush1.bf16.msra.mxu0 0
      %1451 = vmatprep.subr.bf16.mxu0 0
      %1452 = vmatpush1.bf16.msra.mxu0 0
      %1453 = vmatprep.subr.bf16.mxu0 0
      %1454 = vmatpush1.bf16.msra.mxu0 0
      %1455 = vmatprep.subr.bf16.mxu0 0
      %1456 = vmatpush1.bf16.msra.mxu0 0
      %1457 = vmatprep.subr.bf16.mxu0 0
      %1458 = vmatpush1.bf16.msra.mxu0 0
      %1459 = vmatprep.subr.bf16.mxu0 0
      %1460 = vmatpush1.bf16.msra.mxu0 0
      %1461 = vmatprep.subr.bf16.mxu0 0
      %1462 = vmatpush1.bf16.msra.mxu0 0
      %1463 = vmatprep.subr.bf16.mxu0 0
      %1464 = vmatpush1.bf16.msra.mxu0 0
      %1465 = vmatprep.mubr.bf16.mxu0 0
      %1466 = vmatmul.mubr.bf16.gmra.mrb[0].mxu0 %v1352
      %v1467 = vpop.f32.mrb[0].mxu0
      %v1468 = vadd.f32 0.0, %v1467
      %v1469 = vpop.f32.mrb[0].mxu0
      %v1470 = vpop.f32.mrb[0].mxu0
      %v1471 = vadd.f32 0.0, %v1470
      %v1472 = vpop.f32.mrb[0].mxu0
      %1473 = vmatprep.mubr.bf16.mxu0 0
      %1474 = vmatmul.mubr.bf16.gmra.mrb[0].mxu0 %v1353
      %v1475 = vpop.f32.mrb[0].mxu0
      %v1476 = vadd.f32 0.0, %v1475
      %v1477 = vpop.f32.mrb[0].mxu0
      %v1478 = vpop.f32.mrb[0].mxu0
      %v1479 = vadd.f32 0.0, %v1478
      %v1480 = vpop.f32.mrb[0].mxu0
      %1481 = vmatprep.mubr.bf16.mxu0 0
      %1482 = vmatmul.mubr.bf16.gmra.mrb[0].mxu0 %v1354
      %v1483 = vpop.f32.mrb[0].mxu0
      %v1484 = vadd.f32 0.0, %v1483
      %v1485 = vpop.f32.mrb[0].mxu0
      %v1486 = vpop.f32.mrb[0].mxu0
      %v1487 = vadd.f32 0.0, %v1486
      %v1488 = vpop.f32.mrb[0].mxu0
      %1489 = vmatprep.mubr.bf16.mxu0 0
      %1490 = vmatmul.mubr.bf16.gmra.mrb[0].mxu0 %v1355
      %v1491 = vpop.f32.mrb[0].mxu0
      %v1492 = vadd.f32 0.0, %v1491
      %v1493 = vpop.f32.mrb[0].mxu0
      %v1494 = vpop.f32.mrb[0].mxu0
      %v1495 = vadd.f32 0.0, %v1494
      %v1496 = vpop.f32.mrb[0].mxu0
      %1497 = vmatprep.mubr.bf16.mxu0 0
      %1498 = vmatmul.mubr.bf16.gmra.mrb[0].mxu0 %v1356
      %v1499 = vpop.f32.mrb[0].mxu0
      %v1500 = vadd.f32 0.0, %v1499
      %v1501 = vpop.f32.mrb[0].mxu0
      %v1502 = vpop.f32.mrb[0].mxu0
      %v1503 = vadd.f32 0.0, %v1502
      %v1504 = vpop.f32.mrb[0].mxu0
      %1505 = vmatprep.mubr.bf16.mxu0 0
      %1506 = vmatmul.mubr.bf16.gmra.mrb[0].mxu0 %v1357
      %v1507 = vpop.f32.mrb[0].mxu0
      %v1508 = vadd.f32 0.0, %v1507
      %v1509 = vpop.f32.mrb[0].mxu0
      %v1510 = vpop.f32.mrb[0].mxu0
      %v1511 = vadd.f32 0.0, %v1510
      %v1512 = vpop.f32.mrb[0].mxu0
      %1513 = vmatprep.mubr.bf16.mxu0 0
      %1514 = vmatmul.mubr.bf16.gmra.mrb[0].mxu0 %v1358
      %v1515 = vpop.f32.mrb[0].mxu0
      %v1516 = vadd.f32 0.0, %v1515
      %v1517 = vpop.f32.mrb[0].mxu0
      %v1518 = vpop.f32.mrb[0].mxu0
      %v1519 = vadd.f32 0.0, %v1518
      %v1520 = vpop.f32.mrb[0].mxu0
      %1521 = vmatprep.mubr.bf16.mxu0 0
      %1522 = vmatmul.mubr.bf16.gmra.mrb[0].mxu0 %v1359
      %v1523 = vpop.f32.mrb[0].mxu0
      %v1524 = vadd.f32 0.0, %v1523
      %v1525 = vpop.f32.mrb[0].mxu0
      %v1526 = vpop.f32.mrb[0].mxu0
      %v1527 = vadd.f32 0.0, %v1526
      %v1528 = vpop.f32.mrb[0].mxu0
      %1529 = vmatprep.mubr.bf16.mxu0 0
      %1530 = vmatmul.mubr.bf16.gmra.mrb[0].mxu0 %v1360
      %v1531 = vpop.f32.mrb[0].mxu0
      %v1532 = vadd.f32 0.0, %v1531
      %v1533 = vpop.f32.mrb[0].mxu0
      %v1534 = vpop.f32.mrb[0].mxu0
      %v1535 = vadd.f32 0.0, %v1534
      %v1536 = vpop.f32.mrb[0].mxu0
      %1537 = vmatprep.mubr.bf16.mxu0 0
      %1538 = vmatmul.mubr.bf16.gmra.mrb[0].mxu0 %v1361
      %v1539 = vpop.f32.mrb[0].mxu0
      %v1540 = vadd.f32 0.0, %v1539
      %v1541 = vpop.f32.mrb[0].mxu0
      %v1542 = vpop.f32.mrb[0].mxu0
      %v1543 = vadd.f32 0.0, %v1542
      %v1544 = vpop.f32.mrb[0].mxu0
      %1545 = vmatprep.mubr.bf16.mxu0 0
      %1546 = vmatmul.mubr.bf16.gmra.mrb[0].mxu0 %v1362
      %v1547 = vpop.f32.mrb[0].mxu0
      %v1548 = vadd.f32 0.0, %v1547
      %v1549 = vpop.f32.mrb[0].mxu0
      %v1550 = vpop.f32.mrb[0].mxu0
      %v1551 = vadd.f32 0.0, %v1550
      %v1552 = vpop.f32.mrb[0].mxu0
      %1553 = vmatprep.mubr.bf16.mxu0 0
      %1554 = vmatmul.mubr.bf16.gmra.mrb[0].mxu0 %v1363
      %v1555 = vpop.f32.mrb[0].mxu0
      %v1556 = vadd.f32 0.0, %v1555
      %v1557 = vpop.f32.mrb[0].mxu0
      %v1558 = vpop.f32.mrb[0].mxu0
      %v1559 = vadd.f32 0.0, %v1558
      %v1560 = vpop.f32.mrb[0].mxu0
      %1561 = vmatprep.mubr.bf16.mxu0 0
      %1562 = vmatmul.mubr.bf16.gmra.mrb[0].mxu0 %v1364
      %v1563 = vpop.f32.mrb[0].mxu0
      %v1564 = vadd.f32 0.0, %v1563
      %v1565 = vpop.f32.mrb[0].mxu0
      %v1566 = vpop.f32.mrb[0].mxu0
      %v1567 = vadd.f32 0.0, %v1566
      %v1568 = vpop.f32.mrb[0].mxu0
      %1569 = vmatprep.mubr.bf16.mxu0 0
      %1570 = vmatmul.mubr.bf16.gmra.mrb[0].mxu0 %v1365
      %v1571 = vpop.f32.mrb[0].mxu0
      %v1572 = vadd.f32 0.0, %v1571
      %v1573 = vpop.f32.mrb[0].mxu0
      %v1574 = vpop.f32.mrb[0].mxu0
      %v1575 = vadd.f32 0.0, %v1574
      %v1576 = vpop.f32.mrb[0].mxu0
      %1577 = vmatprep.mubr.bf16.mxu0 0
      %1578 = vmatmul.mubr.bf16.gmra.mrb[0].mxu0 %v1366
      %v1579 = vpop.f32.mrb[0].mxu0
      %v1580 = vadd.f32 0.0, %v1579
      %v1581 = vpop.f32.mrb[0].mxu0
      %v1582 = vpop.f32.mrb[0].mxu0
      %v1583 = vadd.f32 0.0, %v1582
      %v1584 = vpop.f32.mrb[0].mxu0
      %1585 = vmatprep.mubr.bf16.mxu0 0
      %1586 = vmatmul.mubr.bf16.gmra.mrb[0].mxu0 %v1367
      %v1587 = vpop.f32.mrb[0].mxu0
      %v1588 = vadd.f32 0.0, %v1587
      %v1589 = vpop.f32.mrb[0].mxu0
      %v1590 = vpop.f32.mrb[0].mxu0
      %v1591 = vadd.f32 0.0, %v1590
      %v1592 = vpop.f32.mrb[0].mxu0
      %1593 = vdwg.mxu0
      %v1594 = vadd.f32 %v1288, %v1468
      %v1595 = vadd.f32 %v1289, %v1471
      %v1596 = vadd.f32 %v1290, %v1476
      %v1597 = vadd.f32 %v1291, %v1479
      %v1598 = vadd.f32 %v1292, %v1484
      %v1599 = vadd.f32 %v1293, %v1487
      %v1600 = vadd.f32 %v1294, %v1492
      %v1601 = vadd.f32 %v1295, %v1495
      %v1602 = vadd.f32 %v1296, %v1500
      %v1603 = vadd.f32 %v1297, %v1503
      %v1604 = vadd.f32 %v1298, %v1508
      %v1605 = vadd.f32 %v1299, %v1511
      %v1606 = vadd.f32 %v1300, %v1516
      %v1607 = vadd.f32 %v1301, %v1519
      %v1608 = vadd.f32 %v1302, %v1524
      %v1609 = vadd.f32 %v1303, %v1527
      %v1610 = vadd.f32 %v1304, %v1532
      %v1611 = vadd.f32 %v1305, %v1535
      %v1612 = vadd.f32 %v1306, %v1540
      %v1613 = vadd.f32 %v1307, %v1543
      %v1614 = vadd.f32 %v1308, %v1548
      %v1615 = vadd.f32 %v1309, %v1551
      %v1616 = vadd.f32 %v1310, %v1556
      %v1617 = vadd.f32 %v1311, %v1559
      %v1618 = vadd.f32 %v1312, %v1564
      %v1619 = vadd.f32 %v1313, %v1567
      %v1620 = vadd.f32 %v1314, %v1572
      %v1621 = vadd.f32 %v1315, %v1575
      %v1622 = vadd.f32 %v1316, %v1580
      %v1623 = vadd.f32 %v1317, %v1583
      %v1624 = vadd.f32 %v1318, %v1588
      %v1625 = vadd.f32 %v1319, %v1591
      %v1626 = vld [vmem:[%s434 + $0x1] sm:$0xff]
      %v1627 = vld [vmem:[%s434 + $0x9] sm:$0xff]
      %v1628 = vld [vmem:[%s434 + $0x19] sm:$0xff]
      %v1629 = vld [vmem:[%s434 + $0x21] sm:$0xff]
      %v1630 = vld [vmem:[%s434 + $0x31] sm:$0xff]
      %v1631 = vld [vmem:[%s434 + $0x39] sm:$0xff]
      %v1632 = vld [vmem:[%s434 + $0x49] sm:$0xff]
      %v1633 = vld [vmem:[%s434 + $0x51] sm:$0xff]
      %v1634 = vld [vmem:[%s434 + $0x61] sm:$0xff]
      %v1635 = vld [vmem:[%s434 + $0x69] sm:$0xff]
      %v1636 = vld [vmem:[%s434 + $0x79] sm:$0xff]
      %v1637 = vld [vmem:[%s434 + $0x81] sm:$0xff]
      %v1638 = vld [vmem:[%s434 + $0x91] sm:$0xff]
      %v1639 = vld [vmem:[%s434 + $0x99] sm:$0xff]
      %v1640 = vld [vmem:[%s434 + $0xa9] sm:$0xff]
      %v1641 = vld [vmem:[%s434 + $0xb1] sm:$0xff]
      %v1642 = vld [vmem:[%s434 + $0xc1] sm:$0xff]
      %v1643 = vld [vmem:[%s434 + $0xc9] sm:$0xff]
      %v1644 = vld [vmem:[%s434 + $0xd9] sm:$0xff]
      %v1645 = vld [vmem:[%s434 + $0xe1] sm:$0xff]
      %v1646 = vld [vmem:[%s434 + $0xf1] sm:$0xff]
      %v1647 = vld [vmem:[%s434 + $0xf9] sm:$0xff]
      %v1648 = vld [vmem:[%s434 + $0x109] sm:$0xff]
      %v1649 = vld [vmem:[%s434 + $0x111] sm:$0xff]
      %v1650 = vld [vmem:[%s434 + $0x121] sm:$0xff]
      %v1651 = vld [vmem:[%s434 + $0x129] sm:$0xff]
      %v1652 = vld [vmem:[%s434 + $0x139] sm:$0xff]
      %v1653 = vld [vmem:[%s434 + $0x141] sm:$0xff]
      %v1654 = vld [vmem:[%s434 + $0x151] sm:$0xff]
      %v1655 = vld [vmem:[%s434 + $0x159] sm:$0xff]
      %v1656 = vld [vmem:[%s434 + $0x169] sm:$0xff]
      %v1657 = vld [vmem:[%s434 + $0x171] sm:$0xff]
      %v1658 = vpack.c.bf16 %v1627, %v1626
      %v1659 = vpack.c.bf16 %v1629, %v1628
      %v1660 = vpack.c.bf16 %v1631, %v1630
      %v1661 = vpack.c.bf16 %v1633, %v1632
      %v1662 = vpack.c.bf16 %v1635, %v1634
      %v1663 = vpack.c.bf16 %v1637, %v1636
      %v1664 = vpack.c.bf16 %v1639, %v1638
      %v1665 = vpack.c.bf16 %v1641, %v1640
      %v1666 = vpack.c.bf16 %v1643, %v1642
      %v1667 = vpack.c.bf16 %v1645, %v1644
      %v1668 = vpack.c.bf16 %v1647, %v1646
      %v1669 = vpack.c.bf16 %v1649, %v1648
      %v1670 = vpack.c.bf16 %v1651, %v1650
      %v1671 = vpack.c.bf16 %v1653, %v1652
      %v1672 = vpack.c.bf16 %v1655, %v1654
      %v1673 = vpack.c.bf16 %v1657, %v1656
      %s1674 = scalar_lea.vmem %s3, 256
      %v1675 = vld [vmem:[%s1674] sm:$0xf]
      %v1676 = vld [vmem:[%s1674 + $0x4] sm:$0xf]
      %v1677 = vld [vmem:[%s1674 + $0x8] sm:$0xf]
      %v1678 = vld [vmem:[%s1674 + $0xc] sm:$0xf]
      %v1679 = vld [vmem:[%s1674 + $0x10] sm:$0xf]
      %v1680 = vld [vmem:[%s1674 + $0x14] sm:$0xf]
      %v1681 = vld [vmem:[%s1674 + $0x18] sm:$0xf]
      %v1682 = vld [vmem:[%s1674 + $0x1c] sm:$0xf]
      %v1683 = vld [vmem:[%s1674 + $0x20] sm:$0xf]
      %v1684 = vld [vmem:[%s1674 + $0x24] sm:$0xf]
      %v1685 = vld [vmem:[%s1674 + $0x28] sm:$0xf]
      %v1686 = vld [vmem:[%s1674 + $0x2c] sm:$0xf]
      %v1687 = vld [vmem:[%s1674 + $0x30] sm:$0xf]
      %v1688 = vld [vmem:[%s1674 + $0x34] sm:$0xf]
      %v1689 = vld [vmem:[%s1674 + $0x38] sm:$0xf]
      %v1690 = vld [vmem:[%s1674 + $0x3c] sm:$0xf]
      %v1707 = vunpack.c.l.b16 %v1675
      %v1708 = vunpack.c.l.b16 %v1676
      %v1709 = vunpack.c.l.b16 %v1677
      %v1710 = vunpack.c.l.b16 %v1678
      %v1711 = vunpack.c.l.b16 %v1679
      %v1712 = vunpack.c.l.b16 %v1680
      %v1713 = vunpack.c.l.b16 %v1681
      %v1714 = vunpack.c.l.b16 %v1682
      %v1715 = vunpack.c.l.b16 %v1683
      %v1716 = vunpack.c.l.b16 %v1684
      %v1717 = vunpack.c.l.b16 %v1685
      %v1718 = vunpack.c.l.b16 %v1686
      %v1719 = vunpack.c.l.b16 %v1687
      %v1720 = vunpack.c.l.b16 %v1688
      %v1721 = vunpack.c.l.b16 %v1689
      %v1722 = vunpack.c.l.b16 %v1690
      %v1723 = vpack.c.b16 %v1708, %v1707
      %v1724 = vpack.c.b16 %v1710, %v1709
      %v1725 = vpack.c.b16 %v1712, %v1711
      %v1726 = vpack.c.b16 %v1714, %v1713
      %v1727 = vpack.c.b16 %v1716, %v1715
      %v1728 = vpack.c.b16 %v1718, %v1717
      %v1729 = vpack.c.b16 %v1720, %v1719
      %v1730 = vpack.c.b16 %v1722, %v1721
      %1739 = vmatprep.subr.bf16.mxu0 0
      %1740 = vmatpush1.bf16.msra.mxu0 %v1723
      %1741 = vmatprep.subr.bf16.mxu0 0
      %1742 = vmatpush1.bf16.msra.mxu0 %v1724
      %1743 = vmatprep.subr.bf16.mxu0 0
      %1744 = vmatpush1.bf16.msra.mxu0 %v1725
      %1745 = vmatprep.subr.bf16.mxu0 0
      %1746 = vmatpush1.bf16.msra.mxu0 %v1726
      %1747 = vmatprep.subr.bf16.mxu0 0
      %1748 = vmatpush1.bf16.msra.mxu0 %v1727
      %1749 = vmatprep.subr.bf16.mxu0 0
      %1750 = vmatpush1.bf16.msra.mxu0 %v1728
      %1751 = vmatprep.subr.bf16.mxu0 0
      %1752 = vmatpush1.bf16.msra.mxu0 %v1729
      %1753 = vmatprep.subr.bf16.mxu0 0
      %1754 = vmatpush1.bf16.msra.mxu0 %v1730
      %1755 = vmatprep.subr.bf16.mxu0 0
      %1756 = vmatpush1.bf16.msra.mxu0 0
      %1757 = vmatprep.subr.bf16.mxu0 0
      %1758 = vmatpush1.bf16.msra.mxu0 0
      %1759 = vmatprep.subr.bf16.mxu0 0
      %1760 = vmatpush1.bf16.msra.mxu0 0
      %1761 = vmatprep.subr.bf16.mxu0 0
      %1762 = vmatpush1.bf16.msra.mxu0 0
      %1763 = vmatprep.subr.bf16.mxu0 0
      %1764 = vmatpush1.bf16.msra.mxu0 0
      %1765 = vmatprep.subr.bf16.mxu0 0
      %1766 = vmatpush1.bf16.msra.mxu0 0
      %1767 = vmatprep.subr.bf16.mxu0 0
      %1768 = vmatpush1.bf16.msra.mxu0 0
      %1769 = vmatprep.subr.bf16.mxu0 0
      %1770 = vmatpush1.bf16.msra.mxu0 0
      %1771 = vmatprep.mubr.bf16.mxu0 0
      %1772 = vmatmul.mubr.bf16.gmra.mrb[0].mxu0 %v1658
      %v1773 = vpop.f32.mrb[0].mxu0
      %v1774 = vadd.f32 0.0, %v1773
      %v1775 = vpop.f32.mrb[0].mxu0
      %v1776 = vpop.f32.mrb[0].mxu0
      %v1777 = vadd.f32 0.0, %v1776
      %v1778 = vpop.f32.mrb[0].mxu0
      %1779 = vmatprep.mubr.bf16.mxu0 0
      %1780 = vmatmul.mubr.bf16.gmra.mrb[0].mxu0 %v1659
      %v1781 = vpop.f32.mrb[0].mxu0
      %v1782 = vadd.f32 0.0, %v1781
      %v1783 = vpop.f32.mrb[0].mxu0
      %v1784 = vpop.f32.mrb[0].mxu0
      %v1785 = vadd.f32 0.0, %v1784
      %v1786 = vpop.f32.mrb[0].mxu0
      %1787 = vmatprep.mubr.bf16.mxu0 0
      %1788 = vmatmul.mubr.bf16.gmra.mrb[0].mxu0 %v1660
      %v1789 = vpop.f32.mrb[0].mxu0
      %v1790 = vadd.f32 0.0, %v1789
      %v1791 = vpop.f32.mrb[0].mxu0
      %v1792 = vpop.f32.mrb[0].mxu0
      %v1793 = vadd.f32 0.0, %v1792
      %v1794 = vpop.f32.mrb[0].mxu0
      %1795 = vmatprep.mubr.bf16.mxu0 0
      %1796 = vmatmul.mubr.bf16.gmra.mrb[0].mxu0 %v1661
      %v1797 = vpop.f32.mrb[0].mxu0
      %v1798 = vadd.f32 0.0, %v1797
      %v1799 = vpop.f32.mrb[0].mxu0
      %v1800 = vpop.f32.mrb[0].mxu0
      %v1801 = vadd.f32 0.0, %v1800
      %v1802 = vpop.f32.mrb[0].mxu0
      %1803 = vmatprep.mubr.bf16.mxu0 0
      %1804 = vmatmul.mubr.bf16.gmra.mrb[0].mxu0 %v1662
      %v1805 = vpop.f32.mrb[0].mxu0
      %v1806 = vadd.f32 0.0, %v1805
      %v1807 = vpop.f32.mrb[0].mxu0
      %v1808 = vpop.f32.mrb[0].mxu0
      %v1809 = vadd.f32 0.0, %v1808
      %v1810 = vpop.f32.mrb[0].mxu0
      %1811 = vmatprep.mubr.bf16.mxu0 0
      %1812 = vmatmul.mubr.bf16.gmra.mrb[0].mxu0 %v1663
      %v1813 = vpop.f32.mrb[0].mxu0
      %v1814 = vadd.f32 0.0, %v1813
      %v1815 = vpop.f32.mrb[0].mxu0
      %v1816 = vpop.f32.mrb[0].mxu0
      %v1817 = vadd.f32 0.0, %v1816
      %v1818 = vpop.f32.mrb[0].mxu0
      %1819 = vmatprep.mubr.bf16.mxu0 0
      %1820 = vmatmul.mubr.bf16.gmra.mrb[0].mxu0 %v1664
      %v1821 = vpop.f32.mrb[0].mxu0
      %v1822 = vadd.f32 0.0, %v1821
      %v1823 = vpop.f32.mrb[0].mxu0
      %v1824 = vpop.f32.mrb[0].mxu0
      %v1825 = vadd.f32 0.0, %v1824
      %v1826 = vpop.f32.mrb[0].mxu0
      %1827 = vmatprep.mubr.bf16.mxu0 0
      %1828 = vmatmul.mubr.bf16.gmra.mrb[0].mxu0 %v1665
      %v1829 = vpop.f32.mrb[0].mxu0
      %v1830 = vadd.f32 0.0, %v1829
      %v1831 = vpop.f32.mrb[0].mxu0
      %v1832 = vpop.f32.mrb[0].mxu0
      %v1833 = vadd.f32 0.0, %v1832
      %v1834 = vpop.f32.mrb[0].mxu0
      %1835 = vmatprep.mubr.bf16.mxu0 0
      %1836 = vmatmul.mubr.bf16.gmra.mrb[0].mxu0 %v1666
      %v1837 = vpop.f32.mrb[0].mxu0
      %v1838 = vadd.f32 0.0, %v1837
      %v1839 = vpop.f32.mrb[0].mxu0
      %v1840 = vpop.f32.mrb[0].mxu0
      %v1841 = vadd.f32 0.0, %v1840
      %v1842 = vpop.f32.mrb[0].mxu0
      %1843 = vmatprep.mubr.bf16.mxu0 0
      %1844 = vmatmul.mubr.bf16.gmra.mrb[0].mxu0 %v1667
      %v1845 = vpop.f32.mrb[0].mxu0
      %v1846 = vadd.f32 0.0, %v1845
      %v1847 = vpop.f32.mrb[0].mxu0
      %v1848 = vpop.f32.mrb[0].mxu0
      %v1849 = vadd.f32 0.0, %v1848
      %v1850 = vpop.f32.mrb[0].mxu0
      %1851 = vmatprep.mubr.bf16.mxu0 0
      %1852 = vmatmul.mubr.bf16.gmra.mrb[0].mxu0 %v1668
      %v1853 = vpop.f32.mrb[0].mxu0
      %v1854 = vadd.f32 0.0, %v1853
      %v1855 = vpop.f32.mrb[0].mxu0
      %v1856 = vpop.f32.mrb[0].mxu0
      %v1857 = vadd.f32 0.0, %v1856
      %v1858 = vpop.f32.mrb[0].mxu0
      %1859 = vmatprep.mubr.bf16.mxu0 0
      %1860 = vmatmul.mubr.bf16.gmra.mrb[0].mxu0 %v1669
      %v1861 = vpop.f32.mrb[0].mxu0
      %v1862 = vadd.f32 0.0, %v1861
      %v1863 = vpop.f32.mrb[0].mxu0
      %v1864 = vpop.f32.mrb[0].mxu0
      %v1865 = vadd.f32 0.0, %v1864
      %v1866 = vpop.f32.mrb[0].mxu0
      %1867 = vmatprep.mubr.bf16.mxu0 0
      %1868 = vmatmul.mubr.bf16.gmra.mrb[0].mxu0 %v1670
      %v1869 = vpop.f32.mrb[0].mxu0
      %v1870 = vadd.f32 0.0, %v1869
      %v1871 = vpop.f32.mrb[0].mxu0
      %v1872 = vpop.f32.mrb[0].mxu0
      %v1873 = vadd.f32 0.0, %v1872
      %v1874 = vpop.f32.mrb[0].mxu0
      %1875 = vmatprep.mubr.bf16.mxu0 0
      %1876 = vmatmul.mubr.bf16.gmra.mrb[0].mxu0 %v1671
      %v1877 = vpop.f32.mrb[0].mxu0
      %v1878 = vadd.f32 0.0, %v1877
      %v1879 = vpop.f32.mrb[0].mxu0
      %v1880 = vpop.f32.mrb[0].mxu0
      %v1881 = vadd.f32 0.0, %v1880
      %v1882 = vpop.f32.mrb[0].mxu0
      %1883 = vmatprep.mubr.bf16.mxu0 0
      %1884 = vmatmul.mubr.bf16.gmra.mrb[0].mxu0 %v1672
      %v1885 = vpop.f32.mrb[0].mxu0
      %v1886 = vadd.f32 0.0, %v1885
      %v1887 = vpop.f32.mrb[0].mxu0
      %v1888 = vpop.f32.mrb[0].mxu0
      %v1889 = vadd.f32 0.0, %v1888
      %v1890 = vpop.f32.mrb[0].mxu0
      %1891 = vmatprep.mubr.bf16.mxu0 0
      %1892 = vmatmul.mubr.bf16.gmra.mrb[0].mxu0 %v1673
      %v1893 = vpop.f32.mrb[0].mxu0
      %v1894 = vadd.f32 0.0, %v1893
      %v1895 = vpop.f32.mrb[0].mxu0
      %v1896 = vpop.f32.mrb[0].mxu0
      %v1897 = vadd.f32 0.0, %v1896
      %v1898 = vpop.f32.mrb[0].mxu0
      %1899 = vdwg.mxu0
      %v1900 = vadd.f32 %v1594, %v1774
      %v1901 = vadd.f32 %v1595, %v1777
      %v1902 = vadd.f32 %v1596, %v1782
      %v1903 = vadd.f32 %v1597, %v1785
      %v1904 = vadd.f32 %v1598, %v1790
      %v1905 = vadd.f32 %v1599, %v1793
      %v1906 = vadd.f32 %v1600, %v1798
      %v1907 = vadd.f32 %v1601, %v1801
      %v1908 = vadd.f32 %v1602, %v1806
      %v1909 = vadd.f32 %v1603, %v1809
      %v1910 = vadd.f32 %v1604, %v1814
      %v1911 = vadd.f32 %v1605, %v1817
      %v1912 = vadd.f32 %v1606, %v1822
      %v1913 = vadd.f32 %v1607, %v1825
      %v1914 = vadd.f32 %v1608, %v1830
      %v1915 = vadd.f32 %v1609, %v1833
      %v1916 = vadd.f32 %v1610, %v1838
      %v1917 = vadd.f32 %v1611, %v1841
      %v1918 = vadd.f32 %v1612, %v1846
      %v1919 = vadd.f32 %v1613, %v1849
      %v1920 = vadd.f32 %v1614, %v1854
      %v1921 = vadd.f32 %v1615, %v1857
      %v1922 = vadd.f32 %v1616, %v1862
      %v1923 = vadd.f32 %v1617, %v1865
      %v1924 = vadd.f32 %v1618, %v1870
      %v1925 = vadd.f32 %v1619, %v1873
      %v1926 = vadd.f32 %v1620, %v1878
      %v1927 = vadd.f32 %v1621, %v1881
      %v1928 = vadd.f32 %v1622, %v1886
      %v1929 = vadd.f32 %v1623, %v1889
      %v1930 = vadd.f32 %v1624, %v1894
      %v1931 = vadd.f32 %v1625, %v1897
      %v1932 = vld [vmem:[%s434 + $0x2] sm:$0xff]
      %v1933 = vld [vmem:[%s434 + $0xa] sm:$0xff]
      %v1934 = vld [vmem:[%s434 + $0x1a] sm:$0xff]
      %v1935 = vld [vmem:[%s434 + $0x22] sm:$0xff]
      %v1936 = vld [vmem:[%s434 + $0x32] sm:$0xff]
      %v1937 = vld [vmem:[%s434 + $0x3a] sm:$0xff]
      %v1938 = vld [vmem:[%s434 + $0x4a] sm:$0xff]
      %v1939 = vld [vmem:[%s434 + $0x52] sm:$0xff]
      %v1940 = vld [vmem:[%s434 + $0x62] sm:$0xff]
      %v1941 = vld [vmem:[%s434 + $0x6a] sm:$0xff]
      %v1942 = vld [vmem:[%s434 + $0x7a] sm:$0xff]
      %v1943 = vld [vmem:[%s434 + $0x82] sm:$0xff]
      %v1944 = vld [vmem:[%s434 + $0x92] sm:$0xff]
      %v1945 = vld [vmem:[%s434 + $0x9a] sm:$0xff]
      %v1946 = vld [vmem:[%s434 + $0xaa] sm:$0xff]
      %v1947 = vld [vmem:[%s434 + $0xb2] sm:$0xff]
      %v1948 = vld [vmem:[%s434 + $0xc2] sm:$0xff]
      %v1949 = vld [vmem:[%s434 + $0xca] sm:$0xff]
      %v1950 = vld [vmem:[%s434 + $0xda] sm:$0xff]
      %v1951 = vld [vmem:[%s434 + $0xe2] sm:$0xff]
      %v1952 = vld [vmem:[%s434 + $0xf2] sm:$0xff]
      %v1953 = vld [vmem:[%s434 + $0xfa] sm:$0xff]
      %v1954 = vld [vmem:[%s434 + $0x10a] sm:$0xff]
      %v1955 = vld [vmem:[%s434 + $0x112] sm:$0xff]
      %v1956 = vld [vmem:[%s434 + $0x122] sm:$0xff]
      %v1957 = vld [vmem:[%s434 + $0x12a] sm:$0xff]
      %v1958 = vld [vmem:[%s434 + $0x13a] sm:$0xff]
      %v1959 = vld [vmem:[%s434 + $0x142] sm:$0xff]
      %v1960 = vld [vmem:[%s434 + $0x152] sm:$0xff]
      %v1961 = vld [vmem:[%s434 + $0x15a] sm:$0xff]
      %v1962 = vld [vmem:[%s434 + $0x16a] sm:$0xff]
      %v1963 = vld [vmem:[%s434 + $0x172] sm:$0xff]
      %v1964 = vpack.c.bf16 %v1933, %v1932
      %v1965 = vpack.c.bf16 %v1935, %v1934
      %v1966 = vpack.c.bf16 %v1937, %v1936
      %v1967 = vpack.c.bf16 %v1939, %v1938
      %v1968 = vpack.c.bf16 %v1941, %v1940
      %v1969 = vpack.c.bf16 %v1943, %v1942
      %v1970 = vpack.c.bf16 %v1945, %v1944
      %v1971 = vpack.c.bf16 %v1947, %v1946
      %v1972 = vpack.c.bf16 %v1949, %v1948
      %v1973 = vpack.c.bf16 %v1951, %v1950
      %v1974 = vpack.c.bf16 %v1953, %v1952
      %v1975 = vpack.c.bf16 %v1955, %v1954
      %v1976 = vpack.c.bf16 %v1957, %v1956
      %v1977 = vpack.c.bf16 %v1959, %v1958
      %v1978 = vpack.c.bf16 %v1961, %v1960
      %v1979 = vpack.c.bf16 %v1963, %v1962
      %s1980 = scalar_lea.vmem %s3, 320
      %v1981 = vld [vmem:[%s1980] sm:$0xf]
      %v1982 = vld [vmem:[%s1980 + $0x4] sm:$0xf]
      %v1983 = vld [vmem:[%s1980 + $0x8] sm:$0xf]
      %v1984 = vld [vmem:[%s1980 + $0xc] sm:$0xf]
      %v1985 = vld [vmem:[%s1980 + $0x10] sm:$0xf]
      %v1986 = vld [vmem:[%s1980 + $0x14] sm:$0xf]
      %v1987 = vld [vmem:[%s1980 + $0x18] sm:$0xf]
      %v1988 = vld [vmem:[%s1980 + $0x1c] sm:$0xf]
      %v1989 = vld [vmem:[%s1980 + $0x20] sm:$0xf]
      %v1990 = vld [vmem:[%s1980 + $0x24] sm:$0xf]
      %v1991 = vld [vmem:[%s1980 + $0x28] sm:$0xf]
      %v1992 = vld [vmem:[%s1980 + $0x2c] sm:$0xf]
      %v1993 = vld [vmem:[%s1980 + $0x30] sm:$0xf]
      %v1994 = vld [vmem:[%s1980 + $0x34] sm:$0xf]
      %v1995 = vld [vmem:[%s1980 + $0x38] sm:$0xf]
      %v1996 = vld [vmem:[%s1980 + $0x3c] sm:$0xf]
      %v2013 = vunpack.c.l.b16 %v1981
      %v2014 = vunpack.c.l.b16 %v1982
      %v2015 = vunpack.c.l.b16 %v1983
      %v2016 = vunpack.c.l.b16 %v1984
      %v2017 = vunpack.c.l.b16 %v1985
      %v2018 = vunpack.c.l.b16 %v1986
      %v2019 = vunpack.c.l.b16 %v1987
      %v2020 = vunpack.c.l.b16 %v1988
      %v2021 = vunpack.c.l.b16 %v1989
      %v2022 = vunpack.c.l.b16 %v1990
      %v2023 = vunpack.c.l.b16 %v1991
      %v2024 = vunpack.c.l.b16 %v1992
      %v2025 = vunpack.c.l.b16 %v1993
      %v2026 = vunpack.c.l.b16 %v1994
      %v2027 = vunpack.c.l.b16 %v1995
      %v2028 = vunpack.c.l.b16 %v1996
      %v2029 = vpack.c.b16 %v2014, %v2013
      %v2030 = vpack.c.b16 %v2016, %v2015
      %v2031 = vpack.c.b16 %v2018, %v2017
      %v2032 = vpack.c.b16 %v2020, %v2019
      %v2033 = vpack.c.b16 %v2022, %v2021
      %v2034 = vpack.c.b16 %v2024, %v2023
      %v2035 = vpack.c.b16 %v2026, %v2025
      %v2036 = vpack.c.b16 %v2028, %v2027
      %2045 = vmatprep.subr.bf16.mxu0 0
      %2046 = vmatpush1.bf16.msra.mxu0 %v2029
      %2047 = vmatprep.subr.bf16.mxu0 0
      %2048 = vmatpush1.bf16.msra.mxu0 %v2030
      %2049 = vmatprep.subr.bf16.mxu0 0
      %2050 = vmatpush1.bf16.msra.mxu0 %v2031
      %2051 = vmatprep.subr.bf16.mxu0 0
      %2052 = vmatpush1.bf16.msra.mxu0 %v2032
      %2053 = vmatprep.subr.bf16.mxu0 0
      %2054 = vmatpush1.bf16.msra.mxu0 %v2033
      %2055 = vmatprep.subr.bf16.mxu0 0
      %2056 = vmatpush1.bf16.msra.mxu0 %v2034
      %2057 = vmatprep.subr.bf16.mxu0 0
      %2058 = vmatpush1.bf16.msra.mxu0 %v2035
      %2059 = vmatprep.subr.bf16.mxu0 0
      %2060 = vmatpush1.bf16.msra.mxu0 %v2036
      %2061 = vmatprep.subr.bf16.mxu0 0
      %2062 = vmatpush1.bf16.msra.mxu0 0
      %2063 = vmatprep.subr.bf16.mxu0 0
      %2064 = vmatpush1.bf16.msra.mxu0 0
      %2065 = vmatprep.subr.bf16.mxu0 0
      %2066 = vmatpush1.bf16.msra.mxu0 0
      %2067 = vmatprep.subr.bf16.mxu0 0
      %2068 = vmatpush1.bf16.msra.mxu0 0
      %2069 = vmatprep.subr.bf16.mxu0 0
      %2070 = vmatpush1.bf16.msra.mxu0 0
      %2071 = vmatprep.subr.bf16.mxu0 0
      %2072 = vmatpush1.bf16.msra.mxu0 0
      %2073 = vmatprep.subr.bf16.mxu0 0
      %2074 = vmatpush1.bf16.msra.mxu0 0
      %2075 = vmatprep.subr.bf16.mxu0 0
      %2076 = vmatpush1.bf16.msra.mxu0 0
      %2077 = vmatprep.mubr.bf16.mxu0 0
      %2078 = vmatmul.mubr.bf16.gmra.mrb[0].mxu0 %v1964
      %v2079 = vpop.f32.mrb[0].mxu0
      %v2080 = vadd.f32 0.0, %v2079
      %v2081 = vpop.f32.mrb[0].mxu0
      %v2082 = vpop.f32.mrb[0].mxu0
      %v2083 = vadd.f32 0.0, %v2082
      %v2084 = vpop.f32.mrb[0].mxu0
      %2085 = vmatprep.mubr.bf16.mxu0 0
      %2086 = vmatmul.mubr.bf16.gmra.mrb[0].mxu0 %v1965
      %v2087 = vpop.f32.mrb[0].mxu0
      %v2088 = vadd.f32 0.0, %v2087
      %v2089 = vpop.f32.mrb[0].mxu0
      %v2090 = vpop.f32.mrb[0].mxu0
      %v2091 = vadd.f32 0.0, %v2090
      %v2092 = vpop.f32.mrb[0].mxu0
      %2093 = vmatprep.mubr.bf16.mxu0 0
      %2094 = vmatmul.mubr.bf16.gmra.mrb[0].mxu0 %v1966
      %v2095 = vpop.f32.mrb[0].mxu0
      %v2096 = vadd.f32 0.0, %v2095
      %v2097 = vpop.f32.mrb[0].mxu0
      %v2098 = vpop.f32.mrb[0].mxu0
      %v2099 = vadd.f32 0.0, %v2098
      %v2100 = vpop.f32.mrb[0].mxu0
      %2101 = vmatprep.mubr.bf16.mxu0 0
      %2102 = vmatmul.mubr.bf16.gmra.mrb[0].mxu0 %v1967
      %v2103 = vpop.f32.mrb[0].mxu0
      %v2104 = vadd.f32 0.0, %v2103
      %v2105 = vpop.f32.mrb[0].mxu0
      %v2106 = vpop.f32.mrb[0].mxu0
      %v2107 = vadd.f32 0.0, %v2106
      %v2108 = vpop.f32.mrb[0].mxu0
      %2109 = vmatprep.mubr.bf16.mxu0 0
      %2110 = vmatmul.mubr.bf16.gmra.mrb[0].mxu0 %v1968
      %v2111 = vpop.f32.mrb[0].mxu0
      %v2112 = vadd.f32 0.0, %v2111
      %v2113 = vpop.f32.mrb[0].mxu0
      %v2114 = vpop.f32.mrb[0].mxu0
      %v2115 = vadd.f32 0.0, %v2114
      %v2116 = vpop.f32.mrb[0].mxu0
      %2117 = vmatprep.mubr.bf16.mxu0 0
      %2118 = vmatmul.mubr.bf16.gmra.mrb[0].mxu0 %v1969
      %v2119 = vpop.f32.mrb[0].mxu0
      %v2120 = vadd.f32 0.0, %v2119
      %v2121 = vpop.f32.mrb[0].mxu0
      %v2122 = vpop.f32.mrb[0].mxu0
      %v2123 = vadd.f32 0.0, %v2122
      %v2124 = vpop.f32.mrb[0].mxu0
      %2125 = vmatprep.mubr.bf16.mxu0 0
      %2126 = vmatmul.mubr.bf16.gmra.mrb[0].mxu0 %v1970
      %v2127 = vpop.f32.mrb[0].mxu0
      %v2128 = vadd.f32 0.0, %v2127
      %v2129 = vpop.f32.mrb[0].mxu0
      %v2130 = vpop.f32.mrb[0].mxu0
      %v2131 = vadd.f32 0.0, %v2130
      %v2132 = vpop.f32.mrb[0].mxu0
      %2133 = vmatprep.mubr.bf16.mxu0 0
      %2134 = vmatmul.mubr.bf16.gmra.mrb[0].mxu0 %v1971
      %v2135 = vpop.f32.mrb[0].mxu0
      %v2136 = vadd.f32 0.0, %v2135
      %v2137 = vpop.f32.mrb[0].mxu0
      %v2138 = vpop.f32.mrb[0].mxu0
      %v2139 = vadd.f32 0.0, %v2138
      %v2140 = vpop.f32.mrb[0].mxu0
      %2141 = vmatprep.mubr.bf16.mxu0 0
      %2142 = vmatmul.mubr.bf16.gmra.mrb[0].mxu0 %v1972
      %v2143 = vpop.f32.mrb[0].mxu0
      %v2144 = vadd.f32 0.0, %v2143
      %v2145 = vpop.f32.mrb[0].mxu0
      %v2146 = vpop.f32.mrb[0].mxu0
      %v2147 = vadd.f32 0.0, %v2146
      %v2148 = vpop.f32.mrb[0].mxu0
      %2149 = vmatprep.mubr.bf16.mxu0 0
      %2150 = vmatmul.mubr.bf16.gmra.mrb[0].mxu0 %v1973
      %v2151 = vpop.f32.mrb[0].mxu0
      %v2152 = vadd.f32 0.0, %v2151
      %v2153 = vpop.f32.mrb[0].mxu0
      %v2154 = vpop.f32.mrb[0].mxu0
      %v2155 = vadd.f32 0.0, %v2154
      %v2156 = vpop.f32.mrb[0].mxu0
      %2157 = vmatprep.mubr.bf16.mxu0 0
      %2158 = vmatmul.mubr.bf16.gmra.mrb[0].mxu0 %v1974
      %v2159 = vpop.f32.mrb[0].mxu0
      %v2160 = vadd.f32 0.0, %v2159
      %v2161 = vpop.f32.mrb[0].mxu0
      %v2162 = vpop.f32.mrb[0].mxu0
      %v2163 = vadd.f32 0.0, %v2162
      %v2164 = vpop.f32.mrb[0].mxu0
      %2165 = vmatprep.mubr.bf16.mxu0 0
      %2166 = vmatmul.mubr.bf16.gmra.mrb[0].mxu0 %v1975
      %v2167 = vpop.f32.mrb[0].mxu0
      %v2168 = vadd.f32 0.0, %v2167
      %v2169 = vpop.f32.mrb[0].mxu0
      %v2170 = vpop.f32.mrb[0].mxu0
      %v2171 = vadd.f32 0.0, %v2170
      %v2172 = vpop.f32.mrb[0].mxu0
      %2173 = vmatprep.mubr.bf16.mxu0 0
      %2174 = vmatmul.mubr.bf16.gmra.mrb[0].mxu0 %v1976
      %v2175 = vpop.f32.mrb[0].mxu0
      %v2176 = vadd.f32 0.0, %v2175
      %v2177 = vpop.f32.mrb[0].mxu0
      %v2178 = vpop.f32.mrb[0].mxu0
      %v2179 = vadd.f32 0.0, %v2178
      %v2180 = vpop.f32.mrb[0].mxu0
      %2181 = vmatprep.mubr.bf16.mxu0 0
      %2182 = vmatmul.mubr.bf16.gmra.mrb[0].mxu0 %v1977
      %v2183 = vpop.f32.mrb[0].mxu0
      %v2184 = vadd.f32 0.0, %v2183
      %v2185 = vpop.f32.mrb[0].mxu0
      %v2186 = vpop.f32.mrb[0].mxu0
      %v2187 = vadd.f32 0.0, %v2186
      %v2188 = vpop.f32.mrb[0].mxu0
      %2189 = vmatprep.mubr.bf16.mxu0 0
      %2190 = vmatmul.mubr.bf16.gmra.mrb[0].mxu0 %v1978
      %v2191 = vpop.f32.mrb[0].mxu0
      %v2192 = vadd.f32 0.0, %v2191
      %v2193 = vpop.f32.mrb[0].mxu0
      %v2194 = vpop.f32.mrb[0].mxu0
      %v2195 = vadd.f32 0.0, %v2194
      %v2196 = vpop.f32.mrb[0].mxu0
      %2197 = vmatprep.mubr.bf16.mxu0 0
      %2198 = vmatmul.mubr.bf16.gmra.mrb[0].mxu0 %v1979
      %v2199 = vpop.f32.mrb[0].mxu0
      %v2200 = vadd.f32 0.0, %v2199
      %v2201 = vpop.f32.mrb[0].mxu0
      %v2202 = vpop.f32.mrb[0].mxu0
      %v2203 = vadd.f32 0.0, %v2202
      %v2204 = vpop.f32.mrb[0].mxu0
      %2205 = vdwg.mxu0
      %v2206 = vadd.f32 %v1900, %v2080
      %v2207 = vadd.f32 %v1901, %v2083
      %v2208 = vadd.f32 %v1902, %v2088
      %v2209 = vadd.f32 %v1903, %v2091
      %v2210 = vadd.f32 %v1904, %v2096
      %v2211 = vadd.f32 %v1905, %v2099
      %v2212 = vadd.f32 %v1906, %v2104
      %v2213 = vadd.f32 %v1907, %v2107
      %v2214 = vadd.f32 %v1908, %v2112
      %v2215 = vadd.f32 %v1909, %v2115
      %v2216 = vadd.f32 %v1910, %v2120
      %v2217 = vadd.f32 %v1911, %v2123
      %v2218 = vadd.f32 %v1912, %v2128
      %v2219 = vadd.f32 %v1913, %v2131
      %v2220 = vadd.f32 %v1914, %v2136
      %v2221 = vadd.f32 %v1915, %v2139
      %v2222 = vadd.f32 %v1916, %v2144
      %v2223 = vadd.f32 %v1917, %v2147
      %v2224 = vadd.f32 %v1918, %v2152
      %v2225 = vadd.f32 %v1919, %v2155
      %v2226 = vadd.f32 %v1920, %v2160
      %v2227 = vadd.f32 %v1921, %v2163
      %v2228 = vadd.f32 %v1922, %v2168
      %v2229 = vadd.f32 %v1923, %v2171
      %v2230 = vadd.f32 %v1924, %v2176
      %v2231 = vadd.f32 %v1925, %v2179
      %v2232 = vadd.f32 %v1926, %v2184
      %v2233 = vadd.f32 %v1927, %v2187
      %v2234 = vadd.f32 %v1928, %v2192
      %v2235 = vadd.f32 %v1929, %v2195
      %v2236 = vadd.f32 %v1930, %v2200
      %v2237 = vadd.f32 %v1931, %v2203
      %s2238 = scalar_lea.vmem [#allocation2], 48
      %v2239 = vld [vmem:[%s2238] sm:$0xff]
      %v2240 = vld [vmem:[%s2238 + $0x8] sm:$0xff]
      %v2241 = vld [vmem:[%s2238 + $0x18] sm:$0xff]
      %v2242 = vld [vmem:[%s2238 + $0x20] sm:$0xff]
      %v2243 = vld [vmem:[%s2238 + $0x30] sm:$0xff]
      %v2244 = vld [vmem:[%s2238 + $0x38] sm:$0xff]
      %v2245 = vld [vmem:[%s2238 + $0x48] sm:$0xff]
      %v2246 = vld [vmem:[%s2238 + $0x50] sm:$0xff]
      %v2247 = vld [vmem:[%s2238 + $0x60] sm:$0xff]
      %v2248 = vld [vmem:[%s2238 + $0x68] sm:$0xff]
      %v2249 = vld [vmem:[%s2238 + $0x78] sm:$0xff]
      %v2250 = vld [vmem:[%s2238 + $0x80] sm:$0xff]
      %v2251 = vld [vmem:[%s2238 + $0x90] sm:$0xff]
      %v2252 = vld [vmem:[%s2238 + $0x98] sm:$0xff]
      %v2253 = vld [vmem:[%s2238 + $0xa8] sm:$0xff]
      %v2254 = vld [vmem:[%s2238 + $0xb0] sm:$0xff]
      %v2255 = vld [vmem:[%s2238 + $0xc0] sm:$0xff]
      %v2256 = vld [vmem:[%s2238 + $0xc8] sm:$0xff]
      %v2257 = vld [vmem:[%s2238 + $0xd8] sm:$0xff]
      %v2258 = vld [vmem:[%s2238 + $0xe0] sm:$0xff]
      %v2259 = vld [vmem:[%s2238 + $0xf0] sm:$0xff]
      %v2260 = vld [vmem:[%s2238 + $0xf8] sm:$0xff]
      %v2261 = vld [vmem:[%s2238 + $0x108] sm:$0xff]
      %v2262 = vld [vmem:[%s2238 + $0x110] sm:$0xff]
      %v2263 = vld [vmem:[%s2238 + $0x120] sm:$0xff]
      %v2264 = vld [vmem:[%s2238 + $0x128] sm:$0xff]
      %v2265 = vld [vmem:[%s2238 + $0x138] sm:$0xff]
      %v2266 = vld [vmem:[%s2238 + $0x140] sm:$0xff]
      %v2267 = vld [vmem:[%s2238 + $0x150] sm:$0xff]
      %v2268 = vld [vmem:[%s2238 + $0x158] sm:$0xff]
      %v2269 = vld [vmem:[%s2238 + $0x168] sm:$0xff]
      %v2270 = vld [vmem:[%s2238 + $0x170] sm:$0xff]
      %v2271 = vpack.c.bf16 %v2240, %v2239
      %v2272 = vpack.c.bf16 %v2242, %v2241
      %v2273 = vpack.c.bf16 %v2244, %v2243
      %v2274 = vpack.c.bf16 %v2246, %v2245
      %v2275 = vpack.c.bf16 %v2248, %v2247
      %v2276 = vpack.c.bf16 %v2250, %v2249
      %v2277 = vpack.c.bf16 %v2252, %v2251
      %v2278 = vpack.c.bf16 %v2254, %v2253
      %v2279 = vpack.c.bf16 %v2256, %v2255
      %v2280 = vpack.c.bf16 %v2258, %v2257
      %v2281 = vpack.c.bf16 %v2260, %v2259
      %v2282 = vpack.c.bf16 %v2262, %v2261
      %v2283 = vpack.c.bf16 %v2264, %v2263
      %v2284 = vpack.c.bf16 %v2266, %v2265
      %v2285 = vpack.c.bf16 %v2268, %v2267
      %v2286 = vpack.c.bf16 %v2270, %v2269
      %s2287 = scalar_lea.vmem %s3, 384
      %v2288 = vld [vmem:[%s2287] sm:$0xf]
      %v2289 = vld [vmem:[%s2287 + $0x4] sm:$0xf]
      %v2290 = vld [vmem:[%s2287 + $0x8] sm:$0xf]
      %v2291 = vld [vmem:[%s2287 + $0xc] sm:$0xf]
      %v2292 = vld [vmem:[%s2287 + $0x10] sm:$0xf]
      %v2293 = vld [vmem:[%s2287 + $0x14] sm:$0xf]
      %v2294 = vld [vmem:[%s2287 + $0x18] sm:$0xf]
      %v2295 = vld [vmem:[%s2287 + $0x1c] sm:$0xf]
      %v2296 = vld [vmem:[%s2287 + $0x20] sm:$0xf]
      %v2297 = vld [vmem:[%s2287 + $0x24] sm:$0xf]
      %v2298 = vld [vmem:[%s2287 + $0x28] sm:$0xf]
      %v2299 = vld [vmem:[%s2287 + $0x2c] sm:$0xf]
      %v2300 = vld [vmem:[%s2287 + $0x30] sm:$0xf]
      %v2301 = vld [vmem:[%s2287 + $0x34] sm:$0xf]
      %v2302 = vld [vmem:[%s2287 + $0x38] sm:$0xf]
      %v2303 = vld [vmem:[%s2287 + $0x3c] sm:$0xf]
      %v2320 = vunpack.c.l.b16 %v2288
      %v2321 = vunpack.c.l.b16 %v2289
      %v2322 = vunpack.c.l.b16 %v2290
      %v2323 = vunpack.c.l.b16 %v2291
      %v2324 = vunpack.c.l.b16 %v2292
      %v2325 = vunpack.c.l.b16 %v2293
      %v2326 = vunpack.c.l.b16 %v2294
      %v2327 = vunpack.c.l.b16 %v2295
      %v2328 = vunpack.c.l.b16 %v2296
      %v2329 = vunpack.c.l.b16 %v2297
      %v2330 = vunpack.c.l.b16 %v2298
      %v2331 = vunpack.c.l.b16 %v2299
      %v2332 = vunpack.c.l.b16 %v2300
      %v2333 = vunpack.c.l.b16 %v2301
      %v2334 = vunpack.c.l.b16 %v2302
      %v2335 = vunpack.c.l.b16 %v2303
      %v2336 = vpack.c.b16 %v2321, %v2320
      %v2337 = vpack.c.b16 %v2323, %v2322
      %v2338 = vpack.c.b16 %v2325, %v2324
      %v2339 = vpack.c.b16 %v2327, %v2326
      %v2340 = vpack.c.b16 %v2329, %v2328
      %v2341 = vpack.c.b16 %v2331, %v2330
      %v2342 = vpack.c.b16 %v2333, %v2332
      %v2343 = vpack.c.b16 %v2335, %v2334
      %2352 = vmatprep.subr.bf16.mxu0 0
      %2353 = vmatpush1.bf16.msra.mxu0 %v2336
      %2354 = vmatprep.subr.bf16.mxu0 0
      %2355 = vmatpush1.bf16.msra.mxu0 %v2337
      %2356 = vmatprep.subr.bf16.mxu0 0
      %2357 = vmatpush1.bf16.msra.mxu0 %v2338
      %2358 = vmatprep.subr.bf16.mxu0 0
      %2359 = vmatpush1.bf16.msra.mxu0 %v2339
      %2360 = vmatprep.subr.bf16.mxu0 0
      %2361 = vmatpush1.bf16.msra.mxu0 %v2340
      %2362 = vmatprep.subr.bf16.mxu0 0
      %2363 = vmatpush1.bf16.msra.mxu0 %v2341
      %2364 = vmatprep.subr.bf16.mxu0 0
      %2365 = vmatpush1.bf16.msra.mxu0 %v2342
      %2366 = vmatprep.subr.bf16.mxu0 0
      %2367 = vmatpush1.bf16.msra.mxu0 %v2343
      %2368 = vmatprep.subr.bf16.mxu0 0
      %2369 = vmatpush1.bf16.msra.mxu0 0
      %2370 = vmatprep.subr.bf16.mxu0 0
      %2371 = vmatpush1.bf16.msra.mxu0 0
      %2372 = vmatprep.subr.bf16.mxu0 0
      %2373 = vmatpush1.bf16.msra.mxu0 0
      %2374 = vmatprep.subr.bf16.mxu0 0
      %2375 = vmatpush1.bf16.msra.mxu0 0
      %2376 = vmatprep.subr.bf16.mxu0 0
      %2377 = vmatpush1.bf16.msra.mxu0 0
      %2378 = vmatprep.subr.bf16.mxu0 0
      %2379 = vmatpush1.bf16.msra.mxu0 0
      %2380 = vmatprep.subr.bf16.mxu0 0
      %2381 = vmatpush1.bf16.msra.mxu0 0
      %2382 = vmatprep.subr.bf16.mxu0 0
      %2383 = vmatpush1.bf16.msra.mxu0 0
      %2384 = vmatprep.mubr.bf16.mxu0 0
      %2385 = vmatmul.mubr.bf16.gmra.mrb[0].mxu0 %v2271
      %v2386 = vpop.f32.mrb[0].mxu0
      %v2387 = vadd.f32 0.0, %v2386
      %v2388 = vpop.f32.mrb[0].mxu0
      %v2389 = vpop.f32.mrb[0].mxu0
      %v2390 = vadd.f32 0.0, %v2389
      %v2391 = vpop.f32.mrb[0].mxu0
      %2392 = vmatprep.mubr.bf16.mxu0 0
      %2393 = vmatmul.mubr.bf16.gmra.mrb[0].mxu0 %v2272
      %v2394 = vpop.f32.mrb[0].mxu0
      %v2395 = vadd.f32 0.0, %v2394
      %v2396 = vpop.f32.mrb[0].mxu0
      %v2397 = vpop.f32.mrb[0].mxu0
      %v2398 = vadd.f32 0.0, %v2397
      %v2399 = vpop.f32.mrb[0].mxu0
      %2400 = vmatprep.mubr.bf16.mxu0 0
      %2401 = vmatmul.mubr.bf16.gmra.mrb[0].mxu0 %v2273
      %v2402 = vpop.f32.mrb[0].mxu0
      %v2403 = vadd.f32 0.0, %v2402
      %v2404 = vpop.f32.mrb[0].mxu0
      %v2405 = vpop.f32.mrb[0].mxu0
      %v2406 = vadd.f32 0.0, %v2405
      %v2407 = vpop.f32.mrb[0].mxu0
      %2408 = vmatprep.mubr.bf16.mxu0 0
      %2409 = vmatmul.mubr.bf16.gmra.mrb[0].mxu0 %v2274
      %v2410 = vpop.f32.mrb[0].mxu0
      %v2411 = vadd.f32 0.0, %v2410
      %v2412 = vpop.f32.mrb[0].mxu0
      %v2413 = vpop.f32.mrb[0].mxu0
      %v2414 = vadd.f32 0.0, %v2413
      %v2415 = vpop.f32.mrb[0].mxu0
      %2416 = vmatprep.mubr.bf16.mxu0 0
      %2417 = vmatmul.mubr.bf16.gmra.mrb[0].mxu0 %v2275
      %v2418 = vpop.f32.mrb[0].mxu0
      %v2419 = vadd.f32 0.0, %v2418
      %v2420 = vpop.f32.mrb[0].mxu0
      %v2421 = vpop.f32.mrb[0].mxu0
      %v2422 = vadd.f32 0.0, %v2421
      %v2423 = vpop.f32.mrb[0].mxu0
      %2424 = vmatprep.mubr.bf16.mxu0 0
      %2425 = vmatmul.mubr.bf16.gmra.mrb[0].mxu0 %v2276
      %v2426 = vpop.f32.mrb[0].mxu0
      %v2427 = vadd.f32 0.0, %v2426
      %v2428 = vpop.f32.mrb[0].mxu0
      %v2429 = vpop.f32.mrb[0].mxu0
      %v2430 = vadd.f32 0.0, %v2429
      %v2431 = vpop.f32.mrb[0].mxu0
      %2432 = vmatprep.mubr.bf16.mxu0 0
      %2433 = vmatmul.mubr.bf16.gmra.mrb[0].mxu0 %v2277
      %v2434 = vpop.f32.mrb[0].mxu0
      %v2435 = vadd.f32 0.0, %v2434
      %v2436 = vpop.f32.mrb[0].mxu0
      %v2437 = vpop.f32.mrb[0].mxu0
      %v2438 = vadd.f32 0.0, %v2437
      %v2439 = vpop.f32.mrb[0].mxu0
      %2440 = vmatprep.mubr.bf16.mxu0 0
      %2441 = vmatmul.mubr.bf16.gmra.mrb[0].mxu0 %v2278
      %v2442 = vpop.f32.mrb[0].mxu0
      %v2443 = vadd.f32 0.0, %v2442
      %v2444 = vpop.f32.mrb[0].mxu0
      %v2445 = vpop.f32.mrb[0].mxu0
      %v2446 = vadd.f32 0.0, %v2445
      %v2447 = vpop.f32.mrb[0].mxu0
      %2448 = vmatprep.mubr.bf16.mxu0 0
      %2449 = vmatmul.mubr.bf16.gmra.mrb[0].mxu0 %v2279
      %v2450 = vpop.f32.mrb[0].mxu0
      %v2451 = vadd.f32 0.0, %v2450
      %v2452 = vpop.f32.mrb[0].mxu0
      %v2453 = vpop.f32.mrb[0].mxu0
      %v2454 = vadd.f32 0.0, %v2453
      %v2455 = vpop.f32.mrb[0].mxu0
      %2456 = vmatprep.mubr.bf16.mxu0 0
      %2457 = vmatmul.mubr.bf16.gmra.mrb[0].mxu0 %v2280
      %v2458 = vpop.f32.mrb[0].mxu0
      %v2459 = vadd.f32 0.0, %v2458
      %v2460 = vpop.f32.mrb[0].mxu0
      %v2461 = vpop.f32.mrb[0].mxu0
      %v2462 = vadd.f32 0.0, %v2461
      %v2463 = vpop.f32.mrb[0].mxu0
      %2464 = vmatprep.mubr.bf16.mxu0 0
      %2465 = vmatmul.mubr.bf16.gmra.mrb[0].mxu0 %v2281
      %v2466 = vpop.f32.mrb[0].mxu0
      %v2467 = vadd.f32 0.0, %v2466
      %v2468 = vpop.f32.mrb[0].mxu0
      %v2469 = vpop.f32.mrb[0].mxu0
      %v2470 = vadd.f32 0.0, %v2469
      %v2471 = vpop.f32.mrb[0].mxu0
      %2472 = vmatprep.mubr.bf16.mxu0 0
      %2473 = vmatmul.mubr.bf16.gmra.mrb[0].mxu0 %v2282
      %v2474 = vpop.f32.mrb[0].mxu0
      %v2475 = vadd.f32 0.0, %v2474
      %v2476 = vpop.f32.mrb[0].mxu0
      %v2477 = vpop.f32.mrb[0].mxu0
      %v2478 = vadd.f32 0.0, %v2477
      %v2479 = vpop.f32.mrb[0].mxu0
      %2480 = vmatprep.mubr.bf16.mxu0 0
      %2481 = vmatmul.mubr.bf16.gmra.mrb[0].mxu0 %v2283
      %v2482 = vpop.f32.mrb[0].mxu0
      %v2483 = vadd.f32 0.0, %v2482
      %v2484 = vpop.f32.mrb[0].mxu0
      %v2485 = vpop.f32.mrb[0].mxu0
      %v2486 = vadd.f32 0.0, %v2485
      %v2487 = vpop.f32.mrb[0].mxu0
      %2488 = vmatprep.mubr.bf16.mxu0 0
      %2489 = vmatmul.mubr.bf16.gmra.mrb[0].mxu0 %v2284
      %v2490 = vpop.f32.mrb[0].mxu0
      %v2491 = vadd.f32 0.0, %v2490
      %v2492 = vpop.f32.mrb[0].mxu0
      %v2493 = vpop.f32.mrb[0].mxu0
      %v2494 = vadd.f32 0.0, %v2493
      %v2495 = vpop.f32.mrb[0].mxu0
      %2496 = vmatprep.mubr.bf16.mxu0 0
      %2497 = vmatmul.mubr.bf16.gmra.mrb[0].mxu0 %v2285
      %v2498 = vpop.f32.mrb[0].mxu0
      %v2499 = vadd.f32 0.0, %v2498
      %v2500 = vpop.f32.mrb[0].mxu0
      %v2501 = vpop.f32.mrb[0].mxu0
      %v2502 = vadd.f32 0.0, %v2501
      %v2503 = vpop.f32.mrb[0].mxu0
      %2504 = vmatprep.mubr.bf16.mxu0 0
      %2505 = vmatmul.mubr.bf16.gmra.mrb[0].mxu0 %v2286
      %v2506 = vpop.f32.mrb[0].mxu0
      %v2507 = vadd.f32 0.0, %v2506
      %v2508 = vpop.f32.mrb[0].mxu0
      %v2509 = vpop.f32.mrb[0].mxu0
      %v2510 = vadd.f32 0.0, %v2509
      %v2511 = vpop.f32.mrb[0].mxu0
      %2512 = vdwg.mxu0
      %v2513 = vadd.f32 %v2206, %v2387
      %v2514 = vadd.f32 %v2207, %v2390
      %v2515 = vadd.f32 %v2208, %v2395
      %v2516 = vadd.f32 %v2209, %v2398
      %v2517 = vadd.f32 %v2210, %v2403
      %v2518 = vadd.f32 %v2211, %v2406
      %v2519 = vadd.f32 %v2212, %v2411
      %v2520 = vadd.f32 %v2213, %v2414
      %v2521 = vadd.f32 %v2214, %v2419
      %v2522 = vadd.f32 %v2215, %v2422
      %v2523 = vadd.f32 %v2216, %v2427
      %v2524 = vadd.f32 %v2217, %v2430
      %v2525 = vadd.f32 %v2218, %v2435
      %v2526 = vadd.f32 %v2219, %v2438
      %v2527 = vadd.f32 %v2220, %v2443
      %v2528 = vadd.f32 %v2221, %v2446
      %v2529 = vadd.f32 %v2222, %v2451
      %v2530 = vadd.f32 %v2223, %v2454
      %v2531 = vadd.f32 %v2224, %v2459
      %v2532 = vadd.f32 %v2225, %v2462
      %v2533 = vadd.f32 %v2226, %v2467
      %v2534 = vadd.f32 %v2227, %v2470
      %v2535 = vadd.f32 %v2228, %v2475
      %v2536 = vadd.f32 %v2229, %v2478
      %v2537 = vadd.f32 %v2230, %v2483
      %v2538 = vadd.f32 %v2231, %v2486
      %v2539 = vadd.f32 %v2232, %v2491
      %v2540 = vadd.f32 %v2233, %v2494
      %v2541 = vadd.f32 %v2234, %v2499
      %v2542 = vadd.f32 %v2235, %v2502
      %v2543 = vadd.f32 %v2236, %v2507
      %v2544 = vadd.f32 %v2237, %v2510
      %v2545 = vld [vmem:[%s2238 + $0x1] sm:$0xff]
      %v2546 = vld [vmem:[%s2238 + $0x9] sm:$0xff]
      %v2547 = vld [vmem:[%s2238 + $0x19] sm:$0xff]
      %v2548 = vld [vmem:[%s2238 + $0x21] sm:$0xff]
      %v2549 = vld [vmem:[%s2238 + $0x31] sm:$0xff]
      %v2550 = vld [vmem:[%s2238 + $0x39] sm:$0xff]
      %v2551 = vld [vmem:[%s2238 + $0x49] sm:$0xff]
      %v2552 = vld [vmem:[%s2238 + $0x51] sm:$0xff]
      %v2553 = vld [vmem:[%s2238 + $0x61] sm:$0xff]
      %v2554 = vld [vmem:[%s2238 + $0x69] sm:$0xff]
      %v2555 = vld [vmem:[%s2238 + $0x79] sm:$0xff]
      %v2556 = vld [vmem:[%s2238 + $0x81] sm:$0xff]
      %v2557 = vld [vmem:[%s2238 + $0x91] sm:$0xff]
      %v2558 = vld [vmem:[%s2238 + $0x99] sm:$0xff]
      %v2559 = vld [vmem:[%s2238 + $0xa9] sm:$0xff]
      %v2560 = vld [vmem:[%s2238 + $0xb1] sm:$0xff]
      %v2561 = vld [vmem:[%s2238 + $0xc1] sm:$0xff]
      %v2562 = vld [vmem:[%s2238 + $0xc9] sm:$0xff]
      %v2563 = vld [vmem:[%s2238 + $0xd9] sm:$0xff]
      %v2564 = vld [vmem:[%s2238 + $0xe1] sm:$0xff]
      %v2565 = vld [vmem:[%s2238 + $0xf1] sm:$0xff]
      %v2566 = vld [vmem:[%s2238 + $0xf9] sm:$0xff]
      %v2567 = vld [vmem:[%s2238 + $0x109] sm:$0xff]
      %v2568 = vld [vmem:[%s2238 + $0x111] sm:$0xff]
      %v2569 = vld [vmem:[%s2238 + $0x121] sm:$0xff]
      %v2570 = vld [vmem:[%s2238 + $0x129] sm:$0xff]
      %v2571 = vld [vmem:[%s2238 + $0x139] sm:$0xff]
      %v2572 = vld [vmem:[%s2238 + $0x141] sm:$0xff]
      %v2573 = vld [vmem:[%s2238 + $0x151] sm:$0xff]
      %v2574 = vld [vmem:[%s2238 + $0x159] sm:$0xff]
      %v2575 = vld [vmem:[%s2238 + $0x169] sm:$0xff]
      %v2576 = vld [vmem:[%s2238 + $0x171] sm:$0xff]
      %v2577 = vpack.c.bf16 %v2546, %v2545
      %v2578 = vpack.c.bf16 %v2548, %v2547
      %v2579 = vpack.c.bf16 %v2550, %v2549
      %v2580 = vpack.c.bf16 %v2552, %v2551
      %v2581 = vpack.c.bf16 %v2554, %v2553
      %v2582 = vpack.c.bf16 %v2556, %v2555
      %v2583 = vpack.c.bf16 %v2558, %v2557
      %v2584 = vpack.c.bf16 %v2560, %v2559
      %v2585 = vpack.c.bf16 %v2562, %v2561
      %v2586 = vpack.c.bf16 %v2564, %v2563
      %v2587 = vpack.c.bf16 %v2566, %v2565
      %v2588 = vpack.c.bf16 %v2568, %v2567
      %v2589 = vpack.c.bf16 %v2570, %v2569
      %v2590 = vpack.c.bf16 %v2572, %v2571
      %v2591 = vpack.c.bf16 %v2574, %v2573
      %v2592 = vpack.c.bf16 %v2576, %v2575
      %s2593 = scalar_lea.vmem %s3, 448
      %v2594 = vld [vmem:[%s2593] sm:$0xf]
      %v2595 = vld [vmem:[%s2593 + $0x4] sm:$0xf]
      %v2596 = vld [vmem:[%s2593 + $0x8] sm:$0xf]
      %v2597 = vld [vmem:[%s2593 + $0xc] sm:$0xf]
      %v2598 = vld [vmem:[%s2593 + $0x10] sm:$0xf]
      %v2599 = vld [vmem:[%s2593 + $0x14] sm:$0xf]
      %v2600 = vld [vmem:[%s2593 + $0x18] sm:$0xf]
      %v2601 = vld [vmem:[%s2593 + $0x1c] sm:$0xf]
      %v2602 = vld [vmem:[%s2593 + $0x20] sm:$0xf]
      %v2603 = vld [vmem:[%s2593 + $0x24] sm:$0xf]
      %v2604 = vld [vmem:[%s2593 + $0x28] sm:$0xf]
      %v2605 = vld [vmem:[%s2593 + $0x2c] sm:$0xf]
      %v2606 = vld [vmem:[%s2593 + $0x30] sm:$0xf]
      %v2607 = vld [vmem:[%s2593 + $0x34] sm:$0xf]
      %v2608 = vld [vmem:[%s2593 + $0x38] sm:$0xf]
      %v2609 = vld [vmem:[%s2593 + $0x3c] sm:$0xf]
      %v2626 = vunpack.c.l.b16 %v2594
      %v2627 = vunpack.c.l.b16 %v2595
      %v2628 = vunpack.c.l.b16 %v2596
      %v2629 = vunpack.c.l.b16 %v2597
      %v2630 = vunpack.c.l.b16 %v2598
      %v2631 = vunpack.c.l.b16 %v2599
      %v2632 = vunpack.c.l.b16 %v2600
      %v2633 = vunpack.c.l.b16 %v2601
      %v2634 = vunpack.c.l.b16 %v2602
      %v2635 = vunpack.c.l.b16 %v2603
      %v2636 = vunpack.c.l.b16 %v2604
      %v2637 = vunpack.c.l.b16 %v2605
      %v2638 = vunpack.c.l.b16 %v2606
      %v2639 = vunpack.c.l.b16 %v2607
      %v2640 = vunpack.c.l.b16 %v2608
      %v2641 = vunpack.c.l.b16 %v2609
      %v2642 = vpack.c.b16 %v2627, %v2626
      %v2643 = vpack.c.b16 %v2629, %v2628
      %v2644 = vpack.c.b16 %v2631, %v2630
      %v2645 = vpack.c.b16 %v2633, %v2632
      %v2646 = vpack.c.b16 %v2635, %v2634
      %v2647 = vpack.c.b16 %v2637, %v2636
      %v2648 = vpack.c.b16 %v2639, %v2638
      %v2649 = vpack.c.b16 %v2641, %v2640
      %2658 = vmatprep.subr.bf16.mxu0 0
      %2659 = vmatpush1.bf16.msra.mxu0 %v2642
      %2660 = vmatprep.subr.bf16.mxu0 0
      %2661 = vmatpush1.bf16.msra.mxu0 %v2643
      %2662 = vmatprep.subr.bf16.mxu0 0
      %2663 = vmatpush1.bf16.msra.mxu0 %v2644
      %2664 = vmatprep.subr.bf16.mxu0 0
      %2665 = vmatpush1.bf16.msra.mxu0 %v2645
      %2666 = vmatprep.subr.bf16.mxu0 0
      %2667 = vmatpush1.bf16.msra.mxu0 %v2646
      %2668 = vmatprep.subr.bf16.mxu0 0
      %2669 = vmatpush1.bf16.msra.mxu0 %v2647
      %2670 = vmatprep.subr.bf16.mxu0 0
      %2671 = vmatpush1.bf16.msra.mxu0 %v2648
      %2672 = vmatprep.subr.bf16.mxu0 0
      %2673 = vmatpush1.bf16.msra.mxu0 %v2649
      %2674 = vmatprep.subr.bf16.mxu0 0
      %2675 = vmatpush1.bf16.msra.mxu0 0
      %2676 = vmatprep.subr.bf16.mxu0 0
      %2677 = vmatpush1.bf16.msra.mxu0 0
      %2678 = vmatprep.subr.bf16.mxu0 0
      %2679 = vmatpush1.bf16.msra.mxu0 0
      %2680 = vmatprep.subr.bf16.mxu0 0
      %2681 = vmatpush1.bf16.msra.mxu0 0
      %2682 = vmatprep.subr.bf16.mxu0 0
      %2683 = vmatpush1.bf16.msra.mxu0 0
      %2684 = vmatprep.subr.bf16.mxu0 0
      %2685 = vmatpush1.bf16.msra.mxu0 0
      %2686 = vmatprep.subr.bf16.mxu0 0
      %2687 = vmatpush1.bf16.msra.mxu0 0
      %2688 = vmatprep.subr.bf16.mxu0 0
      %2689 = vmatpush1.bf16.msra.mxu0 0
      %2690 = vmatprep.mubr.bf16.mxu0 0
      %2691 = vmatmul.mubr.bf16.gmra.mrb[0].mxu0 %v2577
      %v2692 = vpop.f32.mrb[0].mxu0
      %v2693 = vadd.f32 0.0, %v2692
      %v2694 = vpop.f32.mrb[0].mxu0
      %v2695 = vpop.f32.mrb[0].mxu0
      %v2696 = vadd.f32 0.0, %v2695
      %v2697 = vpop.f32.mrb[0].mxu0
      %2698 = vmatprep.mubr.bf16.mxu0 0
      %2699 = vmatmul.mubr.bf16.gmra.mrb[0].mxu0 %v2578
      %v2700 = vpop.f32.mrb[0].mxu0
      %v2701 = vadd.f32 0.0, %v2700
      %v2702 = vpop.f32.mrb[0].mxu0
      %v2703 = vpop.f32.mrb[0].mxu0
      %v2704 = vadd.f32 0.0, %v2703
      %v2705 = vpop.f32.mrb[0].mxu0
      %2706 = vmatprep.mubr.bf16.mxu0 0
      %2707 = vmatmul.mubr.bf16.gmra.mrb[0].mxu0 %v2579
      %v2708 = vpop.f32.mrb[0].mxu0
      %v2709 = vadd.f32 0.0, %v2708
      %v2710 = vpop.f32.mrb[0].mxu0
      %v2711 = vpop.f32.mrb[0].mxu0
      %v2712 = vadd.f32 0.0, %v2711
      %v2713 = vpop.f32.mrb[0].mxu0
      %2714 = vmatprep.mubr.bf16.mxu0 0
      %2715 = vmatmul.mubr.bf16.gmra.mrb[0].mxu0 %v2580
      %v2716 = vpop.f32.mrb[0].mxu0
      %v2717 = vadd.f32 0.0, %v2716
      %v2718 = vpop.f32.mrb[0].mxu0
      %v2719 = vpop.f32.mrb[0].mxu0
      %v2720 = vadd.f32 0.0, %v2719
      %v2721 = vpop.f32.mrb[0].mxu0
      %2722 = vmatprep.mubr.bf16.mxu0 0
      %2723 = vmatmul.mubr.bf16.gmra.mrb[0].mxu0 %v2581
      %v2724 = vpop.f32.mrb[0].mxu0
      %v2725 = vadd.f32 0.0, %v2724
      %v2726 = vpop.f32.mrb[0].mxu0
      %v2727 = vpop.f32.mrb[0].mxu0
      %v2728 = vadd.f32 0.0, %v2727
      %v2729 = vpop.f32.mrb[0].mxu0
      %2730 = vmatprep.mubr.bf16.mxu0 0
      %2731 = vmatmul.mubr.bf16.gmra.mrb[0].mxu0 %v2582
      %v2732 = vpop.f32.mrb[0].mxu0
      %v2733 = vadd.f32 0.0, %v2732
      %v2734 = vpop.f32.mrb[0].mxu0
      %v2735 = vpop.f32.mrb[0].mxu0
      %v2736 = vadd.f32 0.0, %v2735
      %v2737 = vpop.f32.mrb[0].mxu0
      %2738 = vmatprep.mubr.bf16.mxu0 0
      %2739 = vmatmul.mubr.bf16.gmra.mrb[0].mxu0 %v2583
      %v2740 = vpop.f32.mrb[0].mxu0
      %v2741 = vadd.f32 0.0, %v2740
      %v2742 = vpop.f32.mrb[0].mxu0
      %v2743 = vpop.f32.mrb[0].mxu0
      %v2744 = vadd.f32 0.0, %v2743
      %v2745 = vpop.f32.mrb[0].mxu0
      %2746 = vmatprep.mubr.bf16.mxu0 0
      %2747 = vmatmul.mubr.bf16.gmra.mrb[0].mxu0 %v2584
      %v2748 = vpop.f32.mrb[0].mxu0
      %v2749 = vadd.f32 0.0, %v2748
      %v2750 = vpop.f32.mrb[0].mxu0
      %v2751 = vpop.f32.mrb[0].mxu0
      %v2752 = vadd.f32 0.0, %v2751
      %v2753 = vpop.f32.mrb[0].mxu0
      %2754 = vmatprep.mubr.bf16.mxu0 0
      %2755 = vmatmul.mubr.bf16.gmra.mrb[0].mxu0 %v2585
      %v2756 = vpop.f32.mrb[0].mxu0
      %v2757 = vadd.f32 0.0, %v2756
      %v2758 = vpop.f32.mrb[0].mxu0
      %v2759 = vpop.f32.mrb[0].mxu0
      %v2760 = vadd.f32 0.0, %v2759
      %v2761 = vpop.f32.mrb[0].mxu0
      %2762 = vmatprep.mubr.bf16.mxu0 0
      %2763 = vmatmul.mubr.bf16.gmra.mrb[0].mxu0 %v2586
      %v2764 = vpop.f32.mrb[0].mxu0
      %v2765 = vadd.f32 0.0, %v2764
      %v2766 = vpop.f32.mrb[0].mxu0
      %v2767 = vpop.f32.mrb[0].mxu0
      %v2768 = vadd.f32 0.0, %v2767
      %v2769 = vpop.f32.mrb[0].mxu0
      %2770 = vmatprep.mubr.bf16.mxu0 0
      %2771 = vmatmul.mubr.bf16.gmra.mrb[0].mxu0 %v2587
      %v2772 = vpop.f32.mrb[0].mxu0
      %v2773 = vadd.f32 0.0, %v2772
      %v2774 = vpop.f32.mrb[0].mxu0
      %v2775 = vpop.f32.mrb[0].mxu0
      %v2776 = vadd.f32 0.0, %v2775
      %v2777 = vpop.f32.mrb[0].mxu0
      %2778 = vmatprep.mubr.bf16.mxu0 0
      %2779 = vmatmul.mubr.bf16.gmra.mrb[0].mxu0 %v2588
      %v2780 = vpop.f32.mrb[0].mxu0
      %v2781 = vadd.f32 0.0, %v2780
      %v2782 = vpop.f32.mrb[0].mxu0
      %v2783 = vpop.f32.mrb[0].mxu0
      %v2784 = vadd.f32 0.0, %v2783
      %v2785 = vpop.f32.mrb[0].mxu0
      %2786 = vmatprep.mubr.bf16.mxu0 0
      %2787 = vmatmul.mubr.bf16.gmra.mrb[0].mxu0 %v2589
      %v2788 = vpop.f32.mrb[0].mxu0
      %v2789 = vadd.f32 0.0, %v2788
      %v2790 = vpop.f32.mrb[0].mxu0
      %v2791 = vpop.f32.mrb[0].mxu0
      %v2792 = vadd.f32 0.0, %v2791
      %v2793 = vpop.f32.mrb[0].mxu0
      %2794 = vmatprep.mubr.bf16.mxu0 0
      %2795 = vmatmul.mubr.bf16.gmra.mrb[0].mxu0 %v2590
      %v2796 = vpop.f32.mrb[0].mxu0
      %v2797 = vadd.f32 0.0, %v2796
      %v2798 = vpop.f32.mrb[0].mxu0
      %v2799 = vpop.f32.mrb[0].mxu0
      %v2800 = vadd.f32 0.0, %v2799
      %v2801 = vpop.f32.mrb[0].mxu0
      %2802 = vmatprep.mubr.bf16.mxu0 0
      %2803 = vmatmul.mubr.bf16.gmra.mrb[0].mxu0 %v2591
      %v2804 = vpop.f32.mrb[0].mxu0
      %v2805 = vadd.f32 0.0, %v2804
      %v2806 = vpop.f32.mrb[0].mxu0
      %v2807 = vpop.f32.mrb[0].mxu0
      %v2808 = vadd.f32 0.0, %v2807
      %v2809 = vpop.f32.mrb[0].mxu0
      %2810 = vmatprep.mubr.bf16.mxu0 0
      %2811 = vmatmul.mubr.bf16.gmra.mrb[0].mxu0 %v2592
      %v2812 = vpop.f32.mrb[0].mxu0
      %v2813 = vadd.f32 0.0, %v2812
      %v2814 = vpop.f32.mrb[0].mxu0
      %v2815 = vpop.f32.mrb[0].mxu0
      %v2816 = vadd.f32 0.0, %v2815
      %v2817 = vpop.f32.mrb[0].mxu0
      %2818 = vdwg.mxu0
      %v2819 = vadd.f32 %v2513, %v2693
      %v2820 = vadd.f32 %v2514, %v2696
      %v2821 = vadd.f32 %v2515, %v2701
      %v2822 = vadd.f32 %v2516, %v2704
      %v2823 = vadd.f32 %v2517, %v2709
      %v2824 = vadd.f32 %v2518, %v2712
      %v2825 = vadd.f32 %v2519, %v2717
      %v2826 = vadd.f32 %v2520, %v2720
      %v2827 = vadd.f32 %v2521, %v2725
      %v2828 = vadd.f32 %v2522, %v2728
      %v2829 = vadd.f32 %v2523, %v2733
      %v2830 = vadd.f32 %v2524, %v2736
      %v2831 = vadd.f32 %v2525, %v2741
      %v2832 = vadd.f32 %v2526, %v2744
      %v2833 = vadd.f32 %v2527, %v2749
      %v2834 = vadd.f32 %v2528, %v2752
      %v2835 = vadd.f32 %v2529, %v2757
      %v2836 = vadd.f32 %v2530, %v2760
      %v2837 = vadd.f32 %v2531, %v2765
      %v2838 = vadd.f32 %v2532, %v2768
      %v2839 = vadd.f32 %v2533, %v2773
      %v2840 = vadd.f32 %v2534, %v2776
      %v2841 = vadd.f32 %v2535, %v2781
      %v2842 = vadd.f32 %v2536, %v2784
      %v2843 = vadd.f32 %v2537, %v2789
      %v2844 = vadd.f32 %v2538, %v2792
      %v2845 = vadd.f32 %v2539, %v2797
      %v2846 = vadd.f32 %v2540, %v2800
      %v2847 = vadd.f32 %v2541, %v2805
      %v2848 = vadd.f32 %v2542, %v2808
      %v2849 = vadd.f32 %v2543, %v2813
      %v2850 = vadd.f32 %v2544, %v2816
      %v2851 = vld [vmem:[%s2238 + $0x2] sm:$0xff]
      %v2852 = vld [vmem:[%s2238 + $0xa] sm:$0xff]
      %v2853 = vld [vmem:[%s2238 + $0x1a] sm:$0xff]
      %v2854 = vld [vmem:[%s2238 + $0x22] sm:$0xff]
      %v2855 = vld [vmem:[%s2238 + $0x32] sm:$0xff]
      %v2856 = vld [vmem:[%s2238 + $0x3a] sm:$0xff]
      %v2857 = vld [vmem:[%s2238 + $0x4a] sm:$0xff]
      %v2858 = vld [vmem:[%s2238 + $0x52] sm:$0xff]
      %v2859 = vld [vmem:[%s2238 + $0x62] sm:$0xff]
      %v2860 = vld [vmem:[%s2238 + $0x6a] sm:$0xff]
      %v2861 = vld [vmem:[%s2238 + $0x7a] sm:$0xff]
      %v2862 = vld [vmem:[%s2238 + $0x82] sm:$0xff]
      %v2863 = vld [vmem:[%s2238 + $0x92] sm:$0xff]
      %v2864 = vld [vmem:[%s2238 + $0x9a] sm:$0xff]
      %v2865 = vld [vmem:[%s2238 + $0xaa] sm:$0xff]
      %v2866 = vld [vmem:[%s2238 + $0xb2] sm:$0xff]
      %v2867 = vld [vmem:[%s2238 + $0xc2] sm:$0xff]
      %v2868 = vld [vmem:[%s2238 + $0xca] sm:$0xff]
      %v2869 = vld [vmem:[%s2238 + $0xda] sm:$0xff]
      %v2870 = vld [vmem:[%s2238 + $0xe2] sm:$0xff]
      %v2871 = vld [vmem:[%s2238 + $0xf2] sm:$0xff]
      %v2872 = vld [vmem:[%s2238 + $0xfa] sm:$0xff]
      %v2873 = vld [vmem:[%s2238 + $0x10a] sm:$0xff]
      %v2874 = vld [vmem:[%s2238 + $0x112] sm:$0xff]
      %v2875 = vld [vmem:[%s2238 + $0x122] sm:$0xff]
      %v2876 = vld [vmem:[%s2238 + $0x12a] sm:$0xff]
      %v2877 = vld [vmem:[%s2238 + $0x13a] sm:$0xff]
      %v2878 = vld [vmem:[%s2238 + $0x142] sm:$0xff]
      %v2879 = vld [vmem:[%s2238 + $0x152] sm:$0xff]
      %v2880 = vld [vmem:[%s2238 + $0x15a] sm:$0xff]
      %v2881 = vld [vmem:[%s2238 + $0x16a] sm:$0xff]
      %v2882 = vld [vmem:[%s2238 + $0x172] sm:$0xff]
      %v2883 = vpack.c.bf16 %v2852, %v2851
      %v2884 = vpack.c.bf16 %v2854, %v2853
      %v2885 = vpack.c.bf16 %v2856, %v2855
      %v2886 = vpack.c.bf16 %v2858, %v2857
      %v2887 = vpack.c.bf16 %v2860, %v2859
      %v2888 = vpack.c.bf16 %v2862, %v2861
      %v2889 = vpack.c.bf16 %v2864, %v2863
      %v2890 = vpack.c.bf16 %v2866, %v2865
      %v2891 = vpack.c.bf16 %v2868, %v2867
      %v2892 = vpack.c.bf16 %v2870, %v2869
      %v2893 = vpack.c.bf16 %v2872, %v2871
      %v2894 = vpack.c.bf16 %v2874, %v2873
      %v2895 = vpack.c.bf16 %v2876, %v2875
      %v2896 = vpack.c.bf16 %v2878, %v2877
      %v2897 = vpack.c.bf16 %v2880, %v2879
      %v2898 = vpack.c.bf16 %v2882, %v2881
      %s2899 = scalar_lea.vmem %s3, 512
      %v2900 = vld [vmem:[%s2899] sm:$0xf]
      %v2901 = vld [vmem:[%s2899 + $0x4] sm:$0xf]
      %v2902 = vld [vmem:[%s2899 + $0x8] sm:$0xf]
      %v2903 = vld [vmem:[%s2899 + $0xc] sm:$0xf]
      %v2904 = vld [vmem:[%s2899 + $0x10] sm:$0xf]
      %v2905 = vld [vmem:[%s2899 + $0x14] sm:$0xf]
      %v2906 = vld [vmem:[%s2899 + $0x18] sm:$0xf]
      %v2907 = vld [vmem:[%s2899 + $0x1c] sm:$0xf]
      %v2908 = vld [vmem:[%s2899 + $0x20] sm:$0xf]
      %v2909 = vld [vmem:[%s2899 + $0x24] sm:$0xf]
      %v2910 = vld [vmem:[%s2899 + $0x28] sm:$0xf]
      %v2911 = vld [vmem:[%s2899 + $0x2c] sm:$0xf]
      %v2912 = vld [vmem:[%s2899 + $0x30] sm:$0xf]
      %v2913 = vld [vmem:[%s2899 + $0x34] sm:$0xf]
      %v2914 = vld [vmem:[%s2899 + $0x38] sm:$0xf]
      %v2915 = vld [vmem:[%s2899 + $0x3c] sm:$0xf]
      %v2932 = vunpack.c.l.b16 %v2900
      %v2933 = vunpack.c.l.b16 %v2901
      %v2934 = vunpack.c.l.b16 %v2902
      %v2935 = vunpack.c.l.b16 %v2903
      %v2936 = vunpack.c.l.b16 %v2904
      %v2937 = vunpack.c.l.b16 %v2905
      %v2938 = vunpack.c.l.b16 %v2906
      %v2939 = vunpack.c.l.b16 %v2907
      %v2940 = vunpack.c.l.b16 %v2908
      %v2941 = vunpack.c.l.b16 %v2909
      %v2942 = vunpack.c.l.b16 %v2910
      %v2943 = vunpack.c.l.b16 %v2911
      %v2944 = vunpack.c.l.b16 %v2912
      %v2945 = vunpack.c.l.b16 %v2913
      %v2946 = vunpack.c.l.b16 %v2914
      %v2947 = vunpack.c.l.b16 %v2915
      %v2948 = vpack.c.b16 %v2933, %v2932
      %v2949 = vpack.c.b16 %v2935, %v2934
      %v2950 = vpack.c.b16 %v2937, %v2936
      %v2951 = vpack.c.b16 %v2939, %v2938
      %v2952 = vpack.c.b16 %v2941, %v2940
      %v2953 = vpack.c.b16 %v2943, %v2942
      %v2954 = vpack.c.b16 %v2945, %v2944
      %v2955 = vpack.c.b16 %v2947, %v2946
      %2964 = vmatprep.subr.bf16.mxu0 0
      %2965 = vmatpush1.bf16.msra.mxu0 %v2948
      %2966 = vmatprep.subr.bf16.mxu0 0
      %2967 = vmatpush1.bf16.msra.mxu0 %v2949
      %2968 = vmatprep.subr.bf16.mxu0 0
      %2969 = vmatpush1.bf16.msra.mxu0 %v2950
      %2970 = vmatprep.subr.bf16.mxu0 0
      %2971 = vmatpush1.bf16.msra.mxu0 %v2951
      %2972 = vmatprep.subr.bf16.mxu0 0
      %2973 = vmatpush1.bf16.msra.mxu0 %v2952
      %2974 = vmatprep.subr.bf16.mxu0 0
      %2975 = vmatpush1.bf16.msra.mxu0 %v2953
      %2976 = vmatprep.subr.bf16.mxu0 0
      %2977 = vmatpush1.bf16.msra.mxu0 %v2954
      %2978 = vmatprep.subr.bf16.mxu0 0
      %2979 = vmatpush1.bf16.msra.mxu0 %v2955
      %2980 = vmatprep.subr.bf16.mxu0 0
      %2981 = vmatpush1.bf16.msra.mxu0 0
      %2982 = vmatprep.subr.bf16.mxu0 0
      %2983 = vmatpush1.bf16.msra.mxu0 0
      %2984 = vmatprep.subr.bf16.mxu0 0
      %2985 = vmatpush1.bf16.msra.mxu0 0
      %2986 = vmatprep.subr.bf16.mxu0 0
      %2987 = vmatpush1.bf16.msra.mxu0 0
      %2988 = vmatprep.subr.bf16.mxu0 0
      %2989 = vmatpush1.bf16.msra.mxu0 0
      %2990 = vmatprep.subr.bf16.mxu0 0
      %2991 = vmatpush1.bf16.msra.mxu0 0
      %2992 = vmatprep.subr.bf16.mxu0 0
      %2993 = vmatpush1.bf16.msra.mxu0 0
      %2994 = vmatprep.subr.bf16.mxu0 0
      %2995 = vmatpush1.bf16.msra.mxu0 0
      %2996 = vmatprep.mubr.bf16.mxu0 0
      %2997 = vmatmul.mubr.bf16.gmra.mrb[0].mxu0 %v2883
      %v2998 = vpop.f32.mrb[0].mxu0
      %v2999 = vadd.f32 0.0, %v2998
      %v3000 = vpop.f32.mrb[0].mxu0
      %v3001 = vpop.f32.mrb[0].mxu0
      %v3002 = vadd.f32 0.0, %v3001
      %v3003 = vpop.f32.mrb[0].mxu0
      %3004 = vmatprep.mubr.bf16.mxu0 0
      %3005 = vmatmul.mubr.bf16.gmra.mrb[0].mxu0 %v2884
      %v3006 = vpop.f32.mrb[0].mxu0
      %v3007 = vadd.f32 0.0, %v3006
      %v3008 = vpop.f32.mrb[0].mxu0
      %v3009 = vpop.f32.mrb[0].mxu0
      %v3010 = vadd.f32 0.0, %v3009
      %v3011 = vpop.f32.mrb[0].mxu0
      %3012 = vmatprep.mubr.bf16.mxu0 0
      %3013 = vmatmul.mubr.bf16.gmra.mrb[0].mxu0 %v2885
      %v3014 = vpop.f32.mrb[0].mxu0
      %v3015 = vadd.f32 0.0, %v3014
      %v3016 = vpop.f32.mrb[0].mxu0
      %v3017 = vpop.f32.mrb[0].mxu0
      %v3018 = vadd.f32 0.0, %v3017
      %v3019 = vpop.f32.mrb[0].mxu0
      %3020 = vmatprep.mubr.bf16.mxu0 0
      %3021 = vmatmul.mubr.bf16.gmra.mrb[0].mxu0 %v2886
      %v3022 = vpop.f32.mrb[0].mxu0
      %v3023 = vadd.f32 0.0, %v3022
      %v3024 = vpop.f32.mrb[0].mxu0
      %v3025 = vpop.f32.mrb[0].mxu0
      %v3026 = vadd.f32 0.0, %v3025
      %v3027 = vpop.f32.mrb[0].mxu0
      %3028 = vmatprep.mubr.bf16.mxu0 0
      %3029 = vmatmul.mubr.bf16.gmra.mrb[0].mxu0 %v2887
      %v3030 = vpop.f32.mrb[0].mxu0
      %v3031 = vadd.f32 0.0, %v3030
      %v3032 = vpop.f32.mrb[0].mxu0
      %v3033 = vpop.f32.mrb[0].mxu0
      %v3034 = vadd.f32 0.0, %v3033
      %v3035 = vpop.f32.mrb[0].mxu0
      %3036 = vmatprep.mubr.bf16.mxu0 0
      %3037 = vmatmul.mubr.bf16.gmra.mrb[0].mxu0 %v2888
      %v3038 = vpop.f32.mrb[0].mxu0
      %v3039 = vadd.f32 0.0, %v3038
      %v3040 = vpop.f32.mrb[0].mxu0
      %v3041 = vpop.f32.mrb[0].mxu0
      %v3042 = vadd.f32 0.0, %v3041
      %v3043 = vpop.f32.mrb[0].mxu0
      %3044 = vmatprep.mubr.bf16.mxu0 0
      %3045 = vmatmul.mubr.bf16.gmra.mrb[0].mxu0 %v2889
      %v3046 = vpop.f32.mrb[0].mxu0
      %v3047 = vadd.f32 0.0, %v3046
      %v3048 = vpop.f32.mrb[0].mxu0
      %v3049 = vpop.f32.mrb[0].mxu0
      %v3050 = vadd.f32 0.0, %v3049
      %v3051 = vpop.f32.mrb[0].mxu0
      %3052 = vmatprep.mubr.bf16.mxu0 0
      %3053 = vmatmul.mubr.bf16.gmra.mrb[0].mxu0 %v2890
      %v3054 = vpop.f32.mrb[0].mxu0
      %v3055 = vadd.f32 0.0, %v3054
      %v3056 = vpop.f32.mrb[0].mxu0
      %v3057 = vpop.f32.mrb[0].mxu0
      %v3058 = vadd.f32 0.0, %v3057
      %v3059 = vpop.f32.mrb[0].mxu0
      %3060 = vmatprep.mubr.bf16.mxu0 0
      %3061 = vmatmul.mubr.bf16.gmra.mrb[0].mxu0 %v2891
      %v3062 = vpop.f32.mrb[0].mxu0
      %v3063 = vadd.f32 0.0, %v3062
      %v3064 = vpop.f32.mrb[0].mxu0
      %v3065 = vpop.f32.mrb[0].mxu0
      %v3066 = vadd.f32 0.0, %v3065
      %v3067 = vpop.f32.mrb[0].mxu0
      %3068 = vmatprep.mubr.bf16.mxu0 0
      %3069 = vmatmul.mubr.bf16.gmra.mrb[0].mxu0 %v2892
      %v3070 = vpop.f32.mrb[0].mxu0
      %v3071 = vadd.f32 0.0, %v3070
      %v3072 = vpop.f32.mrb[0].mxu0
      %v3073 = vpop.f32.mrb[0].mxu0
      %v3074 = vadd.f32 0.0, %v3073
      %v3075 = vpop.f32.mrb[0].mxu0
      %3076 = vmatprep.mubr.bf16.mxu0 0
      %3077 = vmatmul.mubr.bf16.gmra.mrb[0].mxu0 %v2893
      %v3078 = vpop.f32.mrb[0].mxu0
      %v3079 = vadd.f32 0.0, %v3078
      %v3080 = vpop.f32.mrb[0].mxu0
      %v3081 = vpop.f32.mrb[0].mxu0
      %v3082 = vadd.f32 0.0, %v3081
      %v3083 = vpop.f32.mrb[0].mxu0
      %3084 = vmatprep.mubr.bf16.mxu0 0
      %3085 = vmatmul.mubr.bf16.gmra.mrb[0].mxu0 %v2894
      %v3086 = vpop.f32.mrb[0].mxu0
      %v3087 = vadd.f32 0.0, %v3086
      %v3088 = vpop.f32.mrb[0].mxu0
      %v3089 = vpop.f32.mrb[0].mxu0
      %v3090 = vadd.f32 0.0, %v3089
      %v3091 = vpop.f32.mrb[0].mxu0
      %3092 = vmatprep.mubr.bf16.mxu0 0
      %3093 = vmatmul.mubr.bf16.gmra.mrb[0].mxu0 %v2895
      %v3094 = vpop.f32.mrb[0].mxu0
      %v3095 = vadd.f32 0.0, %v3094
      %v3096 = vpop.f32.mrb[0].mxu0
      %v3097 = vpop.f32.mrb[0].mxu0
      %v3098 = vadd.f32 0.0, %v3097
      %v3099 = vpop.f32.mrb[0].mxu0
      %3100 = vmatprep.mubr.bf16.mxu0 0
      %3101 = vmatmul.mubr.bf16.gmra.mrb[0].mxu0 %v2896
      %v3102 = vpop.f32.mrb[0].mxu0
      %v3103 = vadd.f32 0.0, %v3102
      %v3104 = vpop.f32.mrb[0].mxu0
      %v3105 = vpop.f32.mrb[0].mxu0
      %v3106 = vadd.f32 0.0, %v3105
      %v3107 = vpop.f32.mrb[0].mxu0
      %3108 = vmatprep.mubr.bf16.mxu0 0
      %3109 = vmatmul.mubr.bf16.gmra.mrb[0].mxu0 %v2897
      %v3110 = vpop.f32.mrb[0].mxu0
      %v3111 = vadd.f32 0.0, %v3110
      %v3112 = vpop.f32.mrb[0].mxu0
      %v3113 = vpop.f32.mrb[0].mxu0
      %v3114 = vadd.f32 0.0, %v3113
      %v3115 = vpop.f32.mrb[0].mxu0
      %3116 = vmatprep.mubr.bf16.mxu0 0
      %3117 = vmatmul.mubr.bf16.gmra.mrb[0].mxu0 %v2898
      %v3118 = vpop.f32.mrb[0].mxu0
      %v3119 = vadd.f32 0.0, %v3118
      %v3120 = vpop.f32.mrb[0].mxu0
      %v3121 = vpop.f32.mrb[0].mxu0
      %v3122 = vadd.f32 0.0, %v3121
      %v3123 = vpop.f32.mrb[0].mxu0
      %3124 = vdwg.mxu0
      %v3125 = vadd.f32 %v2819, %v2999
      %v3126 = vadd.f32 %v2820, %v3002
      %v3127 = vadd.f32 %v2821, %v3007
      %v3128 = vadd.f32 %v2822, %v3010
      %v3129 = vadd.f32 %v2823, %v3015
      %v3130 = vadd.f32 %v2824, %v3018
      %v3131 = vadd.f32 %v2825, %v3023
      %v3132 = vadd.f32 %v2826, %v3026
      %v3133 = vadd.f32 %v2827, %v3031
      %v3134 = vadd.f32 %v2828, %v3034
      %v3135 = vadd.f32 %v2829, %v3039
      %v3136 = vadd.f32 %v2830, %v3042
      %v3137 = vadd.f32 %v2831, %v3047
      %v3138 = vadd.f32 %v2832, %v3050
      %v3139 = vadd.f32 %v2833, %v3055
      %v3140 = vadd.f32 %v2834, %v3058
      %v3141 = vadd.f32 %v2835, %v3063
      %v3142 = vadd.f32 %v2836, %v3066
      %v3143 = vadd.f32 %v2837, %v3071
      %v3144 = vadd.f32 %v2838, %v3074
      %v3145 = vadd.f32 %v2839, %v3079
      %v3146 = vadd.f32 %v2840, %v3082
      %v3147 = vadd.f32 %v2841, %v3087
      %v3148 = vadd.f32 %v2842, %v3090
      %v3149 = vadd.f32 %v2843, %v3095
      %v3150 = vadd.f32 %v2844, %v3098
      %v3151 = vadd.f32 %v2845, %v3103
      %v3152 = vadd.f32 %v2846, %v3106
      %v3153 = vadd.f32 %v2847, %v3111
      %v3154 = vadd.f32 %v2848, %v3114
      %v3155 = vadd.f32 %v2849, %v3119
      %v3156 = vadd.f32 %v2850, %v3122
      %v3157 = vmax.f32 %v3125, 0.0
      %v3158 = vmax.f32 %v3126, 0.0
      %v3159 = vmax.f32 %v3127, 0.0
      %v3160 = vmax.f32 %v3128, 0.0
      %v3161 = vmax.f32 %v3129, 0.0
      %v3162 = vmax.f32 %v3130, 0.0
      %v3163 = vmax.f32 %v3131, 0.0
      %v3164 = vmax.f32 %v3132, 0.0
      %v3165 = vmax.f32 %v3133, 0.0
      %v3166 = vmax.f32 %v3134, 0.0
      %v3167 = vmax.f32 %v3135, 0.0
      %v3168 = vmax.f32 %v3136, 0.0
      %v3169 = vmax.f32 %v3137, 0.0
      %v3170 = vmax.f32 %v3138, 0.0
      %v3171 = vmax.f32 %v3139, 0.0
      %v3172 = vmax.f32 %v3140, 0.0
      %v3173 = vmax.f32 %v3141, 0.0
      %v3174 = vmax.f32 %v3142, 0.0
      %v3175 = vmax.f32 %v3143, 0.0
      %v3176 = vmax.f32 %v3144, 0.0
      %v3177 = vmax.f32 %v3145, 0.0
      %v3178 = vmax.f32 %v3146, 0.0
      %v3179 = vmax.f32 %v3147, 0.0
      %v3180 = vmax.f32 %v3148, 0.0
      %v3181 = vmax.f32 %v3149, 0.0
      %v3182 = vmax.f32 %v3150, 0.0
      %v3183 = vmax.f32 %v3151, 0.0
      %v3184 = vmax.f32 %v3152, 0.0
      %v3185 = vmax.f32 %v3153, 0.0
      %v3186 = vmax.f32 %v3154, 0.0
      %v3187 = vmax.f32 %v3155, 0.0
      %v3188 = vmax.f32 %v3156, 0.0
      %3189 = vst [vmem:[%s262] sm:$0xff] %v3157
      %3190 = vst [vmem:[%s262 + $0x8] sm:$0xff] %v3158
      %3191 = vst [vmem:[%s262 + $0x10] sm:$0xff] %v3159
      %3192 = vst [vmem:[%s262 + $0x18] sm:$0xff] %v3160
      %3193 = vst [vmem:[%s262 + $0x20] sm:$0xff] %v3161
      %3194 = vst [vmem:[%s262 + $0x28] sm:$0xff] %v3162
      %3195 = vst [vmem:[%s262 + $0x30] sm:$0xff] %v3163
      %3196 = vst [vmem:[%s262 + $0x38] sm:$0xff] %v3164
      %3197 = vst [vmem:[%s262 + $0x40] sm:$0xff] %v3165
      %3198 = vst [vmem:[%s262 + $0x48] sm:$0xff] %v3166
      %3199 = vst [vmem:[%s262 + $0x50] sm:$0xff] %v3167
      %3200 = vst [vmem:[%s262 + $0x58] sm:$0xff] %v3168
      %3201 = vst [vmem:[%s262 + $0x60] sm:$0xff] %v3169
      %3202 = vst [vmem:[%s262 + $0x68] sm:$0xff] %v3170
      %3203 = vst [vmem:[%s262 + $0x70] sm:$0xff] %v3171
      %3204 = vst [vmem:[%s262 + $0x78] sm:$0xff] %v3172
      %3205 = vst [vmem:[%s262 + $0x80] sm:$0xff] %v3173
      %3206 = vst [vmem:[%s262 + $0x88] sm:$0xff] %v3174
      %3207 = vst [vmem:[%s262 + $0x90] sm:$0xff] %v3175
      %3208 = vst [vmem:[%s262 + $0x98] sm:$0xff] %v3176
      %3209 = vst [vmem:[%s262 + $0xa0] sm:$0xff] %v3177
      %3210 = vst [vmem:[%s262 + $0xa8] sm:$0xff] %v3178
      %3211 = vst [vmem:[%s262 + $0xb0] sm:$0xff] %v3179
      %3212 = vst [vmem:[%s262 + $0xb8] sm:$0xff] %v3180
      %3213 = vst [vmem:[%s262 + $0xc0] sm:$0xff] %v3181
      %3214 = vst [vmem:[%s262 + $0xc8] sm:$0xff] %v3182
      %3215 = vst [vmem:[%s262 + $0xd0] sm:$0xff] %v3183
      %3216 = vst [vmem:[%s262 + $0xd8] sm:$0xff] %v3184
      %3217 = vst [vmem:[%s262 + $0xe0] sm:$0xff] %v3185
      %3218 = vst [vmem:[%s262 + $0xe8] sm:$0xff] %v3186
      %3219 = vst [vmem:[%s262 + $0xf0] sm:$0xff] %v3187
      %3220 = vst [vmem:[%s262 + $0xf8] sm:$0xff] %v3188
      %v3221 = vadd.f32 %v3157, %v3158
      %v3222 = vadd.f32 %v3221, %v3159
      %v3223 = vadd.f32 %v3222, %v3160
      %v3224 = vadd.f32 %v3223, %v3161
      %v3225 = vadd.f32 %v3224, %v3162
      %v3226 = vadd.f32 %v3225, %v3163
      %v3227 = vadd.f32 %v3226, %v3164
      %v3228 = vadd.f32 %v3227, %v3165
      %v3229 = vadd.f32 %v3228, %v3166
      %v3230 = vadd.f32 %v3229, %v3167
      %v3231 = vadd.f32 %v3230, %v3168
      %v3232 = vadd.f32 %v3231, %v3169
      %v3233 = vadd.f32 %v3232, %v3170
      %v3234 = vadd.f32 %v3233, %v3171
      %v3235 = vadd.f32 %v3234, %v3172
      %v3236 = vadd.f32 %v3235, %v3173
      %v3237 = vadd.f32 %v3236, %v3174
      %v3238 = vadd.f32 %v3237, %v3175
      %v3239 = vadd.f32 %v3238, %v3176
      %v3240 = vadd.f32 %v3239, %v3177
      %v3241 = vadd.f32 %v3240, %v3178
      %v3242 = vadd.f32 %v3241, %v3179
      %v3243 = vadd.f32 %v3242, %v3180
      %v3244 = vadd.f32 %v3243, %v3181
      %v3245 = vadd.f32 %v3244, %v3182
      %v3246 = vadd.f32 %v3245, %v3183
      %v3247 = vadd.f32 %v3246, %v3184
      %v3248 = vadd.f32 %v3247, %v3185
      %v3249 = vadd.f32 %v3248, %v3186
      %v3250 = vadd.f32 %v3249, %v3187
      %v3251 = vadd.f32 %v3250, %v3188
      %v3252 = vrot.slane %v3251, 4
      %v3253 = vadd.f32 %v3251, %v3252
      %v3254 = vrot.slane %v3253, 2
      %v3255 = vadd.f32 %v3253, %v3254
      %v3256 = vrot.slane %v3255, 1
      %v3257 = vadd.f32 %v3255, %v3256
      %3258 = vst [vmem:[%s265] sm:$0x1] %v3257
      %v3259 = vmul.f32 %v3157, %v3157
      %v3260 = vmul.f32 %v3158, %v3158
      %v3261 = vmul.f32 %v3159, %v3159
      %v3262 = vmul.f32 %v3160, %v3160
      %v3263 = vmul.f32 %v3161, %v3161
      %v3264 = vmul.f32 %v3162, %v3162
      %v3265 = vmul.f32 %v3163, %v3163
      %v3266 = vmul.f32 %v3164, %v3164
      %v3267 = vmul.f32 %v3165, %v3165
      %v3268 = vmul.f32 %v3166, %v3166
      %v3269 = vmul.f32 %v3167, %v3167
      %v3270 = vmul.f32 %v3168, %v3168
      %v3271 = vmul.f32 %v3169, %v3169
      %v3272 = vmul.f32 %v3170, %v3170
      %v3273 = vmul.f32 %v3171, %v3171
      %v3274 = vmul.f32 %v3172, %v3172
      %v3275 = vmul.f32 %v3173, %v3173
      %v3276 = vmul.f32 %v3174, %v3174
      %v3277 = vmul.f32 %v3175, %v3175
      %v3278 = vmul.f32 %v3176, %v3176
      %v3279 = vmul.f32 %v3177, %v3177
      %v3280 = vmul.f32 %v3178, %v3178
      %v3281 = vmul.f32 %v3179, %v3179
      %v3282 = vmul.f32 %v3180, %v3180
      %v3283 = vmul.f32 %v3181, %v3181
      %v3284 = vmul.f32 %v3182, %v3182
      %v3285 = vmul.f32 %v3183, %v3183
      %v3286 = vmul.f32 %v3184, %v3184
      %v3287 = vmul.f32 %v3185, %v3185
      %v3288 = vmul.f32 %v3186, %v3186
      %v3289 = vmul.f32 %v3187, %v3187
      %v3290 = vmul.f32 %v3188, %v3188
      %v3291 = vadd.f32 %v3259, %v3260
      %v3292 = vadd.f32 %v3291, %v3261
      %v3293 = vadd.f32 %v3292, %v3262
      %v3294 = vadd.f32 %v3293, %v3263
      %v3295 = vadd.f32 %v3294, %v3264
      %v3296 = vadd.f32 %v3295, %v3265
      %v3297 = vadd.f32 %v3296, %v3266
      %v3298 = vadd.f32 %v3297, %v3267
      %v3299 = vadd.f32 %v3298, %v3268
      %v3300 = vadd.f32 %v3299, %v3269
      %v3301 = vadd.f32 %v3300, %v3270
      %v3302 = vadd.f32 %v3301, %v3271
      %v3303 = vadd.f32 %v3302, %v3272
      %v3304 = vadd.f32 %v3303, %v3273
      %v3305 = vadd.f32 %v3304, %v3274
      %v3306 = vadd.f32 %v3305, %v3275
      %v3307 = vadd.f32 %v3306, %v3276
      %v3308 = vadd.f32 %v3307, %v3277
      %v3309 = vadd.f32 %v3308, %v3278
      %v3310 = vadd.f32 %v3309, %v3279
      %v3311 = vadd.f32 %v3310, %v3280
      %v3312 = vadd.f32 %v3311, %v3281
      %v3313 = vadd.f32 %v3312, %v3282
      %v3314 = vadd.f32 %v3313, %v3283
      %v3315 = vadd.f32 %v3314, %v3284
      %v3316 = vadd.f32 %v3315, %v3285
      %v3317 = vadd.f32 %v3316, %v3286
      %v3318 = vadd.f32 %v3317, %v3287
      %v3319 = vadd.f32 %v3318, %v3288
      %v3320 = vadd.f32 %v3319, %v3289
      %v3321 = vadd.f32 %v3320, %v3290
      %v3322 = vrot.slane %v3321, 4
      %v3323 = vadd.f32 %v3321, %v3322
      %v3324 = vrot.slane %v3323, 2
      %v3325 = vadd.f32 %v3323, %v3324
      %v3326 = vrot.slane %v3325, 1
      %v3327 = vadd.f32 %v3325, %v3326
      %3328 = vst [vmem:[%s268] sm:$0x1] %v3327
      %p3329 = scmp.lt.s32.totalorder %s18, 1
      %s3330 = scalar_select %p3329, %s18, 1
      %s3331 = smul.addr %s3330, 32
      %s3332 = smul.addr %s3331, 8
      %s3333 = scalar_lea.vmem %s4, %s3332
      %p3334 = scmp.lt.s32.totalorder %s18, 1
      %s3335 = scalar_select %p3334, %s18, 1
      %s3336 = scalar_lea.vmem %s5, %s3335
      %p3337 = scmp.lt.s32.totalorder %s18, 1
      %s3338 = scalar_select %p3337, %s18, 1
      %s3339 = scalar_lea.vmem %s6, %s3338
      // Predicated region
      $region37: #{basic_block_forward.3} parent=35 // pred_check
        %p3340 = pneg %p125
      $region38: #{basic_block_forward.3} parent=35 // pred_check_branch
        %3342 = sbr.rel (%p3340) target = $region40
      $region39: #{basic_block_forward.3} parent=35 // pred_region
        _
      $region40: #{basic_block_forward.3} parent=35 // pred_fallthru
        _
      // Predicated region
      $region41: #{basic_block_forward.3} parent=35 // pred_check
        %p3343 = pneg %p151
      $region42: #{basic_block_forward.3} parent=35 // pred_check_branch
        %3345 = sbr.rel (%p3343) target = $region44
      $region43: #{basic_block_forward.3} parent=35 // pred_region
        _
      $region44: #{basic_block_forward.3} parent=35 // pred_fallthru
        _
      // Predicated region
      $region45: #{basic_block_forward.3} parent=35 // pred_check
        %p3346 = pneg %p177
      $region46: #{basic_block_forward.3} parent=35 // pred_check_branch
        %3348 = sbr.rel (%p3346) target = $region48
      $region47: #{basic_block_forward.3} parent=35 // pred_region
        _
      $region48: #{basic_block_forward.3} parent=35 // pred_fallthru
        _
    $region36: #{basic_block_forward.3} parent=5 // pred_fallthru
      _
    %p3349 = scmp.le.s32.totalorder 2, %s13
    // Predicated region
    $region49: #{basic_block_forward.3} parent=5 // pred_check
      %p3350 = pneg %p3349
    $region50: #{basic_block_forward.3} parent=5 // pred_check_branch
      %3352 = sbr.rel (%p3350) target = $region52
    $region51: #{basic_block_forward.3} parent=5 // pred_region
      %s3353 = ssub.s32 %s13, 2
      // Predicated region
      $region53: #{basic_block_forward.3} parent=51 // pred_check
        %p3354 = pneg %p131
      $region54: #{basic_block_forward.3} parent=51 // pred_check_branch
        %3356 = sbr.rel (%p3354) target = $region56
      $region55: #{basic_block_forward.3} parent=51 // pred_region
        %p3357 = scmp.lt.s32.totalorder %s19, 1
        %s3358 = scalar_select %p3357, %s19, 1
        %s3359 = smul.addr %s3358, 32
        %s3360 = smul.addr %s3359, 8
        %s3361 = scalar_lea.vmem %s4, %s3360
      $region56: #{basic_block_forward.3} parent=51 // pred_fallthru
        _
      // Predicated region
      $region57: #{basic_block_forward.3} parent=51 // pred_check
        %p3362 = pneg %p157
      $region58: #{basic_block_forward.3} parent=51 // pred_check_branch
        %3364 = sbr.rel (%p3362) target = $region60
      $region59: #{basic_block_forward.3} parent=51 // pred_region
        %p3365 = scmp.lt.s32.totalorder %s19, 1
        %s3366 = scalar_select %p3365, %s19, 1
        %s3367 = scalar_lea.vmem %s5, %s3366
      $region60: #{basic_block_forward.3} parent=51 // pred_fallthru
        _
      // Predicated region
      $region61: #{basic_block_forward.3} parent=51 // pred_check
        %p3368 = pneg %p183
      $region62: #{basic_block_forward.3} parent=51 // pred_check_branch
        %3370 = sbr.rel (%p3368) target = $region64
      $region63: #{basic_block_forward.3} parent=51 // pred_region
        %p3371 = scmp.lt.s32.totalorder %s19, 1
        %s3372 = scalar_select %p3371, %s19, 1
        %s3373 = scalar_lea.vmem %s6, %s3372
      $region64: #{basic_block_forward.3} parent=51 // pred_fallthru
        _
    $region52: #{basic_block_forward.3} parent=5 // pred_fallthru
      _
  $region6: #{basic_block_forward.3} parent=0 // loop_footer
    %s17 = sadd.s32 1, %s13
  $region7: #{basic_block_forward.3} parent=0 // loop_footer_branch
    %12 = sbr.rel target = $region3
  $region8: #{basic_block_forward.3} parent=0 // loop_exit
    _

</llo_original>
